<compile_context>
chip_gen: v5e
topology: v5e:2x2
jax: 0.10.0
libtpu: 0.0.40
codegen_flags: <defaults>
</compile_context>

<pallas_src>
import functools
import numpy as np

import jax
import jax.numpy as jnp
from jax.experimental import pallas as pl
from jax.experimental.pallas import tpu as pltpu


# ----------------------------------------------------------------------------
# Windowing helpers (XLA glue: pure reshapes / transposes)
# ----------------------------------------------------------------------------
def window_partition_3d(x, window_size):
    B, T, H, W, C = x.shape
    wt, wh, ww = window_size
    x = x.reshape(B, T // wt, wt, H // wh, wh, W // ww, ww, C)
    x = jnp.transpose(x, (0, 1, 3, 5, 2, 4, 6, 7))
    return x.reshape(-1, wt * wh * ww, C)


def window_reverse_3d(windows, window_size, B, T, H, W):
    wt, wh, ww = window_size
    C = windows.shape[-1]
    x = windows.reshape(B, T // wt, H // wh, W // ww, wt, wh, ww, C)
    x = jnp.transpose(x, (0, 1, 4, 2, 5, 3, 6, 7))
    return x.reshape(B, T, H, W, C)


# ----------------------------------------------------------------------------
# In-kernel math helpers (f32 VPU math; bf16 only into the MXU)
# ----------------------------------------------------------------------------
def _erf_approx(x):
    # A&S 7.1.26, |err| < 1.5e-7 -> matches torch.nn.GELU (exact erf) to f32 noise.
    p_ = 0.3275911
    a1, a2, a3, a4, a5 = 0.254829592, -0.284496736, 1.421413741, -1.453152027, 1.061405429
    ax = jnp.abs(x)
    t = 1.0 / (1.0 + p_ * ax)
    poly = ((((a5 * t + a4) * t + a3) * t + a2) * t + a1) * t
    y = 1.0 - poly * jnp.exp(-ax * ax)
    return jnp.where(x < 0.0, -y, y)


def _gelu_erf(x):
    return 0.5 * x * (1.0 + _erf_approx(x * 0.7071067811865476))


def _layernorm(x, gamma, beta, eps):
    mu = jnp.mean(x, axis=-1, keepdims=True)
    var = jnp.mean(jnp.square(x - mu), axis=-1, keepdims=True)
    return (x - mu) * jax.lax.rsqrt(var + eps) * gamma + beta


# ----------------------------------------------------------------------------
# Fused Swin block kernel (one grid step = w_blk whole windows)
# ----------------------------------------------------------------------------
def swin_block_kernel(*refs, num_heads, has_mask, eps):
    if has_mask:
        (xw_ref, mask_ref, g1_ref, b1_ref, wqkv_ref, bqkv_ref, bias_ref,
         wp_ref, bp_ref, g2_ref, b2_ref, w1_ref, c1_ref, w2_ref, c2_ref,
         out_ref) = refs
    else:
        (xw_ref, g1_ref, b1_ref, wqkv_ref, bqkv_ref, bias_ref,
         wp_ref, bp_ref, g2_ref, b2_ref, w1_ref, c1_ref, w2_ref, c2_ref,
         out_ref) = refs
        mask_ref = None

    Wb, N, C = xw_ref.shape
    Hh = num_heads
    hd = C // Hh
    M = Wb * N

    x = xw_ref[...].reshape(M, C)                          # f32 residual input
    xn = _layernorm(x, g1_ref[0], b1_ref[0], eps)          # norm1 (per-token)

    # Fused QKV projection on the MXU (bf16 operands, f32 accumulate).
    # The 1/sqrt(hd) attention scale is folded into the Q columns of wqkv/bqkv.
    qkv = jnp.dot(xn.astype(jnp.bfloat16), wqkv_ref[...],
                  preferred_element_type=jnp.float32) + bqkv_ref[0]   # (M, 3C)

    # Keep only bf16 copies of q/k/v alive past this point.
    q = qkv[:, 0 * C:1 * C].astype(jnp.bfloat16)
    k = qkv[:, 1 * C:2 * C].astype(jnp.bfloat16)
    v = qkv[:, 2 * C:3 * C].astype(jnp.bfloat16)

    def to_heads(t):   # (M, C) -> (Wb*H, N, hd): head-major batches for one einsum
        parts = [t[:, h * hd:(h + 1) * hd].reshape(Wb, N, hd) for h in range(Hh)]
        return jnp.stack(parts, axis=1).reshape(Wb * Hh, N, hd)

    qh, kh, vh = to_heads(q), to_heads(k), to_heads(v)

    # Batched heads: ONE QK^T, one fused (bias + mask) add, one softmax, one PV.
    att = jnp.einsum('bnd,bmd->bnm', qh, kh,
                     preferred_element_type=jnp.float32)              # (Wb*H, N, N)
    att = att.reshape(Wb, Hh, N, N)
    bias = bias_ref[...].astype(jnp.float32)[None]                    # (1, H, N, N)
    if has_mask:
        bias = bias + mask_ref[...].astype(jnp.float32)[:, None]      # + shift mask
    att = att + bias

    att = att - jnp.max(att, axis=-1, keepdims=True)
    p = jnp.exp(att)
    # approx reciprocal runs on the EUP slot; ~2^-12 rel err (fine for inference)
    p = p * pl.reciprocal(jnp.sum(p, axis=-1, keepdims=True), approx=True)

    o = jnp.einsum('bnm,bmd->bnd',
                   p.reshape(Wb * Hh, N, N).astype(jnp.bfloat16), vh,
                   preferred_element_type=jnp.float32)                # (Wb*H, N, hd)
    o = o.reshape(Wb, Hh, N, hd)
    # Merge heads back into the channel dim -> single K=C output projection.
    o = jnp.concatenate([o[:, h] for h in range(Hh)], axis=-1)        # (Wb, N, C)
    z = jnp.dot(o.reshape(M, C).astype(jnp.bfloat16), wp_ref[...],
                preferred_element_type=jnp.float32) + bp_ref[0]       # attn output

    # MLP branch fused in (z never leaves VMEM).
    y = z + x
    yn = _layernorm(y, g2_ref[0], b2_ref[0], eps)                     # norm2
    h1 = jnp.dot(yn.astype(jnp.bfloat16), w1_ref[...],
                 preferred_element_type=jnp.float32) + c1_ref[0]
    h1 = _gelu_erf(h1)
    o2 = jnp.dot(h1.astype(jnp.bfloat16), w2_ref[...],
                 preferred_element_type=jnp.float32) + c2_ref[0]

    # NOTE: matches the PyTorch spec exactly: out = x + mlp(norm2(z + x)).
    # The attention branch z feeds ONLY through norm2 (not the direct residual).
    out = x + o2
    out_ref[...] = out.reshape(Wb, N, C).astype(out_ref.dtype)


# ----------------------------------------------------------------------------
# Chip-aware tiling
# ----------------------------------------------------------------------------
def _vmem_capacity_bytes():
    try:
        return int(pltpu.get_tpu_info().vmem_capacity_bytes)
    except Exception:
        return 64 * 1024 * 1024          # conservative (v7x-sized) fallback


def _step_vmem_bytes(w_blk, N, C, hidden, heads):
    """Rough per-grid-step VMEM footprint of the fused block kernel (f32)."""
    toks = w_blk * N
    return 4 * (2 * 2 * toks * C              # x / out blocks, double-buffered
                + toks * 3 * C                # f32 qkv
                + 2 * w_blk * heads * N * N   # att logits + probabilities
                + toks * hidden               # MLP hidden
                + 4 * toks * C)               # slack for casts / relayouts


def _pick_window_block(nW, B, N, C, hidden, heads, vmem_cap):
    """Largest divisor of nW that fits the VMEM budget, preferring >= 4 grid
    steps (v7x has 2 TensorCores; >= 2 steps per core keeps DMA overlapped)."""
    Wt = B * nW
    budget = int(0.35 * vmem_cap)             # headroom for weights + scratch
    divs = [d for d in range(1, nW + 1) if nW % d == 0]
    fits = [d for d in divs if _step_vmem_bytes(d, N, C, hidden, heads) <= budget] or [1]

    def score(d):
        steps = Wt // d
        return (steps >= 4, steps >= 2, d)
    return max(fits, key=score)


# ----------------------------------------------------------------------------
# Pallas wrapper: one call per Swin block
# ----------------------------------------------------------------------------
def fused_swin_block(xw, mask, p, num_heads, nW, eps=1e-5):
    Wt, N, C = xw.shape
    B = Wt // nW
    hidden = p["w1"].shape[1]
    vmem_cap = _vmem_capacity_bytes()
    w_blk = _pick_window_block(nW, B, N, C, hidden, num_heads, vmem_cap)
    grid_steps = Wt // w_blk
    mask_blocks = nW // w_blk

    kernel = functools.partial(swin_block_kernel, num_heads=num_heads,
                               has_mask=mask is not None, eps=eps)

    const_specs = [
        pl.BlockSpec((1, C), lambda i: (0, 0)),                  # norm1 gamma
        pl.BlockSpec((1, C), lambda i: (0, 0)),                  # norm1 beta
        pl.BlockSpec((C, 3 * C), lambda i: (0, 0)),              # qkv weight (bf16, scale folded)
        pl.BlockSpec((1, 3 * C), lambda i: (0, 0)),              # qkv bias (scale folded)
        pl.BlockSpec((num_heads, N, N), lambda i: (0, 0, 0)),    # rel-pos bias (bf16)
        pl.BlockSpec((C, C), lambda i: (0, 0)),                  # proj weight (bf16)
        pl.BlockSpec((1, C), lambda i: (0, 0)),                  # proj bias
        pl.BlockSpec((1, C), lambda i: (0, 0)),                  # norm2 gamma
        pl.BlockSpec((1, C), lambda i: (0, 0)),                  # norm2 beta
        pl.BlockSpec((C, hidden), lambda i: (0, 0)),             # mlp w1 (bf16)
        pl.BlockSpec((1, hidden), lambda i: (0, 0)),             # mlp b1
        pl.BlockSpec((hidden, C), lambda i: (0, 0)),             # mlp w2 (bf16)
        pl.BlockSpec((1, C), lambda i: (0, 0)),                  # mlp b2
    ]
    x_spec = pl.BlockSpec((w_blk, N, C), lambda i: (i, 0, 0))
    out_spec = pl.BlockSpec((w_blk, N, C), lambda i: (i, 0, 0))

    weights = (p["g1"], p["b1"], p["wqkv"], p["bqkv"], p["rel_bias"], p["wproj"],
               p["bproj"], p["g2"], p["b2"], p["w1"], p["c1"], p["w2"], p["c2"])
    if mask is not None:
        in_specs = ([x_spec,
                     pl.BlockSpec((w_blk, N, N),
                                  lambda i: (i % mask_blocks, 0, 0))]  # native (nW,N,N) mask
                    + const_specs)
        args = (xw, mask) + weights
    else:
        in_specs = [x_spec] + const_specs
        args = (xw,) + weights

    # Advisory cost estimate so XLA schedules the roll/partition glue sensibly.
    Mtot = Wt * N
    flops = (2 * Mtot * C * 3 * C + 4 * Mtot * N * C + 2 * Mtot * C * C
             + 4 * Mtot * C * hidden)
    trans = Wt * num_heads * N * N + Mtot * hidden + 3 * Mtot
    weight_bytes = 2 * (3 * C * C + C * C + 2 * C * hidden) + 4 * (9 * C + hidden)
    const_bytes = weight_bytes + 2 * num_heads * N * N \
        + (2 * w_blk * N * N if mask is not None else 0)
    bytes_acc = 8 * Mtot * C + grid_steps * const_bytes

    return pl.pallas_call(
        kernel,
        out_shape=jax.ShapeDtypeStruct((Wt, N, C), xw.dtype),
        grid=(grid_steps,),
        in_specs=in_specs,
        out_specs=out_spec,
        compiler_params=pltpu.CompilerParams(
            dimension_semantics=("parallel",),
            vmem_limit_bytes=int(vmem_cap * 3 // 4)),
        cost_estimate=pl.CostEstimate(flops=int(flops), transcendentals=int(trans),
                                      bytes_accessed=int(bytes_acc)),
    )(*args)


# ----------------------------------------------------------------------------
# SwinTransformerBlock / RSTB forward (glue + fused kernel)
# ----------------------------------------------------------------------------
def swin_block_forward(x, attn_mask, p, window_size, shift_size, num_heads):
    B, T, H, W, C = x.shape
    wt, wh, ww = window_size
    nW = (T // wt) * (H // wh) * (W // ww)
    shifted = any(s > 0 for s in shift_size)

    xs = x
    if shifted:
        xs = jnp.roll(xs, shift=(-shift_size[0], -shift_size[1], -shift_size[2]),
                      axis=(1, 2, 3))
    xw = window_partition_3d(xs, window_size)                     # (B*nW, N, C)

    ow = fused_swin_block(xw, attn_mask if shifted else None, p, num_heads, nW)

    out = window_reverse_3d(ow, window_size, B, T, H, W)
    if shifted:
        out = jnp.roll(out, shift=shift_size, axis=(1, 2, 3))
    return out


def rstb_forward(x, attn_mask, block_params, window_size, num_heads):
    h = x
    for i, p in enumerate(block_params):
        # Matches the PyTorch module: shift = (wt, wh // 2, ww // 2) on odd blocks.
        shift = (0, 0, 0) if i % 2 == 0 else (
            window_size[0], window_size[1] // 2, window_size[2] // 2)
        h = swin_block_forward(h, attn_mask, p, window_size, shift, num_heads)
    return h + x


# ----------------------------------------------------------------------------
# Parameter / mask construction (deterministic, synthetic)
# ----------------------------------------------------------------------------
def _relative_position_index_3d(window_size):
    wt, wh, ww = window_size
    coords = np.stack(np.meshgrid(np.arange(wt), np.arange(wh), np.arange(ww),
                                  indexing="ij")).reshape(3, -1)
    rel = (coords[:, :, None] - coords[:, None, :]).transpose(1, 2, 0)
    rel[:, :, 0] += wt - 1
    rel[:, :, 1] += wh - 1
    rel[:, :, 2] += ww - 1
    rel[:, :, 0] *= (2 * wh - 1) * (2 * ww - 1)
    rel[:, :, 1] *= (2 * ww - 1)
    return rel.sum(-1)                                   # (N, N) int


def init_block_params(key, dim, num_heads, window_size, mlp_ratio, qkv_bias):
    wt, wh, ww = window_size
    N = wt * wh * ww
    hd = dim // num_heads
    hidden = int(dim * mlp_ratio)
    scale = hd ** -0.5
    f32, bf16 = jnp.float32, jnp.bfloat16
    ks = jax.random.split(key, 5)

    table = jax.random.normal(
        ks[0], ((2 * wt - 1) * (2 * wh - 1) * (2 * ww - 1), num_heads), dtype=f32) * 0.02
    rel_idx = _relative_position_index_3d(window_size).reshape(-1)
    rel_bias = jnp.transpose(table[rel_idx].reshape(N, N, num_heads), (2, 0, 1))

    wqkv = jax.random.normal(ks[1], (dim, 3 * dim), f32) * 0.02
    bqkv = jnp.zeros((1, 3 * dim), f32)      # qkv_bias=True -> bias init 0
    # Fold the 1/sqrt(hd) attention scale into the Q projection (one-time transform).
    wqkv = wqkv.at[:, :dim].multiply(scale)
    bqkv = bqkv.at[:, :dim].multiply(scale)

    wproj = jax.random.normal(ks[2], (dim, dim), f32) * 0.02

    return dict(
        g1=jnp.ones((1, dim), f32), b1=jnp.zeros((1, dim), f32),
        wqkv=wqkv.astype(bf16), bqkv=bqkv,
        rel_bias=rel_bias.astype(bf16),
        wproj=wproj.astype(bf16), bproj=jnp.zeros((1, dim), f32),
        g2=jnp.ones((1, dim), f32), b2=jnp.zeros((1, dim), f32),
        w1=(jax.random.normal(ks[3], (dim, hidden), f32) * 0.02).astype(bf16),
        c1=jnp.zeros((1, hidden), f32),
        w2=(jax.random.normal(ks[4], (hidden, dim), f32) * 0.02).astype(bf16),
        c2=jnp.zeros((1, dim), f32),
    )


def compute_attn_mask(T, H, W, window_size, shift_size):
    wt, wh, ww = window_size
    st, sh, sw = shift_size

    def slices(w, s):
        return (slice(0, -w), slice(-w, -s), slice(-s, None)) if s > 0 else (slice(None),)

    img = np.zeros((1, T, H, W, 1), np.float32)
    cnt = 0
    for ts in slices(wt, st):
        for hs in slices(wh, sh):
            for ws_ in slices(ww, sw):
                img[:, ts, hs, ws_, :] = cnt
                cnt += 1
    mw = np.asarray(window_partition_3d(jnp.asarray(img), window_size))[..., 0]  # (nW, N)
    diff = mw[:, None, :] - mw[:, :, None]
    attn_mask = np.where(diff != 0, -100.0, 0.0).astype(np.float32)
    return jnp.asarray(attn_mask, dtype=jnp.bfloat16)     # exact in bf16 (0 / -100)


# ----------------------------------------------------------------------------
if __name__ == "__main__":
    B, T, H, W, C = 2, 4, 8, 8, 32
    window_size = (2, 4, 4)
    num_heads = 4
    depth = 2
    mlp_ratio = 2.0

    key = jax.random.PRNGKey(0)
    kx, kp = jax.random.split(key)
    x = jax.random.normal(kx, (B, T, H, W, C), dtype=jnp.float32)

    block_params = [
        init_block_params(k, C, num_heads, window_size, mlp_ratio, qkv_bias=True)
        for k in jax.random.split(kp, depth)
    ]

    shift = (window_size[0], window_size[1] // 2, window_size[2] // 2)
    attn_mask = compute_attn_mask(T, H, W, window_size, shift)    # (nW, N, N) bf16

    fwd = jax.jit(functools.partial(rstb_forward,
                                    window_size=window_size, num_heads=num_heads))
    out = fwd(x, attn_mask, block_params)
    out = jax.block_until_ready(out)
    assert out.shape == (B, T, H, W, C) and out.dtype == jnp.float32
    assert bool(jnp.all(jnp.isfinite(out)))
    print("KERNEL_OK")
</pallas_src>

<mosaic_0001>
module attributes {stable_mosaic.version = 11 : i64} {
  func.func @swin_block_kernel(%arg0: i32, %arg1: memref<4x32x32xf32, #tpu.memory_space<vmem>>, %arg2: memref<1x32xf32, #tpu.memory_space<vmem>>, %arg3: memref<1x32xf32, #tpu.memory_space<vmem>>, %arg4: memref<32x96xbf16, #tpu.memory_space<vmem>>, %arg5: memref<1x96xf32, #tpu.memory_space<vmem>>, %arg6: memref<4x32x32xbf16, #tpu.memory_space<vmem>>, %arg7: memref<32x32xbf16, #tpu.memory_space<vmem>>, %arg8: memref<1x32xf32, #tpu.memory_space<vmem>>, %arg9: memref<1x32xf32, #tpu.memory_space<vmem>>, %arg10: memref<1x32xf32, #tpu.memory_space<vmem>>, %arg11: memref<32x64xbf16, #tpu.memory_space<vmem>>, %arg12: memref<1x64xf32, #tpu.memory_space<vmem>>, %arg13: memref<64x32xbf16, #tpu.memory_space<vmem>>, %arg14: memref<1x32xf32, #tpu.memory_space<vmem>>, %arg15: memref<4x32x32xf32, #tpu.memory_space<vmem>>) attributes {dimension_semantics = [#tpu.dimension_semantics<parallel>], iteration_bounds = array<i64: 4>, scalar_prefetch = 0 : i64, scratch_operands = 0 : i64, tpu.core_type = #tpu.core_type<tc>, window_params = [{transform_indices = @transform_0, window_bounds = array<i64: 4, 32, 32>}, {pipeline_mode = #tpu.pipeline_mode<synchronous>, transform_indices = @transform_1, window_bounds = array<i64: 1, 32>}, {pipeline_mode = #tpu.pipeline_mode<synchronous>, transform_indices = @transform_2, window_bounds = array<i64: 1, 32>}, {pipeline_mode = #tpu.pipeline_mode<synchronous>, transform_indices = @transform_3, window_bounds = array<i64: 32, 96>}, {pipeline_mode = #tpu.pipeline_mode<synchronous>, transform_indices = @transform_4, window_bounds = array<i64: 1, 96>}, {pipeline_mode = #tpu.pipeline_mode<synchronous>, transform_indices = @transform_5, window_bounds = array<i64: 4, 32, 32>}, {pipeline_mode = #tpu.pipeline_mode<synchronous>, transform_indices = @transform_6, window_bounds = array<i64: 32, 32>}, {pipeline_mode = #tpu.pipeline_mode<synchronous>, transform_indices = @transform_7, window_bounds = array<i64: 1, 32>}, {pipeline_mode = #tpu.pipeline_mode<synchronous>, transform_indices = @transform_8, window_bounds = array<i64: 1, 32>}, {pipeline_mode = #tpu.pipeline_mode<synchronous>, transform_indices = @transform_9, window_bounds = array<i64: 1, 32>}, {pipeline_mode = #tpu.pipeline_mode<synchronous>, transform_indices = @transform_10, window_bounds = array<i64: 32, 64>}, {pipeline_mode = #tpu.pipeline_mode<synchronous>, transform_indices = @transform_11, window_bounds = array<i64: 1, 64>}, {pipeline_mode = #tpu.pipeline_mode<synchronous>, transform_indices = @transform_12, window_bounds = array<i64: 64, 32>}, {pipeline_mode = #tpu.pipeline_mode<synchronous>, transform_indices = @transform_13, window_bounds = array<i64: 1, 32>}, {transform_indices = @transform_14, window_bounds = array<i64: 4, 32, 32>}]} {
    %c0 = arith.constant 0 : index
    %c0_0 = arith.constant 0 : index
    %c0_1 = arith.constant 0 : index
    %0 = vector.load %arg1[%c0, %c0_0, %c0_1] : memref<4x32x32xf32, #tpu.memory_space<vmem>>, vector<4x32x32xf32>
    %1 = vector.shape_cast %0 : vector<4x32x32xf32> to vector<128x32xf32>
    %c0_2 = arith.constant 0 : index
    %c0_3 = arith.constant 0 : index
    %2 = vector.load %arg2[%c0_2, %c0_3] : memref<1x32xf32, #tpu.memory_space<vmem>>, vector<1x32xf32>
    %3 = vector.shape_cast %2 : vector<1x32xf32> to vector<32xf32>
    %c0_4 = arith.constant 0 : index
    %c0_5 = arith.constant 0 : index
    %4 = vector.load %arg3[%c0_4, %c0_5] : memref<1x32xf32, #tpu.memory_space<vmem>>, vector<1x32xf32>
    %5 = vector.shape_cast %4 : vector<1x32xf32> to vector<32xf32>
    %cst = arith.constant dense<0.000000e+00> : vector<128xf32>
    %6 = vector.multi_reduction <add>, %1, %cst [1] : vector<128x32xf32> to vector<128xf32>
    %7 = vector.shape_cast %6 : vector<128xf32> to vector<128x1xf32>
    %cst_6 = arith.constant 3.200000e+01 : f32
    %8 = vector.broadcast %cst_6 : f32 to vector<128x1xf32>
    %9 = arith.divf %7, %8 : vector<128x1xf32>
    %10 = vector.broadcast %9 : vector<128x1xf32> to vector<128x32xf32>
    %11 = arith.subf %1, %10 : vector<128x32xf32>
    %12 = arith.mulf %11, %11 : vector<128x32xf32>
    %cst_7 = arith.constant dense<0.000000e+00> : vector<128xf32>
    %13 = vector.multi_reduction <add>, %12, %cst_7 [1] : vector<128x32xf32> to vector<128xf32>
    %14 = vector.shape_cast %13 : vector<128xf32> to vector<128x1xf32>
    %cst_8 = arith.constant 3.200000e+01 : f32
    %15 = vector.broadcast %cst_8 : f32 to vector<128x1xf32>
    %16 = arith.divf %14, %15 : vector<128x1xf32>
    %17 = vector.broadcast %9 : vector<128x1xf32> to vector<128x32xf32>
    %18 = arith.subf %1, %17 : vector<128x32xf32>
    %cst_9 = arith.constant 9.99999974E-6 : f32
    %19 = vector.broadcast %cst_9 : f32 to vector<128x1xf32>
    %20 = arith.addf %16, %19 : vector<128x1xf32>
    %21 = math.rsqrt %20 : vector<128x1xf32>
    %22 = vector.broadcast %21 : vector<128x1xf32> to vector<128x32xf32>
    %23 = arith.mulf %18, %22 : vector<128x32xf32>
    %24 = vector.shape_cast %3 : vector<32xf32> to vector<1x32xf32>
    %25 = vector.broadcast %24 : vector<1x32xf32> to vector<128x32xf32>
    %26 = arith.mulf %23, %25 : vector<128x32xf32>
    %27 = vector.shape_cast %5 : vector<32xf32> to vector<1x32xf32>
    %28 = vector.broadcast %27 : vector<1x32xf32> to vector<128x32xf32>
    %29 = arith.addf %26, %28 : vector<128x32xf32>
    %30 = arith.truncf %29 : vector<128x32xf32> to vector<128x32xbf16>
    %c0_10 = arith.constant 0 : index
    %c0_11 = arith.constant 0 : index
    %31 = vector.load %arg4[%c0_10, %c0_11] : memref<32x96xbf16, #tpu.memory_space<vmem>>, vector<32x96xbf16>
    %cst_12 = arith.constant dense<0.000000e+00> : vector<128x96xf32>
    %32 = tpu.matmul %30, %31, %cst_12 {dimension_numbers = #tpu.dot_dimension_numbers<[1], [0], [0], [1], [0, 0, 1, 1], [], []>} : vector<128x32xbf16>, vector<32x96xbf16>, vector<128x96xf32> -> vector<128x96xf32>
    %c0_13 = arith.constant 0 : index
    %c0_14 = arith.constant 0 : index
    %33 = vector.load %arg5[%c0_13, %c0_14] : memref<1x96xf32, #tpu.memory_space<vmem>>, vector<1x96xf32>
    %34 = vector.shape_cast %33 : vector<1x96xf32> to vector<96xf32>
    %35 = vector.shape_cast %34 : vector<96xf32> to vector<1x96xf32>
    %36 = vector.broadcast %35 : vector<1x96xf32> to vector<128x96xf32>
    %37 = arith.addf %32, %36 : vector<128x96xf32>
    %38 = vector.extract_strided_slice %37 {offsets = [0, 0], sizes = [128, 32], strides = [1, 1]} : vector<128x96xf32> to vector<128x32xf32>
    %39 = arith.truncf %38 : vector<128x32xf32> to vector<128x32xbf16>
    %40 = vector.extract_strided_slice %37 {offsets = [0, 32], sizes = [128, 32], strides = [1, 1]} : vector<128x96xf32> to vector<128x32xf32>
    %41 = arith.truncf %40 : vector<128x32xf32> to vector<128x32xbf16>
    %42 = vector.extract_strided_slice %37 {offsets = [0, 64], sizes = [128, 32], strides = [1, 1]} : vector<128x96xf32> to vector<128x32xf32>
    %43 = arith.truncf %42 : vector<128x32xf32> to vector<128x32xbf16>
    %44 = vector.extract_strided_slice %39 {offsets = [0, 0], sizes = [128, 8], strides = [1, 1]} : vector<128x32xbf16> to vector<128x8xbf16>
    %45 = vector.shape_cast %44 : vector<128x8xbf16> to vector<4x32x8xbf16>
    %46 = vector.extract_strided_slice %39 {offsets = [0, 8], sizes = [128, 8], strides = [1, 1]} : vector<128x32xbf16> to vector<128x8xbf16>
    %47 = vector.shape_cast %46 : vector<128x8xbf16> to vector<4x32x8xbf16>
    %48 = vector.extract_strided_slice %39 {offsets = [0, 16], sizes = [128, 8], strides = [1, 1]} : vector<128x32xbf16> to vector<128x8xbf16>
    %49 = vector.shape_cast %48 : vector<128x8xbf16> to vector<4x32x8xbf16>
    %50 = vector.extract_strided_slice %39 {offsets = [0, 24], sizes = [128, 8], strides = [1, 1]} : vector<128x32xbf16> to vector<128x8xbf16>
    %51 = vector.shape_cast %50 : vector<128x8xbf16> to vector<4x32x8xbf16>
    %52 = vector.shape_cast %45 : vector<4x32x8xbf16> to vector<4x1x32x8xbf16>
    %53 = vector.shape_cast %47 : vector<4x32x8xbf16> to vector<4x1x32x8xbf16>
    %54 = vector.shape_cast %49 : vector<4x32x8xbf16> to vector<4x1x32x8xbf16>
    %55 = vector.shape_cast %51 : vector<4x32x8xbf16> to vector<4x1x32x8xbf16>
    %56 = tpu.concatenate %52, %53, %54, %55 in 1 : vector<4x1x32x8xbf16>, vector<4x1x32x8xbf16>, vector<4x1x32x8xbf16>, vector<4x1x32x8xbf16> -> vector<4x4x32x8xbf16>
    %57 = vector.shape_cast %56 : vector<4x4x32x8xbf16> to vector<16x32x8xbf16>
    %58 = vector.extract_strided_slice %41 {offsets = [0, 0], sizes = [128, 8], strides = [1, 1]} : vector<128x32xbf16> to vector<128x8xbf16>
    %59 = vector.shape_cast %58 : vector<128x8xbf16> to vector<4x32x8xbf16>
    %60 = vector.extract_strided_slice %41 {offsets = [0, 8], sizes = [128, 8], strides = [1, 1]} : vector<128x32xbf16> to vector<128x8xbf16>
    %61 = vector.shape_cast %60 : vector<128x8xbf16> to vector<4x32x8xbf16>
    %62 = vector.extract_strided_slice %41 {offsets = [0, 16], sizes = [128, 8], strides = [1, 1]} : vector<128x32xbf16> to vector<128x8xbf16>
    %63 = vector.shape_cast %62 : vector<128x8xbf16> to vector<4x32x8xbf16>
    %64 = vector.extract_strided_slice %41 {offsets = [0, 24], sizes = [128, 8], strides = [1, 1]} : vector<128x32xbf16> to vector<128x8xbf16>
    %65 = vector.shape_cast %64 : vector<128x8xbf16> to vector<4x32x8xbf16>
    %66 = vector.shape_cast %59 : vector<4x32x8xbf16> to vector<4x1x32x8xbf16>
    %67 = vector.shape_cast %61 : vector<4x32x8xbf16> to vector<4x1x32x8xbf16>
    %68 = vector.shape_cast %63 : vector<4x32x8xbf16> to vector<4x1x32x8xbf16>
    %69 = vector.shape_cast %65 : vector<4x32x8xbf16> to vector<4x1x32x8xbf16>
    %70 = tpu.concatenate %66, %67, %68, %69 in 1 : vector<4x1x32x8xbf16>, vector<4x1x32x8xbf16>, vector<4x1x32x8xbf16>, vector<4x1x32x8xbf16> -> vector<4x4x32x8xbf16>
    %71 = vector.shape_cast %70 : vector<4x4x32x8xbf16> to vector<16x32x8xbf16>
    %72 = vector.extract_strided_slice %43 {offsets = [0, 0], sizes = [128, 8], strides = [1, 1]} : vector<128x32xbf16> to vector<128x8xbf16>
    %73 = vector.shape_cast %72 : vector<128x8xbf16> to vector<4x32x8xbf16>
    %74 = vector.extract_strided_slice %43 {offsets = [0, 8], sizes = [128, 8], strides = [1, 1]} : vector<128x32xbf16> to vector<128x8xbf16>
    %75 = vector.shape_cast %74 : vector<128x8xbf16> to vector<4x32x8xbf16>
    %76 = vector.extract_strided_slice %43 {offsets = [0, 16], sizes = [128, 8], strides = [1, 1]} : vector<128x32xbf16> to vector<128x8xbf16>
    %77 = vector.shape_cast %76 : vector<128x8xbf16> to vector<4x32x8xbf16>
    %78 = vector.extract_strided_slice %43 {offsets = [0, 24], sizes = [128, 8], strides = [1, 1]} : vector<128x32xbf16> to vector<128x8xbf16>
    %79 = vector.shape_cast %78 : vector<128x8xbf16> to vector<4x32x8xbf16>
    %80 = vector.shape_cast %73 : vector<4x32x8xbf16> to vector<4x1x32x8xbf16>
    %81 = vector.shape_cast %75 : vector<4x32x8xbf16> to vector<4x1x32x8xbf16>
    %82 = vector.shape_cast %77 : vector<4x32x8xbf16> to vector<4x1x32x8xbf16>
    %83 = vector.shape_cast %79 : vector<4x32x8xbf16> to vector<4x1x32x8xbf16>
    %84 = tpu.concatenate %80, %81, %82, %83 in 1 : vector<4x1x32x8xbf16>, vector<4x1x32x8xbf16>, vector<4x1x32x8xbf16>, vector<4x1x32x8xbf16> -> vector<4x4x32x8xbf16>
    %85 = vector.shape_cast %84 : vector<4x4x32x8xbf16> to vector<16x32x8xbf16>
    "tpu.trace_start"() <{level = 10 : i32, message = "bnd,bmd->bnm"}> : () -> ()
    %cst_15 = arith.constant dense<0.000000e+00> : vector<16x32x32xf32>
    %86 = tpu.matmul %57, %71, %cst_15 {dimension_numbers = #tpu.dot_dimension_numbers<[2], [2], [1], [1], [0, 0, 0, 1, 1, 1], [0], [0]>} : vector<16x32x8xbf16>, vector<16x32x8xbf16>, vector<16x32x32xf32> -> vector<16x32x32xf32>
    "tpu.trace_stop"() : () -> ()
    %87 = vector.shape_cast %86 : vector<16x32x32xf32> to vector<4x4x32x32xf32>
    %c0_16 = arith.constant 0 : index
    %c0_17 = arith.constant 0 : index
    %c0_18 = arith.constant 0 : index
    %88 = vector.load %arg6[%c0_16, %c0_17, %c0_18] : memref<4x32x32xbf16, #tpu.memory_space<vmem>>, vector<4x32x32xbf16>
    %89 = arith.extf %88 : vector<4x32x32xbf16> to vector<4x32x32xf32>
    %90 = vector.shape_cast %89 : vector<4x32x32xf32> to vector<1x4x32x32xf32>
    %91 = vector.broadcast %90 : vector<1x4x32x32xf32> to vector<4x4x32x32xf32>
    %92 = arith.addf %87, %91 : vector<4x4x32x32xf32>
    %cst_19 = arith.constant dense<0xFF800000> : vector<4x4x32xf32>
    %93 = vector.multi_reduction <maximumf>, %92, %cst_19 [3] : vector<4x4x32x32xf32> to vector<4x4x32xf32>
    %94 = vector.shape_cast %93 : vector<4x4x32xf32> to vector<4x4x32x1xf32>
    %95 = vector.broadcast %94 : vector<4x4x32x1xf32> to vector<4x4x32x32xf32>
    %96 = arith.subf %92, %95 : vector<4x4x32x32xf32>
    %97 = math.exp %96 : vector<4x4x32x32xf32>
    %cst_20 = arith.constant dense<0.000000e+00> : vector<4x4x32xf32>
    %98 = vector.multi_reduction <add>, %97, %cst_20 [3] : vector<4x4x32x32xf32> to vector<4x4x32xf32>
    %99 = vector.shape_cast %98 : vector<4x4x32xf32> to vector<4x4x32x1xf32>
    %100 = tpu.reciprocal %99 {approx = true} : vector<4x4x32x1xf32> -> vector<4x4x32x1xf32>
    %101 = vector.broadcast %100 : vector<4x4x32x1xf32> to vector<4x4x32x32xf32>
    %102 = arith.mulf %97, %101 : vector<4x4x32x32xf32>
    %103 = vector.shape_cast %102 : vector<4x4x32x32xf32> to vector<16x32x32xf32>
    %104 = arith.truncf %103 : vector<16x32x32xf32> to vector<16x32x32xbf16>
    "tpu.trace_start"() <{level = 10 : i32, message = "bnm,bmd->bnd"}> : () -> ()
    %cst_21 = arith.constant dense<0.000000e+00> : vector<16x32x8xf32>
    %105 = tpu.matmul %104, %85, %cst_21 {dimension_numbers = #tpu.dot_dimension_numbers<[2], [1], [1], [2], [0, 0, 0, 1, 1, 2], [0], [0]>} : vector<16x32x32xbf16>, vector<16x32x8xbf16>, vector<16x32x8xf32> -> vector<16x32x8xf32>
    "tpu.trace_stop"() : () -> ()
    %106 = vector.shape_cast %105 : vector<16x32x8xf32> to vector<4x4x32x8xf32>
    %107 = vector.extract_strided_slice %106 {offsets = [0, 0, 0, 0], sizes = [4, 1, 32, 8], strides = [1, 1, 1, 1]} : vector<4x4x32x8xf32> to vector<4x1x32x8xf32>
    %108 = vector.shape_cast %107 : vector<4x1x32x8xf32> to vector<4x32x8xf32>
    %109 = vector.extract_strided_slice %106 {offsets = [0, 1, 0, 0], sizes = [4, 1, 32, 8], strides = [1, 1, 1, 1]} : vector<4x4x32x8xf32> to vector<4x1x32x8xf32>
    %110 = vector.shape_cast %109 : vector<4x1x32x8xf32> to vector<4x32x8xf32>
    %111 = vector.extract_strided_slice %106 {offsets = [0, 2, 0, 0], sizes = [4, 1, 32, 8], strides = [1, 1, 1, 1]} : vector<4x4x32x8xf32> to vector<4x1x32x8xf32>
    %112 = vector.shape_cast %111 : vector<4x1x32x8xf32> to vector<4x32x8xf32>
    %113 = vector.extract_strided_slice %106 {offsets = [0, 3, 0, 0], sizes = [4, 1, 32, 8], strides = [1, 1, 1, 1]} : vector<4x4x32x8xf32> to vector<4x1x32x8xf32>
    %114 = vector.shape_cast %113 : vector<4x1x32x8xf32> to vector<4x32x8xf32>
    %115 = tpu.concatenate %108, %110, %112, %114 in 2 : vector<4x32x8xf32>, vector<4x32x8xf32>, vector<4x32x8xf32>, vector<4x32x8xf32> -> vector<4x32x32xf32>
    %116 = vector.shape_cast %115 : vector<4x32x32xf32> to vector<128x32xf32>
    %117 = arith.truncf %116 : vector<128x32xf32> to vector<128x32xbf16>
    %c0_22 = arith.constant 0 : index
    %c0_23 = arith.constant 0 : index
    %118 = vector.load %arg7[%c0_22, %c0_23] : memref<32x32xbf16, #tpu.memory_space<vmem>>, vector<32x32xbf16>
    %cst_24 = arith.constant dense<0.000000e+00> : vector<128x32xf32>
    %119 = tpu.matmul %117, %118, %cst_24 {dimension_numbers = #tpu.dot_dimension_numbers<[1], [0], [0], [1], [0, 0, 1, 1], [], []>} : vector<128x32xbf16>, vector<32x32xbf16>, vector<128x32xf32> -> vector<128x32xf32>
    %c0_25 = arith.constant 0 : index
    %c0_26 = arith.constant 0 : index
    %120 = vector.load %arg8[%c0_25, %c0_26] : memref<1x32xf32, #tpu.memory_space<vmem>>, vector<1x32xf32>
    %121 = vector.shape_cast %120 : vector<1x32xf32> to vector<32xf32>
    %122 = vector.shape_cast %121 : vector<32xf32> to vector<1x32xf32>
    %123 = vector.broadcast %122 : vector<1x32xf32> to vector<128x32xf32>
    %124 = arith.addf %119, %123 : vector<128x32xf32>
    %125 = arith.addf %124, %1 : vector<128x32xf32>
    %c0_27 = arith.constant 0 : index
    %c0_28 = arith.constant 0 : index
    %126 = vector.load %arg9[%c0_27, %c0_28] : memref<1x32xf32, #tpu.memory_space<vmem>>, vector<1x32xf32>
    %127 = vector.shape_cast %126 : vector<1x32xf32> to vector<32xf32>
    %c0_29 = arith.constant 0 : index
    %c0_30 = arith.constant 0 : index
    %128 = vector.load %arg10[%c0_29, %c0_30] : memref<1x32xf32, #tpu.memory_space<vmem>>, vector<1x32xf32>
    %129 = vector.shape_cast %128 : vector<1x32xf32> to vector<32xf32>
    %cst_31 = arith.constant dense<0.000000e+00> : vector<128xf32>
    %130 = vector.multi_reduction <add>, %125, %cst_31 [1] : vector<128x32xf32> to vector<128xf32>
    %131 = vector.shape_cast %130 : vector<128xf32> to vector<128x1xf32>
    %cst_32 = arith.constant 3.200000e+01 : f32
    %132 = vector.broadcast %cst_32 : f32 to vector<128x1xf32>
    %133 = arith.divf %131, %132 : vector<128x1xf32>
    %134 = vector.broadcast %133 : vector<128x1xf32> to vector<128x32xf32>
    %135 = arith.subf %125, %134 : vector<128x32xf32>
    %136 = arith.mulf %135, %135 : vector<128x32xf32>
    %cst_33 = arith.constant dense<0.000000e+00> : vector<128xf32>
    %137 = vector.multi_reduction <add>, %136, %cst_33 [1] : vector<128x32xf32> to vector<128xf32>
    %138 = vector.shape_cast %137 : vector<128xf32> to vector<128x1xf32>
    %cst_34 = arith.constant 3.200000e+01 : f32
    %139 = vector.broadcast %cst_34 : f32 to vector<128x1xf32>
    %140 = arith.divf %138, %139 : vector<128x1xf32>
    %141 = vector.broadcast %133 : vector<128x1xf32> to vector<128x32xf32>
    %142 = arith.subf %125, %141 : vector<128x32xf32>
    %cst_35 = arith.constant 9.99999974E-6 : f32
    %143 = vector.broadcast %cst_35 : f32 to vector<128x1xf32>
    %144 = arith.addf %140, %143 : vector<128x1xf32>
    %145 = math.rsqrt %144 : vector<128x1xf32>
    %146 = vector.broadcast %145 : vector<128x1xf32> to vector<128x32xf32>
    %147 = arith.mulf %142, %146 : vector<128x32xf32>
    %148 = vector.shape_cast %127 : vector<32xf32> to vector<1x32xf32>
    %149 = vector.broadcast %148 : vector<1x32xf32> to vector<128x32xf32>
    %150 = arith.mulf %147, %149 : vector<128x32xf32>
    %151 = vector.shape_cast %129 : vector<32xf32> to vector<1x32xf32>
    %152 = vector.broadcast %151 : vector<1x32xf32> to vector<128x32xf32>
    %153 = arith.addf %150, %152 : vector<128x32xf32>
    %154 = arith.truncf %153 : vector<128x32xf32> to vector<128x32xbf16>
    %c0_36 = arith.constant 0 : index
    %c0_37 = arith.constant 0 : index
    %155 = vector.load %arg11[%c0_36, %c0_37] : memref<32x64xbf16, #tpu.memory_space<vmem>>, vector<32x64xbf16>
    %cst_38 = arith.constant dense<0.000000e+00> : vector<128x64xf32>
    %156 = tpu.matmul %154, %155, %cst_38 {dimension_numbers = #tpu.dot_dimension_numbers<[1], [0], [0], [1], [0, 0, 1, 1], [], []>} : vector<128x32xbf16>, vector<32x64xbf16>, vector<128x64xf32> -> vector<128x64xf32>
    %c0_39 = arith.constant 0 : index
    %c0_40 = arith.constant 0 : index
    %157 = vector.load %arg12[%c0_39, %c0_40] : memref<1x64xf32, #tpu.memory_space<vmem>>, vector<1x64xf32>
    %158 = vector.shape_cast %157 : vector<1x64xf32> to vector<64xf32>
    %159 = vector.shape_cast %158 : vector<64xf32> to vector<1x64xf32>
    %160 = vector.broadcast %159 : vector<1x64xf32> to vector<128x64xf32>
    %161 = arith.addf %156, %160 : vector<128x64xf32>
    %cst_41 = arith.constant 5.000000e-01 : f32
    %162 = vector.broadcast %cst_41 : f32 to vector<128x64xf32>
    %163 = arith.mulf %162, %161 : vector<128x64xf32>
    %cst_42 = arith.constant 0.707106769 : f32
    %164 = vector.broadcast %cst_42 : f32 to vector<128x64xf32>
    %165 = arith.mulf %161, %164 : vector<128x64xf32>
    %166 = math.absf %165 : vector<128x64xf32>
    %cst_43 = arith.constant 0.327591091 : f32
    %167 = vector.broadcast %cst_43 : f32 to vector<128x64xf32>
    %168 = arith.mulf %167, %166 : vector<128x64xf32>
    %cst_44 = arith.constant 1.000000e+00 : f32
    %169 = vector.broadcast %cst_44 : f32 to vector<128x64xf32>
    %170 = arith.addf %169, %168 : vector<128x64xf32>
    %cst_45 = arith.constant 1.000000e+00 : f32
    %171 = vector.broadcast %cst_45 : f32 to vector<128x64xf32>
    %172 = arith.divf %171, %170 : vector<128x64xf32>
    %cst_46 = arith.constant 1.06140542 : f32
    %173 = vector.broadcast %cst_46 : f32 to vector<128x64xf32>
    %174 = arith.mulf %173, %172 : vector<128x64xf32>
    %cst_47 = arith.constant -1.45315206 : f32
    %175 = vector.broadcast %cst_47 : f32 to vector<128x64xf32>
    %176 = arith.addf %174, %175 : vector<128x64xf32>
    %177 = arith.mulf %176, %172 : vector<128x64xf32>
    %cst_48 = arith.constant 1.42141378 : f32
    %178 = vector.broadcast %cst_48 : f32 to vector<128x64xf32>
    %179 = arith.addf %177, %178 : vector<128x64xf32>
    %180 = arith.mulf %179, %172 : vector<128x64xf32>
    %cst_49 = arith.constant -0.284496725 : f32
    %181 = vector.broadcast %cst_49 : f32 to vector<128x64xf32>
    %182 = arith.addf %180, %181 : vector<128x64xf32>
    %183 = arith.mulf %182, %172 : vector<128x64xf32>
    %cst_50 = arith.constant 0.254829586 : f32
    %184 = vector.broadcast %cst_50 : f32 to vector<128x64xf32>
    %185 = arith.addf %183, %184 : vector<128x64xf32>
    %186 = arith.mulf %185, %172 : vector<128x64xf32>
    %cst_51 = arith.constant 0.000000e+00 : f32
    %187 = vector.broadcast %cst_51 : f32 to vector<128x64xf32>
    %188 = arith.subf %187, %166 : vector<128x64xf32>
    %189 = arith.mulf %188, %166 : vector<128x64xf32>
    %190 = math.exp %189 : vector<128x64xf32>
    %191 = arith.mulf %186, %190 : vector<128x64xf32>
    %cst_52 = arith.constant 1.000000e+00 : f32
    %192 = vector.broadcast %cst_52 : f32 to vector<128x64xf32>
    %193 = arith.subf %192, %191 : vector<128x64xf32>
    %cst_53 = arith.constant 0.000000e+00 : f32
    %194 = vector.broadcast %cst_53 : f32 to vector<128x64xf32>
    %195 = arith.cmpf olt, %165, %194 : vector<128x64xf32>
    %cst_54 = arith.constant 0.000000e+00 : f32
    %196 = vector.broadcast %cst_54 : f32 to vector<128x64xf32>
    %197 = arith.subf %196, %193 : vector<128x64xf32>
    %198 = arith.select %195, %197, %193 : vector<128x64xi1>, vector<128x64xf32>
    %cst_55 = arith.constant 1.000000e+00 : f32
    %199 = vector.broadcast %cst_55 : f32 to vector<128x64xf32>
    %200 = arith.addf %199, %198 : vector<128x64xf32>
    %201 = arith.mulf %163, %200 : vector<128x64xf32>
    %202 = arith.truncf %201 : vector<128x64xf32> to vector<128x64xbf16>
    %c0_56 = arith.constant 0 : index
    %c0_57 = arith.constant 0 : index
    %203 = vector.load %arg13[%c0_56, %c0_57] : memref<64x32xbf16, #tpu.memory_space<vmem>>, vector<64x32xbf16>
    %cst_58 = arith.constant dense<0.000000e+00> : vector<128x32xf32>
    %204 = tpu.matmul %202, %203, %cst_58 {dimension_numbers = #tpu.dot_dimension_numbers<[1], [0], [0], [1], [0, 0, 1, 1], [], []>} : vector<128x64xbf16>, vector<64x32xbf16>, vector<128x32xf32> -> vector<128x32xf32>
    %c0_59 = arith.constant 0 : index
    %c0_60 = arith.constant 0 : index
    %205 = vector.load %arg14[%c0_59, %c0_60] : memref<1x32xf32, #tpu.memory_space<vmem>>, vector<1x32xf32>
    %206 = vector.shape_cast %205 : vector<1x32xf32> to vector<32xf32>
    %207 = vector.shape_cast %206 : vector<32xf32> to vector<1x32xf32>
    %208 = vector.broadcast %207 : vector<1x32xf32> to vector<128x32xf32>
    %209 = arith.addf %204, %208 : vector<128x32xf32>
    %210 = arith.addf %1, %209 : vector<128x32xf32>
    %211 = vector.shape_cast %210 : vector<128x32xf32> to vector<4x32x32xf32>
    %c0_61 = arith.constant 0 : index
    %c0_62 = arith.constant 0 : index
    %c0_63 = arith.constant 0 : index
    %212 = vector.load %arg15[%c0_61, %c0_62, %c0_63] : memref<4x32x32xf32, #tpu.memory_space<vmem>>, vector<4x32x32xf32>
    tpu.vector_store %arg15[%c0_61, %c0_62, %c0_63], %211 {strides = array<i32>} : memref<4x32x32xf32, #tpu.memory_space<vmem>>, vector<4x32x32xf32>,
    return
  }
  func.func @transform_0(%arg0: i32) -> (i32, i32, i32) {
    %c0_i32 = arith.constant 0 : i32
    %c0_i32_0 = arith.constant 0 : i32
    %c0_i32_1 = arith.constant 0 : i32
    return %arg0, %c0_i32, %c0_i32_0 : i32, i32, i32
  }
  func.func @transform_1(%arg0: i32) -> (i32, i32) {
    %c0_i32 = arith.constant 0 : i32
    %c0_i32_0 = arith.constant 0 : i32
    %c0_i32_1 = arith.constant 0 : i32
    return %c0_i32, %c0_i32_0 : i32, i32
  }
  func.func @transform_2(%arg0: i32) -> (i32, i32) {
    %c0_i32 = arith.constant 0 : i32
    %c0_i32_0 = arith.constant 0 : i32
    %c0_i32_1 = arith.constant 0 : i32
    return %c0_i32, %c0_i32_0 : i32, i32
  }
  func.func @transform_3(%arg0: i32) -> (i32, i32) {
    %c0_i32 = arith.constant 0 : i32
    %c0_i32_0 = arith.constant 0 : i32
    %c0_i32_1 = arith.constant 0 : i32
    return %c0_i32, %c0_i32_0 : i32, i32
  }
  func.func @transform_4(%arg0: i32) -> (i32, i32) {
    %c0_i32 = arith.constant 0 : i32
    %c0_i32_0 = arith.constant 0 : i32
    %c0_i32_1 = arith.constant 0 : i32
    return %c0_i32, %c0_i32_0 : i32, i32
  }
  func.func @transform_5(%arg0: i32) -> (i32, i32, i32) {
    %c0_i32 = arith.constant 0 : i32
    %c0_i32_0 = arith.constant 0 : i32
    %c0_i32_1 = arith.constant 0 : i32
    %c0_i32_2 = arith.constant 0 : i32
    return %c0_i32, %c0_i32_0, %c0_i32_1 : i32, i32, i32
  }
  func.func @transform_6(%arg0: i32) -> (i32, i32) {
    %c0_i32 = arith.constant 0 : i32
    %c0_i32_0 = arith.constant 0 : i32
    %c0_i32_1 = arith.constant 0 : i32
    return %c0_i32, %c0_i32_0 : i32, i32
  }
  func.func @transform_7(%arg0: i32) -> (i32, i32) {
    %c0_i32 = arith.constant 0 : i32
    %c0_i32_0 = arith.constant 0 : i32
    %c0_i32_1 = arith.constant 0 : i32
    return %c0_i32, %c0_i32_0 : i32, i32
  }
  func.func @transform_8(%arg0: i32) -> (i32, i32) {
    %c0_i32 = arith.constant 0 : i32
    %c0_i32_0 = arith.constant 0 : i32
    %c0_i32_1 = arith.constant 0 : i32
    return %c0_i32, %c0_i32_0 : i32, i32
  }
  func.func @transform_9(%arg0: i32) -> (i32, i32) {
    %c0_i32 = arith.constant 0 : i32
    %c0_i32_0 = arith.constant 0 : i32
    %c0_i32_1 = arith.constant 0 : i32
    return %c0_i32, %c0_i32_0 : i32, i32
  }
  func.func @transform_10(%arg0: i32) -> (i32, i32) {
    %c0_i32 = arith.constant 0 : i32
    %c0_i32_0 = arith.constant 0 : i32
    %c0_i32_1 = arith.constant 0 : i32
    return %c0_i32, %c0_i32_0 : i32, i32
  }
  func.func @transform_11(%arg0: i32) -> (i32, i32) {
    %c0_i32 = arith.constant 0 : i32
    %c0_i32_0 = arith.constant 0 : i32
    %c0_i32_1 = arith.constant 0 : i32
    return %c0_i32, %c0_i32_0 : i32, i32
  }
  func.func @transform_12(%arg0: i32) -> (i32, i32) {
    %c0_i32 = arith.constant 0 : i32
    %c0_i32_0 = arith.constant 0 : i32
    %c0_i32_1 = arith.constant 0 : i32
    return %c0_i32, %c0_i32_0 : i32, i32
  }
  func.func @transform_13(%arg0: i32) -> (i32, i32) {
    %c0_i32 = arith.constant 0 : i32
    %c0_i32_0 = arith.constant 0 : i32
    %c0_i32_1 = arith.constant 0 : i32
    return %c0_i32, %c0_i32_0 : i32, i32
  }
  func.func @transform_14(%arg0: i32) -> (i32, i32, i32) {
    %c0_i32 = arith.constant 0 : i32
    %c0_i32_0 = arith.constant 0 : i32
    %c0_i32_1 = arith.constant 0 : i32
    return %arg0, %c0_i32, %c0_i32_0 : i32, i32, i32
  }
}

module attributes {stable_mosaic.version = 11 : i64} {
  func.func @swin_block_kernel(%arg0: i32, %arg1: memref<4x32x32xf32, #tpu.memory_space<vmem>>, %arg2: memref<4x32x32xbf16, #tpu.memory_space<vmem>>, %arg3: memref<1x32xf32, #tpu.memory_space<vmem>>, %arg4: memref<1x32xf32, #tpu.memory_space<vmem>>, %arg5: memref<32x96xbf16, #tpu.memory_space<vmem>>, %arg6: memref<1x96xf32, #tpu.memory_space<vmem>>, %arg7: memref<4x32x32xbf16, #tpu.memory_space<vmem>>, %arg8: memref<32x32xbf16, #tpu.memory_space<vmem>>, %arg9: memref<1x32xf32, #tpu.memory_space<vmem>>, %arg10: memref<1x32xf32, #tpu.memory_space<vmem>>, %arg11: memref<1x32xf32, #tpu.memory_space<vmem>>, %arg12: memref<32x64xbf16, #tpu.memory_space<vmem>>, %arg13: memref<1x64xf32, #tpu.memory_space<vmem>>, %arg14: memref<64x32xbf16, #tpu.memory_space<vmem>>, %arg15: memref<1x32xf32, #tpu.memory_space<vmem>>, %arg16: memref<4x32x32xf32, #tpu.memory_space<vmem>>) attributes {dimension_semantics = [#tpu.dimension_semantics<parallel>], iteration_bounds = array<i64: 4>, scalar_prefetch = 0 : i64, scratch_operands = 0 : i64, tpu.core_type = #tpu.core_type<tc>, window_params = [{transform_indices = @transform_0, window_bounds = array<i64: 4, 32, 32>}, {transform_indices = @transform_1, window_bounds = array<i64: 4, 32, 32>}, {pipeline_mode = #tpu.pipeline_mode<synchronous>, transform_indices = @transform_2, window_bounds = array<i64: 1, 32>}, {pipeline_mode = #tpu.pipeline_mode<synchronous>, transform_indices = @transform_3, window_bounds = array<i64: 1, 32>}, {pipeline_mode = #tpu.pipeline_mode<synchronous>, transform_indices = @transform_4, window_bounds = array<i64: 32, 96>}, {pipeline_mode = #tpu.pipeline_mode<synchronous>, transform_indices = @transform_5, window_bounds = array<i64: 1, 96>}, {pipeline_mode = #tpu.pipeline_mode<synchronous>, transform_indices = @transform_6, window_bounds = array<i64: 4, 32, 32>}, {pipeline_mode = #tpu.pipeline_mode<synchronous>, transform_indices = @transform_7, window_bounds = array<i64: 32, 32>}, {pipeline_mode = #tpu.pipeline_mode<synchronous>, transform_indices = @transform_8, window_bounds = array<i64: 1, 32>}, {pipeline_mode = #tpu.pipeline_mode<synchronous>, transform_indices = @transform_9, window_bounds = array<i64: 1, 32>}, {pipeline_mode = #tpu.pipeline_mode<synchronous>, transform_indices = @transform_10, window_bounds = array<i64: 1, 32>}, {pipeline_mode = #tpu.pipeline_mode<synchronous>, transform_indices = @transform_11, window_bounds = array<i64: 32, 64>}, {pipeline_mode = #tpu.pipeline_mode<synchronous>, transform_indices = @transform_12, window_bounds = array<i64: 1, 64>}, {pipeline_mode = #tpu.pipeline_mode<synchronous>, transform_indices = @transform_13, window_bounds = array<i64: 64, 32>}, {pipeline_mode = #tpu.pipeline_mode<synchronous>, transform_indices = @transform_14, window_bounds = array<i64: 1, 32>}, {transform_indices = @transform_15, window_bounds = array<i64: 4, 32, 32>}]} {
    %c0 = arith.constant 0 : index
    %c0_0 = arith.constant 0 : index
    %c0_1 = arith.constant 0 : index
    %0 = vector.load %arg1[%c0, %c0_0, %c0_1] : memref<4x32x32xf32, #tpu.memory_space<vmem>>, vector<4x32x32xf32>
    %1 = vector.shape_cast %0 : vector<4x32x32xf32> to vector<128x32xf32>
    %c0_2 = arith.constant 0 : index
    %c0_3 = arith.constant 0 : index
    %2 = vector.load %arg3[%c0_2, %c0_3] : memref<1x32xf32, #tpu.memory_space<vmem>>, vector<1x32xf32>
    %3 = vector.shape_cast %2 : vector<1x32xf32> to vector<32xf32>
    %c0_4 = arith.constant 0 : index
    %c0_5 = arith.constant 0 : index
    %4 = vector.load %arg4[%c0_4, %c0_5] : memref<1x32xf32, #tpu.memory_space<vmem>>, vector<1x32xf32>
    %5 = vector.shape_cast %4 : vector<1x32xf32> to vector<32xf32>
    %cst = arith.constant dense<0.000000e+00> : vector<128xf32>
    %6 = vector.multi_reduction <add>, %1, %cst [1] : vector<128x32xf32> to vector<128xf32>
    %7 = vector.shape_cast %6 : vector<128xf32> to vector<128x1xf32>
    %cst_6 = arith.constant 3.200000e+01 : f32
    %8 = vector.broadcast %cst_6 : f32 to vector<128x1xf32>
    %9 = arith.divf %7, %8 : vector<128x1xf32>
    %10 = vector.broadcast %9 : vector<128x1xf32> to vector<128x32xf32>
    %11 = arith.subf %1, %10 : vector<128x32xf32>
    %12 = arith.mulf %11, %11 : vector<128x32xf32>
    %cst_7 = arith.constant dense<0.000000e+00> : vector<128xf32>
    %13 = vector.multi_reduction <add>, %12, %cst_7 [1] : vector<128x32xf32> to vector<128xf32>
    %14 = vector.shape_cast %13 : vector<128xf32> to vector<128x1xf32>
    %cst_8 = arith.constant 3.200000e+01 : f32
    %15 = vector.broadcast %cst_8 : f32 to vector<128x1xf32>
    %16 = arith.divf %14, %15 : vector<128x1xf32>
    %17 = vector.broadcast %9 : vector<128x1xf32> to vector<128x32xf32>
    %18 = arith.subf %1, %17 : vector<128x32xf32>
    %cst_9 = arith.constant 9.99999974E-6 : f32
    %19 = vector.broadcast %cst_9 : f32 to vector<128x1xf32>
    %20 = arith.addf %16, %19 : vector<128x1xf32>
    %21 = math.rsqrt %20 : vector<128x1xf32>
    %22 = vector.broadcast %21 : vector<128x1xf32> to vector<128x32xf32>
    %23 = arith.mulf %18, %22 : vector<128x32xf32>
    %24 = vector.shape_cast %3 : vector<32xf32> to vector<1x32xf32>
    %25 = vector.broadcast %24 : vector<1x32xf32> to vector<128x32xf32>
    %26 = arith.mulf %23, %25 : vector<128x32xf32>
    %27 = vector.shape_cast %5 : vector<32xf32> to vector<1x32xf32>
    %28 = vector.broadcast %27 : vector<1x32xf32> to vector<128x32xf32>
    %29 = arith.addf %26, %28 : vector<128x32xf32>
    %30 = arith.truncf %29 : vector<128x32xf32> to vector<128x32xbf16>
    %c0_10 = arith.constant 0 : index
    %c0_11 = arith.constant 0 : index
    %31 = vector.load %arg5[%c0_10, %c0_11] : memref<32x96xbf16, #tpu.memory_space<vmem>>, vector<32x96xbf16>
    %cst_12 = arith.constant dense<0.000000e+00> : vector<128x96xf32>
    %32 = tpu.matmul %30, %31, %cst_12 {dimension_numbers = #tpu.dot_dimension_numbers<[1], [0], [0], [1], [0, 0, 1, 1], [], []>} : vector<128x32xbf16>, vector<32x96xbf16>, vector<128x96xf32> -> vector<128x96xf32>
    %c0_13 = arith.constant 0 : index
    %c0_14 = arith.constant 0 : index
    %33 = vector.load %arg6[%c0_13, %c0_14] : memref<1x96xf32, #tpu.memory_space<vmem>>, vector<1x96xf32>
    %34 = vector.shape_cast %33 : vector<1x96xf32> to vector<96xf32>
    %35 = vector.shape_cast %34 : vector<96xf32> to vector<1x96xf32>
    %36 = vector.broadcast %35 : vector<1x96xf32> to vector<128x96xf32>
    %37 = arith.addf %32, %36 : vector<128x96xf32>
    %38 = vector.extract_strided_slice %37 {offsets = [0, 0], sizes = [128, 32], strides = [1, 1]} : vector<128x96xf32> to vector<128x32xf32>
    %39 = arith.truncf %38 : vector<128x32xf32> to vector<128x32xbf16>
    %40 = vector.extract_strided_slice %37 {offsets = [0, 32], sizes = [128, 32], strides = [1, 1]} : vector<128x96xf32> to vector<128x32xf32>
    %41 = arith.truncf %40 : vector<128x32xf32> to vector<128x32xbf16>
    %42 = vector.extract_strided_slice %37 {offsets = [0, 64], sizes = [128, 32], strides = [1, 1]} : vector<128x96xf32> to vector<128x32xf32>
    %43 = arith.truncf %42 : vector<128x32xf32> to vector<128x32xbf16>
    %44 = vector.extract_strided_slice %39 {offsets = [0, 0], sizes = [128, 8], strides = [1, 1]} : vector<128x32xbf16> to vector<128x8xbf16>
    %45 = vector.shape_cast %44 : vector<128x8xbf16> to vector<4x32x8xbf16>
    %46 = vector.extract_strided_slice %39 {offsets = [0, 8], sizes = [128, 8], strides = [1, 1]} : vector<128x32xbf16> to vector<128x8xbf16>
    %47 = vector.shape_cast %46 : vector<128x8xbf16> to vector<4x32x8xbf16>
    %48 = vector.extract_strided_slice %39 {offsets = [0, 16], sizes = [128, 8], strides = [1, 1]} : vector<128x32xbf16> to vector<128x8xbf16>
    %49 = vector.shape_cast %48 : vector<128x8xbf16> to vector<4x32x8xbf16>
    %50 = vector.extract_strided_slice %39 {offsets = [0, 24], sizes = [128, 8], strides = [1, 1]} : vector<128x32xbf16> to vector<128x8xbf16>
    %51 = vector.shape_cast %50 : vector<128x8xbf16> to vector<4x32x8xbf16>
    %52 = vector.shape_cast %45 : vector<4x32x8xbf16> to vector<4x1x32x8xbf16>
    %53 = vector.shape_cast %47 : vector<4x32x8xbf16> to vector<4x1x32x8xbf16>
    %54 = vector.shape_cast %49 : vector<4x32x8xbf16> to vector<4x1x32x8xbf16>
    %55 = vector.shape_cast %51 : vector<4x32x8xbf16> to vector<4x1x32x8xbf16>
    %56 = tpu.concatenate %52, %53, %54, %55 in 1 : vector<4x1x32x8xbf16>, vector<4x1x32x8xbf16>, vector<4x1x32x8xbf16>, vector<4x1x32x8xbf16> -> vector<4x4x32x8xbf16>
    %57 = vector.shape_cast %56 : vector<4x4x32x8xbf16> to vector<16x32x8xbf16>
    %58 = vector.extract_strided_slice %41 {offsets = [0, 0], sizes = [128, 8], strides = [1, 1]} : vector<128x32xbf16> to vector<128x8xbf16>
    %59 = vector.shape_cast %58 : vector<128x8xbf16> to vector<4x32x8xbf16>
    %60 = vector.extract_strided_slice %41 {offsets = [0, 8], sizes = [128, 8], strides = [1, 1]} : vector<128x32xbf16> to vector<128x8xbf16>
    %61 = vector.shape_cast %60 : vector<128x8xbf16> to vector<4x32x8xbf16>
    %62 = vector.extract_strided_slice %41 {offsets = [0, 16], sizes = [128, 8], strides = [1, 1]} : vector<128x32xbf16> to vector<128x8xbf16>
    %63 = vector.shape_cast %62 : vector<128x8xbf16> to vector<4x32x8xbf16>
    %64 = vector.extract_strided_slice %41 {offsets = [0, 24], sizes = [128, 8], strides = [1, 1]} : vector<128x32xbf16> to vector<128x8xbf16>
    %65 = vector.shape_cast %64 : vector<128x8xbf16> to vector<4x32x8xbf16>
    %66 = vector.shape_cast %59 : vector<4x32x8xbf16> to vector<4x1x32x8xbf16>
    %67 = vector.shape_cast %61 : vector<4x32x8xbf16> to vector<4x1x32x8xbf16>
    %68 = vector.shape_cast %63 : vector<4x32x8xbf16> to vector<4x1x32x8xbf16>
    %69 = vector.shape_cast %65 : vector<4x32x8xbf16> to vector<4x1x32x8xbf16>
    %70 = tpu.concatenate %66, %67, %68, %69 in 1 : vector<4x1x32x8xbf16>, vector<4x1x32x8xbf16>, vector<4x1x32x8xbf16>, vector<4x1x32x8xbf16> -> vector<4x4x32x8xbf16>
    %71 = vector.shape_cast %70 : vector<4x4x32x8xbf16> to vector<16x32x8xbf16>
    %72 = vector.extract_strided_slice %43 {offsets = [0, 0], sizes = [128, 8], strides = [1, 1]} : vector<128x32xbf16> to vector<128x8xbf16>
    %73 = vector.shape_cast %72 : vector<128x8xbf16> to vector<4x32x8xbf16>
    %74 = vector.extract_strided_slice %43 {offsets = [0, 8], sizes = [128, 8], strides = [1, 1]} : vector<128x32xbf16> to vector<128x8xbf16>
    %75 = vector.shape_cast %74 : vector<128x8xbf16> to vector<4x32x8xbf16>
    %76 = vector.extract_strided_slice %43 {offsets = [0, 16], sizes = [128, 8], strides = [1, 1]} : vector<128x32xbf16> to vector<128x8xbf16>
    %77 = vector.shape_cast %76 : vector<128x8xbf16> to vector<4x32x8xbf16>
    %78 = vector.extract_strided_slice %43 {offsets = [0, 24], sizes = [128, 8], strides = [1, 1]} : vector<128x32xbf16> to vector<128x8xbf16>
    %79 = vector.shape_cast %78 : vector<128x8xbf16> to vector<4x32x8xbf16>
    %80 = vector.shape_cast %73 : vector<4x32x8xbf16> to vector<4x1x32x8xbf16>
    %81 = vector.shape_cast %75 : vector<4x32x8xbf16> to vector<4x1x32x8xbf16>
    %82 = vector.shape_cast %77 : vector<4x32x8xbf16> to vector<4x1x32x8xbf16>
    %83 = vector.shape_cast %79 : vector<4x32x8xbf16> to vector<4x1x32x8xbf16>
    %84 = tpu.concatenate %80, %81, %82, %83 in 1 : vector<4x1x32x8xbf16>, vector<4x1x32x8xbf16>, vector<4x1x32x8xbf16>, vector<4x1x32x8xbf16> -> vector<4x4x32x8xbf16>
    %85 = vector.shape_cast %84 : vector<4x4x32x8xbf16> to vector<16x32x8xbf16>
    "tpu.trace_start"() <{level = 10 : i32, message = "bnd,bmd->bnm"}> : () -> ()
    %cst_15 = arith.constant dense<0.000000e+00> : vector<16x32x32xf32>
    %86 = tpu.matmul %57, %71, %cst_15 {dimension_numbers = #tpu.dot_dimension_numbers<[2], [2], [1], [1], [0, 0, 0, 1, 1, 1], [0], [0]>} : vector<16x32x8xbf16>, vector<16x32x8xbf16>, vector<16x32x32xf32> -> vector<16x32x32xf32>
    "tpu.trace_stop"() : () -> ()
    %87 = vector.shape_cast %86 : vector<16x32x32xf32> to vector<4x4x32x32xf32>
    %c0_16 = arith.constant 0 : index
    %c0_17 = arith.constant 0 : index
    %c0_18 = arith.constant 0 : index
    %88 = vector.load %arg7[%c0_16, %c0_17, %c0_18] : memref<4x32x32xbf16, #tpu.memory_space<vmem>>, vector<4x32x32xbf16>
    %89 = arith.extf %88 : vector<4x32x32xbf16> to vector<4x32x32xf32>
    %90 = vector.shape_cast %89 : vector<4x32x32xf32> to vector<1x4x32x32xf32>
    %c0_19 = arith.constant 0 : index
    %c0_20 = arith.constant 0 : index
    %c0_21 = arith.constant 0 : index
    %91 = vector.load %arg2[%c0_19, %c0_20, %c0_21] : memref<4x32x32xbf16, #tpu.memory_space<vmem>>, vector<4x32x32xbf16>
    %92 = arith.extf %91 : vector<4x32x32xbf16> to vector<4x32x32xf32>
    %93 = vector.shape_cast %92 : vector<4x32x32xf32> to vector<4x1x32x32xf32>
    %94 = vector.broadcast %90 : vector<1x4x32x32xf32> to vector<4x4x32x32xf32>
    %95 = vector.broadcast %93 : vector<4x1x32x32xf32> to vector<4x4x32x32xf32>
    %96 = arith.addf %94, %95 : vector<4x4x32x32xf32>
    %97 = arith.addf %87, %96 : vector<4x4x32x32xf32>
    %cst_22 = arith.constant dense<0xFF800000> : vector<4x4x32xf32>
    %98 = vector.multi_reduction <maximumf>, %97, %cst_22 [3] : vector<4x4x32x32xf32> to vector<4x4x32xf32>
    %99 = vector.shape_cast %98 : vector<4x4x32xf32> to vector<4x4x32x1xf32>
    %100 = vector.broadcast %99 : vector<4x4x32x1xf32> to vector<4x4x32x32xf32>
    %101 = arith.subf %97, %100 : vector<4x4x32x32xf32>
    %102 = math.exp %101 : vector<4x4x32x32xf32>
    %cst_23 = arith.constant dense<0.000000e+00> : vector<4x4x32xf32>
    %103 = vector.multi_reduction <add>, %102, %cst_23 [3] : vector<4x4x32x32xf32> to vector<4x4x32xf32>
    %104 = vector.shape_cast %103 : vector<4x4x32xf32> to vector<4x4x32x1xf32>
    %105 = tpu.reciprocal %104 {approx = true} : vector<4x4x32x1xf32> -> vector<4x4x32x1xf32>
    %106 = vector.broadcast %105 : vector<4x4x32x1xf32> to vector<4x4x32x32xf32>
    %107 = arith.mulf %102, %106 : vector<4x4x32x32xf32>
    %108 = vector.shape_cast %107 : vector<4x4x32x32xf32> to vector<16x32x32xf32>
    %109 = arith.truncf %108 : vector<16x32x32xf32> to vector<16x32x32xbf16>
    "tpu.trace_start"() <{level = 10 : i32, message = "bnm,bmd->bnd"}> : () -> ()
    %cst_24 = arith.constant dense<0.000000e+00> : vector<16x32x8xf32>
    %110 = tpu.matmul %109, %85, %cst_24 {dimension_numbers = #tpu.dot_dimension_numbers<[2], [1], [1], [2], [0, 0, 0, 1, 1, 2], [0], [0]>} : vector<16x32x32xbf16>, vector<16x32x8xbf16>, vector<16x32x8xf32> -> vector<16x32x8xf32>
    "tpu.trace_stop"() : () -> ()
    %111 = vector.shape_cast %110 : vector<16x32x8xf32> to vector<4x4x32x8xf32>
    %112 = vector.extract_strided_slice %111 {offsets = [0, 0, 0, 0], sizes = [4, 1, 32, 8], strides = [1, 1, 1, 1]} : vector<4x4x32x8xf32> to vector<4x1x32x8xf32>
    %113 = vector.shape_cast %112 : vector<4x1x32x8xf32> to vector<4x32x8xf32>
    %114 = vector.extract_strided_slice %111 {offsets = [0, 1, 0, 0], sizes = [4, 1, 32, 8], strides = [1, 1, 1, 1]} : vector<4x4x32x8xf32> to vector<4x1x32x8xf32>
    %115 = vector.shape_cast %114 : vector<4x1x32x8xf32> to vector<4x32x8xf32>
    %116 = vector.extract_strided_slice %111 {offsets = [0, 2, 0, 0], sizes = [4, 1, 32, 8], strides = [1, 1, 1, 1]} : vector<4x4x32x8xf32> to vector<4x1x32x8xf32>
    %117 = vector.shape_cast %116 : vector<4x1x32x8xf32> to vector<4x32x8xf32>
    %118 = vector.extract_strided_slice %111 {offsets = [0, 3, 0, 0], sizes = [4, 1, 32, 8], strides = [1, 1, 1, 1]} : vector<4x4x32x8xf32> to vector<4x1x32x8xf32>
    %119 = vector.shape_cast %118 : vector<4x1x32x8xf32> to vector<4x32x8xf32>
    %120 = tpu.concatenate %113, %115, %117, %119 in 2 : vector<4x32x8xf32>, vector<4x32x8xf32>, vector<4x32x8xf32>, vector<4x32x8xf32> -> vector<4x32x32xf32>
    %121 = vector.shape_cast %120 : vector<4x32x32xf32> to vector<128x32xf32>
    %122 = arith.truncf %121 : vector<128x32xf32> to vector<128x32xbf16>
    %c0_25 = arith.constant 0 : index
    %c0_26 = arith.constant 0 : index
    %123 = vector.load %arg8[%c0_25, %c0_26] : memref<32x32xbf16, #tpu.memory_space<vmem>>, vector<32x32xbf16>
    %cst_27 = arith.constant dense<0.000000e+00> : vector<128x32xf32>
    %124 = tpu.matmul %122, %123, %cst_27 {dimension_numbers = #tpu.dot_dimension_numbers<[1], [0], [0], [1], [0, 0, 1, 1], [], []>} : vector<128x32xbf16>, vector<32x32xbf16>, vector<128x32xf32> -> vector<128x32xf32>
    %c0_28 = arith.constant 0 : index
    %c0_29 = arith.constant 0 : index
    %125 = vector.load %arg9[%c0_28, %c0_29] : memref<1x32xf32, #tpu.memory_space<vmem>>, vector<1x32xf32>
    %126 = vector.shape_cast %125 : vector<1x32xf32> to vector<32xf32>
    %127 = vector.shape_cast %126 : vector<32xf32> to vector<1x32xf32>
    %128 = vector.broadcast %127 : vector<1x32xf32> to vector<128x32xf32>
    %129 = arith.addf %124, %128 : vector<128x32xf32>
    %130 = arith.addf %129, %1 : vector<128x32xf32>
    %c0_30 = arith.constant 0 : index
    %c0_31 = arith.constant 0 : index
    %131 = vector.load %arg10[%c0_30, %c0_31] : memref<1x32xf32, #tpu.memory_space<vmem>>, vector<1x32xf32>
    %132 = vector.shape_cast %131 : vector<1x32xf32> to vector<32xf32>
    %c0_32 = arith.constant 0 : index
    %c0_33 = arith.constant 0 : index
    %133 = vector.load %arg11[%c0_32, %c0_33] : memref<1x32xf32, #tpu.memory_space<vmem>>, vector<1x32xf32>
    %134 = vector.shape_cast %133 : vector<1x32xf32> to vector<32xf32>
    %cst_34 = arith.constant dense<0.000000e+00> : vector<128xf32>
    %135 = vector.multi_reduction <add>, %130, %cst_34 [1] : vector<128x32xf32> to vector<128xf32>
    %136 = vector.shape_cast %135 : vector<128xf32> to vector<128x1xf32>
    %cst_35 = arith.constant 3.200000e+01 : f32
    %137 = vector.broadcast %cst_35 : f32 to vector<128x1xf32>
    %138 = arith.divf %136, %137 : vector<128x1xf32>
    %139 = vector.broadcast %138 : vector<128x1xf32> to vector<128x32xf32>
    %140 = arith.subf %130, %139 : vector<128x32xf32>
    %141 = arith.mulf %140, %140 : vector<128x32xf32>
    %cst_36 = arith.constant dense<0.000000e+00> : vector<128xf32>
    %142 = vector.multi_reduction <add>, %141, %cst_36 [1] : vector<128x32xf32> to vector<128xf32>
    %143 = vector.shape_cast %142 : vector<128xf32> to vector<128x1xf32>
    %cst_37 = arith.constant 3.200000e+01 : f32
    %144 = vector.broadcast %cst_37 : f32 to vector<128x1xf32>
    %145 = arith.divf %143, %144 : vector<128x1xf32>
    %146 = vector.broadcast %138 : vector<128x1xf32> to vector<128x32xf32>
    %147 = arith.subf %130, %146 : vector<128x32xf32>
    %cst_38 = arith.constant 9.99999974E-6 : f32
    %148 = vector.broadcast %cst_38 : f32 to vector<128x1xf32>
    %149 = arith.addf %145, %148 : vector<128x1xf32>
    %150 = math.rsqrt %149 : vector<128x1xf32>
    %151 = vector.broadcast %150 : vector<128x1xf32> to vector<128x32xf32>
    %152 = arith.mulf %147, %151 : vector<128x32xf32>
    %153 = vector.shape_cast %132 : vector<32xf32> to vector<1x32xf32>
    %154 = vector.broadcast %153 : vector<1x32xf32> to vector<128x32xf32>
    %155 = arith.mulf %152, %154 : vector<128x32xf32>
    %156 = vector.shape_cast %134 : vector<32xf32> to vector<1x32xf32>
    %157 = vector.broadcast %156 : vector<1x32xf32> to vector<128x32xf32>
    %158 = arith.addf %155, %157 : vector<128x32xf32>
    %159 = arith.truncf %158 : vector<128x32xf32> to vector<128x32xbf16>
    %c0_39 = arith.constant 0 : index
    %c0_40 = arith.constant 0 : index
    %160 = vector.load %arg12[%c0_39, %c0_40] : memref<32x64xbf16, #tpu.memory_space<vmem>>, vector<32x64xbf16>
    %cst_41 = arith.constant dense<0.000000e+00> : vector<128x64xf32>
    %161 = tpu.matmul %159, %160, %cst_41 {dimension_numbers = #tpu.dot_dimension_numbers<[1], [0], [0], [1], [0, 0, 1, 1], [], []>} : vector<128x32xbf16>, vector<32x64xbf16>, vector<128x64xf32> -> vector<128x64xf32>
    %c0_42 = arith.constant 0 : index
    %c0_43 = arith.constant 0 : index
    %162 = vector.load %arg13[%c0_42, %c0_43] : memref<1x64xf32, #tpu.memory_space<vmem>>, vector<1x64xf32>
    %163 = vector.shape_cast %162 : vector<1x64xf32> to vector<64xf32>
    %164 = vector.shape_cast %163 : vector<64xf32> to vector<1x64xf32>
    %165 = vector.broadcast %164 : vector<1x64xf32> to vector<128x64xf32>
    %166 = arith.addf %161, %165 : vector<128x64xf32>
    %cst_44 = arith.constant 5.000000e-01 : f32
    %167 = vector.broadcast %cst_44 : f32 to vector<128x64xf32>
    %168 = arith.mulf %167, %166 : vector<128x64xf32>
    %cst_45 = arith.constant 0.707106769 : f32
    %169 = vector.broadcast %cst_45 : f32 to vector<128x64xf32>
    %170 = arith.mulf %166, %169 : vector<128x64xf32>
    %171 = math.absf %170 : vector<128x64xf32>
    %cst_46 = arith.constant 0.327591091 : f32
    %172 = vector.broadcast %cst_46 : f32 to vector<128x64xf32>
    %173 = arith.mulf %172, %171 : vector<128x64xf32>
    %cst_47 = arith.constant 1.000000e+00 : f32
    %174 = vector.broadcast %cst_47 : f32 to vector<128x64xf32>
    %175 = arith.addf %174, %173 : vector<128x64xf32>
    %cst_48 = arith.constant 1.000000e+00 : f32
    %176 = vector.broadcast %cst_48 : f32 to vector<128x64xf32>
    %177 = arith.divf %176, %175 : vector<128x64xf32>
    %cst_49 = arith.constant 1.06140542 : f32
    %178 = vector.broadcast %cst_49 : f32 to vector<128x64xf32>
    %179 = arith.mulf %178, %177 : vector<128x64xf32>
    %cst_50 = arith.constant -1.45315206 : f32
    %180 = vector.broadcast %cst_50 : f32 to vector<128x64xf32>
    %181 = arith.addf %179, %180 : vector<128x64xf32>
    %182 = arith.mulf %181, %177 : vector<128x64xf32>
    %cst_51 = arith.constant 1.42141378 : f32
    %183 = vector.broadcast %cst_51 : f32 to vector<128x64xf32>
    %184 = arith.addf %182, %183 : vector<128x64xf32>
    %185 = arith.mulf %184, %177 : vector<128x64xf32>
    %cst_52 = arith.constant -0.284496725 : f32
    %186 = vector.broadcast %cst_52 : f32 to vector<128x64xf32>
    %187 = arith.addf %185, %186 : vector<128x64xf32>
    %188 = arith.mulf %187, %177 : vector<128x64xf32>
    %cst_53 = arith.constant 0.254829586 : f32
    %189 = vector.broadcast %cst_53 : f32 to vector<128x64xf32>
    %190 = arith.addf %188, %189 : vector<128x64xf32>
    %191 = arith.mulf %190, %177 : vector<128x64xf32>
    %cst_54 = arith.constant 0.000000e+00 : f32
    %192 = vector.broadcast %cst_54 : f32 to vector<128x64xf32>
    %193 = arith.subf %192, %171 : vector<128x64xf32>
    %194 = arith.mulf %193, %171 : vector<128x64xf32>
    %195 = math.exp %194 : vector<128x64xf32>
    %196 = arith.mulf %191, %195 : vector<128x64xf32>
    %cst_55 = arith.constant 1.000000e+00 : f32
    %197 = vector.broadcast %cst_55 : f32 to vector<128x64xf32>
    %198 = arith.subf %197, %196 : vector<128x64xf32>
    %cst_56 = arith.constant 0.000000e+00 : f32
    %199 = vector.broadcast %cst_56 : f32 to vector<128x64xf32>
    %200 = arith.cmpf olt, %170, %199 : vector<128x64xf32>
    %cst_57 = arith.constant 0.000000e+00 : f32
    %201 = vector.broadcast %cst_57 : f32 to vector<128x64xf32>
    %202 = arith.subf %201, %198 : vector<128x64xf32>
    %203 = arith.select %200, %202, %198 : vector<128x64xi1>, vector<128x64xf32>
    %cst_58 = arith.constant 1.000000e+00 : f32
    %204 = vector.broadcast %cst_58 : f32 to vector<128x64xf32>
    %205 = arith.addf %204, %203 : vector<128x64xf32>
    %206 = arith.mulf %168, %205 : vector<128x64xf32>
    %207 = arith.truncf %206 : vector<128x64xf32> to vector<128x64xbf16>
    %c0_59 = arith.constant 0 : index
    %c0_60 = arith.constant 0 : index
    %208 = vector.load %arg14[%c0_59, %c0_60] : memref<64x32xbf16, #tpu.memory_space<vmem>>, vector<64x32xbf16>
    %cst_61 = arith.constant dense<0.000000e+00> : vector<128x32xf32>
    %209 = tpu.matmul %207, %208, %cst_61 {dimension_numbers = #tpu.dot_dimension_numbers<[1], [0], [0], [1], [0, 0, 1, 1], [], []>} : vector<128x64xbf16>, vector<64x32xbf16>, vector<128x32xf32> -> vector<128x32xf32>
    %c0_62 = arith.constant 0 : index
    %c0_63 = arith.constant 0 : index
    %210 = vector.load %arg15[%c0_62, %c0_63] : memref<1x32xf32, #tpu.memory_space<vmem>>, vector<1x32xf32>
    %211 = vector.shape_cast %210 : vector<1x32xf32> to vector<32xf32>
    %212 = vector.shape_cast %211 : vector<32xf32> to vector<1x32xf32>
    %213 = vector.broadcast %212 : vector<1x32xf32> to vector<128x32xf32>
    %214 = arith.addf %209, %213 : vector<128x32xf32>
    %215 = arith.addf %1, %214 : vector<128x32xf32>
    %216 = vector.shape_cast %215 : vector<128x32xf32> to vector<4x32x32xf32>
    %c0_64 = arith.constant 0 : index
    %c0_65 = arith.constant 0 : index
    %c0_66 = arith.constant 0 : index
    %217 = vector.load %arg16[%c0_64, %c0_65, %c0_66] : memref<4x32x32xf32, #tpu.memory_space<vmem>>, vector<4x32x32xf32>
    tpu.vector_store %arg16[%c0_64, %c0_65, %c0_66], %216 {strides = array<i32>} : memref<4x32x32xf32, #tpu.memory_space<vmem>>, vector<4x32x32xf32>,
    return
  }
  func.func @transform_0(%arg0: i32) -> (i32, i32, i32) {
    %c0_i32 = arith.constant 0 : i32
    %c0_i32_0 = arith.constant 0 : i32
    %c0_i32_1 = arith.constant 0 : i32
    return %arg0, %c0_i32, %c0_i32_0 : i32, i32, i32
  }
  func.func @transform_1(%arg0: i32) -> (i32, i32, i32) {
    %c2_i32 = arith.constant 2 : i32
    %c0_i32 = arith.constant 0 : i32
    %0 = arith.cmpi eq, %c2_i32, %c0_i32 : i32
    %c1_i32 = arith.constant 1 : i32
    %1 = arith.select %0, %c1_i32, %c2_i32 : i32
    %2 = arith.remsi %arg0, %1 : i32
    %c0_i32_0 = arith.constant 0 : i32
    %3 = arith.cmpi ne, %2, %c0_i32_0 : i32
    %c0_i32_1 = arith.constant 0 : i32
    %4 = arith.cmpi slt, %2, %c0_i32_1 : i32
    %c0_i32_2 = arith.constant 0 : i32
    %5 = arith.cmpi slt, %1, %c0_i32_2 : i32
    %6 = arith.xori %4, %5 : i1
    %7 = arith.andi %6, %3 : i1
    %8 = arith.addi %2, %1 : i32
    %9 = arith.select %7, %8, %2 : i32
    %c0_i32_3 = arith.constant 0 : i32
    %c0_i32_4 = arith.constant 0 : i32
    %c0_i32_5 = arith.constant 0 : i32
    return %9, %c0_i32_3, %c0_i32_4 : i32, i32, i32
  }
  func.func @transform_2(%arg0: i32) -> (i32, i32) {
    %c0_i32 = arith.constant 0 : i32
    %c0_i32_0 = arith.constant 0 : i32
    %c0_i32_1 = arith.constant 0 : i32
    return %c0_i32, %c0_i32_0 : i32, i32
  }
  func.func @transform_3(%arg0: i32) -> (i32, i32) {
    %c0_i32 = arith.constant 0 : i32
    %c0_i32_0 = arith.constant 0 : i32
    %c0_i32_1 = arith.constant 0 : i32
    return %c0_i32, %c0_i32_0 : i32, i32
  }
  func.func @transform_4(%arg0: i32) -> (i32, i32) {
    %c0_i32 = arith.constant 0 : i32
    %c0_i32_0 = arith.constant 0 : i32
    %c0_i32_1 = arith.constant 0 : i32
    return %c0_i32, %c0_i32_0 : i32, i32
  }
  func.func @transform_5(%arg0: i32) -> (i32, i32) {
    %c0_i32 = arith.constant 0 : i32
    %c0_i32_0 = arith.constant 0 : i32
    %c0_i32_1 = arith.constant 0 : i32
    return %c0_i32, %c0_i32_0 : i32, i32
  }
  func.func @transform_6(%arg0: i32) -> (i32, i32, i32) {
    %c0_i32 = arith.constant 0 : i32
    %c0_i32_0 = arith.constant 0 : i32
    %c0_i32_1 = arith.constant 0 : i32
    %c0_i32_2 = arith.constant 0 : i32
    return %c0_i32, %c0_i32_0, %c0_i32_1 : i32, i32, i32
  }
  func.func @transform_7(%arg0: i32) -> (i32, i32) {
    %c0_i32 = arith.constant 0 : i32
    %c0_i32_0 = arith.constant 0 : i32
    %c0_i32_1 = arith.constant 0 : i32
    return %c0_i32, %c0_i32_0 : i32, i32
  }
  func.func @transform_8(%arg0: i32) -> (i32, i32) {
    %c0_i32 = arith.constant 0 : i32
    %c0_i32_0 = arith.constant 0 : i32
    %c0_i32_1 = arith.constant 0 : i32
    return %c0_i32, %c0_i32_0 : i32, i32
  }
  func.func @transform_9(%arg0: i32) -> (i32, i32) {
    %c0_i32 = arith.constant 0 : i32
    %c0_i32_0 = arith.constant 0 : i32
    %c0_i32_1 = arith.constant 0 : i32
    return %c0_i32, %c0_i32_0 : i32, i32
  }
  func.func @transform_10(%arg0: i32) -> (i32, i32) {
    %c0_i32 = arith.constant 0 : i32
    %c0_i32_0 = arith.constant 0 : i32
    %c0_i32_1 = arith.constant 0 : i32
    return %c0_i32, %c0_i32_0 : i32, i32
  }
  func.func @transform_11(%arg0: i32) -> (i32, i32) {
    %c0_i32 = arith.constant 0 : i32
    %c0_i32_0 = arith.constant 0 : i32
    %c0_i32_1 = arith.constant 0 : i32
    return %c0_i32, %c0_i32_0 : i32, i32
  }
  func.func @transform_12(%arg0: i32) -> (i32, i32) {
    %c0_i32 = arith.constant 0 : i32
    %c0_i32_0 = arith.constant 0 : i32
    %c0_i32_1 = arith.constant 0 : i32
    return %c0_i32, %c0_i32_0 : i32, i32
  }
  func.func @transform_13(%arg0: i32) -> (i32, i32) {
    %c0_i32 = arith.constant 0 : i32
    %c0_i32_0 = arith.constant 0 : i32
    %c0_i32_1 = arith.constant 0 : i32
    return %c0_i32, %c0_i32_0 : i32, i32
  }
  func.func @transform_14(%arg0: i32) -> (i32, i32) {
    %c0_i32 = arith.constant 0 : i32
    %c0_i32_0 = arith.constant 0 : i32
    %c0_i32_1 = arith.constant 0 : i32
    return %c0_i32, %c0_i32_0 : i32, i32
  }
  func.func @transform_15(%arg0: i32) -> (i32, i32, i32) {
    %c0_i32 = arith.constant 0 : i32
    %c0_i32_0 = arith.constant 0 : i32
    %c0_i32_1 = arith.constant 0 : i32
    return %arg0, %c0_i32, %c0_i32_0 : i32, i32, i32
  }
}

</mosaic_0001>

<llo_original>
// kernel: rstb_forward.2
$region0: #{rstb_forward.2}
  #allocation0 [shape = 'u32[]', space=smem, size = 0x4, offset = 0x4, fixed_abs, tag = 'smem constant byte address 0x4 - core index']
  #allocation1 [shape = 'u32[72,128]{1,0:T(1,128)}', space=vmem, size = 0x9000, scoped, tag = 'internal scratch']
  %s0 = inlined_call_operand.vmem [shape: f32[16,32,32], index: 0, kind: input, shape index: {}]
  %s1 = inlined_call_operand.vmem [shape: f32[1,32], index: 1, kind: input, shape index: {}]
  %s2 = inlined_call_operand.vmem [shape: f32[1,32], index: 2, kind: input, shape index: {}]
  %s3 = inlined_call_operand.vmem [shape: bf16[32,96], index: 3, kind: input, shape index: {}]
  %s4 = inlined_call_operand.vmem [shape: f32[1,96], index: 4, kind: input, shape index: {}]
  %s5 = inlined_call_operand.vmem [shape: bf16[4,32,32], index: 5, kind: input, shape index: {}]
  %s6 = inlined_call_operand.vmem [shape: bf16[32,32], index: 6, kind: input, shape index: {}]
  %s7 = inlined_call_operand.vmem [shape: f32[1,32], index: 7, kind: input, shape index: {}]
  %s8 = inlined_call_operand.vmem [shape: f32[1,32], index: 8, kind: input, shape index: {}]
  %s9 = inlined_call_operand.vmem [shape: f32[1,32], index: 9, kind: input, shape index: {}]
  %s10 = inlined_call_operand.vmem [shape: bf16[32,64], index: 10, kind: input, shape index: {}]
  %s11 = inlined_call_operand.vmem [shape: f32[1,64], index: 11, kind: input, shape index: {}]
  %s12 = inlined_call_operand.vmem [shape: bf16[64,32], index: 12, kind: input, shape index: {}]
  %s13 = inlined_call_operand.vmem [shape: f32[1,32], index: 13, kind: input, shape index: {}]
  %s14 = inlined_call_operand.vmem [shape: f32[16,32,32], index: 14, kind: output, shape index: {}]
  %s15 = sld [smem:[#allocation0]]
  $region89: #{rstb_forward.2} parent=0
    _
  %s17 = ssub.s32 1, %s15
  %s18 = scalar_select 0, %s17, %s15
  loop: start=0, step=1, limit=6
  $region2: #{rstb_forward.2} parent=0 // loop_pre_header
    _
  $region3: #{rstb_forward.2} parent=0 // loop_header
    %s20 = sphi 0, %s24
    %p21 = scmp.ge.s32.totalorder %s20, 6
    %s30 = sphi 0, %s32
    %s33 = sphi 0, %s30
    %s34 = sphi 0, %s33
    %s50 = sphi 0, %s34
    %s54 = sphi 0, %s54
    %s56 = sphi 0, %s54
    %s57 = sphi 0, %s56
    %s71 = sphi 0, %s57
    %s75 = sphi 0, %s75
    %s77 = sphi 0, %s75
    %s78 = sphi 0, %s77
    %s92 = sphi 0, %s78
    %s96 = sphi 0, %s96
    %s98 = sphi 0, %s96
    %s99 = sphi 0, %s98
    %s113 = sphi 0, %s99
    %s117 = sphi 0, %s117
    %s119 = sphi 0, %s117
    %s120 = sphi 0, %s119
    %s134 = sphi 0, %s120
    %s138 = sphi 0, %s138
    %s140 = sphi 0, %s138
    %s141 = sphi 0, %s140
    %s155 = sphi 0, %s141
    %s159 = sphi 0, %s159
    %s161 = sphi 0, %s159
    %s162 = sphi 0, %s161
    %s176 = sphi 0, %s162
    %s180 = sphi 0, %s180
    %s182 = sphi 0, %s180
    %s183 = sphi 0, %s182
    %s197 = sphi 0, %s183
    %s201 = sphi 0, %s201
    %s203 = sphi 0, %s201
    %s204 = sphi 0, %s203
    %s218 = sphi 0, %s204
    %s222 = sphi 0, %s222
    %s224 = sphi 0, %s222
    %s225 = sphi 0, %s224
    %s239 = sphi 0, %s225
    %s243 = sphi 0, %s243
    %s245 = sphi 0, %s243
    %s246 = sphi 0, %s245
    %s260 = sphi 0, %s246
    %s264 = sphi 0, %s264
    %s266 = sphi 0, %s264
    %s267 = sphi 0, %s266
    %s281 = sphi 0, %s267
    %s285 = sphi 0, %s285
    %s287 = sphi 0, %s285
    %s288 = sphi 0, %s287
    %s302 = sphi 0, %s288
    %s306 = sphi 0, %s306
    %s308 = sphi 0, %s306
    %s309 = sphi 0, %s308
    %s323 = sphi 0, %s309
    %s329 = sphi 0, %s331
    %s332 = sphi 0, %s329
    %s333 = sphi 0, %s332
    %s349 = sphi 0, %s333
  $region4: #{rstb_forward.2} parent=0 // loop_header_branch
    %23 = sbr.rel (%p21) target = $region8
  $region5: #{rstb_forward.2} parent=0 // loop_body
    %s25 = ssub.s32 %s20, 1
    %s26 = ssub.s32 %s20, 2
    %s27 = sadd.s32 %s20, 1
    %s28 = ssub.s32 %s20, %s27
    %p29 = scmp.eq.s32.totalorder %s28, 0
    %s31 = sadd.s32 %s30, 1
    %s32 = scalar_select %p29, %s30, %s31
    %p35 = pneg %p29
    %p36 = scmp.eq.s32.totalorder %s20, 3
    %p37 = por %p35, %p36
    %p38 = scmp.ne.s32.totalorder %s30, %s33
    %p39 = scmp.eq.s32.totalorder %s20, 0
    %p40 = por %p38, %p39
    %p41 = scmp.ne.s32.totalorder %s30, %s33
    %p42 = scmp.eq.s32.totalorder %s25, 3
    %p43 = por %p41, %p42
    %p44 = scmp.ne.s32.totalorder %s33, %s34
    %p45 = scmp.eq.s32.totalorder %s25, 0
    %p46 = por %p44, %p45
    %p47 = scmp.ne.s32.totalorder %s33, %s34
    %p48 = scmp.eq.s32.totalorder %s26, 3
    %p49 = por %p47, %p48
    %p51 = scmp.ne.s32.totalorder %s34, %s50
    %p52 = scmp.eq.s32.totalorder %s26, 0
    %p53 = por %p51, %p52
    %s55 = sadd.s32 %s54, 1
    %p58 = scmp.eq.s32.totalorder %s20, 3
    %p59 = scmp.ne.s32.totalorder %s54, %s56
    %p60 = scmp.eq.s32.totalorder %s20, 0
    %p61 = por %p59, %p60
    %p62 = scmp.ne.s32.totalorder %s54, %s56
    %p63 = scmp.eq.s32.totalorder %s25, 3
    %p64 = por %p62, %p63
    %p65 = scmp.ne.s32.totalorder %s56, %s57
    %p66 = scmp.eq.s32.totalorder %s25, 0
    %p67 = por %p65, %p66
    %p68 = scmp.ne.s32.totalorder %s56, %s57
    %p69 = scmp.eq.s32.totalorder %s26, 3
    %p70 = por %p68, %p69
    %p72 = scmp.ne.s32.totalorder %s57, %s71
    %p73 = scmp.eq.s32.totalorder %s26, 0
    %p74 = por %p72, %p73
    %s76 = sadd.s32 %s75, 1
    %p79 = scmp.eq.s32.totalorder %s20, 3
    %p80 = scmp.ne.s32.totalorder %s75, %s77
    %p81 = scmp.eq.s32.totalorder %s20, 0
    %p82 = por %p80, %p81
    %p83 = scmp.ne.s32.totalorder %s75, %s77
    %p84 = scmp.eq.s32.totalorder %s25, 3
    %p85 = por %p83, %p84
    %p86 = scmp.ne.s32.totalorder %s77, %s78
    %p87 = scmp.eq.s32.totalorder %s25, 0
    %p88 = por %p86, %p87
    %p89 = scmp.ne.s32.totalorder %s77, %s78
    %p90 = scmp.eq.s32.totalorder %s26, 3
    %p91 = por %p89, %p90
    %p93 = scmp.ne.s32.totalorder %s78, %s92
    %p94 = scmp.eq.s32.totalorder %s26, 0
    %p95 = por %p93, %p94
    %s97 = sadd.s32 %s96, 1
    %p100 = scmp.eq.s32.totalorder %s20, 3
    %p101 = scmp.ne.s32.totalorder %s96, %s98
    %p102 = scmp.eq.s32.totalorder %s20, 0
    %p103 = por %p101, %p102
    %p104 = scmp.ne.s32.totalorder %s96, %s98
    %p105 = scmp.eq.s32.totalorder %s25, 3
    %p106 = por %p104, %p105
    %p107 = scmp.ne.s32.totalorder %s98, %s99
    %p108 = scmp.eq.s32.totalorder %s25, 0
    %p109 = por %p107, %p108
    %p110 = scmp.ne.s32.totalorder %s98, %s99
    %p111 = scmp.eq.s32.totalorder %s26, 3
    %p112 = por %p110, %p111
    %p114 = scmp.ne.s32.totalorder %s99, %s113
    %p115 = scmp.eq.s32.totalorder %s26, 0
    %p116 = por %p114, %p115
    %s118 = sadd.s32 %s117, 1
    %p121 = scmp.eq.s32.totalorder %s20, 3
    %p122 = scmp.ne.s32.totalorder %s117, %s119
    %p123 = scmp.eq.s32.totalorder %s20, 0
    %p124 = por %p122, %p123
    %p125 = scmp.ne.s32.totalorder %s117, %s119
    %p126 = scmp.eq.s32.totalorder %s25, 3
    %p127 = por %p125, %p126
    %p128 = scmp.ne.s32.totalorder %s119, %s120
    %p129 = scmp.eq.s32.totalorder %s25, 0
    %p130 = por %p128, %p129
    %p131 = scmp.ne.s32.totalorder %s119, %s120
    %p132 = scmp.eq.s32.totalorder %s26, 3
    %p133 = por %p131, %p132
    %p135 = scmp.ne.s32.totalorder %s120, %s134
    %p136 = scmp.eq.s32.totalorder %s26, 0
    %p137 = por %p135, %p136
    %s139 = sadd.s32 %s138, 1
    %p142 = scmp.eq.s32.totalorder %s20, 3
    %p143 = scmp.ne.s32.totalorder %s138, %s140
    %p144 = scmp.eq.s32.totalorder %s20, 0
    %p145 = por %p143, %p144
    %p146 = scmp.ne.s32.totalorder %s138, %s140
    %p147 = scmp.eq.s32.totalorder %s25, 3
    %p148 = por %p146, %p147
    %p149 = scmp.ne.s32.totalorder %s140, %s141
    %p150 = scmp.eq.s32.totalorder %s25, 0
    %p151 = por %p149, %p150
    %p152 = scmp.ne.s32.totalorder %s140, %s141
    %p153 = scmp.eq.s32.totalorder %s26, 3
    %p154 = por %p152, %p153
    %p156 = scmp.ne.s32.totalorder %s141, %s155
    %p157 = scmp.eq.s32.totalorder %s26, 0
    %p158 = por %p156, %p157
    %s160 = sadd.s32 %s159, 1
    %p163 = scmp.eq.s32.totalorder %s20, 3
    %p164 = scmp.ne.s32.totalorder %s159, %s161
    %p165 = scmp.eq.s32.totalorder %s20, 0
    %p166 = por %p164, %p165
    %p167 = scmp.ne.s32.totalorder %s159, %s161
    %p168 = scmp.eq.s32.totalorder %s25, 3
    %p169 = por %p167, %p168
    %p170 = scmp.ne.s32.totalorder %s161, %s162
    %p171 = scmp.eq.s32.totalorder %s25, 0
    %p172 = por %p170, %p171
    %p173 = scmp.ne.s32.totalorder %s161, %s162
    %p174 = scmp.eq.s32.totalorder %s26, 3
    %p175 = por %p173, %p174
    %p177 = scmp.ne.s32.totalorder %s162, %s176
    %p178 = scmp.eq.s32.totalorder %s26, 0
    %p179 = por %p177, %p178
    %s181 = sadd.s32 %s180, 1
    %p184 = scmp.eq.s32.totalorder %s20, 3
    %p185 = scmp.ne.s32.totalorder %s180, %s182
    %p186 = scmp.eq.s32.totalorder %s20, 0
    %p187 = por %p185, %p186
    %p188 = scmp.ne.s32.totalorder %s180, %s182
    %p189 = scmp.eq.s32.totalorder %s25, 3
    %p190 = por %p188, %p189
    %p191 = scmp.ne.s32.totalorder %s182, %s183
    %p192 = scmp.eq.s32.totalorder %s25, 0
    %p193 = por %p191, %p192
    %p194 = scmp.ne.s32.totalorder %s182, %s183
    %p195 = scmp.eq.s32.totalorder %s26, 3
    %p196 = por %p194, %p195
    %p198 = scmp.ne.s32.totalorder %s183, %s197
    %p199 = scmp.eq.s32.totalorder %s26, 0
    %p200 = por %p198, %p199
    %s202 = sadd.s32 %s201, 1
    %p205 = scmp.eq.s32.totalorder %s20, 3
    %p206 = scmp.ne.s32.totalorder %s201, %s203
    %p207 = scmp.eq.s32.totalorder %s20, 0
    %p208 = por %p206, %p207
    %p209 = scmp.ne.s32.totalorder %s201, %s203
    %p210 = scmp.eq.s32.totalorder %s25, 3
    %p211 = por %p209, %p210
    %p212 = scmp.ne.s32.totalorder %s203, %s204
    %p213 = scmp.eq.s32.totalorder %s25, 0
    %p214 = por %p212, %p213
    %p215 = scmp.ne.s32.totalorder %s203, %s204
    %p216 = scmp.eq.s32.totalorder %s26, 3
    %p217 = por %p215, %p216
    %p219 = scmp.ne.s32.totalorder %s204, %s218
    %p220 = scmp.eq.s32.totalorder %s26, 0
    %p221 = por %p219, %p220
    %s223 = sadd.s32 %s222, 1
    %p226 = scmp.eq.s32.totalorder %s20, 3
    %p227 = scmp.ne.s32.totalorder %s222, %s224
    %p228 = scmp.eq.s32.totalorder %s20, 0
    %p229 = por %p227, %p228
    %p230 = scmp.ne.s32.totalorder %s222, %s224
    %p231 = scmp.eq.s32.totalorder %s25, 3
    %p232 = por %p230, %p231
    %p233 = scmp.ne.s32.totalorder %s224, %s225
    %p234 = scmp.eq.s32.totalorder %s25, 0
    %p235 = por %p233, %p234
    %p236 = scmp.ne.s32.totalorder %s224, %s225
    %p237 = scmp.eq.s32.totalorder %s26, 3
    %p238 = por %p236, %p237
    %p240 = scmp.ne.s32.totalorder %s225, %s239
    %p241 = scmp.eq.s32.totalorder %s26, 0
    %p242 = por %p240, %p241
    %s244 = sadd.s32 %s243, 1
    %p247 = scmp.eq.s32.totalorder %s20, 3
    %p248 = scmp.ne.s32.totalorder %s243, %s245
    %p249 = scmp.eq.s32.totalorder %s20, 0
    %p250 = por %p248, %p249
    %p251 = scmp.ne.s32.totalorder %s243, %s245
    %p252 = scmp.eq.s32.totalorder %s25, 3
    %p253 = por %p251, %p252
    %p254 = scmp.ne.s32.totalorder %s245, %s246
    %p255 = scmp.eq.s32.totalorder %s25, 0
    %p256 = por %p254, %p255
    %p257 = scmp.ne.s32.totalorder %s245, %s246
    %p258 = scmp.eq.s32.totalorder %s26, 3
    %p259 = por %p257, %p258
    %p261 = scmp.ne.s32.totalorder %s246, %s260
    %p262 = scmp.eq.s32.totalorder %s26, 0
    %p263 = por %p261, %p262
    %s265 = sadd.s32 %s264, 1
    %p268 = scmp.eq.s32.totalorder %s20, 3
    %p269 = scmp.ne.s32.totalorder %s264, %s266
    %p270 = scmp.eq.s32.totalorder %s20, 0
    %p271 = por %p269, %p270
    %p272 = scmp.ne.s32.totalorder %s264, %s266
    %p273 = scmp.eq.s32.totalorder %s25, 3
    %p274 = por %p272, %p273
    %p275 = scmp.ne.s32.totalorder %s266, %s267
    %p276 = scmp.eq.s32.totalorder %s25, 0
    %p277 = por %p275, %p276
    %p278 = scmp.ne.s32.totalorder %s266, %s267
    %p279 = scmp.eq.s32.totalorder %s26, 3
    %p280 = por %p278, %p279
    %p282 = scmp.ne.s32.totalorder %s267, %s281
    %p283 = scmp.eq.s32.totalorder %s26, 0
    %p284 = por %p282, %p283
    %s286 = sadd.s32 %s285, 1
    %p289 = scmp.eq.s32.totalorder %s20, 3
    %p290 = scmp.ne.s32.totalorder %s285, %s287
    %p291 = scmp.eq.s32.totalorder %s20, 0
    %p292 = por %p290, %p291
    %p293 = scmp.ne.s32.totalorder %s285, %s287
    %p294 = scmp.eq.s32.totalorder %s25, 3
    %p295 = por %p293, %p294
    %p296 = scmp.ne.s32.totalorder %s287, %s288
    %p297 = scmp.eq.s32.totalorder %s25, 0
    %p298 = por %p296, %p297
    %p299 = scmp.ne.s32.totalorder %s287, %s288
    %p300 = scmp.eq.s32.totalorder %s26, 3
    %p301 = por %p299, %p300
    %p303 = scmp.ne.s32.totalorder %s288, %s302
    %p304 = scmp.eq.s32.totalorder %s26, 0
    %p305 = por %p303, %p304
    %s307 = sadd.s32 %s306, 1
    %p310 = scmp.eq.s32.totalorder %s20, 3
    %p311 = scmp.ne.s32.totalorder %s306, %s308
    %p312 = scmp.eq.s32.totalorder %s20, 0
    %p313 = por %p311, %p312
    %p314 = scmp.ne.s32.totalorder %s306, %s308
    %p315 = scmp.eq.s32.totalorder %s25, 3
    %p316 = por %p314, %p315
    %p317 = scmp.ne.s32.totalorder %s308, %s309
    %p318 = scmp.eq.s32.totalorder %s25, 0
    %p319 = por %p317, %p318
    %p320 = scmp.ne.s32.totalorder %s308, %s309
    %p321 = scmp.eq.s32.totalorder %s26, 3
    %p322 = por %p320, %p321
    %p324 = scmp.ne.s32.totalorder %s309, %s323
    %p325 = scmp.eq.s32.totalorder %s26, 0
    %p326 = por %p324, %p325
    %s327 = ssub.s32 %s20, %s27
    %p328 = scmp.eq.s32.totalorder %s327, 0
    %s330 = sadd.s32 %s329, 1
    %s331 = scalar_select %p328, %s329, %s330
    %p334 = pneg %p328
    %p335 = scmp.eq.s32.totalorder %s20, 3
    %p336 = por %p334, %p335
    %p337 = scmp.ne.s32.totalorder %s329, %s332
    %p338 = scmp.eq.s32.totalorder %s20, 0
    %p339 = por %p337, %p338
    %p340 = scmp.ne.s32.totalorder %s329, %s332
    %p341 = scmp.eq.s32.totalorder %s25, 3
    %p342 = por %p340, %p341
    %p343 = scmp.ne.s32.totalorder %s332, %s333
    %p344 = scmp.eq.s32.totalorder %s25, 0
    %p345 = por %p343, %p344
    %p346 = scmp.ne.s32.totalorder %s332, %s333
    %p347 = scmp.eq.s32.totalorder %s26, 3
    %p348 = por %p346, %p347
    %p350 = scmp.ne.s32.totalorder %s333, %s349
    %p351 = scmp.eq.s32.totalorder %s26, 0
    %p352 = por %p350, %p351
    %p353 = scmp.le.s32.totalorder 1, %s20
    %p354 = scmp.lt.s32.totalorder %s20, 5
    %p355 = pnand %p353, %p354
    %p356 = pneg %p355
    // Predicated region
    $region9: #{rstb_forward.2} parent=5 // pred_check
      _
    $region10: #{rstb_forward.2} parent=5 // pred_check_branch
      %358 = sbr.rel (%p355) target = $region12
    $region11: #{rstb_forward.2} parent=5 // pred_region
      %s359 = ssub.s32 %s20, 1
      // Predicated region
      $region13: #{rstb_forward.2} parent=11 // pred_check
        %p360 = pneg %p67
      $region14: #{rstb_forward.2} parent=11 // pred_check_branch
        %362 = sbr.rel (%p360) target = $region16
      $region15: #{rstb_forward.2} parent=11 // pred_region
        _
      $region16: #{rstb_forward.2} parent=11 // pred_fallthru
        _
      // Predicated region
      $region17: #{rstb_forward.2} parent=11 // pred_check
        %p363 = pneg %p88
      $region18: #{rstb_forward.2} parent=11 // pred_check_branch
        %365 = sbr.rel (%p363) target = $region20
      $region19: #{rstb_forward.2} parent=11 // pred_region
        _
      $region20: #{rstb_forward.2} parent=11 // pred_fallthru
        _
      // Predicated region
      $region21: #{rstb_forward.2} parent=11 // pred_check
        %p366 = pneg %p109
      $region22: #{rstb_forward.2} parent=11 // pred_check_branch
        %368 = sbr.rel (%p366) target = $region24
      $region23: #{rstb_forward.2} parent=11 // pred_region
        _
      $region24: #{rstb_forward.2} parent=11 // pred_fallthru
        _
      // Predicated region
      $region25: #{rstb_forward.2} parent=11 // pred_check
        %p369 = pneg %p130
      $region26: #{rstb_forward.2} parent=11 // pred_check_branch
        %371 = sbr.rel (%p369) target = $region28
      $region27: #{rstb_forward.2} parent=11 // pred_region
        _
      $region28: #{rstb_forward.2} parent=11 // pred_fallthru
        _
      // Predicated region
      $region29: #{rstb_forward.2} parent=11 // pred_check
        %p372 = pneg %p151
      $region30: #{rstb_forward.2} parent=11 // pred_check_branch
        %374 = sbr.rel (%p372) target = $region32
      $region31: #{rstb_forward.2} parent=11 // pred_region
        _
      $region32: #{rstb_forward.2} parent=11 // pred_fallthru
        _
      // Predicated region
      $region33: #{rstb_forward.2} parent=11 // pred_check
        %p375 = pneg %p172
      $region34: #{rstb_forward.2} parent=11 // pred_check_branch
        %377 = sbr.rel (%p375) target = $region36
      $region35: #{rstb_forward.2} parent=11 // pred_region
        _
      $region36: #{rstb_forward.2} parent=11 // pred_fallthru
        _
      // Predicated region
      $region37: #{rstb_forward.2} parent=11 // pred_check
        %p378 = pneg %p193
      $region38: #{rstb_forward.2} parent=11 // pred_check_branch
        %380 = sbr.rel (%p378) target = $region40
      $region39: #{rstb_forward.2} parent=11 // pred_region
        _
      $region40: #{rstb_forward.2} parent=11 // pred_fallthru
        _
      // Predicated region
      $region41: #{rstb_forward.2} parent=11 // pred_check
        %p381 = pneg %p214
      $region42: #{rstb_forward.2} parent=11 // pred_check_branch
        %383 = sbr.rel (%p381) target = $region44
      $region43: #{rstb_forward.2} parent=11 // pred_region
        _
      $region44: #{rstb_forward.2} parent=11 // pred_fallthru
        _
      // Predicated region
      $region45: #{rstb_forward.2} parent=11 // pred_check
        %p384 = pneg %p235
      $region46: #{rstb_forward.2} parent=11 // pred_check_branch
        %386 = sbr.rel (%p384) target = $region48
      $region47: #{rstb_forward.2} parent=11 // pred_region
        _
      $region48: #{rstb_forward.2} parent=11 // pred_fallthru
        _
      // Predicated region
      $region49: #{rstb_forward.2} parent=11 // pred_check
        %p387 = pneg %p256
      $region50: #{rstb_forward.2} parent=11 // pred_check_branch
        %389 = sbr.rel (%p387) target = $region52
      $region51: #{rstb_forward.2} parent=11 // pred_region
        _
      $region52: #{rstb_forward.2} parent=11 // pred_fallthru
        _
      // Predicated region
      $region53: #{rstb_forward.2} parent=11 // pred_check
        %p390 = pneg %p277
      $region54: #{rstb_forward.2} parent=11 // pred_check_branch
        %392 = sbr.rel (%p390) target = $region56
      $region55: #{rstb_forward.2} parent=11 // pred_region
        _
      $region56: #{rstb_forward.2} parent=11 // pred_fallthru
        _
      // Predicated region
      $region57: #{rstb_forward.2} parent=11 // pred_check
        %p393 = pneg %p298
      $region58: #{rstb_forward.2} parent=11 // pred_check_branch
        %395 = sbr.rel (%p393) target = $region60
      $region59: #{rstb_forward.2} parent=11 // pred_region
        _
      $region60: #{rstb_forward.2} parent=11 // pred_fallthru
        _
      // Predicated region
      $region61: #{rstb_forward.2} parent=11 // pred_check
        %p396 = pneg %p319
      $region62: #{rstb_forward.2} parent=11 // pred_check_branch
        %398 = sbr.rel (%p396) target = $region64
      $region63: #{rstb_forward.2} parent=11 // pred_region
        _
      $region64: #{rstb_forward.2} parent=11 // pred_fallthru
        _
    $region12: #{rstb_forward.2} parent=5 // pred_fallthru
      _
    %p399 = scmp.lt.s32.totalorder %s20, 4
    // Predicated region
    $region65: #{rstb_forward.2} parent=5 // pred_check
      %p400 = pneg %p399
    $region66: #{rstb_forward.2} parent=5 // pred_check_branch
      %402 = sbr.rel (%p400) target = $region68
    $region67: #{rstb_forward.2} parent=5 // pred_region
      // Predicated region
      $region69: #{rstb_forward.2} parent=67 // pred_check
        %p403 = pneg %p40
      $region70: #{rstb_forward.2} parent=67 // pred_check_branch
        %405 = sbr.rel (%p403) target = $region72
      $region71: #{rstb_forward.2} parent=67 // pred_region
        %s406 = smul.u32 4, %s20
        %p407 = scmp.lt.s32.totalorder %s406, 15
        %s408 = scalar_select %p407, %s406, 15
        %s409 = smul.addr %s408, 4
        %s410 = smul.addr %s409, 8
        %s411 = scalar_lea.vmem %s0, %s410
        %s412 = smul.u32 4, %s20
      $region72: #{rstb_forward.2} parent=67 // pred_fallthru
        _
    $region68: #{rstb_forward.2} parent=5 // pred_fallthru
      _
    %p413 = scmp.le.s32.totalorder 1, %s20
    %p414 = scmp.lt.s32.totalorder %s20, 5
    %p415 = pnand %p413, %p414
    %p416 = pneg %p415
    // Predicated region
    $region73: #{rstb_forward.2} parent=5 // pred_check
      _
    $region74: #{rstb_forward.2} parent=5 // pred_check_branch
      %418 = sbr.rel (%p415) target = $region76
    $region75: #{rstb_forward.2} parent=5 // pred_region
      %s419 = ssub.s32 %s20, 1
      %s420 = smul.u32 4, %s25
      %p421 = scmp.lt.s32.totalorder %s420, 15
      %s422 = scalar_select %p421, %s420, 15
      %s423 = smul.addr %s422, 4
      %s424 = smul.addr %s423, 8
      %s425 = scalar_lea.vmem %s0, %s424
      %p426 = pneg %p46
      %p427 = pneg %p43
      %p428 = pneg %p67
      %p429 = pneg %p64
      %p430 = pneg %p88
      %p431 = pneg %p85
      %p432 = pneg %p109
      %p433 = pneg %p106
      %p434 = pneg %p130
      %p435 = pneg %p127
      %p436 = pneg %p151
      %p437 = pneg %p148
      %p438 = pneg %p172
      %p439 = pneg %p169
      %p440 = pneg %p193
      %p441 = pneg %p190
      %p442 = pneg %p214
      %p443 = pneg %p211
      %p444 = pneg %p235
      %p445 = pneg %p232
      %p446 = pneg %p256
      %p447 = pneg %p253
      %p448 = pneg %p277
      %p449 = pneg %p274
      %p450 = pneg %p298
      %p451 = pneg %p295
      %p452 = pneg %p319
      %p453 = pneg %p316
      %p454 = pneg %p345
      %p455 = pneg %p342
      %s456 = smul.u32 4, %s25
      %p457 = scmp.lt.s32.totalorder %s456, 15
      %s458 = scalar_select %p457, %s456, 15
      %s459 = smul.addr %s458, 4
      %s460 = smul.addr %s459, 8
      %s461 = scalar_lea.vmem %s14, %s460
      %s462 = smul.u32 4, %s25
      %p463 = scmp.lt.s32.totalorder %s462, 15
      %s464 = scalar_select %p463, %s462, 15
      %s465 = smul.addr %s464, 4
      %s466 = smul.addr %s465, 8
      %s467 = scalar_lea.vmem %s0, %s466
      %s468 = smul.u32 4, %s25
      %s469 = smul.u32 4, %s25
      %p470 = scmp.lt.s32.totalorder %s469, 15
      %s471 = scalar_select %p470, %s469, 15
      %s472 = smul.addr %s471, 4
      %s473 = smul.addr %s472, 8
      %s474 = scalar_lea.vmem %s14, %s473
      %s475 = smul.u32 4, %s25
      %v477 = vld [vmem:[%s467] sm:$0xff]
      %v478 = vld [vmem:[%s467 + $0x8] sm:$0xff]
      %v479 = vld [vmem:[%s467 + $0x10] sm:$0xff]
      %v480 = vld [vmem:[%s467 + $0x18] sm:$0xff]
      %v481 = vld [vmem:[%s467 + $0x20] sm:$0xff]
      %v482 = vld [vmem:[%s467 + $0x28] sm:$0xff]
      %v483 = vld [vmem:[%s467 + $0x30] sm:$0xff]
      %v484 = vld [vmem:[%s467 + $0x38] sm:$0xff]
      %v485 = vld [vmem:[%s467 + $0x40] sm:$0xff]
      %v486 = vld [vmem:[%s467 + $0x48] sm:$0xff]
      %v487 = vld [vmem:[%s467 + $0x50] sm:$0xff]
      %v488 = vld [vmem:[%s467 + $0x58] sm:$0xff]
      %v489 = vld [vmem:[%s467 + $0x60] sm:$0xff]
      %v490 = vld [vmem:[%s467 + $0x68] sm:$0xff]
      %v491 = vld [vmem:[%s467 + $0x70] sm:$0xff]
      %v492 = vld [vmem:[%s467 + $0x78] sm:$0xff]
      %v493 = vld [vmem:[%s1] sm:$0x1]
      %v494 = vld [vmem:[%s2] sm:$0x1]
      %vm495 = vcmask 261120
      %v496 = vsel %vm495, %v477, 0.0
      %497 = vadd.xlane.f32.xlu0 %v496
      %v498 = vpop.xlane.xlu0 %497
      %v499 = vsel %vm495, %v478, 0.0
      %500 = vadd.xlane.f32.xlu0 %v499
      %v501 = vpop.xlane.xlu0 %500
      %v502 = vsel %vm495, %v479, 0.0
      %503 = vadd.xlane.f32.xlu0 %v502
      %v504 = vpop.xlane.xlu0 %503
      %v505 = vsel %vm495, %v480, 0.0
      %506 = vadd.xlane.f32.xlu0 %v505
      %v507 = vpop.xlane.xlu0 %506
      %v508 = vsel %vm495, %v481, 0.0
      %509 = vadd.xlane.f32.xlu0 %v508
      %v510 = vpop.xlane.xlu0 %509
      %v511 = vsel %vm495, %v482, 0.0
      %512 = vadd.xlane.f32.xlu0 %v511
      %v513 = vpop.xlane.xlu0 %512
      %v514 = vsel %vm495, %v483, 0.0
      %515 = vadd.xlane.f32.xlu0 %v514
      %v516 = vpop.xlane.xlu0 %515
      %v517 = vsel %vm495, %v484, 0.0
      %518 = vadd.xlane.f32.xlu0 %v517
      %v519 = vpop.xlane.xlu0 %518
      %v520 = vsel %vm495, %v485, 0.0
      %521 = vadd.xlane.f32.xlu0 %v520
      %v522 = vpop.xlane.xlu0 %521
      %v523 = vsel %vm495, %v486, 0.0
      %524 = vadd.xlane.f32.xlu0 %v523
      %v525 = vpop.xlane.xlu0 %524
      %v526 = vsel %vm495, %v487, 0.0
      %527 = vadd.xlane.f32.xlu0 %v526
      %v528 = vpop.xlane.xlu0 %527
      %v529 = vsel %vm495, %v488, 0.0
      %530 = vadd.xlane.f32.xlu0 %v529
      %v531 = vpop.xlane.xlu0 %530
      %v532 = vsel %vm495, %v489, 0.0
      %533 = vadd.xlane.f32.xlu0 %v532
      %v534 = vpop.xlane.xlu0 %533
      %v535 = vsel %vm495, %v490, 0.0
      %536 = vadd.xlane.f32.xlu0 %v535
      %v537 = vpop.xlane.xlu0 %536
      %v538 = vsel %vm495, %v491, 0.0
      %539 = vadd.xlane.f32.xlu0 %v538
      %v540 = vpop.xlane.xlu0 %539
      %v541 = vsel %vm495, %v492, 0.0
      %542 = vadd.xlane.f32.xlu0 %v541
      %v543 = vpop.xlane.xlu0 %542
      %v544 = vrcp.pop 32.0
      %v545 = vmul.f32 32.0, %v544
      %v546 = vsub.f32 1.0, %v545
      %v547 = vmul.f32 %v544, %v546
      %v548 = vadd.f32 %v544, %v547
      %vm549 = vweird.f32 %v544
      %v550 = vsel %vm549, %v544, %v548
      %v551 = vmul.f32 %v498, %v550
      %v552 = vmul.f32 %v501, %v550
      %v553 = vmul.f32 %v504, %v550
      %v554 = vmul.f32 %v507, %v550
      %v555 = vmul.f32 %v510, %v550
      %v556 = vmul.f32 %v513, %v550
      %v557 = vmul.f32 %v516, %v550
      %v558 = vmul.f32 %v519, %v550
      %v559 = vmul.f32 %v522, %v550
      %v560 = vmul.f32 %v525, %v550
      %v561 = vmul.f32 %v528, %v550
      %v562 = vmul.f32 %v531, %v550
      %v563 = vmul.f32 %v534, %v550
      %v564 = vmul.f32 %v537, %v550
      %v565 = vmul.f32 %v540, %v550
      %v566 = vmul.f32 %v543, %v550
      %v567 = vsub.f32 %v477, %v551
      %v568 = vsub.f32 %v478, %v552
      %v569 = vsub.f32 %v479, %v553
      %v570 = vsub.f32 %v480, %v554
      %v571 = vsub.f32 %v481, %v555
      %v572 = vsub.f32 %v482, %v556
      %v573 = vsub.f32 %v483, %v557
      %v574 = vsub.f32 %v484, %v558
      %v575 = vsub.f32 %v485, %v559
      %v576 = vsub.f32 %v486, %v560
      %v577 = vsub.f32 %v487, %v561
      %v578 = vsub.f32 %v488, %v562
      %v579 = vsub.f32 %v489, %v563
      %v580 = vsub.f32 %v490, %v564
      %v581 = vsub.f32 %v491, %v565
      %v582 = vsub.f32 %v492, %v566
      %v583 = vmul.f32 %v567, %v567
      %v584 = vmul.f32 %v568, %v568
      %v585 = vmul.f32 %v569, %v569
      %v586 = vmul.f32 %v570, %v570
      %v587 = vmul.f32 %v571, %v571
      %v588 = vmul.f32 %v572, %v572
      %v589 = vmul.f32 %v573, %v573
      %v590 = vmul.f32 %v574, %v574
      %v591 = vmul.f32 %v575, %v575
      %v592 = vmul.f32 %v576, %v576
      %v593 = vmul.f32 %v577, %v577
      %v594 = vmul.f32 %v578, %v578
      %v595 = vmul.f32 %v579, %v579
      %v596 = vmul.f32 %v580, %v580
      %v597 = vmul.f32 %v581, %v581
      %v598 = vmul.f32 %v582, %v582
      %v599 = vsel %vm495, %v583, 0.0
      %600 = vadd.xlane.f32.xlu0 %v599
      %v601 = vpop.xlane.xlu0 %600
      %v602 = vsel %vm495, %v584, 0.0
      %603 = vadd.xlane.f32.xlu0 %v602
      %v604 = vpop.xlane.xlu0 %603
      %v605 = vsel %vm495, %v585, 0.0
      %606 = vadd.xlane.f32.xlu0 %v605
      %v607 = vpop.xlane.xlu0 %606
      %v608 = vsel %vm495, %v586, 0.0
      %609 = vadd.xlane.f32.xlu0 %v608
      %v610 = vpop.xlane.xlu0 %609
      %v611 = vsel %vm495, %v587, 0.0
      %612 = vadd.xlane.f32.xlu0 %v611
      %v613 = vpop.xlane.xlu0 %612
      %v614 = vsel %vm495, %v588, 0.0
      %615 = vadd.xlane.f32.xlu0 %v614
      %v616 = vpop.xlane.xlu0 %615
      %v617 = vsel %vm495, %v589, 0.0
      %618 = vadd.xlane.f32.xlu0 %v617
      %v619 = vpop.xlane.xlu0 %618
      %v620 = vsel %vm495, %v590, 0.0
      %621 = vadd.xlane.f32.xlu0 %v620
      %v622 = vpop.xlane.xlu0 %621
      %v623 = vsel %vm495, %v591, 0.0
      %624 = vadd.xlane.f32.xlu0 %v623
      %v625 = vpop.xlane.xlu0 %624
      %v626 = vsel %vm495, %v592, 0.0
      %627 = vadd.xlane.f32.xlu0 %v626
      %v628 = vpop.xlane.xlu0 %627
      %v629 = vsel %vm495, %v593, 0.0
      %630 = vadd.xlane.f32.xlu0 %v629
      %v631 = vpop.xlane.xlu0 %630
      %v632 = vsel %vm495, %v594, 0.0
      %633 = vadd.xlane.f32.xlu0 %v632
      %v634 = vpop.xlane.xlu0 %633
      %v635 = vsel %vm495, %v595, 0.0
      %636 = vadd.xlane.f32.xlu0 %v635
      %v637 = vpop.xlane.xlu0 %636
      %v638 = vsel %vm495, %v596, 0.0
      %639 = vadd.xlane.f32.xlu0 %v638
      %v640 = vpop.xlane.xlu0 %639
      %v641 = vsel %vm495, %v597, 0.0
      %642 = vadd.xlane.f32.xlu0 %v641
      %v643 = vpop.xlane.xlu0 %642
      %v644 = vsel %vm495, %v598, 0.0
      %645 = vadd.xlane.f32.xlu0 %v644
      %v646 = vpop.xlane.xlu0 %645
      %v647 = vmul.f32 %v601, %v550
      %v648 = vmul.f32 %v604, %v550
      %v649 = vmul.f32 %v607, %v550
      %v650 = vmul.f32 %v610, %v550
      %v651 = vmul.f32 %v613, %v550
      %v652 = vmul.f32 %v616, %v550
      %v653 = vmul.f32 %v619, %v550
      %v654 = vmul.f32 %v622, %v550
      %v655 = vmul.f32 %v625, %v550
      %v656 = vmul.f32 %v628, %v550
      %v657 = vmul.f32 %v631, %v550
      %v658 = vmul.f32 %v634, %v550
      %v659 = vmul.f32 %v637, %v550
      %v660 = vmul.f32 %v640, %v550
      %v661 = vmul.f32 %v643, %v550
      %v662 = vmul.f32 %v646, %v550
      %v663 = vadd.f32 %v647, 1e-05
      %v664 = vadd.f32 %v648, 1e-05
      %v665 = vadd.f32 %v649, 1e-05
      %v666 = vadd.f32 %v650, 1e-05
      %v667 = vadd.f32 %v651, 1e-05
      %v668 = vadd.f32 %v652, 1e-05
      %v669 = vadd.f32 %v653, 1e-05
      %v670 = vadd.f32 %v654, 1e-05
      %v671 = vadd.f32 %v655, 1e-05
      %v672 = vadd.f32 %v656, 1e-05
      %v673 = vadd.f32 %v657, 1e-05
      %v674 = vadd.f32 %v658, 1e-05
      %v675 = vadd.f32 %v659, 1e-05
      %v676 = vadd.f32 %v660, 1e-05
      %v677 = vadd.f32 %v661, 1e-05
      %v678 = vadd.f32 %v662, 1e-05
      %v679 = vrsqrt.pop %v663
      %v680 = vmul.f32 %v679, %v663
      %v681 = vmul.f32 %v680, %v679
      %v682 = vmul.f32 0.5, %v681
      %v683 = vsub.f32 1.5, %v682
      %v684 = vmul.f32 %v679, %v683
      %vm685 = vweird.f32 %v663
      %vm686 = vweird.f32 %v679
      %vm687 = vmor %vm685, %vm686
      %v688 = vsel %vm687, %v679, %v684
      %v689 = vrsqrt.pop %v664
      %v690 = vmul.f32 %v689, %v664
      %v691 = vmul.f32 %v690, %v689
      %v692 = vmul.f32 0.5, %v691
      %v693 = vsub.f32 1.5, %v692
      %v694 = vmul.f32 %v689, %v693
      %vm695 = vweird.f32 %v664
      %vm696 = vweird.f32 %v689
      %vm697 = vmor %vm695, %vm696
      %v698 = vsel %vm697, %v689, %v694
      %v699 = vrsqrt.pop %v665
      %v700 = vmul.f32 %v699, %v665
      %v701 = vmul.f32 %v700, %v699
      %v702 = vmul.f32 0.5, %v701
      %v703 = vsub.f32 1.5, %v702
      %v704 = vmul.f32 %v699, %v703
      %vm705 = vweird.f32 %v665
      %vm706 = vweird.f32 %v699
      %vm707 = vmor %vm705, %vm706
      %v708 = vsel %vm707, %v699, %v704
      %v709 = vrsqrt.pop %v666
      %v710 = vmul.f32 %v709, %v666
      %v711 = vmul.f32 %v710, %v709
      %v712 = vmul.f32 0.5, %v711
      %v713 = vsub.f32 1.5, %v712
      %v714 = vmul.f32 %v709, %v713
      %vm715 = vweird.f32 %v666
      %vm716 = vweird.f32 %v709
      %vm717 = vmor %vm715, %vm716
      %v718 = vsel %vm717, %v709, %v714
      %v719 = vrsqrt.pop %v667
      %v720 = vmul.f32 %v719, %v667
      %v721 = vmul.f32 %v720, %v719
      %v722 = vmul.f32 0.5, %v721
      %v723 = vsub.f32 1.5, %v722
      %v724 = vmul.f32 %v719, %v723
      %vm725 = vweird.f32 %v667
      %vm726 = vweird.f32 %v719
      %vm727 = vmor %vm725, %vm726
      %v728 = vsel %vm727, %v719, %v724
      %v729 = vrsqrt.pop %v668
      %v730 = vmul.f32 %v729, %v668
      %v731 = vmul.f32 %v730, %v729
      %v732 = vmul.f32 0.5, %v731
      %v733 = vsub.f32 1.5, %v732
      %v734 = vmul.f32 %v729, %v733
      %vm735 = vweird.f32 %v668
      %vm736 = vweird.f32 %v729
      %vm737 = vmor %vm735, %vm736
      %v738 = vsel %vm737, %v729, %v734
      %v739 = vrsqrt.pop %v669
      %v740 = vmul.f32 %v739, %v669
      %v741 = vmul.f32 %v740, %v739
      %v742 = vmul.f32 0.5, %v741
      %v743 = vsub.f32 1.5, %v742
      %v744 = vmul.f32 %v739, %v743
      %vm745 = vweird.f32 %v669
      %vm746 = vweird.f32 %v739
      %vm747 = vmor %vm745, %vm746
      %v748 = vsel %vm747, %v739, %v744
      %v749 = vrsqrt.pop %v670
      %v750 = vmul.f32 %v749, %v670
      %v751 = vmul.f32 %v750, %v749
      %v752 = vmul.f32 0.5, %v751
      %v753 = vsub.f32 1.5, %v752
      %v754 = vmul.f32 %v749, %v753
      %vm755 = vweird.f32 %v670
      %vm756 = vweird.f32 %v749
      %vm757 = vmor %vm755, %vm756
      %v758 = vsel %vm757, %v749, %v754
      %v759 = vrsqrt.pop %v671
      %v760 = vmul.f32 %v759, %v671
      %v761 = vmul.f32 %v760, %v759
      %v762 = vmul.f32 0.5, %v761
      %v763 = vsub.f32 1.5, %v762
      %v764 = vmul.f32 %v759, %v763
      %vm765 = vweird.f32 %v671
      %vm766 = vweird.f32 %v759
      %vm767 = vmor %vm765, %vm766
      %v768 = vsel %vm767, %v759, %v764
      %v769 = vrsqrt.pop %v672
      %v770 = vmul.f32 %v769, %v672
      %v771 = vmul.f32 %v770, %v769
      %v772 = vmul.f32 0.5, %v771
      %v773 = vsub.f32 1.5, %v772
      %v774 = vmul.f32 %v769, %v773
      %vm775 = vweird.f32 %v672
      %vm776 = vweird.f32 %v769
      %vm777 = vmor %vm775, %vm776
      %v778 = vsel %vm777, %v769, %v774
      %v779 = vrsqrt.pop %v673
      %v780 = vmul.f32 %v779, %v673
      %v781 = vmul.f32 %v780, %v779
      %v782 = vmul.f32 0.5, %v781
      %v783 = vsub.f32 1.5, %v782
      %v784 = vmul.f32 %v779, %v783
      %vm785 = vweird.f32 %v673
      %vm786 = vweird.f32 %v779
      %vm787 = vmor %vm785, %vm786
      %v788 = vsel %vm787, %v779, %v784
      %v789 = vrsqrt.pop %v674
      %v790 = vmul.f32 %v789, %v674
      %v791 = vmul.f32 %v790, %v789
      %v792 = vmul.f32 0.5, %v791
      %v793 = vsub.f32 1.5, %v792
      %v794 = vmul.f32 %v789, %v793
      %vm795 = vweird.f32 %v674
      %vm796 = vweird.f32 %v789
      %vm797 = vmor %vm795, %vm796
      %v798 = vsel %vm797, %v789, %v794
      %v799 = vrsqrt.pop %v675
      %v800 = vmul.f32 %v799, %v675
      %v801 = vmul.f32 %v800, %v799
      %v802 = vmul.f32 0.5, %v801
      %v803 = vsub.f32 1.5, %v802
      %v804 = vmul.f32 %v799, %v803
      %vm805 = vweird.f32 %v675
      %vm806 = vweird.f32 %v799
      %vm807 = vmor %vm805, %vm806
      %v808 = vsel %vm807, %v799, %v804
      %v809 = vrsqrt.pop %v676
      %v810 = vmul.f32 %v809, %v676
      %v811 = vmul.f32 %v810, %v809
      %v812 = vmul.f32 0.5, %v811
      %v813 = vsub.f32 1.5, %v812
      %v814 = vmul.f32 %v809, %v813
      %vm815 = vweird.f32 %v676
      %vm816 = vweird.f32 %v809
      %vm817 = vmor %vm815, %vm816
      %v818 = vsel %vm817, %v809, %v814
      %v819 = vrsqrt.pop %v677
      %v820 = vmul.f32 %v819, %v677
      %v821 = vmul.f32 %v820, %v819
      %v822 = vmul.f32 0.5, %v821
      %v823 = vsub.f32 1.5, %v822
      %v824 = vmul.f32 %v819, %v823
      %vm825 = vweird.f32 %v677
      %vm826 = vweird.f32 %v819
      %vm827 = vmor %vm825, %vm826
      %v828 = vsel %vm827, %v819, %v824
      %v829 = vrsqrt.pop %v678
      %v830 = vmul.f32 %v829, %v678
      %v831 = vmul.f32 %v830, %v829
      %v832 = vmul.f32 0.5, %v831
      %v833 = vsub.f32 1.5, %v832
      %v834 = vmul.f32 %v829, %v833
      %vm835 = vweird.f32 %v678
      %vm836 = vweird.f32 %v829
      %vm837 = vmor %vm835, %vm836
      %v838 = vsel %vm837, %v829, %v834
      %v839 = vmul.f32 %v567, %v688
      %v840 = vmul.f32 %v568, %v698
      %v841 = vmul.f32 %v569, %v708
      %v842 = vmul.f32 %v570, %v718
      %v843 = vmul.f32 %v571, %v728
      %v844 = vmul.f32 %v572, %v738
      %v845 = vmul.f32 %v573, %v748
      %v846 = vmul.f32 %v574, %v758
      %v847 = vmul.f32 %v575, %v768
      %v848 = vmul.f32 %v576, %v778
      %v849 = vmul.f32 %v577, %v788
      %v850 = vmul.f32 %v578, %v798
      %v851 = vmul.f32 %v579, %v808
      %v852 = vmul.f32 %v580, %v818
      %v853 = vmul.f32 %v581, %v828
      %v854 = vmul.f32 %v582, %v838
      %v856 = vperm.slane %v493, 0
      %v858 = vmul.f32 %v839, %v856
      %v859 = vmul.f32 %v840, %v856
      %v860 = vmul.f32 %v841, %v856
      %v861 = vmul.f32 %v842, %v856
      %v862 = vmul.f32 %v843, %v856
      %v863 = vmul.f32 %v844, %v856
      %v864 = vmul.f32 %v845, %v856
      %v865 = vmul.f32 %v846, %v856
      %v866 = vmul.f32 %v847, %v856
      %v867 = vmul.f32 %v848, %v856
      %v868 = vmul.f32 %v849, %v856
      %v869 = vmul.f32 %v850, %v856
      %v870 = vmul.f32 %v851, %v856
      %v871 = vmul.f32 %v852, %v856
      %v872 = vmul.f32 %v853, %v856
      %v873 = vmul.f32 %v854, %v856
      %v875 = vperm.slane %v494, 0
      %v877 = vadd.f32 %v858, %v875
      %v878 = vadd.f32 %v859, %v875
      %v879 = vadd.f32 %v860, %v875
      %v880 = vadd.f32 %v861, %v875
      %v881 = vadd.f32 %v862, %v875
      %v882 = vadd.f32 %v863, %v875
      %v883 = vadd.f32 %v864, %v875
      %v884 = vadd.f32 %v865, %v875
      %v885 = vadd.f32 %v866, %v875
      %v886 = vadd.f32 %v867, %v875
      %v887 = vadd.f32 %v868, %v875
      %v888 = vadd.f32 %v869, %v875
      %v889 = vadd.f32 %v870, %v875
      %v890 = vadd.f32 %v871, %v875
      %v891 = vadd.f32 %v872, %v875
      %v892 = vadd.f32 %v873, %v875
      %v893 = vpack.c.bf16 %v878, %v877
      %v894 = vpack.c.bf16 %v880, %v879
      %v895 = vpack.c.bf16 %v882, %v881
      %v896 = vpack.c.bf16 %v884, %v883
      %v897 = vpack.c.bf16 %v886, %v885
      %v898 = vpack.c.bf16 %v888, %v887
      %v899 = vpack.c.bf16 %v890, %v889
      %v900 = vpack.c.bf16 %v892, %v891
      %v901 = vld [vmem:[%s3] sm:$0xf]
      %v902 = vld [vmem:[%s3 + $0x4] sm:$0xf]
      %v903 = vld [vmem:[%s3 + $0x8] sm:$0xf]
      %v904 = vld [vmem:[%s3 + $0xc] sm:$0xf]
      %v905 = vld [vmem:[%s4] sm:$0x1]
      %v907 = vperm.slane %v905, 0
      %v913 = vunpack.c.l.b16 %v901
      %v914 = vunpack.c.l.b16 %v902
      %v915 = vunpack.c.l.b16 %v903
      %v916 = vunpack.c.l.b16 %v904
      %v917 = vpack.c.b16 %v914, %v913
      %v918 = vpack.c.b16 %v916, %v915
      %v922 = vsel %vm495, %v893, 0
      %v925 = vsel %vm495, %v894, 0
      %v928 = vsel %vm495, %v895, 0
      %v931 = vsel %vm495, %v896, 0
      %v934 = vsel %vm495, %v897, 0
      %v937 = vsel %vm495, %v898, 0
      %v940 = vsel %vm495, %v899, 0
      %v943 = vsel %vm495, %v900, 0
      %945 = vmatpush.bf16.msra.mxu0 0
      %946 = vmatpush.bf16.msra.mxu0 0
      %947 = vmatpush.bf16.msra.mxu0 0
      %948 = vmatpush.bf16.msra.mxu0 0
      %949 = vmatpush.bf16.msra.mxu0 0
      %950 = vmatpush.bf16.msra.mxu0 0
      %951 = vmatpush.bf16.msra.mxu0 %v918
      %952 = vmatpush.bf16.msra.mxu0 %v917
      %953 = vmatmul.bf16.gmra.mxu0 %v922
      %v954 = vpop.f32.mrf.mxu0
      %v955 = vadd.f32 %v907, %v954
      %v956 = vpop.f32.mrf.mxu0
      %v957 = vadd.f32 %v907, %v956
      %958 = vmatmul.bf16.gmra.mxu0 %v925
      %v959 = vpop.f32.mrf.mxu0
      %v960 = vadd.f32 %v907, %v959
      %v961 = vpop.f32.mrf.mxu0
      %v962 = vadd.f32 %v907, %v961
      %963 = vmatmul.bf16.gmra.mxu0 %v928
      %v964 = vpop.f32.mrf.mxu0
      %v965 = vadd.f32 %v907, %v964
      %v966 = vpop.f32.mrf.mxu0
      %v967 = vadd.f32 %v907, %v966
      %968 = vmatmul.bf16.gmra.mxu0 %v931
      %v969 = vpop.f32.mrf.mxu0
      %v970 = vadd.f32 %v907, %v969
      %v971 = vpop.f32.mrf.mxu0
      %v972 = vadd.f32 %v907, %v971
      %973 = vmatmul.bf16.gmra.mxu0 %v934
      %v974 = vpop.f32.mrf.mxu0
      %v975 = vadd.f32 %v907, %v974
      %v976 = vpop.f32.mrf.mxu0
      %v977 = vadd.f32 %v907, %v976
      %978 = vmatmul.bf16.gmra.mxu0 %v937
      %v979 = vpop.f32.mrf.mxu0
      %v980 = vadd.f32 %v907, %v979
      %v981 = vpop.f32.mrf.mxu0
      %v982 = vadd.f32 %v907, %v981
      %983 = vmatmul.bf16.gmra.mxu0 %v940
      %v984 = vpop.f32.mrf.mxu0
      %v985 = vadd.f32 %v907, %v984
      %v986 = vpop.f32.mrf.mxu0
      %v987 = vadd.f32 %v907, %v986
      %988 = vmatmul.bf16.gmra.mxu0 %v943
      %v989 = vpop.f32.mrf.mxu0
      %v990 = vadd.f32 %v907, %v989
      %v991 = vpop.f32.mrf.mxu0
      %v992 = vadd.f32 %v907, %v991
      %993 = vdwg.mxu0
      %v994 = vpack.c.bf16 %v955, %v955
      %v995 = vpack.c.bf16 %v957, %v957
      %v996 = vpack.c.bf16 %v960, %v960
      %v997 = vpack.c.bf16 %v962, %v962
      %v998 = vpack.c.bf16 %v965, %v965
      %v999 = vpack.c.bf16 %v967, %v967
      %v1000 = vpack.c.bf16 %v970, %v970
      %v1001 = vpack.c.bf16 %v972, %v972
      %v1002 = vpack.c.bf16 %v975, %v975
      %v1003 = vpack.c.bf16 %v977, %v977
      %v1004 = vpack.c.bf16 %v980, %v980
      %v1005 = vpack.c.bf16 %v982, %v982
      %v1006 = vpack.c.bf16 %v985, %v985
      %v1007 = vpack.c.bf16 %v987, %v987
      %v1008 = vpack.c.bf16 %v990, %v990
      %v1009 = vpack.c.bf16 %v992, %v992
      %1026 = vrot.lane.b32.xlu0 %v994, 120
      %v1027 = vpop.permute.xlu0 %1026
      %1028 = vrot.lane.b32.xlu0 %v995, 120
      %v1029 = vpop.permute.xlu0 %1028
      %1030 = vrot.lane.b32.xlu0 %v996, 120
      %v1031 = vpop.permute.xlu0 %1030
      %1032 = vrot.lane.b32.xlu0 %v997, 120
      %v1033 = vpop.permute.xlu0 %1032
      %1034 = vrot.lane.b32.xlu0 %v998, 120
      %v1035 = vpop.permute.xlu0 %1034
      %1036 = vrot.lane.b32.xlu0 %v999, 120
      %v1037 = vpop.permute.xlu0 %1036
      %1038 = vrot.lane.b32.xlu0 %v1000, 120
      %v1039 = vpop.permute.xlu0 %1038
      %1040 = vrot.lane.b32.xlu0 %v1001, 120
      %v1041 = vpop.permute.xlu0 %1040
      %1042 = vrot.lane.b32.xlu0 %v1002, 120
      %v1043 = vpop.permute.xlu0 %1042
      %1044 = vrot.lane.b32.xlu0 %v1003, 120
      %v1045 = vpop.permute.xlu0 %1044
      %1046 = vrot.lane.b32.xlu0 %v1004, 120
      %v1047 = vpop.permute.xlu0 %1046
      %1048 = vrot.lane.b32.xlu0 %v1005, 120
      %v1049 = vpop.permute.xlu0 %1048
      %1050 = vrot.lane.b32.xlu0 %v1006, 120
      %v1051 = vpop.permute.xlu0 %1050
      %1052 = vrot.lane.b32.xlu0 %v1007, 120
      %v1053 = vpop.permute.xlu0 %1052
      %1054 = vrot.lane.b32.xlu0 %v1008, 120
      %v1055 = vpop.permute.xlu0 %1054
      %1056 = vrot.lane.b32.xlu0 %v1009, 120
      %v1057 = vpop.permute.xlu0 %1056
      %1058 = vrot.lane.b32.xlu0 %v994, 112
      %v1059 = vpop.permute.xlu0 %1058
      %1060 = vrot.lane.b32.xlu0 %v995, 112
      %v1061 = vpop.permute.xlu0 %1060
      %1062 = vrot.lane.b32.xlu0 %v996, 112
      %v1063 = vpop.permute.xlu0 %1062
      %1064 = vrot.lane.b32.xlu0 %v997, 112
      %v1065 = vpop.permute.xlu0 %1064
      %1066 = vrot.lane.b32.xlu0 %v998, 112
      %v1067 = vpop.permute.xlu0 %1066
      %1068 = vrot.lane.b32.xlu0 %v999, 112
      %v1069 = vpop.permute.xlu0 %1068
      %1070 = vrot.lane.b32.xlu0 %v1000, 112
      %v1071 = vpop.permute.xlu0 %1070
      %1072 = vrot.lane.b32.xlu0 %v1001, 112
      %v1073 = vpop.permute.xlu0 %1072
      %1074 = vrot.lane.b32.xlu0 %v1002, 112
      %v1075 = vpop.permute.xlu0 %1074
      %1076 = vrot.lane.b32.xlu0 %v1003, 112
      %v1077 = vpop.permute.xlu0 %1076
      %1078 = vrot.lane.b32.xlu0 %v1004, 112
      %v1079 = vpop.permute.xlu0 %1078
      %1080 = vrot.lane.b32.xlu0 %v1005, 112
      %v1081 = vpop.permute.xlu0 %1080
      %1082 = vrot.lane.b32.xlu0 %v1006, 112
      %v1083 = vpop.permute.xlu0 %1082
      %1084 = vrot.lane.b32.xlu0 %v1007, 112
      %v1085 = vpop.permute.xlu0 %1084
      %1086 = vrot.lane.b32.xlu0 %v1008, 112
      %v1087 = vpop.permute.xlu0 %1086
      %1088 = vrot.lane.b32.xlu0 %v1009, 112
      %v1089 = vpop.permute.xlu0 %1088
      %1090 = vrot.lane.b32.xlu0 %v994, 104
      %v1091 = vpop.permute.xlu0 %1090
      %1092 = vrot.lane.b32.xlu0 %v995, 104
      %v1093 = vpop.permute.xlu0 %1092
      %1094 = vrot.lane.b32.xlu0 %v996, 104
      %v1095 = vpop.permute.xlu0 %1094
      %1096 = vrot.lane.b32.xlu0 %v997, 104
      %v1097 = vpop.permute.xlu0 %1096
      %1098 = vrot.lane.b32.xlu0 %v998, 104
      %v1099 = vpop.permute.xlu0 %1098
      %1100 = vrot.lane.b32.xlu0 %v999, 104
      %v1101 = vpop.permute.xlu0 %1100
      %1102 = vrot.lane.b32.xlu0 %v1000, 104
      %v1103 = vpop.permute.xlu0 %1102
      %1104 = vrot.lane.b32.xlu0 %v1001, 104
      %v1105 = vpop.permute.xlu0 %1104
      %1106 = vrot.lane.b32.xlu0 %v1002, 104
      %v1107 = vpop.permute.xlu0 %1106
      %1108 = vrot.lane.b32.xlu0 %v1003, 104
      %v1109 = vpop.permute.xlu0 %1108
      %1110 = vrot.lane.b32.xlu0 %v1004, 104
      %v1111 = vpop.permute.xlu0 %1110
      %1112 = vrot.lane.b32.xlu0 %v1005, 104
      %v1113 = vpop.permute.xlu0 %1112
      %1114 = vrot.lane.b32.xlu0 %v1006, 104
      %v1115 = vpop.permute.xlu0 %1114
      %1116 = vrot.lane.b32.xlu0 %v1007, 104
      %v1117 = vpop.permute.xlu0 %1116
      %1118 = vrot.lane.b32.xlu0 %v1008, 104
      %v1119 = vpop.permute.xlu0 %1118
      %1120 = vrot.lane.b32.xlu0 %v1009, 104
      %v1121 = vpop.permute.xlu0 %1120
      %v1122 = vunpack.c.l.b16 %v994
      %v1123 = vunpack.c.l.b16 %v995
      %v1124 = vunpack.c.l.b16 %v996
      %v1125 = vunpack.c.l.b16 %v997
      %v1126 = vpack.c.b16 %v1123, %v1122
      %v1127 = vpack.c.b16 %v1125, %v1124
      %1128 = vrot.lane.b32.xlu0 %v1126, 96
      %v1129 = vpop.permute.xlu0 %1128
      %1130 = vrot.lane.b32.xlu0 %v1127, 96
      %v1131 = vpop.permute.xlu0 %1130
      %vm1132 = vcmask 64512
      %v1134 = vsel %vm1132, %v1126, 0
      %v1137 = vsel %vm1132, %v1127, 0
      %v1140 = vsel %vm1132, %v1129, 0
      %v1143 = vsel %vm1132, %v1131, 0
      %1145 = vmatpush.bf16.xpose.msra.mxu0 0
      %1146 = vmatpush.bf16.xpose.msra.mxu0 0
      %1147 = vmatpush.bf16.xpose.msra.mxu0 0
      %1148 = vmatpush.bf16.xpose.msra.mxu0 0
      %1149 = vmatpush.bf16.xpose.msra.mxu0 0
      %1150 = vmatpush.bf16.xpose.msra.mxu0 0
      %1151 = vmatpush.bf16.xpose.msra.mxu0 %v1143
      %1152 = vmatpush.bf16.xpose.msra.mxu0 %v1140
      %1153 = vmatmul.bf16.gmra.mxu0 %v1134
      %v1154 = vpop.f32.mrf.mxu0
      %v1155 = vadd.f32 0.0, %v1154
      %v1156 = vpop.f32.mrf.mxu0
      %v1157 = vadd.f32 0.0, %v1156
      %1158 = vmatmul.bf16.gmra.mxu0 %v1137
      %v1159 = vpop.f32.mrf.mxu0
      %v1160 = vadd.f32 0.0, %v1159
      %v1161 = vpop.f32.mrf.mxu0
      %v1162 = vadd.f32 0.0, %v1161
      %1163 = vdwg.mxu0
      %v1164 = vunpack.c.l.b16 %v1027
      %v1165 = vunpack.c.l.b16 %v1029
      %v1166 = vunpack.c.l.b16 %v1031
      %v1167 = vunpack.c.l.b16 %v1033
      %v1168 = vpack.c.b16 %v1165, %v1164
      %v1169 = vpack.c.b16 %v1167, %v1166
      %1170 = vrot.lane.b32.xlu0 %v1168, 96
      %v1171 = vpop.permute.xlu0 %1170
      %1172 = vrot.lane.b32.xlu0 %v1169, 96
      %v1173 = vpop.permute.xlu0 %1172
      %v1175 = vsel %vm1132, %v1168, 0
      %v1178 = vsel %vm1132, %v1169, 0
      %v1181 = vsel %vm1132, %v1171, 0
      %v1184 = vsel %vm1132, %v1173, 0
      %1186 = vmatpush.bf16.xpose.msra.mxu0 0
      %1187 = vmatpush.bf16.xpose.msra.mxu0 0
      %1188 = vmatpush.bf16.xpose.msra.mxu0 0
      %1189 = vmatpush.bf16.xpose.msra.mxu0 0
      %1190 = vmatpush.bf16.xpose.msra.mxu0 0
      %1191 = vmatpush.bf16.xpose.msra.mxu0 0
      %1192 = vmatpush.bf16.xpose.msra.mxu0 %v1184
      %1193 = vmatpush.bf16.xpose.msra.mxu0 %v1181
      %1194 = vmatmul.bf16.gmra.mxu0 %v1175
      %v1195 = vpop.f32.mrf.mxu0
      %v1196 = vadd.f32 0.0, %v1195
      %v1197 = vpop.f32.mrf.mxu0
      %v1198 = vadd.f32 0.0, %v1197
      %1199 = vmatmul.bf16.gmra.mxu0 %v1178
      %v1200 = vpop.f32.mrf.mxu0
      %v1201 = vadd.f32 0.0, %v1200
      %v1202 = vpop.f32.mrf.mxu0
      %v1203 = vadd.f32 0.0, %v1202
      %1204 = vdwg.mxu0
      %v1205 = vunpack.c.l.b16 %v1059
      %v1206 = vunpack.c.l.b16 %v1061
      %v1207 = vunpack.c.l.b16 %v1063
      %v1208 = vunpack.c.l.b16 %v1065
      %v1209 = vpack.c.b16 %v1206, %v1205
      %v1210 = vpack.c.b16 %v1208, %v1207
      %1211 = vrot.lane.b32.xlu0 %v1209, 96
      %v1212 = vpop.permute.xlu0 %1211
      %1213 = vrot.lane.b32.xlu0 %v1210, 96
      %v1214 = vpop.permute.xlu0 %1213
      %v1216 = vsel %vm1132, %v1209, 0
      %v1219 = vsel %vm1132, %v1210, 0
      %v1222 = vsel %vm1132, %v1212, 0
      %v1225 = vsel %vm1132, %v1214, 0
      %1227 = vmatpush.bf16.xpose.msra.mxu0 0
      %1228 = vmatpush.bf16.xpose.msra.mxu0 0
      %1229 = vmatpush.bf16.xpose.msra.mxu0 0
      %1230 = vmatpush.bf16.xpose.msra.mxu0 0
      %1231 = vmatpush.bf16.xpose.msra.mxu0 0
      %1232 = vmatpush.bf16.xpose.msra.mxu0 0
      %1233 = vmatpush.bf16.xpose.msra.mxu0 %v1225
      %1234 = vmatpush.bf16.xpose.msra.mxu0 %v1222
      %1235 = vmatmul.bf16.gmra.mxu0 %v1216
      %v1236 = vpop.f32.mrf.mxu0
      %v1237 = vadd.f32 0.0, %v1236
      %v1238 = vpop.f32.mrf.mxu0
      %v1239 = vadd.f32 0.0, %v1238
      %1240 = vmatmul.bf16.gmra.mxu0 %v1219
      %v1241 = vpop.f32.mrf.mxu0
      %v1242 = vadd.f32 0.0, %v1241
      %v1243 = vpop.f32.mrf.mxu0
      %v1244 = vadd.f32 0.0, %v1243
      %1245 = vdwg.mxu0
      %v1246 = vunpack.c.l.b16 %v1091
      %v1247 = vunpack.c.l.b16 %v1093
      %v1248 = vunpack.c.l.b16 %v1095
      %v1249 = vunpack.c.l.b16 %v1097
      %v1250 = vpack.c.b16 %v1247, %v1246
      %v1251 = vpack.c.b16 %v1249, %v1248
      %1252 = vrot.lane.b32.xlu0 %v1250, 96
      %v1253 = vpop.permute.xlu0 %1252
      %1254 = vrot.lane.b32.xlu0 %v1251, 96
      %v1255 = vpop.permute.xlu0 %1254
      %v1257 = vsel %vm1132, %v1250, 0
      %v1260 = vsel %vm1132, %v1251, 0
      %v1263 = vsel %vm1132, %v1253, 0
      %v1266 = vsel %vm1132, %v1255, 0
      %1268 = vmatpush.bf16.xpose.msra.mxu0 0
      %1269 = vmatpush.bf16.xpose.msra.mxu0 0
      %1270 = vmatpush.bf16.xpose.msra.mxu0 0
      %1271 = vmatpush.bf16.xpose.msra.mxu0 0
      %1272 = vmatpush.bf16.xpose.msra.mxu0 0
      %1273 = vmatpush.bf16.xpose.msra.mxu0 0
      %1274 = vmatpush.bf16.xpose.msra.mxu0 %v1266
      %1275 = vmatpush.bf16.xpose.msra.mxu0 %v1263
      %1276 = vmatmul.bf16.gmra.mxu0 %v1257
      %v1277 = vpop.f32.mrf.mxu0
      %v1278 = vadd.f32 0.0, %v1277
      %v1279 = vpop.f32.mrf.mxu0
      %v1280 = vadd.f32 0.0, %v1279
      %1281 = vmatmul.bf16.gmra.mxu0 %v1260
      %v1282 = vpop.f32.mrf.mxu0
      %v1283 = vadd.f32 0.0, %v1282
      %v1284 = vpop.f32.mrf.mxu0
      %v1285 = vadd.f32 0.0, %v1284
      %1286 = vdwg.mxu0
      %v1287 = vunpack.c.l.b16 %v998
      %v1288 = vunpack.c.l.b16 %v999
      %v1289 = vunpack.c.l.b16 %v1000
      %v1290 = vunpack.c.l.b16 %v1001
      %v1291 = vpack.c.b16 %v1288, %v1287
      %v1292 = vpack.c.b16 %v1290, %v1289
      %1293 = vrot.lane.b32.xlu0 %v1291, 96
      %v1294 = vpop.permute.xlu0 %1293
      %1295 = vrot.lane.b32.xlu0 %v1292, 96
      %v1296 = vpop.permute.xlu0 %1295
      %v1298 = vsel %vm1132, %v1291, 0
      %v1301 = vsel %vm1132, %v1292, 0
      %v1304 = vsel %vm1132, %v1294, 0
      %v1307 = vsel %vm1132, %v1296, 0
      %1309 = vmatpush.bf16.xpose.msra.mxu0 0
      %1310 = vmatpush.bf16.xpose.msra.mxu0 0
      %1311 = vmatpush.bf16.xpose.msra.mxu0 0
      %1312 = vmatpush.bf16.xpose.msra.mxu0 0
      %1313 = vmatpush.bf16.xpose.msra.mxu0 0
      %1314 = vmatpush.bf16.xpose.msra.mxu0 0
      %1315 = vmatpush.bf16.xpose.msra.mxu0 %v1307
      %1316 = vmatpush.bf16.xpose.msra.mxu0 %v1304
      %1317 = vmatmul.bf16.gmra.mxu0 %v1298
      %v1318 = vpop.f32.mrf.mxu0
      %v1319 = vadd.f32 0.0, %v1318
      %v1320 = vpop.f32.mrf.mxu0
      %v1321 = vadd.f32 0.0, %v1320
      %1322 = vmatmul.bf16.gmra.mxu0 %v1301
      %v1323 = vpop.f32.mrf.mxu0
      %v1324 = vadd.f32 0.0, %v1323
      %v1325 = vpop.f32.mrf.mxu0
      %v1326 = vadd.f32 0.0, %v1325
      %1327 = vdwg.mxu0
      %v1328 = vunpack.c.l.b16 %v1035
      %v1329 = vunpack.c.l.b16 %v1037
      %v1330 = vunpack.c.l.b16 %v1039
      %v1331 = vunpack.c.l.b16 %v1041
      %v1332 = vpack.c.b16 %v1329, %v1328
      %v1333 = vpack.c.b16 %v1331, %v1330
      %1334 = vrot.lane.b32.xlu0 %v1332, 96
      %v1335 = vpop.permute.xlu0 %1334
      %1336 = vrot.lane.b32.xlu0 %v1333, 96
      %v1337 = vpop.permute.xlu0 %1336
      %v1339 = vsel %vm1132, %v1332, 0
      %v1342 = vsel %vm1132, %v1333, 0
      %v1345 = vsel %vm1132, %v1335, 0
      %v1348 = vsel %vm1132, %v1337, 0
      %1350 = vmatpush.bf16.xpose.msra.mxu0 0
      %1351 = vmatpush.bf16.xpose.msra.mxu0 0
      %1352 = vmatpush.bf16.xpose.msra.mxu0 0
      %1353 = vmatpush.bf16.xpose.msra.mxu0 0
      %1354 = vmatpush.bf16.xpose.msra.mxu0 0
      %1355 = vmatpush.bf16.xpose.msra.mxu0 0
      %1356 = vmatpush.bf16.xpose.msra.mxu0 %v1348
      %1357 = vmatpush.bf16.xpose.msra.mxu0 %v1345
      %1358 = vmatmul.bf16.gmra.mxu0 %v1339
      %v1359 = vpop.f32.mrf.mxu0
      %v1360 = vadd.f32 0.0, %v1359
      %v1361 = vpop.f32.mrf.mxu0
      %v1362 = vadd.f32 0.0, %v1361
      %1363 = vmatmul.bf16.gmra.mxu0 %v1342
      %v1364 = vpop.f32.mrf.mxu0
      %v1365 = vadd.f32 0.0, %v1364
      %v1366 = vpop.f32.mrf.mxu0
      %v1367 = vadd.f32 0.0, %v1366
      %1368 = vdwg.mxu0
      %v1369 = vunpack.c.l.b16 %v1067
      %v1370 = vunpack.c.l.b16 %v1069
      %v1371 = vunpack.c.l.b16 %v1071
      %v1372 = vunpack.c.l.b16 %v1073
      %v1373 = vpack.c.b16 %v1370, %v1369
      %v1374 = vpack.c.b16 %v1372, %v1371
      %1375 = vrot.lane.b32.xlu0 %v1373, 96
      %v1376 = vpop.permute.xlu0 %1375
      %1377 = vrot.lane.b32.xlu0 %v1374, 96
      %v1378 = vpop.permute.xlu0 %1377
      %v1380 = vsel %vm1132, %v1373, 0
      %v1383 = vsel %vm1132, %v1374, 0
      %v1386 = vsel %vm1132, %v1376, 0
      %v1389 = vsel %vm1132, %v1378, 0
      %1391 = vmatpush.bf16.xpose.msra.mxu0 0
      %1392 = vmatpush.bf16.xpose.msra.mxu0 0
      %1393 = vmatpush.bf16.xpose.msra.mxu0 0
      %1394 = vmatpush.bf16.xpose.msra.mxu0 0
      %1395 = vmatpush.bf16.xpose.msra.mxu0 0
      %1396 = vmatpush.bf16.xpose.msra.mxu0 0
      %1397 = vmatpush.bf16.xpose.msra.mxu0 %v1389
      %1398 = vmatpush.bf16.xpose.msra.mxu0 %v1386
      %1399 = vmatmul.bf16.gmra.mxu0 %v1380
      %v1400 = vpop.f32.mrf.mxu0
      %v1401 = vadd.f32 0.0, %v1400
      %v1402 = vpop.f32.mrf.mxu0
      %v1403 = vadd.f32 0.0, %v1402
      %1404 = vmatmul.bf16.gmra.mxu0 %v1383
      %v1405 = vpop.f32.mrf.mxu0
      %v1406 = vadd.f32 0.0, %v1405
      %v1407 = vpop.f32.mrf.mxu0
      %v1408 = vadd.f32 0.0, %v1407
      %1409 = vdwg.mxu0
      %v1410 = vunpack.c.l.b16 %v1099
      %v1411 = vunpack.c.l.b16 %v1101
      %v1412 = vunpack.c.l.b16 %v1103
      %v1413 = vunpack.c.l.b16 %v1105
      %v1414 = vpack.c.b16 %v1411, %v1410
      %v1415 = vpack.c.b16 %v1413, %v1412
      %1416 = vrot.lane.b32.xlu0 %v1414, 96
      %v1417 = vpop.permute.xlu0 %1416
      %1418 = vrot.lane.b32.xlu0 %v1415, 96
      %v1419 = vpop.permute.xlu0 %1418
      %v1421 = vsel %vm1132, %v1414, 0
      %v1424 = vsel %vm1132, %v1415, 0
      %v1427 = vsel %vm1132, %v1417, 0
      %v1430 = vsel %vm1132, %v1419, 0
      %1432 = vmatpush.bf16.xpose.msra.mxu0 0
      %1433 = vmatpush.bf16.xpose.msra.mxu0 0
      %1434 = vmatpush.bf16.xpose.msra.mxu0 0
      %1435 = vmatpush.bf16.xpose.msra.mxu0 0
      %1436 = vmatpush.bf16.xpose.msra.mxu0 0
      %1437 = vmatpush.bf16.xpose.msra.mxu0 0
      %1438 = vmatpush.bf16.xpose.msra.mxu0 %v1430
      %1439 = vmatpush.bf16.xpose.msra.mxu0 %v1427
      %1440 = vmatmul.bf16.gmra.mxu0 %v1421
      %v1441 = vpop.f32.mrf.mxu0
      %v1442 = vadd.f32 0.0, %v1441
      %v1443 = vpop.f32.mrf.mxu0
      %v1444 = vadd.f32 0.0, %v1443
      %1445 = vmatmul.bf16.gmra.mxu0 %v1424
      %v1446 = vpop.f32.mrf.mxu0
      %v1447 = vadd.f32 0.0, %v1446
      %v1448 = vpop.f32.mrf.mxu0
      %v1449 = vadd.f32 0.0, %v1448
      %1450 = vdwg.mxu0
      %v1451 = vunpack.c.l.b16 %v1002
      %v1452 = vunpack.c.l.b16 %v1003
      %v1453 = vunpack.c.l.b16 %v1004
      %v1454 = vunpack.c.l.b16 %v1005
      %v1455 = vpack.c.b16 %v1452, %v1451
      %v1456 = vpack.c.b16 %v1454, %v1453
      %1457 = vrot.lane.b32.xlu0 %v1455, 96
      %v1458 = vpop.permute.xlu0 %1457
      %1459 = vrot.lane.b32.xlu0 %v1456, 96
      %v1460 = vpop.permute.xlu0 %1459
      %v1462 = vsel %vm1132, %v1455, 0
      %v1465 = vsel %vm1132, %v1456, 0
      %v1468 = vsel %vm1132, %v1458, 0
      %v1471 = vsel %vm1132, %v1460, 0
      %1473 = vmatpush.bf16.xpose.msra.mxu0 0
      %1474 = vmatpush.bf16.xpose.msra.mxu0 0
      %1475 = vmatpush.bf16.xpose.msra.mxu0 0
      %1476 = vmatpush.bf16.xpose.msra.mxu0 0
      %1477 = vmatpush.bf16.xpose.msra.mxu0 0
      %1478 = vmatpush.bf16.xpose.msra.mxu0 0
      %1479 = vmatpush.bf16.xpose.msra.mxu0 %v1471
      %1480 = vmatpush.bf16.xpose.msra.mxu0 %v1468
      %1481 = vmatmul.bf16.gmra.mxu0 %v1462
      %v1482 = vpop.f32.mrf.mxu0
      %v1483 = vadd.f32 0.0, %v1482
      %v1484 = vpop.f32.mrf.mxu0
      %v1485 = vadd.f32 0.0, %v1484
      %1486 = vmatmul.bf16.gmra.mxu0 %v1465
      %v1487 = vpop.f32.mrf.mxu0
      %v1488 = vadd.f32 0.0, %v1487
      %v1489 = vpop.f32.mrf.mxu0
      %v1490 = vadd.f32 0.0, %v1489
      %1491 = vdwg.mxu0
      %v1492 = vunpack.c.l.b16 %v1043
      %v1493 = vunpack.c.l.b16 %v1045
      %v1494 = vunpack.c.l.b16 %v1047
      %v1495 = vunpack.c.l.b16 %v1049
      %v1496 = vpack.c.b16 %v1493, %v1492
      %v1497 = vpack.c.b16 %v1495, %v1494
      %1498 = vrot.lane.b32.xlu0 %v1496, 96
      %v1499 = vpop.permute.xlu0 %1498
      %1500 = vrot.lane.b32.xlu0 %v1497, 96
      %v1501 = vpop.permute.xlu0 %1500
      %v1503 = vsel %vm1132, %v1496, 0
      %v1506 = vsel %vm1132, %v1497, 0
      %v1509 = vsel %vm1132, %v1499, 0
      %v1512 = vsel %vm1132, %v1501, 0
      %1514 = vmatpush.bf16.xpose.msra.mxu0 0
      %1515 = vmatpush.bf16.xpose.msra.mxu0 0
      %1516 = vmatpush.bf16.xpose.msra.mxu0 0
      %1517 = vmatpush.bf16.xpose.msra.mxu0 0
      %1518 = vmatpush.bf16.xpose.msra.mxu0 0
      %1519 = vmatpush.bf16.xpose.msra.mxu0 0
      %1520 = vmatpush.bf16.xpose.msra.mxu0 %v1512
      %1521 = vmatpush.bf16.xpose.msra.mxu0 %v1509
      %1522 = vmatmul.bf16.gmra.mxu0 %v1503
      %v1523 = vpop.f32.mrf.mxu0
      %v1524 = vadd.f32 0.0, %v1523
      %v1525 = vpop.f32.mrf.mxu0
      %v1526 = vadd.f32 0.0, %v1525
      %1527 = vmatmul.bf16.gmra.mxu0 %v1506
      %v1528 = vpop.f32.mrf.mxu0
      %v1529 = vadd.f32 0.0, %v1528
      %v1530 = vpop.f32.mrf.mxu0
      %v1531 = vadd.f32 0.0, %v1530
      %1532 = vdwg.mxu0
      %v1533 = vunpack.c.l.b16 %v1075
      %v1534 = vunpack.c.l.b16 %v1077
      %v1535 = vunpack.c.l.b16 %v1079
      %v1536 = vunpack.c.l.b16 %v1081
      %v1537 = vpack.c.b16 %v1534, %v1533
      %v1538 = vpack.c.b16 %v1536, %v1535
      %1539 = vrot.lane.b32.xlu0 %v1537, 96
      %v1540 = vpop.permute.xlu0 %1539
      %1541 = vrot.lane.b32.xlu0 %v1538, 96
      %v1542 = vpop.permute.xlu0 %1541
      %v1544 = vsel %vm1132, %v1537, 0
      %v1547 = vsel %vm1132, %v1538, 0
      %v1550 = vsel %vm1132, %v1540, 0
      %v1553 = vsel %vm1132, %v1542, 0
      %1555 = vmatpush.bf16.xpose.msra.mxu0 0
      %1556 = vmatpush.bf16.xpose.msra.mxu0 0
      %1557 = vmatpush.bf16.xpose.msra.mxu0 0
      %1558 = vmatpush.bf16.xpose.msra.mxu0 0
      %1559 = vmatpush.bf16.xpose.msra.mxu0 0
      %1560 = vmatpush.bf16.xpose.msra.mxu0 0
      %1561 = vmatpush.bf16.xpose.msra.mxu0 %v1553
      %1562 = vmatpush.bf16.xpose.msra.mxu0 %v1550
      %1563 = vmatmul.bf16.gmra.mxu0 %v1544
      %v1564 = vpop.f32.mrf.mxu0
      %v1565 = vadd.f32 0.0, %v1564
      %v1566 = vpop.f32.mrf.mxu0
      %v1567 = vadd.f32 0.0, %v1566
      %1568 = vmatmul.bf16.gmra.mxu0 %v1547
      %v1569 = vpop.f32.mrf.mxu0
      %v1570 = vadd.f32 0.0, %v1569
      %v1571 = vpop.f32.mrf.mxu0
      %v1572 = vadd.f32 0.0, %v1571
      %1573 = vdwg.mxu0
      %v1574 = vunpack.c.l.b16 %v1107
      %v1575 = vunpack.c.l.b16 %v1109
      %v1576 = vunpack.c.l.b16 %v1111
      %v1577 = vunpack.c.l.b16 %v1113
      %v1578 = vpack.c.b16 %v1575, %v1574
      %v1579 = vpack.c.b16 %v1577, %v1576
      %1580 = vrot.lane.b32.xlu0 %v1578, 96
      %v1581 = vpop.permute.xlu0 %1580
      %1582 = vrot.lane.b32.xlu0 %v1579, 96
      %v1583 = vpop.permute.xlu0 %1582
      %v1585 = vsel %vm1132, %v1578, 0
      %v1588 = vsel %vm1132, %v1579, 0
      %v1591 = vsel %vm1132, %v1581, 0
      %v1594 = vsel %vm1132, %v1583, 0
      %1596 = vmatpush.bf16.xpose.msra.mxu0 0
      %1597 = vmatpush.bf16.xpose.msra.mxu0 0
      %1598 = vmatpush.bf16.xpose.msra.mxu0 0
      %1599 = vmatpush.bf16.xpose.msra.mxu0 0
      %1600 = vmatpush.bf16.xpose.msra.mxu0 0
      %1601 = vmatpush.bf16.xpose.msra.mxu0 0
      %1602 = vmatpush.bf16.xpose.msra.mxu0 %v1594
      %1603 = vmatpush.bf16.xpose.msra.mxu0 %v1591
      %1604 = vmatmul.bf16.gmra.mxu0 %v1585
      %v1605 = vpop.f32.mrf.mxu0
      %v1606 = vadd.f32 0.0, %v1605
      %v1607 = vpop.f32.mrf.mxu0
      %v1608 = vadd.f32 0.0, %v1607
      %1609 = vmatmul.bf16.gmra.mxu0 %v1588
      %v1610 = vpop.f32.mrf.mxu0
      %v1611 = vadd.f32 0.0, %v1610
      %v1612 = vpop.f32.mrf.mxu0
      %v1613 = vadd.f32 0.0, %v1612
      %1614 = vdwg.mxu0
      %v1615 = vunpack.c.l.b16 %v1006
      %v1616 = vunpack.c.l.b16 %v1007
      %v1617 = vunpack.c.l.b16 %v1008
      %v1618 = vunpack.c.l.b16 %v1009
      %v1619 = vpack.c.b16 %v1616, %v1615
      %v1620 = vpack.c.b16 %v1618, %v1617
      %1621 = vrot.lane.b32.xlu0 %v1619, 96
      %v1622 = vpop.permute.xlu0 %1621
      %1623 = vrot.lane.b32.xlu0 %v1620, 96
      %v1624 = vpop.permute.xlu0 %1623
      %v1626 = vsel %vm1132, %v1619, 0
      %v1629 = vsel %vm1132, %v1620, 0
      %v1632 = vsel %vm1132, %v1622, 0
      %v1635 = vsel %vm1132, %v1624, 0
      %1637 = vmatpush.bf16.xpose.msra.mxu0 0
      %1638 = vmatpush.bf16.xpose.msra.mxu0 0
      %1639 = vmatpush.bf16.xpose.msra.mxu0 0
      %1640 = vmatpush.bf16.xpose.msra.mxu0 0
      %1641 = vmatpush.bf16.xpose.msra.mxu0 0
      %1642 = vmatpush.bf16.xpose.msra.mxu0 0
      %1643 = vmatpush.bf16.xpose.msra.mxu0 %v1635
      %1644 = vmatpush.bf16.xpose.msra.mxu0 %v1632
      %1645 = vmatmul.bf16.gmra.mxu0 %v1626
      %v1646 = vpop.f32.mrf.mxu0
      %v1647 = vadd.f32 0.0, %v1646
      %v1648 = vpop.f32.mrf.mxu0
      %v1649 = vadd.f32 0.0, %v1648
      %1650 = vmatmul.bf16.gmra.mxu0 %v1629
      %v1651 = vpop.f32.mrf.mxu0
      %v1652 = vadd.f32 0.0, %v1651
      %v1653 = vpop.f32.mrf.mxu0
      %v1654 = vadd.f32 0.0, %v1653
      %1655 = vdwg.mxu0
      %v1656 = vunpack.c.l.b16 %v1051
      %v1657 = vunpack.c.l.b16 %v1053
      %v1658 = vunpack.c.l.b16 %v1055
      %v1659 = vunpack.c.l.b16 %v1057
      %v1660 = vpack.c.b16 %v1657, %v1656
      %v1661 = vpack.c.b16 %v1659, %v1658
      %1662 = vrot.lane.b32.xlu0 %v1660, 96
      %v1663 = vpop.permute.xlu0 %1662
      %1664 = vrot.lane.b32.xlu0 %v1661, 96
      %v1665 = vpop.permute.xlu0 %1664
      %v1667 = vsel %vm1132, %v1660, 0
      %v1670 = vsel %vm1132, %v1661, 0
      %v1673 = vsel %vm1132, %v1663, 0
      %v1676 = vsel %vm1132, %v1665, 0
      %1678 = vmatpush.bf16.xpose.msra.mxu0 0
      %1679 = vmatpush.bf16.xpose.msra.mxu0 0
      %1680 = vmatpush.bf16.xpose.msra.mxu0 0
      %1681 = vmatpush.bf16.xpose.msra.mxu0 0
      %1682 = vmatpush.bf16.xpose.msra.mxu0 0
      %1683 = vmatpush.bf16.xpose.msra.mxu0 0
      %1684 = vmatpush.bf16.xpose.msra.mxu0 %v1676
      %1685 = vmatpush.bf16.xpose.msra.mxu0 %v1673
      %1686 = vmatmul.bf16.gmra.mxu0 %v1667
      %v1687 = vpop.f32.mrf.mxu0
      %v1688 = vadd.f32 0.0, %v1687
      %v1689 = vpop.f32.mrf.mxu0
      %v1690 = vadd.f32 0.0, %v1689
      %1691 = vmatmul.bf16.gmra.mxu0 %v1670
      %v1692 = vpop.f32.mrf.mxu0
      %v1693 = vadd.f32 0.0, %v1692
      %v1694 = vpop.f32.mrf.mxu0
      %v1695 = vadd.f32 0.0, %v1694
      %1696 = vdwg.mxu0
      %v1697 = vunpack.c.l.b16 %v1083
      %v1698 = vunpack.c.l.b16 %v1085
      %v1699 = vunpack.c.l.b16 %v1087
      %v1700 = vunpack.c.l.b16 %v1089
      %v1701 = vpack.c.b16 %v1698, %v1697
      %v1702 = vpack.c.b16 %v1700, %v1699
      %1703 = vrot.lane.b32.xlu0 %v1701, 96
      %v1704 = vpop.permute.xlu0 %1703
      %1705 = vrot.lane.b32.xlu0 %v1702, 96
      %v1706 = vpop.permute.xlu0 %1705
      %v1708 = vsel %vm1132, %v1701, 0
      %v1711 = vsel %vm1132, %v1702, 0
      %v1714 = vsel %vm1132, %v1704, 0
      %v1717 = vsel %vm1132, %v1706, 0
      %1719 = vmatpush.bf16.xpose.msra.mxu0 0
      %1720 = vmatpush.bf16.xpose.msra.mxu0 0
      %1721 = vmatpush.bf16.xpose.msra.mxu0 0
      %1722 = vmatpush.bf16.xpose.msra.mxu0 0
      %1723 = vmatpush.bf16.xpose.msra.mxu0 0
      %1724 = vmatpush.bf16.xpose.msra.mxu0 0
      %1725 = vmatpush.bf16.xpose.msra.mxu0 %v1717
      %1726 = vmatpush.bf16.xpose.msra.mxu0 %v1714
      %1727 = vmatmul.bf16.gmra.mxu0 %v1708
      %v1728 = vpop.f32.mrf.mxu0
      %v1729 = vadd.f32 0.0, %v1728
      %v1730 = vpop.f32.mrf.mxu0
      %v1731 = vadd.f32 0.0, %v1730
      %1732 = vmatmul.bf16.gmra.mxu0 %v1711
      %v1733 = vpop.f32.mrf.mxu0
      %v1734 = vadd.f32 0.0, %v1733
      %v1735 = vpop.f32.mrf.mxu0
      %v1736 = vadd.f32 0.0, %v1735
      %1737 = vdwg.mxu0
      %v1738 = vunpack.c.l.b16 %v1115
      %v1739 = vunpack.c.l.b16 %v1117
      %v1740 = vunpack.c.l.b16 %v1119
      %v1741 = vunpack.c.l.b16 %v1121
      %v1742 = vpack.c.b16 %v1739, %v1738
      %v1743 = vpack.c.b16 %v1741, %v1740
      %1744 = vrot.lane.b32.xlu0 %v1742, 96
      %v1745 = vpop.permute.xlu0 %1744
      %1746 = vrot.lane.b32.xlu0 %v1743, 96
      %v1747 = vpop.permute.xlu0 %1746
      %v1749 = vsel %vm1132, %v1742, 0
      %v1752 = vsel %vm1132, %v1743, 0
      %v1755 = vsel %vm1132, %v1745, 0
      %v1758 = vsel %vm1132, %v1747, 0
      %1760 = vmatpush.bf16.xpose.msra.mxu0 0
      %1761 = vmatpush.bf16.xpose.msra.mxu0 0
      %1762 = vmatpush.bf16.xpose.msra.mxu0 0
      %1763 = vmatpush.bf16.xpose.msra.mxu0 0
      %1764 = vmatpush.bf16.xpose.msra.mxu0 0
      %1765 = vmatpush.bf16.xpose.msra.mxu0 0
      %1766 = vmatpush.bf16.xpose.msra.mxu0 %v1758
      %1767 = vmatpush.bf16.xpose.msra.mxu0 %v1755
      %1768 = vmatmul.bf16.gmra.mxu0 %v1749
      %v1769 = vpop.f32.mrf.mxu0
      %v1770 = vadd.f32 0.0, %v1769
      %v1771 = vpop.f32.mrf.mxu0
      %v1772 = vadd.f32 0.0, %v1771
      %1773 = vmatmul.bf16.gmra.mxu0 %v1752
      %v1774 = vpop.f32.mrf.mxu0
      %v1775 = vadd.f32 0.0, %v1774
      %v1776 = vpop.f32.mrf.mxu0
      %v1777 = vadd.f32 0.0, %v1776
      %1778 = vdwg.mxu0
      %v1779 = vld [vmem:[%s5] sm:$0xf]
      %v1780 = vld [vmem:[%s5 + $0x4] sm:$0xf]
      %v1781 = vld [vmem:[%s5 + $0x8] sm:$0xf]
      %v1782 = vld [vmem:[%s5 + $0xc] sm:$0xf]
      %v1783 = vld [vmem:[%s5 + $0x10] sm:$0xf]
      %v1784 = vld [vmem:[%s5 + $0x14] sm:$0xf]
      %v1785 = vld [vmem:[%s5 + $0x18] sm:$0xf]
      %v1786 = vld [vmem:[%s5 + $0x1c] sm:$0xf]
      %v1787 = vld [vmem:[%s5 + $0x20] sm:$0xf]
      %v1788 = vld [vmem:[%s5 + $0x24] sm:$0xf]
      %v1789 = vld [vmem:[%s5 + $0x28] sm:$0xf]
      %v1790 = vld [vmem:[%s5 + $0x2c] sm:$0xf]
      %v1791 = vld [vmem:[%s5 + $0x30] sm:$0xf]
      %v1792 = vld [vmem:[%s5 + $0x34] sm:$0xf]
      %v1793 = vld [vmem:[%s5 + $0x38] sm:$0xf]
      %v1794 = vld [vmem:[%s5 + $0x3c] sm:$0xf]
      %v1795 = vunpack.c.l.bf16 %v1779
      %v1796 = vunpack.c.l.bf16 %v1780
      %v1797 = vunpack.c.l.bf16 %v1781
      %v1798 = vunpack.c.l.bf16 %v1782
      %v1799 = vunpack.c.l.bf16 %v1783
      %v1800 = vunpack.c.l.bf16 %v1784
      %v1801 = vunpack.c.l.bf16 %v1785
      %v1802 = vunpack.c.l.bf16 %v1786
      %v1803 = vunpack.c.l.bf16 %v1787
      %v1804 = vunpack.c.l.bf16 %v1788
      %v1805 = vunpack.c.l.bf16 %v1789
      %v1806 = vunpack.c.l.bf16 %v1790
      %v1807 = vunpack.c.l.bf16 %v1791
      %v1808 = vunpack.c.l.bf16 %v1792
      %v1809 = vunpack.c.l.bf16 %v1793
      %v1810 = vunpack.c.l.bf16 %v1794
      %v1811 = vadd.f32 %v1155, %v1795
      %v1812 = vadd.f32 %v1157, %v1796
      %v1813 = vadd.f32 %v1160, %v1797
      %v1814 = vadd.f32 %v1162, %v1798
      %v1815 = vadd.f32 %v1196, %v1799
      %v1816 = vadd.f32 %v1198, %v1800
      %v1817 = vadd.f32 %v1201, %v1801
      %v1818 = vadd.f32 %v1203, %v1802
      %v1819 = vadd.f32 %v1237, %v1803
      %v1820 = vadd.f32 %v1239, %v1804
      %v1821 = vadd.f32 %v1242, %v1805
      %v1822 = vadd.f32 %v1244, %v1806
      %v1823 = vadd.f32 %v1278, %v1807
      %v1824 = vadd.f32 %v1280, %v1808
      %v1825 = vadd.f32 %v1283, %v1809
      %v1826 = vadd.f32 %v1285, %v1810
      %v1827 = vadd.f32 %v1319, %v1795
      %v1828 = vadd.f32 %v1321, %v1796
      %v1829 = vadd.f32 %v1324, %v1797
      %v1830 = vadd.f32 %v1326, %v1798
      %v1831 = vadd.f32 %v1360, %v1799
      %v1832 = vadd.f32 %v1362, %v1800
      %v1833 = vadd.f32 %v1365, %v1801
      %v1834 = vadd.f32 %v1367, %v1802
      %v1835 = vadd.f32 %v1401, %v1803
      %v1836 = vadd.f32 %v1403, %v1804
      %v1837 = vadd.f32 %v1406, %v1805
      %v1838 = vadd.f32 %v1408, %v1806
      %v1839 = vadd.f32 %v1442, %v1807
      %v1840 = vadd.f32 %v1444, %v1808
      %v1841 = vadd.f32 %v1447, %v1809
      %v1842 = vadd.f32 %v1449, %v1810
      %v1843 = vadd.f32 %v1483, %v1795
      %v1844 = vadd.f32 %v1485, %v1796
      %v1845 = vadd.f32 %v1488, %v1797
      %v1846 = vadd.f32 %v1490, %v1798
      %v1847 = vadd.f32 %v1524, %v1799
      %v1848 = vadd.f32 %v1526, %v1800
      %v1849 = vadd.f32 %v1529, %v1801
      %v1850 = vadd.f32 %v1531, %v1802
      %v1851 = vadd.f32 %v1565, %v1803
      %v1852 = vadd.f32 %v1567, %v1804
      %v1853 = vadd.f32 %v1570, %v1805
      %v1854 = vadd.f32 %v1572, %v1806
      %v1855 = vadd.f32 %v1606, %v1807
      %v1856 = vadd.f32 %v1608, %v1808
      %v1857 = vadd.f32 %v1611, %v1809
      %v1858 = vadd.f32 %v1613, %v1810
      %v1859 = vadd.f32 %v1647, %v1795
      %v1860 = vadd.f32 %v1649, %v1796
      %v1861 = vadd.f32 %v1652, %v1797
      %v1862 = vadd.f32 %v1654, %v1798
      %v1863 = vadd.f32 %v1688, %v1799
      %v1864 = vadd.f32 %v1690, %v1800
      %v1865 = vadd.f32 %v1693, %v1801
      %v1866 = vadd.f32 %v1695, %v1802
      %v1867 = vadd.f32 %v1729, %v1803
      %v1868 = vadd.f32 %v1731, %v1804
      %v1869 = vadd.f32 %v1734, %v1805
      %v1870 = vadd.f32 %v1736, %v1806
      %v1871 = vadd.f32 %v1770, %v1807
      %v1872 = vadd.f32 %v1772, %v1808
      %v1873 = vadd.f32 %v1775, %v1809
      %v1874 = vadd.f32 %v1777, %v1810
      %v1875 = vsel %vm495, %v1811, -inf
      %1876 = vmax.xlane.f32.xlu0 %v1875
      %v1877 = vpop.xlane.xlu0 %1876
      %v1878 = vsel %vm495, %v1812, -inf
      %1879 = vmax.xlane.f32.xlu0 %v1878
      %v1880 = vpop.xlane.xlu0 %1879
      %v1881 = vsel %vm495, %v1813, -inf
      %1882 = vmax.xlane.f32.xlu0 %v1881
      %v1883 = vpop.xlane.xlu0 %1882
      %v1884 = vsel %vm495, %v1814, -inf
      %1885 = vmax.xlane.f32.xlu0 %v1884
      %v1886 = vpop.xlane.xlu0 %1885
      %v1887 = vsel %vm495, %v1815, -inf
      %1888 = vmax.xlane.f32.xlu0 %v1887
      %v1889 = vpop.xlane.xlu0 %1888
      %v1890 = vsel %vm495, %v1816, -inf
      %1891 = vmax.xlane.f32.xlu0 %v1890
      %v1892 = vpop.xlane.xlu0 %1891
      %v1893 = vsel %vm495, %v1817, -inf
      %1894 = vmax.xlane.f32.xlu0 %v1893
      %v1895 = vpop.xlane.xlu0 %1894
      %v1896 = vsel %vm495, %v1818, -inf
      %1897 = vmax.xlane.f32.xlu0 %v1896
      %v1898 = vpop.xlane.xlu0 %1897
      %v1899 = vsel %vm495, %v1819, -inf
      %1900 = vmax.xlane.f32.xlu0 %v1899
      %v1901 = vpop.xlane.xlu0 %1900
      %v1902 = vsel %vm495, %v1820, -inf
      %1903 = vmax.xlane.f32.xlu0 %v1902
      %v1904 = vpop.xlane.xlu0 %1903
      %v1905 = vsel %vm495, %v1821, -inf
      %1906 = vmax.xlane.f32.xlu0 %v1905
      %v1907 = vpop.xlane.xlu0 %1906
      %v1908 = vsel %vm495, %v1822, -inf
      %1909 = vmax.xlane.f32.xlu0 %v1908
      %v1910 = vpop.xlane.xlu0 %1909
      %v1911 = vsel %vm495, %v1823, -inf
      %1912 = vmax.xlane.f32.xlu0 %v1911
      %v1913 = vpop.xlane.xlu0 %1912
      %v1914 = vsel %vm495, %v1824, -inf
      %1915 = vmax.xlane.f32.xlu0 %v1914
      %v1916 = vpop.xlane.xlu0 %1915
      %v1917 = vsel %vm495, %v1825, -inf
      %1918 = vmax.xlane.f32.xlu0 %v1917
      %v1919 = vpop.xlane.xlu0 %1918
      %v1920 = vsel %vm495, %v1826, -inf
      %1921 = vmax.xlane.f32.xlu0 %v1920
      %v1922 = vpop.xlane.xlu0 %1921
      %v1923 = vsel %vm495, %v1827, -inf
      %1924 = vmax.xlane.f32.xlu0 %v1923
      %v1925 = vpop.xlane.xlu0 %1924
      %v1926 = vsel %vm495, %v1828, -inf
      %1927 = vmax.xlane.f32.xlu0 %v1926
      %v1928 = vpop.xlane.xlu0 %1927
      %v1929 = vsel %vm495, %v1829, -inf
      %1930 = vmax.xlane.f32.xlu0 %v1929
      %v1931 = vpop.xlane.xlu0 %1930
      %v1932 = vsel %vm495, %v1830, -inf
      %1933 = vmax.xlane.f32.xlu0 %v1932
      %v1934 = vpop.xlane.xlu0 %1933
      %v1935 = vsel %vm495, %v1831, -inf
      %1936 = vmax.xlane.f32.xlu0 %v1935
      %v1937 = vpop.xlane.xlu0 %1936
      %v1938 = vsel %vm495, %v1832, -inf
      %1939 = vmax.xlane.f32.xlu0 %v1938
      %v1940 = vpop.xlane.xlu0 %1939
      %v1941 = vsel %vm495, %v1833, -inf
      %1942 = vmax.xlane.f32.xlu0 %v1941
      %v1943 = vpop.xlane.xlu0 %1942
      %v1944 = vsel %vm495, %v1834, -inf
      %1945 = vmax.xlane.f32.xlu0 %v1944
      %v1946 = vpop.xlane.xlu0 %1945
      %v1947 = vsel %vm495, %v1835, -inf
      %1948 = vmax.xlane.f32.xlu0 %v1947
      %v1949 = vpop.xlane.xlu0 %1948
      %v1950 = vsel %vm495, %v1836, -inf
      %1951 = vmax.xlane.f32.xlu0 %v1950
      %v1952 = vpop.xlane.xlu0 %1951
      %v1953 = vsel %vm495, %v1837, -inf
      %1954 = vmax.xlane.f32.xlu0 %v1953
      %v1955 = vpop.xlane.xlu0 %1954
      %v1956 = vsel %vm495, %v1838, -inf
      %1957 = vmax.xlane.f32.xlu0 %v1956
      %v1958 = vpop.xlane.xlu0 %1957
      %v1959 = vsel %vm495, %v1839, -inf
      %1960 = vmax.xlane.f32.xlu0 %v1959
      %v1961 = vpop.xlane.xlu0 %1960
      %v1962 = vsel %vm495, %v1840, -inf
      %1963 = vmax.xlane.f32.xlu0 %v1962
      %v1964 = vpop.xlane.xlu0 %1963
      %v1965 = vsel %vm495, %v1841, -inf
      %1966 = vmax.xlane.f32.xlu0 %v1965
      %v1967 = vpop.xlane.xlu0 %1966
      %v1968 = vsel %vm495, %v1842, -inf
      %1969 = vmax.xlane.f32.xlu0 %v1968
      %v1970 = vpop.xlane.xlu0 %1969
      %v1971 = vsel %vm495, %v1843, -inf
      %1972 = vmax.xlane.f32.xlu0 %v1971
      %v1973 = vpop.xlane.xlu0 %1972
      %v1974 = vsel %vm495, %v1844, -inf
      %1975 = vmax.xlane.f32.xlu0 %v1974
      %v1976 = vpop.xlane.xlu0 %1975
      %v1977 = vsel %vm495, %v1845, -inf
      %1978 = vmax.xlane.f32.xlu0 %v1977
      %v1979 = vpop.xlane.xlu0 %1978
      %v1980 = vsel %vm495, %v1846, -inf
      %1981 = vmax.xlane.f32.xlu0 %v1980
      %v1982 = vpop.xlane.xlu0 %1981
      %v1983 = vsel %vm495, %v1847, -inf
      %1984 = vmax.xlane.f32.xlu0 %v1983
      %v1985 = vpop.xlane.xlu0 %1984
      %v1986 = vsel %vm495, %v1848, -inf
      %1987 = vmax.xlane.f32.xlu0 %v1986
      %v1988 = vpop.xlane.xlu0 %1987
      %v1989 = vsel %vm495, %v1849, -inf
      %1990 = vmax.xlane.f32.xlu0 %v1989
      %v1991 = vpop.xlane.xlu0 %1990
      %v1992 = vsel %vm495, %v1850, -inf
      %1993 = vmax.xlane.f32.xlu0 %v1992
      %v1994 = vpop.xlane.xlu0 %1993
      %v1995 = vsel %vm495, %v1851, -inf
      %1996 = vmax.xlane.f32.xlu0 %v1995
      %v1997 = vpop.xlane.xlu0 %1996
      %v1998 = vsel %vm495, %v1852, -inf
      %1999 = vmax.xlane.f32.xlu0 %v1998
      %v2000 = vpop.xlane.xlu0 %1999
      %v2001 = vsel %vm495, %v1853, -inf
      %2002 = vmax.xlane.f32.xlu0 %v2001
      %v2003 = vpop.xlane.xlu0 %2002
      %v2004 = vsel %vm495, %v1854, -inf
      %2005 = vmax.xlane.f32.xlu0 %v2004
      %v2006 = vpop.xlane.xlu0 %2005
      %v2007 = vsel %vm495, %v1855, -inf
      %2008 = vmax.xlane.f32.xlu0 %v2007
      %v2009 = vpop.xlane.xlu0 %2008
      %v2010 = vsel %vm495, %v1856, -inf
      %2011 = vmax.xlane.f32.xlu0 %v2010
      %v2012 = vpop.xlane.xlu0 %2011
      %v2013 = vsel %vm495, %v1857, -inf
      %2014 = vmax.xlane.f32.xlu0 %v2013
      %v2015 = vpop.xlane.xlu0 %2014
      %v2016 = vsel %vm495, %v1858, -inf
      %2017 = vmax.xlane.f32.xlu0 %v2016
      %v2018 = vpop.xlane.xlu0 %2017
      %v2019 = vsel %vm495, %v1859, -inf
      %2020 = vmax.xlane.f32.xlu0 %v2019
      %v2021 = vpop.xlane.xlu0 %2020
      %v2022 = vsel %vm495, %v1860, -inf
      %2023 = vmax.xlane.f32.xlu0 %v2022
      %v2024 = vpop.xlane.xlu0 %2023
      %v2025 = vsel %vm495, %v1861, -inf
      %2026 = vmax.xlane.f32.xlu0 %v2025
      %v2027 = vpop.xlane.xlu0 %2026
      %v2028 = vsel %vm495, %v1862, -inf
      %2029 = vmax.xlane.f32.xlu0 %v2028
      %v2030 = vpop.xlane.xlu0 %2029
      %v2031 = vsel %vm495, %v1863, -inf
      %2032 = vmax.xlane.f32.xlu0 %v2031
      %v2033 = vpop.xlane.xlu0 %2032
      %v2034 = vsel %vm495, %v1864, -inf
      %2035 = vmax.xlane.f32.xlu0 %v2034
      %v2036 = vpop.xlane.xlu0 %2035
      %v2037 = vsel %vm495, %v1865, -inf
      %2038 = vmax.xlane.f32.xlu0 %v2037
      %v2039 = vpop.xlane.xlu0 %2038
      %v2040 = vsel %vm495, %v1866, -inf
      %2041 = vmax.xlane.f32.xlu0 %v2040
      %v2042 = vpop.xlane.xlu0 %2041
      %v2043 = vsel %vm495, %v1867, -inf
      %2044 = vmax.xlane.f32.xlu0 %v2043
      %v2045 = vpop.xlane.xlu0 %2044
      %v2046 = vsel %vm495, %v1868, -inf
      %2047 = vmax.xlane.f32.xlu0 %v2046
      %v2048 = vpop.xlane.xlu0 %2047
      %v2049 = vsel %vm495, %v1869, -inf
      %2050 = vmax.xlane.f32.xlu0 %v2049
      %v2051 = vpop.xlane.xlu0 %2050
      %v2052 = vsel %vm495, %v1870, -inf
      %2053 = vmax.xlane.f32.xlu0 %v2052
      %v2054 = vpop.xlane.xlu0 %2053
      %v2055 = vsel %vm495, %v1871, -inf
      %2056 = vmax.xlane.f32.xlu0 %v2055
      %v2057 = vpop.xlane.xlu0 %2056
      %v2058 = vsel %vm495, %v1872, -inf
      %2059 = vmax.xlane.f32.xlu0 %v2058
      %v2060 = vpop.xlane.xlu0 %2059
      %v2061 = vsel %vm495, %v1873, -inf
      %2062 = vmax.xlane.f32.xlu0 %v2061
      %v2063 = vpop.xlane.xlu0 %2062
      %v2064 = vsel %vm495, %v1874, -inf
      %2065 = vmax.xlane.f32.xlu0 %v2064
      %v2066 = vpop.xlane.xlu0 %2065
      %v2067 = vsub.f32 %v1811, %v1877
      %v2068 = vsub.f32 %v1812, %v1880
      %v2069 = vsub.f32 %v1813, %v1883
      %v2070 = vsub.f32 %v1814, %v1886
      %v2071 = vsub.f32 %v1815, %v1889
      %v2072 = vsub.f32 %v1816, %v1892
      %v2073 = vsub.f32 %v1817, %v1895
      %v2074 = vsub.f32 %v1818, %v1898
      %v2075 = vsub.f32 %v1819, %v1901
      %v2076 = vsub.f32 %v1820, %v1904
      %v2077 = vsub.f32 %v1821, %v1907
      %v2078 = vsub.f32 %v1822, %v1910
      %v2079 = vsub.f32 %v1823, %v1913
      %v2080 = vsub.f32 %v1824, %v1916
      %v2081 = vsub.f32 %v1825, %v1919
      %v2082 = vsub.f32 %v1826, %v1922
      %v2083 = vsub.f32 %v1827, %v1925
      %v2084 = vsub.f32 %v1828, %v1928
      %v2085 = vsub.f32 %v1829, %v1931
      %v2086 = vsub.f32 %v1830, %v1934
      %v2087 = vsub.f32 %v1831, %v1937
      %v2088 = vsub.f32 %v1832, %v1940
      %v2089 = vsub.f32 %v1833, %v1943
      %v2090 = vsub.f32 %v1834, %v1946
      %v2091 = vsub.f32 %v1835, %v1949
      %v2092 = vsub.f32 %v1836, %v1952
      %v2093 = vsub.f32 %v1837, %v1955
      %v2094 = vsub.f32 %v1838, %v1958
      %v2095 = vsub.f32 %v1839, %v1961
      %v2096 = vsub.f32 %v1840, %v1964
      %v2097 = vsub.f32 %v1841, %v1967
      %v2098 = vsub.f32 %v1842, %v1970
      %v2099 = vsub.f32 %v1843, %v1973
      %v2100 = vsub.f32 %v1844, %v1976
      %v2101 = vsub.f32 %v1845, %v1979
      %v2102 = vsub.f32 %v1846, %v1982
      %v2103 = vsub.f32 %v1847, %v1985
      %v2104 = vsub.f32 %v1848, %v1988
      %v2105 = vsub.f32 %v1849, %v1991
      %v2106 = vsub.f32 %v1850, %v1994
      %v2107 = vsub.f32 %v1851, %v1997
      %v2108 = vsub.f32 %v1852, %v2000
      %v2109 = vsub.f32 %v1853, %v2003
      %v2110 = vsub.f32 %v1854, %v2006
      %v2111 = vsub.f32 %v1855, %v2009
      %v2112 = vsub.f32 %v1856, %v2012
      %v2113 = vsub.f32 %v1857, %v2015
      %v2114 = vsub.f32 %v1858, %v2018
      %v2115 = vsub.f32 %v1859, %v2021
      %v2116 = vsub.f32 %v1860, %v2024
      %v2117 = vsub.f32 %v1861, %v2027
      %v2118 = vsub.f32 %v1862, %v2030
      %v2119 = vsub.f32 %v1863, %v2033
      %v2120 = vsub.f32 %v1864, %v2036
      %v2121 = vsub.f32 %v1865, %v2039
      %v2122 = vsub.f32 %v1866, %v2042
      %v2123 = vsub.f32 %v1867, %v2045
      %v2124 = vsub.f32 %v1868, %v2048
      %v2125 = vsub.f32 %v1869, %v2051
      %v2126 = vsub.f32 %v1870, %v2054
      %v2127 = vsub.f32 %v1871, %v2057
      %v2128 = vsub.f32 %v1872, %v2060
      %v2129 = vsub.f32 %v1873, %v2063
      %v2130 = vsub.f32 %v1874, %v2066
      %v2131 = vmul.f32 %v2067, 1.442695
      %v2132 = vpow.pop %v2131
      %v2133 = vmul.f32 %v2068, 1.442695
      %v2134 = vpow.pop %v2133
      %v2135 = vmul.f32 %v2069, 1.442695
      %v2136 = vpow.pop %v2135
      %v2137 = vmul.f32 %v2070, 1.442695
      %v2138 = vpow.pop %v2137
      %v2139 = vmul.f32 %v2071, 1.442695
      %v2140 = vpow.pop %v2139
      %v2141 = vmul.f32 %v2072, 1.442695
      %v2142 = vpow.pop %v2141
      %v2143 = vmul.f32 %v2073, 1.442695
      %v2144 = vpow.pop %v2143
      %v2145 = vmul.f32 %v2074, 1.442695
      %v2146 = vpow.pop %v2145
      %v2147 = vmul.f32 %v2075, 1.442695
      %v2148 = vpow.pop %v2147
      %v2149 = vmul.f32 %v2076, 1.442695
      %v2150 = vpow.pop %v2149
      %v2151 = vmul.f32 %v2077, 1.442695
      %v2152 = vpow.pop %v2151
      %v2153 = vmul.f32 %v2078, 1.442695
      %v2154 = vpow.pop %v2153
      %v2155 = vmul.f32 %v2079, 1.442695
      %v2156 = vpow.pop %v2155
      %v2157 = vmul.f32 %v2080, 1.442695
      %v2158 = vpow.pop %v2157
      %v2159 = vmul.f32 %v2081, 1.442695
      %v2160 = vpow.pop %v2159
      %v2161 = vmul.f32 %v2082, 1.442695
      %v2162 = vpow.pop %v2161
      %v2163 = vmul.f32 %v2083, 1.442695
      %v2164 = vpow.pop %v2163
      %v2165 = vmul.f32 %v2084, 1.442695
      %v2166 = vpow.pop %v2165
      %v2167 = vmul.f32 %v2085, 1.442695
      %v2168 = vpow.pop %v2167
      %v2169 = vmul.f32 %v2086, 1.442695
      %v2170 = vpow.pop %v2169
      %v2171 = vmul.f32 %v2087, 1.442695
      %v2172 = vpow.pop %v2171
      %v2173 = vmul.f32 %v2088, 1.442695
      %v2174 = vpow.pop %v2173
      %v2175 = vmul.f32 %v2089, 1.442695
      %v2176 = vpow.pop %v2175
      %v2177 = vmul.f32 %v2090, 1.442695
      %v2178 = vpow.pop %v2177
      %v2179 = vmul.f32 %v2091, 1.442695
      %v2180 = vpow.pop %v2179
      %v2181 = vmul.f32 %v2092, 1.442695
      %v2182 = vpow.pop %v2181
      %v2183 = vmul.f32 %v2093, 1.442695
      %v2184 = vpow.pop %v2183
      %v2185 = vmul.f32 %v2094, 1.442695
      %v2186 = vpow.pop %v2185
      %v2187 = vmul.f32 %v2095, 1.442695
      %v2188 = vpow.pop %v2187
      %v2189 = vmul.f32 %v2096, 1.442695
      %v2190 = vpow.pop %v2189
      %v2191 = vmul.f32 %v2097, 1.442695
      %v2192 = vpow.pop %v2191
      %v2193 = vmul.f32 %v2098, 1.442695
      %v2194 = vpow.pop %v2193
      %v2195 = vmul.f32 %v2099, 1.442695
      %v2196 = vpow.pop %v2195
      %v2197 = vmul.f32 %v2100, 1.442695
      %v2198 = vpow.pop %v2197
      %v2199 = vmul.f32 %v2101, 1.442695
      %v2200 = vpow.pop %v2199
      %v2201 = vmul.f32 %v2102, 1.442695
      %v2202 = vpow.pop %v2201
      %v2203 = vmul.f32 %v2103, 1.442695
      %v2204 = vpow.pop %v2203
      %v2205 = vmul.f32 %v2104, 1.442695
      %v2206 = vpow.pop %v2205
      %v2207 = vmul.f32 %v2105, 1.442695
      %v2208 = vpow.pop %v2207
      %v2209 = vmul.f32 %v2106, 1.442695
      %v2210 = vpow.pop %v2209
      %v2211 = vmul.f32 %v2107, 1.442695
      %v2212 = vpow.pop %v2211
      %v2213 = vmul.f32 %v2108, 1.442695
      %v2214 = vpow.pop %v2213
      %v2215 = vmul.f32 %v2109, 1.442695
      %v2216 = vpow.pop %v2215
      %v2217 = vmul.f32 %v2110, 1.442695
      %v2218 = vpow.pop %v2217
      %v2219 = vmul.f32 %v2111, 1.442695
      %v2220 = vpow.pop %v2219
      %v2221 = vmul.f32 %v2112, 1.442695
      %v2222 = vpow.pop %v2221
      %v2223 = vmul.f32 %v2113, 1.442695
      %v2224 = vpow.pop %v2223
      %v2225 = vmul.f32 %v2114, 1.442695
      %v2226 = vpow.pop %v2225
      %v2227 = vmul.f32 %v2115, 1.442695
      %v2228 = vpow.pop %v2227
      %v2229 = vmul.f32 %v2116, 1.442695
      %v2230 = vpow.pop %v2229
      %v2231 = vmul.f32 %v2117, 1.442695
      %v2232 = vpow.pop %v2231
      %v2233 = vmul.f32 %v2118, 1.442695
      %v2234 = vpow.pop %v2233
      %v2235 = vmul.f32 %v2119, 1.442695
      %v2236 = vpow.pop %v2235
      %v2237 = vmul.f32 %v2120, 1.442695
      %v2238 = vpow.pop %v2237
      %v2239 = vmul.f32 %v2121, 1.442695
      %v2240 = vpow.pop %v2239
      %v2241 = vmul.f32 %v2122, 1.442695
      %v2242 = vpow.pop %v2241
      %v2243 = vmul.f32 %v2123, 1.442695
      %v2244 = vpow.pop %v2243
      %v2245 = vmul.f32 %v2124, 1.442695
      %v2246 = vpow.pop %v2245
      %v2247 = vmul.f32 %v2125, 1.442695
      %v2248 = vpow.pop %v2247
      %v2249 = vmul.f32 %v2126, 1.442695
      %v2250 = vpow.pop %v2249
      %v2251 = vmul.f32 %v2127, 1.442695
      %v2252 = vpow.pop %v2251
      %v2253 = vmul.f32 %v2128, 1.442695
      %v2254 = vpow.pop %v2253
      %v2255 = vmul.f32 %v2129, 1.442695
      %v2256 = vpow.pop %v2255
      %v2257 = vmul.f32 %v2130, 1.442695
      %v2258 = vpow.pop %v2257
      %v2259 = vsel %vm495, %v2132, 0.0
      %2260 = vadd.xlane.f32.xlu0 %v2259
      %v2261 = vpop.xlane.xlu0 %2260
      %v2262 = vsel %vm495, %v2134, 0.0
      %2263 = vadd.xlane.f32.xlu0 %v2262
      %v2264 = vpop.xlane.xlu0 %2263
      %v2265 = vsel %vm495, %v2136, 0.0
      %2266 = vadd.xlane.f32.xlu0 %v2265
      %v2267 = vpop.xlane.xlu0 %2266
      %v2268 = vsel %vm495, %v2138, 0.0
      %2269 = vadd.xlane.f32.xlu0 %v2268
      %v2270 = vpop.xlane.xlu0 %2269
      %v2271 = vsel %vm495, %v2140, 0.0
      %2272 = vadd.xlane.f32.xlu0 %v2271
      %v2273 = vpop.xlane.xlu0 %2272
      %v2274 = vsel %vm495, %v2142, 0.0
      %2275 = vadd.xlane.f32.xlu0 %v2274
      %v2276 = vpop.xlane.xlu0 %2275
      %v2277 = vsel %vm495, %v2144, 0.0
      %2278 = vadd.xlane.f32.xlu0 %v2277
      %v2279 = vpop.xlane.xlu0 %2278
      %v2280 = vsel %vm495, %v2146, 0.0
      %2281 = vadd.xlane.f32.xlu0 %v2280
      %v2282 = vpop.xlane.xlu0 %2281
      %v2283 = vsel %vm495, %v2148, 0.0
      %2284 = vadd.xlane.f32.xlu0 %v2283
      %v2285 = vpop.xlane.xlu0 %2284
      %v2286 = vsel %vm495, %v2150, 0.0
      %2287 = vadd.xlane.f32.xlu0 %v2286
      %v2288 = vpop.xlane.xlu0 %2287
      %v2289 = vsel %vm495, %v2152, 0.0
      %2290 = vadd.xlane.f32.xlu0 %v2289
      %v2291 = vpop.xlane.xlu0 %2290
      %v2292 = vsel %vm495, %v2154, 0.0
      %2293 = vadd.xlane.f32.xlu0 %v2292
      %v2294 = vpop.xlane.xlu0 %2293
      %v2295 = vsel %vm495, %v2156, 0.0
      %2296 = vadd.xlane.f32.xlu0 %v2295
      %v2297 = vpop.xlane.xlu0 %2296
      %v2298 = vsel %vm495, %v2158, 0.0
      %2299 = vadd.xlane.f32.xlu0 %v2298
      %v2300 = vpop.xlane.xlu0 %2299
      %v2301 = vsel %vm495, %v2160, 0.0
      %2302 = vadd.xlane.f32.xlu0 %v2301
      %v2303 = vpop.xlane.xlu0 %2302
      %v2304 = vsel %vm495, %v2162, 0.0
      %2305 = vadd.xlane.f32.xlu0 %v2304
      %v2306 = vpop.xlane.xlu0 %2305
      %v2307 = vsel %vm495, %v2164, 0.0
      %2308 = vadd.xlane.f32.xlu0 %v2307
      %v2309 = vpop.xlane.xlu0 %2308
      %v2310 = vsel %vm495, %v2166, 0.0
      %2311 = vadd.xlane.f32.xlu0 %v2310
      %v2312 = vpop.xlane.xlu0 %2311
      %v2313 = vsel %vm495, %v2168, 0.0
      %2314 = vadd.xlane.f32.xlu0 %v2313
      %v2315 = vpop.xlane.xlu0 %2314
      %v2316 = vsel %vm495, %v2170, 0.0
      %2317 = vadd.xlane.f32.xlu0 %v2316
      %v2318 = vpop.xlane.xlu0 %2317
      %v2319 = vsel %vm495, %v2172, 0.0
      %2320 = vadd.xlane.f32.xlu0 %v2319
      %v2321 = vpop.xlane.xlu0 %2320
      %v2322 = vsel %vm495, %v2174, 0.0
      %2323 = vadd.xlane.f32.xlu0 %v2322
      %v2324 = vpop.xlane.xlu0 %2323
      %v2325 = vsel %vm495, %v2176, 0.0
      %2326 = vadd.xlane.f32.xlu0 %v2325
      %v2327 = vpop.xlane.xlu0 %2326
      %v2328 = vsel %vm495, %v2178, 0.0
      %2329 = vadd.xlane.f32.xlu0 %v2328
      %v2330 = vpop.xlane.xlu0 %2329
      %v2331 = vsel %vm495, %v2180, 0.0
      %2332 = vadd.xlane.f32.xlu0 %v2331
      %v2333 = vpop.xlane.xlu0 %2332
      %v2334 = vsel %vm495, %v2182, 0.0
      %2335 = vadd.xlane.f32.xlu0 %v2334
      %v2336 = vpop.xlane.xlu0 %2335
      %v2337 = vsel %vm495, %v2184, 0.0
      %2338 = vadd.xlane.f32.xlu0 %v2337
      %v2339 = vpop.xlane.xlu0 %2338
      %v2340 = vsel %vm495, %v2186, 0.0
      %2341 = vadd.xlane.f32.xlu0 %v2340
      %v2342 = vpop.xlane.xlu0 %2341
      %v2343 = vsel %vm495, %v2188, 0.0
      %2344 = vadd.xlane.f32.xlu0 %v2343
      %v2345 = vpop.xlane.xlu0 %2344
      %v2346 = vsel %vm495, %v2190, 0.0
      %2347 = vadd.xlane.f32.xlu0 %v2346
      %v2348 = vpop.xlane.xlu0 %2347
      %v2349 = vsel %vm495, %v2192, 0.0
      %2350 = vadd.xlane.f32.xlu0 %v2349
      %v2351 = vpop.xlane.xlu0 %2350
      %v2352 = vsel %vm495, %v2194, 0.0
      %2353 = vadd.xlane.f32.xlu0 %v2352
      %v2354 = vpop.xlane.xlu0 %2353
      %v2355 = vsel %vm495, %v2196, 0.0
      %2356 = vadd.xlane.f32.xlu0 %v2355
      %v2357 = vpop.xlane.xlu0 %2356
      %v2358 = vsel %vm495, %v2198, 0.0
      %2359 = vadd.xlane.f32.xlu0 %v2358
      %v2360 = vpop.xlane.xlu0 %2359
      %v2361 = vsel %vm495, %v2200, 0.0
      %2362 = vadd.xlane.f32.xlu0 %v2361
      %v2363 = vpop.xlane.xlu0 %2362
      %v2364 = vsel %vm495, %v2202, 0.0
      %2365 = vadd.xlane.f32.xlu0 %v2364
      %v2366 = vpop.xlane.xlu0 %2365
      %v2367 = vsel %vm495, %v2204, 0.0
      %2368 = vadd.xlane.f32.xlu0 %v2367
      %v2369 = vpop.xlane.xlu0 %2368
      %v2370 = vsel %vm495, %v2206, 0.0
      %2371 = vadd.xlane.f32.xlu0 %v2370
      %v2372 = vpop.xlane.xlu0 %2371
      %v2373 = vsel %vm495, %v2208, 0.0
      %2374 = vadd.xlane.f32.xlu0 %v2373
      %v2375 = vpop.xlane.xlu0 %2374
      %v2376 = vsel %vm495, %v2210, 0.0
      %2377 = vadd.xlane.f32.xlu0 %v2376
      %v2378 = vpop.xlane.xlu0 %2377
      %v2379 = vsel %vm495, %v2212, 0.0
      %2380 = vadd.xlane.f32.xlu0 %v2379
      %v2381 = vpop.xlane.xlu0 %2380
      %v2382 = vsel %vm495, %v2214, 0.0
      %2383 = vadd.xlane.f32.xlu0 %v2382
      %v2384 = vpop.xlane.xlu0 %2383
      %v2385 = vsel %vm495, %v2216, 0.0
      %2386 = vadd.xlane.f32.xlu0 %v2385
      %v2387 = vpop.xlane.xlu0 %2386
      %v2388 = vsel %vm495, %v2218, 0.0
      %2389 = vadd.xlane.f32.xlu0 %v2388
      %v2390 = vpop.xlane.xlu0 %2389
      %v2391 = vsel %vm495, %v2220, 0.0
      %2392 = vadd.xlane.f32.xlu0 %v2391
      %v2393 = vpop.xlane.xlu0 %2392
      %v2394 = vsel %vm495, %v2222, 0.0
      %2395 = vadd.xlane.f32.xlu0 %v2394
      %v2396 = vpop.xlane.xlu0 %2395
      %v2397 = vsel %vm495, %v2224, 0.0
      %2398 = vadd.xlane.f32.xlu0 %v2397
      %v2399 = vpop.xlane.xlu0 %2398
      %v2400 = vsel %vm495, %v2226, 0.0
      %2401 = vadd.xlane.f32.xlu0 %v2400
      %v2402 = vpop.xlane.xlu0 %2401
      %v2403 = vsel %vm495, %v2228, 0.0
      %2404 = vadd.xlane.f32.xlu0 %v2403
      %v2405 = vpop.xlane.xlu0 %2404
      %v2406 = vsel %vm495, %v2230, 0.0
      %2407 = vadd.xlane.f32.xlu0 %v2406
      %v2408 = vpop.xlane.xlu0 %2407
      %v2409 = vsel %vm495, %v2232, 0.0
      %2410 = vadd.xlane.f32.xlu0 %v2409
      %v2411 = vpop.xlane.xlu0 %2410
      %v2412 = vsel %vm495, %v2234, 0.0
      %2413 = vadd.xlane.f32.xlu0 %v2412
      %v2414 = vpop.xlane.xlu0 %2413
      %v2415 = vsel %vm495, %v2236, 0.0
      %2416 = vadd.xlane.f32.xlu0 %v2415
      %v2417 = vpop.xlane.xlu0 %2416
      %v2418 = vsel %vm495, %v2238, 0.0
      %2419 = vadd.xlane.f32.xlu0 %v2418
      %v2420 = vpop.xlane.xlu0 %2419
      %v2421 = vsel %vm495, %v2240, 0.0
      %2422 = vadd.xlane.f32.xlu0 %v2421
      %v2423 = vpop.xlane.xlu0 %2422
      %v2424 = vsel %vm495, %v2242, 0.0
      %2425 = vadd.xlane.f32.xlu0 %v2424
      %v2426 = vpop.xlane.xlu0 %2425
      %v2427 = vsel %vm495, %v2244, 0.0
      %2428 = vadd.xlane.f32.xlu0 %v2427
      %v2429 = vpop.xlane.xlu0 %2428
      %v2430 = vsel %vm495, %v2246, 0.0
      %2431 = vadd.xlane.f32.xlu0 %v2430
      %v2432 = vpop.xlane.xlu0 %2431
      %v2433 = vsel %vm495, %v2248, 0.0
      %2434 = vadd.xlane.f32.xlu0 %v2433
      %v2435 = vpop.xlane.xlu0 %2434
      %v2436 = vsel %vm495, %v2250, 0.0
      %2437 = vadd.xlane.f32.xlu0 %v2436
      %v2438 = vpop.xlane.xlu0 %2437
      %v2439 = vsel %vm495, %v2252, 0.0
      %2440 = vadd.xlane.f32.xlu0 %v2439
      %v2441 = vpop.xlane.xlu0 %2440
      %v2442 = vsel %vm495, %v2254, 0.0
      %2443 = vadd.xlane.f32.xlu0 %v2442
      %v2444 = vpop.xlane.xlu0 %2443
      %v2445 = vsel %vm495, %v2256, 0.0
      %2446 = vadd.xlane.f32.xlu0 %v2445
      %v2447 = vpop.xlane.xlu0 %2446
      %v2448 = vsel %vm495, %v2258, 0.0
      %2449 = vadd.xlane.f32.xlu0 %v2448
      %v2450 = vpop.xlane.xlu0 %2449
      %v2451 = vrcp.pop %v2261
      %v2452 = vrcp.pop %v2264
      %v2453 = vrcp.pop %v2267
      %v2454 = vrcp.pop %v2270
      %v2455 = vrcp.pop %v2273
      %v2456 = vrcp.pop %v2276
      %v2457 = vrcp.pop %v2279
      %v2458 = vrcp.pop %v2282
      %v2459 = vrcp.pop %v2285
      %v2460 = vrcp.pop %v2288
      %v2461 = vrcp.pop %v2291
      %v2462 = vrcp.pop %v2294
      %v2463 = vrcp.pop %v2297
      %v2464 = vrcp.pop %v2300
      %v2465 = vrcp.pop %v2303
      %v2466 = vrcp.pop %v2306
      %v2467 = vrcp.pop %v2309
      %v2468 = vrcp.pop %v2312
      %v2469 = vrcp.pop %v2315
      %v2470 = vrcp.pop %v2318
      %v2471 = vrcp.pop %v2321
      %v2472 = vrcp.pop %v2324
      %v2473 = vrcp.pop %v2327
      %v2474 = vrcp.pop %v2330
      %v2475 = vrcp.pop %v2333
      %v2476 = vrcp.pop %v2336
      %v2477 = vrcp.pop %v2339
      %v2478 = vrcp.pop %v2342
      %v2479 = vrcp.pop %v2345
      %v2480 = vrcp.pop %v2348
      %v2481 = vrcp.pop %v2351
      %v2482 = vrcp.pop %v2354
      %v2483 = vrcp.pop %v2357
      %v2484 = vrcp.pop %v2360
      %v2485 = vrcp.pop %v2363
      %v2486 = vrcp.pop %v2366
      %v2487 = vrcp.pop %v2369
      %v2488 = vrcp.pop %v2372
      %v2489 = vrcp.pop %v2375
      %v2490 = vrcp.pop %v2378
      %v2491 = vrcp.pop %v2381
      %v2492 = vrcp.pop %v2384
      %v2493 = vrcp.pop %v2387
      %v2494 = vrcp.pop %v2390
      %v2495 = vrcp.pop %v2393
      %v2496 = vrcp.pop %v2396
      %v2497 = vrcp.pop %v2399
      %v2498 = vrcp.pop %v2402
      %v2499 = vrcp.pop %v2405
      %v2500 = vrcp.pop %v2408
      %v2501 = vrcp.pop %v2411
      %v2502 = vrcp.pop %v2414
      %v2503 = vrcp.pop %v2417
      %v2504 = vrcp.pop %v2420
      %v2505 = vrcp.pop %v2423
      %v2506 = vrcp.pop %v2426
      %v2507 = vrcp.pop %v2429
      %v2508 = vrcp.pop %v2432
      %v2509 = vrcp.pop %v2435
      %v2510 = vrcp.pop %v2438
      %v2511 = vrcp.pop %v2441
      %v2512 = vrcp.pop %v2444
      %v2513 = vrcp.pop %v2447
      %v2514 = vrcp.pop %v2450
      %v2515 = vmul.f32 %v2132, %v2451
      %v2516 = vmul.f32 %v2134, %v2452
      %v2517 = vmul.f32 %v2136, %v2453
      %v2518 = vmul.f32 %v2138, %v2454
      %v2519 = vmul.f32 %v2140, %v2455
      %v2520 = vmul.f32 %v2142, %v2456
      %v2521 = vmul.f32 %v2144, %v2457
      %v2522 = vmul.f32 %v2146, %v2458
      %v2523 = vmul.f32 %v2148, %v2459
      %v2524 = vmul.f32 %v2150, %v2460
      %v2525 = vmul.f32 %v2152, %v2461
      %v2526 = vmul.f32 %v2154, %v2462
      %v2527 = vmul.f32 %v2156, %v2463
      %v2528 = vmul.f32 %v2158, %v2464
      %v2529 = vmul.f32 %v2160, %v2465
      %v2530 = vmul.f32 %v2162, %v2466
      %v2531 = vmul.f32 %v2164, %v2467
      %v2532 = vmul.f32 %v2166, %v2468
      %v2533 = vmul.f32 %v2168, %v2469
      %v2534 = vmul.f32 %v2170, %v2470
      %v2535 = vmul.f32 %v2172, %v2471
      %v2536 = vmul.f32 %v2174, %v2472
      %v2537 = vmul.f32 %v2176, %v2473
      %v2538 = vmul.f32 %v2178, %v2474
      %v2539 = vmul.f32 %v2180, %v2475
      %v2540 = vmul.f32 %v2182, %v2476
      %v2541 = vmul.f32 %v2184, %v2477
      %v2542 = vmul.f32 %v2186, %v2478
      %v2543 = vmul.f32 %v2188, %v2479
      %v2544 = vmul.f32 %v2190, %v2480
      %v2545 = vmul.f32 %v2192, %v2481
      %v2546 = vmul.f32 %v2194, %v2482
      %v2547 = vmul.f32 %v2196, %v2483
      %v2548 = vmul.f32 %v2198, %v2484
      %v2549 = vmul.f32 %v2200, %v2485
      %v2550 = vmul.f32 %v2202, %v2486
      %v2551 = vmul.f32 %v2204, %v2487
      %v2552 = vmul.f32 %v2206, %v2488
      %v2553 = vmul.f32 %v2208, %v2489
      %v2554 = vmul.f32 %v2210, %v2490
      %v2555 = vmul.f32 %v2212, %v2491
      %v2556 = vmul.f32 %v2214, %v2492
      %v2557 = vmul.f32 %v2216, %v2493
      %v2558 = vmul.f32 %v2218, %v2494
      %v2559 = vmul.f32 %v2220, %v2495
      %v2560 = vmul.f32 %v2222, %v2496
      %v2561 = vmul.f32 %v2224, %v2497
      %v2562 = vmul.f32 %v2226, %v2498
      %v2563 = vmul.f32 %v2228, %v2499
      %v2564 = vmul.f32 %v2230, %v2500
      %v2565 = vmul.f32 %v2232, %v2501
      %v2566 = vmul.f32 %v2234, %v2502
      %v2567 = vmul.f32 %v2236, %v2503
      %v2568 = vmul.f32 %v2238, %v2504
      %v2569 = vmul.f32 %v2240, %v2505
      %v2570 = vmul.f32 %v2242, %v2506
      %v2571 = vmul.f32 %v2244, %v2507
      %v2572 = vmul.f32 %v2246, %v2508
      %v2573 = vmul.f32 %v2248, %v2509
      %v2574 = vmul.f32 %v2250, %v2510
      %v2575 = vmul.f32 %v2252, %v2511
      %v2576 = vmul.f32 %v2254, %v2512
      %v2577 = vmul.f32 %v2256, %v2513
      %v2578 = vmul.f32 %v2258, %v2514
      %v2579 = vpack.c.bf16 %v2515, %v2515
      %v2580 = vpack.c.bf16 %v2516, %v2516
      %v2581 = vpack.c.bf16 %v2517, %v2517
      %v2582 = vpack.c.bf16 %v2518, %v2518
      %v2583 = vpack.c.bf16 %v2519, %v2519
      %v2584 = vpack.c.bf16 %v2520, %v2520
      %v2585 = vpack.c.bf16 %v2521, %v2521
      %v2586 = vpack.c.bf16 %v2522, %v2522
      %v2587 = vpack.c.bf16 %v2523, %v2523
      %v2588 = vpack.c.bf16 %v2524, %v2524
      %v2589 = vpack.c.bf16 %v2525, %v2525
      %v2590 = vpack.c.bf16 %v2526, %v2526
      %v2591 = vpack.c.bf16 %v2527, %v2527
      %v2592 = vpack.c.bf16 %v2528, %v2528
      %v2593 = vpack.c.bf16 %v2529, %v2529
      %v2594 = vpack.c.bf16 %v2530, %v2530
      %v2595 = vpack.c.bf16 %v2531, %v2531
      %v2596 = vpack.c.bf16 %v2532, %v2532
      %v2597 = vpack.c.bf16 %v2533, %v2533
      %v2598 = vpack.c.bf16 %v2534, %v2534
      %v2599 = vpack.c.bf16 %v2535, %v2535
      %v2600 = vpack.c.bf16 %v2536, %v2536
      %v2601 = vpack.c.bf16 %v2537, %v2537
      %v2602 = vpack.c.bf16 %v2538, %v2538
      %v2603 = vpack.c.bf16 %v2539, %v2539
      %v2604 = vpack.c.bf16 %v2540, %v2540
      %v2605 = vpack.c.bf16 %v2541, %v2541
      %v2606 = vpack.c.bf16 %v2542, %v2542
      %v2607 = vpack.c.bf16 %v2543, %v2543
      %v2608 = vpack.c.bf16 %v2544, %v2544
      %v2609 = vpack.c.bf16 %v2545, %v2545
      %v2610 = vpack.c.bf16 %v2546, %v2546
      %v2611 = vpack.c.bf16 %v2547, %v2547
      %v2612 = vpack.c.bf16 %v2548, %v2548
      %v2613 = vpack.c.bf16 %v2549, %v2549
      %v2614 = vpack.c.bf16 %v2550, %v2550
      %v2615 = vpack.c.bf16 %v2551, %v2551
      %v2616 = vpack.c.bf16 %v2552, %v2552
      %v2617 = vpack.c.bf16 %v2553, %v2553
      %v2618 = vpack.c.bf16 %v2554, %v2554
      %v2619 = vpack.c.bf16 %v2555, %v2555
      %v2620 = vpack.c.bf16 %v2556, %v2556
      %v2621 = vpack.c.bf16 %v2557, %v2557
      %v2622 = vpack.c.bf16 %v2558, %v2558
      %v2623 = vpack.c.bf16 %v2559, %v2559
      %v2624 = vpack.c.bf16 %v2560, %v2560
      %v2625 = vpack.c.bf16 %v2561, %v2561
      %v2626 = vpack.c.bf16 %v2562, %v2562
      %v2627 = vpack.c.bf16 %v2563, %v2563
      %v2628 = vpack.c.bf16 %v2564, %v2564
      %v2629 = vpack.c.bf16 %v2565, %v2565
      %v2630 = vpack.c.bf16 %v2566, %v2566
      %v2631 = vpack.c.bf16 %v2567, %v2567
      %v2632 = vpack.c.bf16 %v2568, %v2568
      %v2633 = vpack.c.bf16 %v2569, %v2569
      %v2634 = vpack.c.bf16 %v2570, %v2570
      %v2635 = vpack.c.bf16 %v2571, %v2571
      %v2636 = vpack.c.bf16 %v2572, %v2572
      %v2637 = vpack.c.bf16 %v2573, %v2573
      %v2638 = vpack.c.bf16 %v2574, %v2574
      %v2639 = vpack.c.bf16 %v2575, %v2575
      %v2640 = vpack.c.bf16 %v2576, %v2576
      %v2641 = vpack.c.bf16 %v2577, %v2577
      %v2642 = vpack.c.bf16 %v2578, %v2578
      %v2647 = vunpack.c.l.b16 %v2579
      %v2648 = vunpack.c.l.b16 %v2580
      %v2649 = vunpack.c.l.b16 %v2581
      %v2650 = vunpack.c.l.b16 %v2582
      %v2651 = vpack.c.b16 %v2648, %v2647
      %v2652 = vpack.c.b16 %v2650, %v2649
      %2653 = vrot.lane.b32.xlu0 %v1126, 64
      %v2654 = vpop.permute.xlu0 %2653
      %2655 = vrot.lane.b32.xlu0 %v1127, 64
      %v2656 = vpop.permute.xlu0 %2655
      %v2660 = vsel %vm495, %v2651, 0
      %v2663 = vsel %vm495, %v2652, 0
      %2665 = vmatpush.bf16.msra.mxu0 0
      %2666 = vmatpush.bf16.msra.mxu0 0
      %2667 = vmatpush.bf16.msra.mxu0 0
      %2668 = vmatpush.bf16.msra.mxu0 0
      %2669 = vmatpush.bf16.msra.mxu0 0
      %2670 = vmatpush.bf16.msra.mxu0 0
      %2671 = vmatpush.bf16.msra.mxu0 %v2656
      %2672 = vmatpush.bf16.msra.mxu0 %v2654
      %2673 = vmatmul.bf16.gmra.mxu0 %v2660
      %v2674 = vpop.f32.mrf.mxu0
      %v2675 = vadd.f32 0.0, %v2674
      %v2676 = vpop.f32.mrf.mxu0
      %v2677 = vadd.f32 0.0, %v2676
      %2678 = vmatmul.bf16.gmra.mxu0 %v2663
      %v2679 = vpop.f32.mrf.mxu0
      %v2680 = vadd.f32 0.0, %v2679
      %v2681 = vpop.f32.mrf.mxu0
      %v2682 = vadd.f32 0.0, %v2681
      %2683 = vdwg.mxu0
      %v2688 = vunpack.c.l.b16 %v2583
      %v2689 = vunpack.c.l.b16 %v2584
      %v2690 = vunpack.c.l.b16 %v2585
      %v2691 = vunpack.c.l.b16 %v2586
      %v2692 = vpack.c.b16 %v2689, %v2688
      %v2693 = vpack.c.b16 %v2691, %v2690
      %2694 = vrot.lane.b32.xlu0 %v1168, 64
      %v2695 = vpop.permute.xlu0 %2694
      %2696 = vrot.lane.b32.xlu0 %v1169, 64
      %v2697 = vpop.permute.xlu0 %2696
      %v2701 = vsel %vm495, %v2692, 0
      %v2704 = vsel %vm495, %v2693, 0
      %2706 = vmatpush.bf16.msra.mxu0 0
      %2707 = vmatpush.bf16.msra.mxu0 0
      %2708 = vmatpush.bf16.msra.mxu0 0
      %2709 = vmatpush.bf16.msra.mxu0 0
      %2710 = vmatpush.bf16.msra.mxu0 0
      %2711 = vmatpush.bf16.msra.mxu0 0
      %2712 = vmatpush.bf16.msra.mxu0 %v2697
      %2713 = vmatpush.bf16.msra.mxu0 %v2695
      %2714 = vmatmul.bf16.gmra.mxu0 %v2701
      %v2715 = vpop.f32.mrf.mxu0
      %v2716 = vadd.f32 0.0, %v2715
      %v2717 = vpop.f32.mrf.mxu0
      %v2718 = vadd.f32 0.0, %v2717
      %2719 = vmatmul.bf16.gmra.mxu0 %v2704
      %v2720 = vpop.f32.mrf.mxu0
      %v2721 = vadd.f32 0.0, %v2720
      %v2722 = vpop.f32.mrf.mxu0
      %v2723 = vadd.f32 0.0, %v2722
      %2724 = vdwg.mxu0
      %v2729 = vunpack.c.l.b16 %v2587
      %v2730 = vunpack.c.l.b16 %v2588
      %v2731 = vunpack.c.l.b16 %v2589
      %v2732 = vunpack.c.l.b16 %v2590
      %v2733 = vpack.c.b16 %v2730, %v2729
      %v2734 = vpack.c.b16 %v2732, %v2731
      %2735 = vrot.lane.b32.xlu0 %v1209, 64
      %v2736 = vpop.permute.xlu0 %2735
      %2737 = vrot.lane.b32.xlu0 %v1210, 64
      %v2738 = vpop.permute.xlu0 %2737
      %v2742 = vsel %vm495, %v2733, 0
      %v2745 = vsel %vm495, %v2734, 0
      %2747 = vmatpush.bf16.msra.mxu0 0
      %2748 = vmatpush.bf16.msra.mxu0 0
      %2749 = vmatpush.bf16.msra.mxu0 0
      %2750 = vmatpush.bf16.msra.mxu0 0
      %2751 = vmatpush.bf16.msra.mxu0 0
      %2752 = vmatpush.bf16.msra.mxu0 0
      %2753 = vmatpush.bf16.msra.mxu0 %v2738
      %2754 = vmatpush.bf16.msra.mxu0 %v2736
      %2755 = vmatmul.bf16.gmra.mxu0 %v2742
      %v2756 = vpop.f32.mrf.mxu0
      %v2757 = vadd.f32 0.0, %v2756
      %v2758 = vpop.f32.mrf.mxu0
      %v2759 = vadd.f32 0.0, %v2758
      %2760 = vmatmul.bf16.gmra.mxu0 %v2745
      %v2761 = vpop.f32.mrf.mxu0
      %v2762 = vadd.f32 0.0, %v2761
      %v2763 = vpop.f32.mrf.mxu0
      %v2764 = vadd.f32 0.0, %v2763
      %2765 = vdwg.mxu0
      %v2770 = vunpack.c.l.b16 %v2591
      %v2771 = vunpack.c.l.b16 %v2592
      %v2772 = vunpack.c.l.b16 %v2593
      %v2773 = vunpack.c.l.b16 %v2594
      %v2774 = vpack.c.b16 %v2771, %v2770
      %v2775 = vpack.c.b16 %v2773, %v2772
      %2776 = vrot.lane.b32.xlu0 %v1250, 64
      %v2777 = vpop.permute.xlu0 %2776
      %2778 = vrot.lane.b32.xlu0 %v1251, 64
      %v2779 = vpop.permute.xlu0 %2778
      %v2783 = vsel %vm495, %v2774, 0
      %v2786 = vsel %vm495, %v2775, 0
      %2788 = vmatpush.bf16.msra.mxu0 0
      %2789 = vmatpush.bf16.msra.mxu0 0
      %2790 = vmatpush.bf16.msra.mxu0 0
      %2791 = vmatpush.bf16.msra.mxu0 0
      %2792 = vmatpush.bf16.msra.mxu0 0
      %2793 = vmatpush.bf16.msra.mxu0 0
      %2794 = vmatpush.bf16.msra.mxu0 %v2779
      %2795 = vmatpush.bf16.msra.mxu0 %v2777
      %2796 = vmatmul.bf16.gmra.mxu0 %v2783
      %v2797 = vpop.f32.mrf.mxu0
      %v2798 = vadd.f32 0.0, %v2797
      %v2799 = vpop.f32.mrf.mxu0
      %v2800 = vadd.f32 0.0, %v2799
      %2801 = vmatmul.bf16.gmra.mxu0 %v2786
      %v2802 = vpop.f32.mrf.mxu0
      %v2803 = vadd.f32 0.0, %v2802
      %v2804 = vpop.f32.mrf.mxu0
      %v2805 = vadd.f32 0.0, %v2804
      %2806 = vdwg.mxu0
      %v2811 = vunpack.c.l.b16 %v2595
      %v2812 = vunpack.c.l.b16 %v2596
      %v2813 = vunpack.c.l.b16 %v2597
      %v2814 = vunpack.c.l.b16 %v2598
      %v2815 = vpack.c.b16 %v2812, %v2811
      %v2816 = vpack.c.b16 %v2814, %v2813
      %2817 = vrot.lane.b32.xlu0 %v1291, 64
      %v2818 = vpop.permute.xlu0 %2817
      %2819 = vrot.lane.b32.xlu0 %v1292, 64
      %v2820 = vpop.permute.xlu0 %2819
      %v2824 = vsel %vm495, %v2815, 0
      %v2827 = vsel %vm495, %v2816, 0
      %2829 = vmatpush.bf16.msra.mxu0 0
      %2830 = vmatpush.bf16.msra.mxu0 0
      %2831 = vmatpush.bf16.msra.mxu0 0
      %2832 = vmatpush.bf16.msra.mxu0 0
      %2833 = vmatpush.bf16.msra.mxu0 0
      %2834 = vmatpush.bf16.msra.mxu0 0
      %2835 = vmatpush.bf16.msra.mxu0 %v2820
      %2836 = vmatpush.bf16.msra.mxu0 %v2818
      %2837 = vmatmul.bf16.gmra.mxu0 %v2824
      %v2838 = vpop.f32.mrf.mxu0
      %v2839 = vadd.f32 0.0, %v2838
      %v2840 = vpop.f32.mrf.mxu0
      %v2841 = vadd.f32 0.0, %v2840
      %2842 = vmatmul.bf16.gmra.mxu0 %v2827
      %v2843 = vpop.f32.mrf.mxu0
      %v2844 = vadd.f32 0.0, %v2843
      %v2845 = vpop.f32.mrf.mxu0
      %v2846 = vadd.f32 0.0, %v2845
      %2847 = vdwg.mxu0
      %v2852 = vunpack.c.l.b16 %v2599
      %v2853 = vunpack.c.l.b16 %v2600
      %v2854 = vunpack.c.l.b16 %v2601
      %v2855 = vunpack.c.l.b16 %v2602
      %v2856 = vpack.c.b16 %v2853, %v2852
      %v2857 = vpack.c.b16 %v2855, %v2854
      %2858 = vrot.lane.b32.xlu0 %v1332, 64
      %v2859 = vpop.permute.xlu0 %2858
      %2860 = vrot.lane.b32.xlu0 %v1333, 64
      %v2861 = vpop.permute.xlu0 %2860
      %v2865 = vsel %vm495, %v2856, 0
      %v2868 = vsel %vm495, %v2857, 0
      %2870 = vmatpush.bf16.msra.mxu0 0
      %2871 = vmatpush.bf16.msra.mxu0 0
      %2872 = vmatpush.bf16.msra.mxu0 0
      %2873 = vmatpush.bf16.msra.mxu0 0
      %2874 = vmatpush.bf16.msra.mxu0 0
      %2875 = vmatpush.bf16.msra.mxu0 0
      %2876 = vmatpush.bf16.msra.mxu0 %v2861
      %2877 = vmatpush.bf16.msra.mxu0 %v2859
      %2878 = vmatmul.bf16.gmra.mxu0 %v2865
      %v2879 = vpop.f32.mrf.mxu0
      %v2880 = vadd.f32 0.0, %v2879
      %v2881 = vpop.f32.mrf.mxu0
      %v2882 = vadd.f32 0.0, %v2881
      %2883 = vmatmul.bf16.gmra.mxu0 %v2868
      %v2884 = vpop.f32.mrf.mxu0
      %v2885 = vadd.f32 0.0, %v2884
      %v2886 = vpop.f32.mrf.mxu0
      %v2887 = vadd.f32 0.0, %v2886
      %2888 = vdwg.mxu0
      %v2893 = vunpack.c.l.b16 %v2603
      %v2894 = vunpack.c.l.b16 %v2604
      %v2895 = vunpack.c.l.b16 %v2605
      %v2896 = vunpack.c.l.b16 %v2606
      %v2897 = vpack.c.b16 %v2894, %v2893
      %v2898 = vpack.c.b16 %v2896, %v2895
      %2899 = vrot.lane.b32.xlu0 %v1373, 64
      %v2900 = vpop.permute.xlu0 %2899
      %2901 = vrot.lane.b32.xlu0 %v1374, 64
      %v2902 = vpop.permute.xlu0 %2901
      %v2906 = vsel %vm495, %v2897, 0
      %v2909 = vsel %vm495, %v2898, 0
      %2911 = vmatpush.bf16.msra.mxu0 0
      %2912 = vmatpush.bf16.msra.mxu0 0
      %2913 = vmatpush.bf16.msra.mxu0 0
      %2914 = vmatpush.bf16.msra.mxu0 0
      %2915 = vmatpush.bf16.msra.mxu0 0
      %2916 = vmatpush.bf16.msra.mxu0 0
      %2917 = vmatpush.bf16.msra.mxu0 %v2902
      %2918 = vmatpush.bf16.msra.mxu0 %v2900
      %2919 = vmatmul.bf16.gmra.mxu0 %v2906
      %v2920 = vpop.f32.mrf.mxu0
      %v2921 = vadd.f32 0.0, %v2920
      %v2922 = vpop.f32.mrf.mxu0
      %v2923 = vadd.f32 0.0, %v2922
      %2924 = vmatmul.bf16.gmra.mxu0 %v2909
      %v2925 = vpop.f32.mrf.mxu0
      %v2926 = vadd.f32 0.0, %v2925
      %v2927 = vpop.f32.mrf.mxu0
      %v2928 = vadd.f32 0.0, %v2927
      %2929 = vdwg.mxu0
      %v2934 = vunpack.c.l.b16 %v2607
      %v2935 = vunpack.c.l.b16 %v2608
      %v2936 = vunpack.c.l.b16 %v2609
      %v2937 = vunpack.c.l.b16 %v2610
      %v2938 = vpack.c.b16 %v2935, %v2934
      %v2939 = vpack.c.b16 %v2937, %v2936
      %2940 = vrot.lane.b32.xlu0 %v1414, 64
      %v2941 = vpop.permute.xlu0 %2940
      %2942 = vrot.lane.b32.xlu0 %v1415, 64
      %v2943 = vpop.permute.xlu0 %2942
      %v2947 = vsel %vm495, %v2938, 0
      %v2950 = vsel %vm495, %v2939, 0
      %2952 = vmatpush.bf16.msra.mxu0 0
      %2953 = vmatpush.bf16.msra.mxu0 0
      %2954 = vmatpush.bf16.msra.mxu0 0
      %2955 = vmatpush.bf16.msra.mxu0 0
      %2956 = vmatpush.bf16.msra.mxu0 0
      %2957 = vmatpush.bf16.msra.mxu0 0
      %2958 = vmatpush.bf16.msra.mxu0 %v2943
      %2959 = vmatpush.bf16.msra.mxu0 %v2941
      %2960 = vmatmul.bf16.gmra.mxu0 %v2947
      %v2961 = vpop.f32.mrf.mxu0
      %v2962 = vadd.f32 0.0, %v2961
      %v2963 = vpop.f32.mrf.mxu0
      %v2964 = vadd.f32 0.0, %v2963
      %2965 = vmatmul.bf16.gmra.mxu0 %v2950
      %v2966 = vpop.f32.mrf.mxu0
      %v2967 = vadd.f32 0.0, %v2966
      %v2968 = vpop.f32.mrf.mxu0
      %v2969 = vadd.f32 0.0, %v2968
      %2970 = vdwg.mxu0
      %v2975 = vunpack.c.l.b16 %v2611
      %v2976 = vunpack.c.l.b16 %v2612
      %v2977 = vunpack.c.l.b16 %v2613
      %v2978 = vunpack.c.l.b16 %v2614
      %v2979 = vpack.c.b16 %v2976, %v2975
      %v2980 = vpack.c.b16 %v2978, %v2977
      %2981 = vrot.lane.b32.xlu0 %v1455, 64
      %v2982 = vpop.permute.xlu0 %2981
      %2983 = vrot.lane.b32.xlu0 %v1456, 64
      %v2984 = vpop.permute.xlu0 %2983
      %v2988 = vsel %vm495, %v2979, 0
      %v2991 = vsel %vm495, %v2980, 0
      %2993 = vmatpush.bf16.msra.mxu0 0
      %2994 = vmatpush.bf16.msra.mxu0 0
      %2995 = vmatpush.bf16.msra.mxu0 0
      %2996 = vmatpush.bf16.msra.mxu0 0
      %2997 = vmatpush.bf16.msra.mxu0 0
      %2998 = vmatpush.bf16.msra.mxu0 0
      %2999 = vmatpush.bf16.msra.mxu0 %v2984
      %3000 = vmatpush.bf16.msra.mxu0 %v2982
      %3001 = vmatmul.bf16.gmra.mxu0 %v2988
      %v3002 = vpop.f32.mrf.mxu0
      %v3003 = vadd.f32 0.0, %v3002
      %v3004 = vpop.f32.mrf.mxu0
      %v3005 = vadd.f32 0.0, %v3004
      %3006 = vmatmul.bf16.gmra.mxu0 %v2991
      %v3007 = vpop.f32.mrf.mxu0
      %v3008 = vadd.f32 0.0, %v3007
      %v3009 = vpop.f32.mrf.mxu0
      %v3010 = vadd.f32 0.0, %v3009
      %3011 = vdwg.mxu0
      %v3016 = vunpack.c.l.b16 %v2615
      %v3017 = vunpack.c.l.b16 %v2616
      %v3018 = vunpack.c.l.b16 %v2617
      %v3019 = vunpack.c.l.b16 %v2618
      %v3020 = vpack.c.b16 %v3017, %v3016
      %v3021 = vpack.c.b16 %v3019, %v3018
      %3022 = vrot.lane.b32.xlu0 %v1496, 64
      %v3023 = vpop.permute.xlu0 %3022
      %3024 = vrot.lane.b32.xlu0 %v1497, 64
      %v3025 = vpop.permute.xlu0 %3024
      %v3029 = vsel %vm495, %v3020, 0
      %v3032 = vsel %vm495, %v3021, 0
      %3034 = vmatpush.bf16.msra.mxu0 0
      %3035 = vmatpush.bf16.msra.mxu0 0
      %3036 = vmatpush.bf16.msra.mxu0 0
      %3037 = vmatpush.bf16.msra.mxu0 0
      %3038 = vmatpush.bf16.msra.mxu0 0
      %3039 = vmatpush.bf16.msra.mxu0 0
      %3040 = vmatpush.bf16.msra.mxu0 %v3025
      %3041 = vmatpush.bf16.msra.mxu0 %v3023
      %3042 = vmatmul.bf16.gmra.mxu0 %v3029
      %v3043 = vpop.f32.mrf.mxu0
      %v3044 = vadd.f32 0.0, %v3043
      %v3045 = vpop.f32.mrf.mxu0
      %v3046 = vadd.f32 0.0, %v3045
      %3047 = vmatmul.bf16.gmra.mxu0 %v3032
      %v3048 = vpop.f32.mrf.mxu0
      %v3049 = vadd.f32 0.0, %v3048
      %v3050 = vpop.f32.mrf.mxu0
      %v3051 = vadd.f32 0.0, %v3050
      %3052 = vdwg.mxu0
      %v3057 = vunpack.c.l.b16 %v2619
      %v3058 = vunpack.c.l.b16 %v2620
      %v3059 = vunpack.c.l.b16 %v2621
      %v3060 = vunpack.c.l.b16 %v2622
      %v3061 = vpack.c.b16 %v3058, %v3057
      %v3062 = vpack.c.b16 %v3060, %v3059
      %3063 = vrot.lane.b32.xlu0 %v1537, 64
      %v3064 = vpop.permute.xlu0 %3063
      %3065 = vrot.lane.b32.xlu0 %v1538, 64
      %v3066 = vpop.permute.xlu0 %3065
      %v3070 = vsel %vm495, %v3061, 0
      %v3073 = vsel %vm495, %v3062, 0
      %3075 = vmatpush.bf16.msra.mxu0 0
      %3076 = vmatpush.bf16.msra.mxu0 0
      %3077 = vmatpush.bf16.msra.mxu0 0
      %3078 = vmatpush.bf16.msra.mxu0 0
      %3079 = vmatpush.bf16.msra.mxu0 0
      %3080 = vmatpush.bf16.msra.mxu0 0
      %3081 = vmatpush.bf16.msra.mxu0 %v3066
      %3082 = vmatpush.bf16.msra.mxu0 %v3064
      %3083 = vmatmul.bf16.gmra.mxu0 %v3070
      %v3084 = vpop.f32.mrf.mxu0
      %v3085 = vadd.f32 0.0, %v3084
      %v3086 = vpop.f32.mrf.mxu0
      %v3087 = vadd.f32 0.0, %v3086
      %3088 = vmatmul.bf16.gmra.mxu0 %v3073
      %v3089 = vpop.f32.mrf.mxu0
      %v3090 = vadd.f32 0.0, %v3089
      %v3091 = vpop.f32.mrf.mxu0
      %v3092 = vadd.f32 0.0, %v3091
      %3093 = vdwg.mxu0
      %v3098 = vunpack.c.l.b16 %v2623
      %v3099 = vunpack.c.l.b16 %v2624
      %v3100 = vunpack.c.l.b16 %v2625
      %v3101 = vunpack.c.l.b16 %v2626
      %v3102 = vpack.c.b16 %v3099, %v3098
      %v3103 = vpack.c.b16 %v3101, %v3100
      %3104 = vrot.lane.b32.xlu0 %v1578, 64
      %v3105 = vpop.permute.xlu0 %3104
      %3106 = vrot.lane.b32.xlu0 %v1579, 64
      %v3107 = vpop.permute.xlu0 %3106
      %v3111 = vsel %vm495, %v3102, 0
      %v3114 = vsel %vm495, %v3103, 0
      %3116 = vmatpush.bf16.msra.mxu0 0
      %3117 = vmatpush.bf16.msra.mxu0 0
      %3118 = vmatpush.bf16.msra.mxu0 0
      %3119 = vmatpush.bf16.msra.mxu0 0
      %3120 = vmatpush.bf16.msra.mxu0 0
      %3121 = vmatpush.bf16.msra.mxu0 0
      %3122 = vmatpush.bf16.msra.mxu0 %v3107
      %3123 = vmatpush.bf16.msra.mxu0 %v3105
      %3124 = vmatmul.bf16.gmra.mxu0 %v3111
      %v3125 = vpop.f32.mrf.mxu0
      %v3126 = vadd.f32 0.0, %v3125
      %v3127 = vpop.f32.mrf.mxu0
      %v3128 = vadd.f32 0.0, %v3127
      %3129 = vmatmul.bf16.gmra.mxu0 %v3114
      %v3130 = vpop.f32.mrf.mxu0
      %v3131 = vadd.f32 0.0, %v3130
      %v3132 = vpop.f32.mrf.mxu0
      %v3133 = vadd.f32 0.0, %v3132
      %3134 = vdwg.mxu0
      %v3139 = vunpack.c.l.b16 %v2627
      %v3140 = vunpack.c.l.b16 %v2628
      %v3141 = vunpack.c.l.b16 %v2629
      %v3142 = vunpack.c.l.b16 %v2630
      %v3143 = vpack.c.b16 %v3140, %v3139
      %v3144 = vpack.c.b16 %v3142, %v3141
      %3145 = vrot.lane.b32.xlu0 %v1619, 64
      %v3146 = vpop.permute.xlu0 %3145
      %3147 = vrot.lane.b32.xlu0 %v1620, 64
      %v3148 = vpop.permute.xlu0 %3147
      %v3152 = vsel %vm495, %v3143, 0
      %v3155 = vsel %vm495, %v3144, 0
      %3157 = vmatpush.bf16.msra.mxu0 0
      %3158 = vmatpush.bf16.msra.mxu0 0
      %3159 = vmatpush.bf16.msra.mxu0 0
      %3160 = vmatpush.bf16.msra.mxu0 0
      %3161 = vmatpush.bf16.msra.mxu0 0
      %3162 = vmatpush.bf16.msra.mxu0 0
      %3163 = vmatpush.bf16.msra.mxu0 %v3148
      %3164 = vmatpush.bf16.msra.mxu0 %v3146
      %3165 = vmatmul.bf16.gmra.mxu0 %v3152
      %v3166 = vpop.f32.mrf.mxu0
      %v3167 = vadd.f32 0.0, %v3166
      %v3168 = vpop.f32.mrf.mxu0
      %v3169 = vadd.f32 0.0, %v3168
      %3170 = vmatmul.bf16.gmra.mxu0 %v3155
      %v3171 = vpop.f32.mrf.mxu0
      %v3172 = vadd.f32 0.0, %v3171
      %v3173 = vpop.f32.mrf.mxu0
      %v3174 = vadd.f32 0.0, %v3173
      %3175 = vdwg.mxu0
      %v3180 = vunpack.c.l.b16 %v2631
      %v3181 = vunpack.c.l.b16 %v2632
      %v3182 = vunpack.c.l.b16 %v2633
      %v3183 = vunpack.c.l.b16 %v2634
      %v3184 = vpack.c.b16 %v3181, %v3180
      %v3185 = vpack.c.b16 %v3183, %v3182
      %3186 = vrot.lane.b32.xlu0 %v1660, 64
      %v3187 = vpop.permute.xlu0 %3186
      %3188 = vrot.lane.b32.xlu0 %v1661, 64
      %v3189 = vpop.permute.xlu0 %3188
      %v3193 = vsel %vm495, %v3184, 0
      %v3196 = vsel %vm495, %v3185, 0
      %3198 = vmatpush.bf16.msra.mxu0 0
      %3199 = vmatpush.bf16.msra.mxu0 0
      %3200 = vmatpush.bf16.msra.mxu0 0
      %3201 = vmatpush.bf16.msra.mxu0 0
      %3202 = vmatpush.bf16.msra.mxu0 0
      %3203 = vmatpush.bf16.msra.mxu0 0
      %3204 = vmatpush.bf16.msra.mxu0 %v3189
      %3205 = vmatpush.bf16.msra.mxu0 %v3187
      %3206 = vmatmul.bf16.gmra.mxu0 %v3193
      %v3207 = vpop.f32.mrf.mxu0
      %v3208 = vadd.f32 0.0, %v3207
      %v3209 = vpop.f32.mrf.mxu0
      %v3210 = vadd.f32 0.0, %v3209
      %3211 = vmatmul.bf16.gmra.mxu0 %v3196
      %v3212 = vpop.f32.mrf.mxu0
      %v3213 = vadd.f32 0.0, %v3212
      %v3214 = vpop.f32.mrf.mxu0
      %v3215 = vadd.f32 0.0, %v3214
      %3216 = vdwg.mxu0
      %v3221 = vunpack.c.l.b16 %v2635
      %v3222 = vunpack.c.l.b16 %v2636
      %v3223 = vunpack.c.l.b16 %v2637
      %v3224 = vunpack.c.l.b16 %v2638
      %v3225 = vpack.c.b16 %v3222, %v3221
      %v3226 = vpack.c.b16 %v3224, %v3223
      %3227 = vrot.lane.b32.xlu0 %v1701, 64
      %v3228 = vpop.permute.xlu0 %3227
      %3229 = vrot.lane.b32.xlu0 %v1702, 64
      %v3230 = vpop.permute.xlu0 %3229
      %v3234 = vsel %vm495, %v3225, 0
      %v3237 = vsel %vm495, %v3226, 0
      %3239 = vmatpush.bf16.msra.mxu0 0
      %3240 = vmatpush.bf16.msra.mxu0 0
      %3241 = vmatpush.bf16.msra.mxu0 0
      %3242 = vmatpush.bf16.msra.mxu0 0
      %3243 = vmatpush.bf16.msra.mxu0 0
      %3244 = vmatpush.bf16.msra.mxu0 0
      %3245 = vmatpush.bf16.msra.mxu0 %v3230
      %3246 = vmatpush.bf16.msra.mxu0 %v3228
      %3247 = vmatmul.bf16.gmra.mxu0 %v3234
      %v3248 = vpop.f32.mrf.mxu0
      %v3249 = vadd.f32 0.0, %v3248
      %v3250 = vpop.f32.mrf.mxu0
      %v3251 = vadd.f32 0.0, %v3250
      %3252 = vmatmul.bf16.gmra.mxu0 %v3237
      %v3253 = vpop.f32.mrf.mxu0
      %v3254 = vadd.f32 0.0, %v3253
      %v3255 = vpop.f32.mrf.mxu0
      %v3256 = vadd.f32 0.0, %v3255
      %3257 = vdwg.mxu0
      %v3262 = vunpack.c.l.b16 %v2639
      %v3263 = vunpack.c.l.b16 %v2640
      %v3264 = vunpack.c.l.b16 %v2641
      %v3265 = vunpack.c.l.b16 %v2642
      %v3266 = vpack.c.b16 %v3263, %v3262
      %v3267 = vpack.c.b16 %v3265, %v3264
      %3268 = vrot.lane.b32.xlu0 %v1742, 64
      %v3269 = vpop.permute.xlu0 %3268
      %3270 = vrot.lane.b32.xlu0 %v1743, 64
      %v3271 = vpop.permute.xlu0 %3270
      %v3275 = vsel %vm495, %v3266, 0
      %v3278 = vsel %vm495, %v3267, 0
      %3280 = vmatpush.bf16.msra.mxu0 0
      %3281 = vmatpush.bf16.msra.mxu0 0
      %3282 = vmatpush.bf16.msra.mxu0 0
      %3283 = vmatpush.bf16.msra.mxu0 0
      %3284 = vmatpush.bf16.msra.mxu0 0
      %3285 = vmatpush.bf16.msra.mxu0 0
      %3286 = vmatpush.bf16.msra.mxu0 %v3271
      %3287 = vmatpush.bf16.msra.mxu0 %v3269
      %3288 = vmatmul.bf16.gmra.mxu0 %v3275
      %v3289 = vpop.f32.mrf.mxu0
      %v3290 = vadd.f32 0.0, %v3289
      %v3291 = vpop.f32.mrf.mxu0
      %v3292 = vadd.f32 0.0, %v3291
      %3293 = vmatmul.bf16.gmra.mxu0 %v3278
      %v3294 = vpop.f32.mrf.mxu0
      %v3295 = vadd.f32 0.0, %v3294
      %v3296 = vpop.f32.mrf.mxu0
      %v3297 = vadd.f32 0.0, %v3296
      %3298 = vdwg.mxu0
      %3315 = vrot.lane.b32.xlu0 %v2716, 8
      %v3316 = vpop.permute.xlu0 %3315
      %3317 = vrot.lane.b32.xlu0 %v2718, 8
      %v3318 = vpop.permute.xlu0 %3317
      %3319 = vrot.lane.b32.xlu0 %v2721, 8
      %v3320 = vpop.permute.xlu0 %3319
      %3321 = vrot.lane.b32.xlu0 %v2723, 8
      %v3322 = vpop.permute.xlu0 %3321
      %3323 = vrot.lane.b32.xlu0 %v2880, 8
      %v3324 = vpop.permute.xlu0 %3323
      %3325 = vrot.lane.b32.xlu0 %v2882, 8
      %v3326 = vpop.permute.xlu0 %3325
      %3327 = vrot.lane.b32.xlu0 %v2885, 8
      %v3328 = vpop.permute.xlu0 %3327
      %3329 = vrot.lane.b32.xlu0 %v2887, 8
      %v3330 = vpop.permute.xlu0 %3329
      %3331 = vrot.lane.b32.xlu0 %v3044, 8
      %v3332 = vpop.permute.xlu0 %3331
      %3333 = vrot.lane.b32.xlu0 %v3046, 8
      %v3334 = vpop.permute.xlu0 %3333
      %3335 = vrot.lane.b32.xlu0 %v3049, 8
      %v3336 = vpop.permute.xlu0 %3335
      %3337 = vrot.lane.b32.xlu0 %v3051, 8
      %v3338 = vpop.permute.xlu0 %3337
      %3339 = vrot.lane.b32.xlu0 %v3208, 8
      %v3340 = vpop.permute.xlu0 %3339
      %3341 = vrot.lane.b32.xlu0 %v3210, 8
      %v3342 = vpop.permute.xlu0 %3341
      %3343 = vrot.lane.b32.xlu0 %v3213, 8
      %v3344 = vpop.permute.xlu0 %3343
      %3345 = vrot.lane.b32.xlu0 %v3215, 8
      %v3346 = vpop.permute.xlu0 %3345
      %3379 = vrot.lane.b32.xlu0 %v2757, 16
      %v3380 = vpop.permute.xlu0 %3379
      %3381 = vrot.lane.b32.xlu0 %v2759, 16
      %v3382 = vpop.permute.xlu0 %3381
      %3383 = vrot.lane.b32.xlu0 %v2762, 16
      %v3384 = vpop.permute.xlu0 %3383
      %3385 = vrot.lane.b32.xlu0 %v2764, 16
      %v3386 = vpop.permute.xlu0 %3385
      %3387 = vrot.lane.b32.xlu0 %v2921, 16
      %v3388 = vpop.permute.xlu0 %3387
      %3389 = vrot.lane.b32.xlu0 %v2923, 16
      %v3390 = vpop.permute.xlu0 %3389
      %3391 = vrot.lane.b32.xlu0 %v2926, 16
      %v3392 = vpop.permute.xlu0 %3391
      %3393 = vrot.lane.b32.xlu0 %v2928, 16
      %v3394 = vpop.permute.xlu0 %3393
      %3395 = vrot.lane.b32.xlu0 %v3085, 16
      %v3396 = vpop.permute.xlu0 %3395
      %3397 = vrot.lane.b32.xlu0 %v3087, 16
      %v3398 = vpop.permute.xlu0 %3397
      %3399 = vrot.lane.b32.xlu0 %v3090, 16
      %v3400 = vpop.permute.xlu0 %3399
      %3401 = vrot.lane.b32.xlu0 %v3092, 16
      %v3402 = vpop.permute.xlu0 %3401
      %3403 = vrot.lane.b32.xlu0 %v3249, 16
      %v3404 = vpop.permute.xlu0 %3403
      %3405 = vrot.lane.b32.xlu0 %v3251, 16
      %v3406 = vpop.permute.xlu0 %3405
      %3407 = vrot.lane.b32.xlu0 %v3254, 16
      %v3408 = vpop.permute.xlu0 %3407
      %3409 = vrot.lane.b32.xlu0 %v3256, 16
      %v3410 = vpop.permute.xlu0 %3409
      %3443 = vrot.lane.b32.xlu0 %v2798, 24
      %v3444 = vpop.permute.xlu0 %3443
      %3445 = vrot.lane.b32.xlu0 %v2800, 24
      %v3446 = vpop.permute.xlu0 %3445
      %3447 = vrot.lane.b32.xlu0 %v2803, 24
      %v3448 = vpop.permute.xlu0 %3447
      %3449 = vrot.lane.b32.xlu0 %v2805, 24
      %v3450 = vpop.permute.xlu0 %3449
      %3451 = vrot.lane.b32.xlu0 %v2962, 24
      %v3452 = vpop.permute.xlu0 %3451
      %3453 = vrot.lane.b32.xlu0 %v2964, 24
      %v3454 = vpop.permute.xlu0 %3453
      %3455 = vrot.lane.b32.xlu0 %v2967, 24
      %v3456 = vpop.permute.xlu0 %3455
      %3457 = vrot.lane.b32.xlu0 %v2969, 24
      %v3458 = vpop.permute.xlu0 %3457
      %3459 = vrot.lane.b32.xlu0 %v3126, 24
      %v3460 = vpop.permute.xlu0 %3459
      %3461 = vrot.lane.b32.xlu0 %v3128, 24
      %v3462 = vpop.permute.xlu0 %3461
      %3463 = vrot.lane.b32.xlu0 %v3131, 24
      %v3464 = vpop.permute.xlu0 %3463
      %3465 = vrot.lane.b32.xlu0 %v3133, 24
      %v3466 = vpop.permute.xlu0 %3465
      %3467 = vrot.lane.b32.xlu0 %v3290, 24
      %v3468 = vpop.permute.xlu0 %3467
      %3469 = vrot.lane.b32.xlu0 %v3292, 24
      %v3470 = vpop.permute.xlu0 %3469
      %3471 = vrot.lane.b32.xlu0 %v3295, 24
      %v3472 = vpop.permute.xlu0 %3471
      %3473 = vrot.lane.b32.xlu0 %v3297, 24
      %v3474 = vpop.permute.xlu0 %3473
      %v3491 = vsel %vm1132, %v2675, %v3316
      %v3492 = vsel %vm1132, %v2677, %v3318
      %v3493 = vsel %vm1132, %v2680, %v3320
      %v3494 = vsel %vm1132, %v2682, %v3322
      %v3495 = vsel %vm1132, %v2839, %v3324
      %v3496 = vsel %vm1132, %v2841, %v3326
      %v3497 = vsel %vm1132, %v2844, %v3328
      %v3498 = vsel %vm1132, %v2846, %v3330
      %v3499 = vsel %vm1132, %v3003, %v3332
      %v3500 = vsel %vm1132, %v3005, %v3334
      %v3501 = vsel %vm1132, %v3008, %v3336
      %v3502 = vsel %vm1132, %v3010, %v3338
      %v3503 = vsel %vm1132, %v3167, %v3340
      %v3504 = vsel %vm1132, %v3169, %v3342
      %v3505 = vsel %vm1132, %v3172, %v3344
      %v3506 = vsel %vm1132, %v3174, %v3346
      %vm3507 = vcmask 130048
      %v3508 = vsel %vm3507, %v3491, %v3380
      %v3509 = vsel %vm3507, %v3492, %v3382
      %v3510 = vsel %vm3507, %v3493, %v3384
      %v3511 = vsel %vm3507, %v3494, %v3386
      %v3512 = vsel %vm3507, %v3495, %v3388
      %v3513 = vsel %vm3507, %v3496, %v3390
      %v3514 = vsel %vm3507, %v3497, %v3392
      %v3515 = vsel %vm3507, %v3498, %v3394
      %v3516 = vsel %vm3507, %v3499, %v3396
      %v3517 = vsel %vm3507, %v3500, %v3398
      %v3518 = vsel %vm3507, %v3501, %v3400
      %v3519 = vsel %vm3507, %v3502, %v3402
      %v3520 = vsel %vm3507, %v3503, %v3404
      %v3521 = vsel %vm3507, %v3504, %v3406
      %v3522 = vsel %vm3507, %v3505, %v3408
      %v3523 = vsel %vm3507, %v3506, %v3410
      %vm3524 = vcmask 195584
      %v3525 = vsel %vm3524, %v3508, %v3444
      %v3526 = vsel %vm3524, %v3509, %v3446
      %v3527 = vsel %vm3524, %v3510, %v3448
      %v3528 = vsel %vm3524, %v3511, %v3450
      %v3529 = vsel %vm3524, %v3512, %v3452
      %v3530 = vsel %vm3524, %v3513, %v3454
      %v3531 = vsel %vm3524, %v3514, %v3456
      %v3532 = vsel %vm3524, %v3515, %v3458
      %v3533 = vsel %vm3524, %v3516, %v3460
      %v3534 = vsel %vm3524, %v3517, %v3462
      %v3535 = vsel %vm3524, %v3518, %v3464
      %v3536 = vsel %vm3524, %v3519, %v3466
      %v3537 = vsel %vm3524, %v3520, %v3468
      %v3538 = vsel %vm3524, %v3521, %v3470
      %v3539 = vsel %vm3524, %v3522, %v3472
      %v3540 = vsel %vm3524, %v3523, %v3474
      %v3541 = vpack.c.bf16 %v3526, %v3525
      %v3542 = vpack.c.bf16 %v3528, %v3527
      %v3543 = vpack.c.bf16 %v3530, %v3529
      %v3544 = vpack.c.bf16 %v3532, %v3531
      %v3545 = vpack.c.bf16 %v3534, %v3533
      %v3546 = vpack.c.bf16 %v3536, %v3535
      %v3547 = vpack.c.bf16 %v3538, %v3537
      %v3548 = vpack.c.bf16 %v3540, %v3539
      %v3549 = vld [vmem:[%s6] sm:$0xf]
      %v3550 = vld [vmem:[%s6 + $0x4] sm:$0xf]
      %v3551 = vld [vmem:[%s6 + $0x8] sm:$0xf]
      %v3552 = vld [vmem:[%s6 + $0xc] sm:$0xf]
      %v3553 = vld [vmem:[%s7] sm:$0x1]
      %v3555 = vperm.slane %v3553, 0
      %v3561 = vunpack.c.l.b16 %v3549
      %v3562 = vunpack.c.l.b16 %v3550
      %v3563 = vunpack.c.l.b16 %v3551
      %v3564 = vunpack.c.l.b16 %v3552
      %v3565 = vpack.c.b16 %v3562, %v3561
      %v3566 = vpack.c.b16 %v3564, %v3563
      %v3570 = vsel %vm495, %v3541, 0
      %v3573 = vsel %vm495, %v3542, 0
      %v3576 = vsel %vm495, %v3543, 0
      %v3579 = vsel %vm495, %v3544, 0
      %v3582 = vsel %vm495, %v3545, 0
      %v3585 = vsel %vm495, %v3546, 0
      %v3588 = vsel %vm495, %v3547, 0
      %v3591 = vsel %vm495, %v3548, 0
      %3593 = vmatpush.bf16.msra.mxu0 0
      %3594 = vmatpush.bf16.msra.mxu0 0
      %3595 = vmatpush.bf16.msra.mxu0 0
      %3596 = vmatpush.bf16.msra.mxu0 0
      %3597 = vmatpush.bf16.msra.mxu0 0
      %3598 = vmatpush.bf16.msra.mxu0 0
      %3599 = vmatpush.bf16.msra.mxu0 %v3566
      %3600 = vmatpush.bf16.msra.mxu0 %v3565
      %3601 = vmatmul.bf16.gmra.mxu0 %v3570
      %v3602 = vpop.f32.mrf.mxu0
      %v3603 = vadd.f32 %v3555, %v3602
      %v3604 = vpop.f32.mrf.mxu0
      %v3605 = vadd.f32 %v3555, %v3604
      %3606 = vmatmul.bf16.gmra.mxu0 %v3573
      %v3607 = vpop.f32.mrf.mxu0
      %v3608 = vadd.f32 %v3555, %v3607
      %v3609 = vpop.f32.mrf.mxu0
      %v3610 = vadd.f32 %v3555, %v3609
      %3611 = vmatmul.bf16.gmra.mxu0 %v3576
      %v3612 = vpop.f32.mrf.mxu0
      %v3613 = vadd.f32 %v3555, %v3612
      %v3614 = vpop.f32.mrf.mxu0
      %v3615 = vadd.f32 %v3555, %v3614
      %3616 = vmatmul.bf16.gmra.mxu0 %v3579
      %v3617 = vpop.f32.mrf.mxu0
      %v3618 = vadd.f32 %v3555, %v3617
      %v3619 = vpop.f32.mrf.mxu0
      %v3620 = vadd.f32 %v3555, %v3619
      %3621 = vmatmul.bf16.gmra.mxu0 %v3582
      %v3622 = vpop.f32.mrf.mxu0
      %v3623 = vadd.f32 %v3555, %v3622
      %v3624 = vpop.f32.mrf.mxu0
      %v3625 = vadd.f32 %v3555, %v3624
      %3626 = vmatmul.bf16.gmra.mxu0 %v3585
      %v3627 = vpop.f32.mrf.mxu0
      %v3628 = vadd.f32 %v3555, %v3627
      %v3629 = vpop.f32.mrf.mxu0
      %v3630 = vadd.f32 %v3555, %v3629
      %3631 = vmatmul.bf16.gmra.mxu0 %v3588
      %v3632 = vpop.f32.mrf.mxu0
      %v3633 = vadd.f32 %v3555, %v3632
      %v3634 = vpop.f32.mrf.mxu0
      %v3635 = vadd.f32 %v3555, %v3634
      %3636 = vmatmul.bf16.gmra.mxu0 %v3591
      %v3637 = vpop.f32.mrf.mxu0
      %v3638 = vadd.f32 %v3555, %v3637
      %v3639 = vpop.f32.mrf.mxu0
      %v3640 = vadd.f32 %v3555, %v3639
      %3641 = vdwg.mxu0
      %v3642 = vadd.f32 %v3603, %v477
      %v3643 = vadd.f32 %v3605, %v478
      %v3644 = vadd.f32 %v3608, %v479
      %v3645 = vadd.f32 %v3610, %v480
      %v3646 = vadd.f32 %v3613, %v481
      %v3647 = vadd.f32 %v3615, %v482
      %v3648 = vadd.f32 %v3618, %v483
      %v3649 = vadd.f32 %v3620, %v484
      %v3650 = vadd.f32 %v3623, %v485
      %v3651 = vadd.f32 %v3625, %v486
      %v3652 = vadd.f32 %v3628, %v487
      %v3653 = vadd.f32 %v3630, %v488
      %v3654 = vadd.f32 %v3633, %v489
      %v3655 = vadd.f32 %v3635, %v490
      %v3656 = vadd.f32 %v3638, %v491
      %v3657 = vadd.f32 %v3640, %v492
      %v3658 = vld [vmem:[%s8] sm:$0x1]
      %v3659 = vld [vmem:[%s9] sm:$0x1]
      %v3660 = vsel %vm495, %v3642, 0.0
      %3661 = vadd.xlane.f32.xlu0 %v3660
      %v3662 = vpop.xlane.xlu0 %3661
      %v3663 = vsel %vm495, %v3643, 0.0
      %3664 = vadd.xlane.f32.xlu0 %v3663
      %v3665 = vpop.xlane.xlu0 %3664
      %v3666 = vsel %vm495, %v3644, 0.0
      %3667 = vadd.xlane.f32.xlu0 %v3666
      %v3668 = vpop.xlane.xlu0 %3667
      %v3669 = vsel %vm495, %v3645, 0.0
      %3670 = vadd.xlane.f32.xlu0 %v3669
      %v3671 = vpop.xlane.xlu0 %3670
      %v3672 = vsel %vm495, %v3646, 0.0
      %3673 = vadd.xlane.f32.xlu0 %v3672
      %v3674 = vpop.xlane.xlu0 %3673
      %v3675 = vsel %vm495, %v3647, 0.0
      %3676 = vadd.xlane.f32.xlu0 %v3675
      %v3677 = vpop.xlane.xlu0 %3676
      %v3678 = vsel %vm495, %v3648, 0.0
      %3679 = vadd.xlane.f32.xlu0 %v3678
      %v3680 = vpop.xlane.xlu0 %3679
      %v3681 = vsel %vm495, %v3649, 0.0
      %3682 = vadd.xlane.f32.xlu0 %v3681
      %v3683 = vpop.xlane.xlu0 %3682
      %v3684 = vsel %vm495, %v3650, 0.0
      %3685 = vadd.xlane.f32.xlu0 %v3684
      %v3686 = vpop.xlane.xlu0 %3685
      %v3687 = vsel %vm495, %v3651, 0.0
      %3688 = vadd.xlane.f32.xlu0 %v3687
      %v3689 = vpop.xlane.xlu0 %3688
      %v3690 = vsel %vm495, %v3652, 0.0
      %3691 = vadd.xlane.f32.xlu0 %v3690
      %v3692 = vpop.xlane.xlu0 %3691
      %v3693 = vsel %vm495, %v3653, 0.0
      %3694 = vadd.xlane.f32.xlu0 %v3693
      %v3695 = vpop.xlane.xlu0 %3694
      %v3696 = vsel %vm495, %v3654, 0.0
      %3697 = vadd.xlane.f32.xlu0 %v3696
      %v3698 = vpop.xlane.xlu0 %3697
      %v3699 = vsel %vm495, %v3655, 0.0
      %3700 = vadd.xlane.f32.xlu0 %v3699
      %v3701 = vpop.xlane.xlu0 %3700
      %v3702 = vsel %vm495, %v3656, 0.0
      %3703 = vadd.xlane.f32.xlu0 %v3702
      %v3704 = vpop.xlane.xlu0 %3703
      %v3705 = vsel %vm495, %v3657, 0.0
      %3706 = vadd.xlane.f32.xlu0 %v3705
      %v3707 = vpop.xlane.xlu0 %3706
      %v3708 = vmul.f32 %v3662, %v550
      %v3709 = vmul.f32 %v3665, %v550
      %v3710 = vmul.f32 %v3668, %v550
      %v3711 = vmul.f32 %v3671, %v550
      %v3712 = vmul.f32 %v3674, %v550
      %v3713 = vmul.f32 %v3677, %v550
      %v3714 = vmul.f32 %v3680, %v550
      %v3715 = vmul.f32 %v3683, %v550
      %v3716 = vmul.f32 %v3686, %v550
      %v3717 = vmul.f32 %v3689, %v550
      %v3718 = vmul.f32 %v3692, %v550
      %v3719 = vmul.f32 %v3695, %v550
      %v3720 = vmul.f32 %v3698, %v550
      %v3721 = vmul.f32 %v3701, %v550
      %v3722 = vmul.f32 %v3704, %v550
      %v3723 = vmul.f32 %v3707, %v550
      %v3724 = vsub.f32 %v3642, %v3708
      %v3725 = vsub.f32 %v3643, %v3709
      %v3726 = vsub.f32 %v3644, %v3710
      %v3727 = vsub.f32 %v3645, %v3711
      %v3728 = vsub.f32 %v3646, %v3712
      %v3729 = vsub.f32 %v3647, %v3713
      %v3730 = vsub.f32 %v3648, %v3714
      %v3731 = vsub.f32 %v3649, %v3715
      %v3732 = vsub.f32 %v3650, %v3716
      %v3733 = vsub.f32 %v3651, %v3717
      %v3734 = vsub.f32 %v3652, %v3718
      %v3735 = vsub.f32 %v3653, %v3719
      %v3736 = vsub.f32 %v3654, %v3720
      %v3737 = vsub.f32 %v3655, %v3721
      %v3738 = vsub.f32 %v3656, %v3722
      %v3739 = vsub.f32 %v3657, %v3723
      %v3740 = vmul.f32 %v3724, %v3724
      %v3741 = vmul.f32 %v3725, %v3725
      %v3742 = vmul.f32 %v3726, %v3726
      %v3743 = vmul.f32 %v3727, %v3727
      %v3744 = vmul.f32 %v3728, %v3728
      %v3745 = vmul.f32 %v3729, %v3729
      %v3746 = vmul.f32 %v3730, %v3730
      %v3747 = vmul.f32 %v3731, %v3731
      %v3748 = vmul.f32 %v3732, %v3732
      %v3749 = vmul.f32 %v3733, %v3733
      %v3750 = vmul.f32 %v3734, %v3734
      %v3751 = vmul.f32 %v3735, %v3735
      %v3752 = vmul.f32 %v3736, %v3736
      %v3753 = vmul.f32 %v3737, %v3737
      %v3754 = vmul.f32 %v3738, %v3738
      %v3755 = vmul.f32 %v3739, %v3739
      %v3756 = vsel %vm495, %v3740, 0.0
      %3757 = vadd.xlane.f32.xlu0 %v3756
      %v3758 = vpop.xlane.xlu0 %3757
      %v3759 = vsel %vm495, %v3741, 0.0
      %3760 = vadd.xlane.f32.xlu0 %v3759
      %v3761 = vpop.xlane.xlu0 %3760
      %v3762 = vsel %vm495, %v3742, 0.0
      %3763 = vadd.xlane.f32.xlu0 %v3762
      %v3764 = vpop.xlane.xlu0 %3763
      %v3765 = vsel %vm495, %v3743, 0.0
      %3766 = vadd.xlane.f32.xlu0 %v3765
      %v3767 = vpop.xlane.xlu0 %3766
      %v3768 = vsel %vm495, %v3744, 0.0
      %3769 = vadd.xlane.f32.xlu0 %v3768
      %v3770 = vpop.xlane.xlu0 %3769
      %v3771 = vsel %vm495, %v3745, 0.0
      %3772 = vadd.xlane.f32.xlu0 %v3771
      %v3773 = vpop.xlane.xlu0 %3772
      %v3774 = vsel %vm495, %v3746, 0.0
      %3775 = vadd.xlane.f32.xlu0 %v3774
      %v3776 = vpop.xlane.xlu0 %3775
      %v3777 = vsel %vm495, %v3747, 0.0
      %3778 = vadd.xlane.f32.xlu0 %v3777
      %v3779 = vpop.xlane.xlu0 %3778
      %v3780 = vsel %vm495, %v3748, 0.0
      %3781 = vadd.xlane.f32.xlu0 %v3780
      %v3782 = vpop.xlane.xlu0 %3781
      %v3783 = vsel %vm495, %v3749, 0.0
      %3784 = vadd.xlane.f32.xlu0 %v3783
      %v3785 = vpop.xlane.xlu0 %3784
      %v3786 = vsel %vm495, %v3750, 0.0
      %3787 = vadd.xlane.f32.xlu0 %v3786
      %v3788 = vpop.xlane.xlu0 %3787
      %v3789 = vsel %vm495, %v3751, 0.0
      %3790 = vadd.xlane.f32.xlu0 %v3789
      %v3791 = vpop.xlane.xlu0 %3790
      %v3792 = vsel %vm495, %v3752, 0.0
      %3793 = vadd.xlane.f32.xlu0 %v3792
      %v3794 = vpop.xlane.xlu0 %3793
      %v3795 = vsel %vm495, %v3753, 0.0
      %3796 = vadd.xlane.f32.xlu0 %v3795
      %v3797 = vpop.xlane.xlu0 %3796
      %v3798 = vsel %vm495, %v3754, 0.0
      %3799 = vadd.xlane.f32.xlu0 %v3798
      %v3800 = vpop.xlane.xlu0 %3799
      %v3801 = vsel %vm495, %v3755, 0.0
      %3802 = vadd.xlane.f32.xlu0 %v3801
      %v3803 = vpop.xlane.xlu0 %3802
      %v3804 = vmul.f32 %v3758, %v550
      %v3805 = vmul.f32 %v3761, %v550
      %v3806 = vmul.f32 %v3764, %v550
      %v3807 = vmul.f32 %v3767, %v550
      %v3808 = vmul.f32 %v3770, %v550
      %v3809 = vmul.f32 %v3773, %v550
      %v3810 = vmul.f32 %v3776, %v550
      %v3811 = vmul.f32 %v3779, %v550
      %v3812 = vmul.f32 %v3782, %v550
      %v3813 = vmul.f32 %v3785, %v550
      %v3814 = vmul.f32 %v3788, %v550
      %v3815 = vmul.f32 %v3791, %v550
      %v3816 = vmul.f32 %v3794, %v550
      %v3817 = vmul.f32 %v3797, %v550
      %v3818 = vmul.f32 %v3800, %v550
      %v3819 = vmul.f32 %v3803, %v550
      %v3820 = vadd.f32 %v3804, 1e-05
      %v3821 = vadd.f32 %v3805, 1e-05
      %v3822 = vadd.f32 %v3806, 1e-05
      %v3823 = vadd.f32 %v3807, 1e-05
      %v3824 = vadd.f32 %v3808, 1e-05
      %v3825 = vadd.f32 %v3809, 1e-05
      %v3826 = vadd.f32 %v3810, 1e-05
      %v3827 = vadd.f32 %v3811, 1e-05
      %v3828 = vadd.f32 %v3812, 1e-05
      %v3829 = vadd.f32 %v3813, 1e-05
      %v3830 = vadd.f32 %v3814, 1e-05
      %v3831 = vadd.f32 %v3815, 1e-05
      %v3832 = vadd.f32 %v3816, 1e-05
      %v3833 = vadd.f32 %v3817, 1e-05
      %v3834 = vadd.f32 %v3818, 1e-05
      %v3835 = vadd.f32 %v3819, 1e-05
      %v3836 = vrsqrt.pop %v3820
      %v3837 = vmul.f32 %v3836, %v3820
      %v3838 = vmul.f32 %v3837, %v3836
      %v3839 = vmul.f32 0.5, %v3838
      %v3840 = vsub.f32 1.5, %v3839
      %v3841 = vmul.f32 %v3836, %v3840
      %vm3842 = vweird.f32 %v3820
      %vm3843 = vweird.f32 %v3836
      %vm3844 = vmor %vm3842, %vm3843
      %v3845 = vsel %vm3844, %v3836, %v3841
      %v3846 = vrsqrt.pop %v3821
      %v3847 = vmul.f32 %v3846, %v3821
      %v3848 = vmul.f32 %v3847, %v3846
      %v3849 = vmul.f32 0.5, %v3848
      %v3850 = vsub.f32 1.5, %v3849
      %v3851 = vmul.f32 %v3846, %v3850
      %vm3852 = vweird.f32 %v3821
      %vm3853 = vweird.f32 %v3846
      %vm3854 = vmor %vm3852, %vm3853
      %v3855 = vsel %vm3854, %v3846, %v3851
      %v3856 = vrsqrt.pop %v3822
      %v3857 = vmul.f32 %v3856, %v3822
      %v3858 = vmul.f32 %v3857, %v3856
      %v3859 = vmul.f32 0.5, %v3858
      %v3860 = vsub.f32 1.5, %v3859
      %v3861 = vmul.f32 %v3856, %v3860
      %vm3862 = vweird.f32 %v3822
      %vm3863 = vweird.f32 %v3856
      %vm3864 = vmor %vm3862, %vm3863
      %v3865 = vsel %vm3864, %v3856, %v3861
      %v3866 = vrsqrt.pop %v3823
      %v3867 = vmul.f32 %v3866, %v3823
      %v3868 = vmul.f32 %v3867, %v3866
      %v3869 = vmul.f32 0.5, %v3868
      %v3870 = vsub.f32 1.5, %v3869
      %v3871 = vmul.f32 %v3866, %v3870
      %vm3872 = vweird.f32 %v3823
      %vm3873 = vweird.f32 %v3866
      %vm3874 = vmor %vm3872, %vm3873
      %v3875 = vsel %vm3874, %v3866, %v3871
      %v3876 = vrsqrt.pop %v3824
      %v3877 = vmul.f32 %v3876, %v3824
      %v3878 = vmul.f32 %v3877, %v3876
      %v3879 = vmul.f32 0.5, %v3878
      %v3880 = vsub.f32 1.5, %v3879
      %v3881 = vmul.f32 %v3876, %v3880
      %vm3882 = vweird.f32 %v3824
      %vm3883 = vweird.f32 %v3876
      %vm3884 = vmor %vm3882, %vm3883
      %v3885 = vsel %vm3884, %v3876, %v3881
      %v3886 = vrsqrt.pop %v3825
      %v3887 = vmul.f32 %v3886, %v3825
      %v3888 = vmul.f32 %v3887, %v3886
      %v3889 = vmul.f32 0.5, %v3888
      %v3890 = vsub.f32 1.5, %v3889
      %v3891 = vmul.f32 %v3886, %v3890
      %vm3892 = vweird.f32 %v3825
      %vm3893 = vweird.f32 %v3886
      %vm3894 = vmor %vm3892, %vm3893
      %v3895 = vsel %vm3894, %v3886, %v3891
      %v3896 = vrsqrt.pop %v3826
      %v3897 = vmul.f32 %v3896, %v3826
      %v3898 = vmul.f32 %v3897, %v3896
      %v3899 = vmul.f32 0.5, %v3898
      %v3900 = vsub.f32 1.5, %v3899
      %v3901 = vmul.f32 %v3896, %v3900
      %vm3902 = vweird.f32 %v3826
      %vm3903 = vweird.f32 %v3896
      %vm3904 = vmor %vm3902, %vm3903
      %v3905 = vsel %vm3904, %v3896, %v3901
      %v3906 = vrsqrt.pop %v3827
      %v3907 = vmul.f32 %v3906, %v3827
      %v3908 = vmul.f32 %v3907, %v3906
      %v3909 = vmul.f32 0.5, %v3908
      %v3910 = vsub.f32 1.5, %v3909
      %v3911 = vmul.f32 %v3906, %v3910
      %vm3912 = vweird.f32 %v3827
      %vm3913 = vweird.f32 %v3906
      %vm3914 = vmor %vm3912, %vm3913
      %v3915 = vsel %vm3914, %v3906, %v3911
      %v3916 = vrsqrt.pop %v3828
      %v3917 = vmul.f32 %v3916, %v3828
      %v3918 = vmul.f32 %v3917, %v3916
      %v3919 = vmul.f32 0.5, %v3918
      %v3920 = vsub.f32 1.5, %v3919
      %v3921 = vmul.f32 %v3916, %v3920
      %vm3922 = vweird.f32 %v3828
      %vm3923 = vweird.f32 %v3916
      %vm3924 = vmor %vm3922, %vm3923
      %v3925 = vsel %vm3924, %v3916, %v3921
      %v3926 = vrsqrt.pop %v3829
      %v3927 = vmul.f32 %v3926, %v3829
      %v3928 = vmul.f32 %v3927, %v3926
      %v3929 = vmul.f32 0.5, %v3928
      %v3930 = vsub.f32 1.5, %v3929
      %v3931 = vmul.f32 %v3926, %v3930
      %vm3932 = vweird.f32 %v3829
      %vm3933 = vweird.f32 %v3926
      %vm3934 = vmor %vm3932, %vm3933
      %v3935 = vsel %vm3934, %v3926, %v3931
      %v3936 = vrsqrt.pop %v3830
      %v3937 = vmul.f32 %v3936, %v3830
      %v3938 = vmul.f32 %v3937, %v3936
      %v3939 = vmul.f32 0.5, %v3938
      %v3940 = vsub.f32 1.5, %v3939
      %v3941 = vmul.f32 %v3936, %v3940
      %vm3942 = vweird.f32 %v3830
      %vm3943 = vweird.f32 %v3936
      %vm3944 = vmor %vm3942, %vm3943
      %v3945 = vsel %vm3944, %v3936, %v3941
      %v3946 = vrsqrt.pop %v3831
      %v3947 = vmul.f32 %v3946, %v3831
      %v3948 = vmul.f32 %v3947, %v3946
      %v3949 = vmul.f32 0.5, %v3948
      %v3950 = vsub.f32 1.5, %v3949
      %v3951 = vmul.f32 %v3946, %v3950
      %vm3952 = vweird.f32 %v3831
      %vm3953 = vweird.f32 %v3946
      %vm3954 = vmor %vm3952, %vm3953
      %v3955 = vsel %vm3954, %v3946, %v3951
      %v3956 = vrsqrt.pop %v3832
      %v3957 = vmul.f32 %v3956, %v3832
      %v3958 = vmul.f32 %v3957, %v3956
      %v3959 = vmul.f32 0.5, %v3958
      %v3960 = vsub.f32 1.5, %v3959
      %v3961 = vmul.f32 %v3956, %v3960
      %vm3962 = vweird.f32 %v3832
      %vm3963 = vweird.f32 %v3956
      %vm3964 = vmor %vm3962, %vm3963
      %v3965 = vsel %vm3964, %v3956, %v3961
      %v3966 = vrsqrt.pop %v3833
      %v3967 = vmul.f32 %v3966, %v3833
      %v3968 = vmul.f32 %v3967, %v3966
      %v3969 = vmul.f32 0.5, %v3968
      %v3970 = vsub.f32 1.5, %v3969
      %v3971 = vmul.f32 %v3966, %v3970
      %vm3972 = vweird.f32 %v3833
      %vm3973 = vweird.f32 %v3966
      %vm3974 = vmor %vm3972, %vm3973
      %v3975 = vsel %vm3974, %v3966, %v3971
      %v3976 = vrsqrt.pop %v3834
      %v3977 = vmul.f32 %v3976, %v3834
      %v3978 = vmul.f32 %v3977, %v3976
      %v3979 = vmul.f32 0.5, %v3978
      %v3980 = vsub.f32 1.5, %v3979
      %v3981 = vmul.f32 %v3976, %v3980
      %vm3982 = vweird.f32 %v3834
      %vm3983 = vweird.f32 %v3976
      %vm3984 = vmor %vm3982, %vm3983
      %v3985 = vsel %vm3984, %v3976, %v3981
      %v3986 = vrsqrt.pop %v3835
      %v3987 = vmul.f32 %v3986, %v3835
      %v3988 = vmul.f32 %v3987, %v3986
      %v3989 = vmul.f32 0.5, %v3988
      %v3990 = vsub.f32 1.5, %v3989
      %v3991 = vmul.f32 %v3986, %v3990
      %vm3992 = vweird.f32 %v3835
      %vm3993 = vweird.f32 %v3986
      %vm3994 = vmor %vm3992, %vm3993
      %v3995 = vsel %vm3994, %v3986, %v3991
      %v3996 = vmul.f32 %v3724, %v3845
      %v3997 = vmul.f32 %v3725, %v3855
      %v3998 = vmul.f32 %v3726, %v3865
      %v3999 = vmul.f32 %v3727, %v3875
      %v4000 = vmul.f32 %v3728, %v3885
      %v4001 = vmul.f32 %v3729, %v3895
      %v4002 = vmul.f32 %v3730, %v3905
      %v4003 = vmul.f32 %v3731, %v3915
      %v4004 = vmul.f32 %v3732, %v3925
      %v4005 = vmul.f32 %v3733, %v3935
      %v4006 = vmul.f32 %v3734, %v3945
      %v4007 = vmul.f32 %v3735, %v3955
      %v4008 = vmul.f32 %v3736, %v3965
      %v4009 = vmul.f32 %v3737, %v3975
      %v4010 = vmul.f32 %v3738, %v3985
      %v4011 = vmul.f32 %v3739, %v3995
      %v4013 = vperm.slane %v3658, 0
      %v4015 = vmul.f32 %v3996, %v4013
      %v4016 = vmul.f32 %v3997, %v4013
      %v4017 = vmul.f32 %v3998, %v4013
      %v4018 = vmul.f32 %v3999, %v4013
      %v4019 = vmul.f32 %v4000, %v4013
      %v4020 = vmul.f32 %v4001, %v4013
      %v4021 = vmul.f32 %v4002, %v4013
      %v4022 = vmul.f32 %v4003, %v4013
      %v4023 = vmul.f32 %v4004, %v4013
      %v4024 = vmul.f32 %v4005, %v4013
      %v4025 = vmul.f32 %v4006, %v4013
      %v4026 = vmul.f32 %v4007, %v4013
      %v4027 = vmul.f32 %v4008, %v4013
      %v4028 = vmul.f32 %v4009, %v4013
      %v4029 = vmul.f32 %v4010, %v4013
      %v4030 = vmul.f32 %v4011, %v4013
      %v4032 = vperm.slane %v3659, 0
      %v4034 = vadd.f32 %v4015, %v4032
      %v4035 = vadd.f32 %v4016, %v4032
      %v4036 = vadd.f32 %v4017, %v4032
      %v4037 = vadd.f32 %v4018, %v4032
      %v4038 = vadd.f32 %v4019, %v4032
      %v4039 = vadd.f32 %v4020, %v4032
      %v4040 = vadd.f32 %v4021, %v4032
      %v4041 = vadd.f32 %v4022, %v4032
      %v4042 = vadd.f32 %v4023, %v4032
      %v4043 = vadd.f32 %v4024, %v4032
      %v4044 = vadd.f32 %v4025, %v4032
      %v4045 = vadd.f32 %v4026, %v4032
      %v4046 = vadd.f32 %v4027, %v4032
      %v4047 = vadd.f32 %v4028, %v4032
      %v4048 = vadd.f32 %v4029, %v4032
      %v4049 = vadd.f32 %v4030, %v4032
      %v4050 = vpack.c.bf16 %v4035, %v4034
      %v4051 = vpack.c.bf16 %v4037, %v4036
      %v4052 = vpack.c.bf16 %v4039, %v4038
      %v4053 = vpack.c.bf16 %v4041, %v4040
      %v4054 = vpack.c.bf16 %v4043, %v4042
      %v4055 = vpack.c.bf16 %v4045, %v4044
      %v4056 = vpack.c.bf16 %v4047, %v4046
      %v4057 = vpack.c.bf16 %v4049, %v4048
      %v4058 = vld [vmem:[%s10] sm:$0xf]
      %v4059 = vld [vmem:[%s10 + $0x4] sm:$0xf]
      %v4060 = vld [vmem:[%s10 + $0x8] sm:$0xf]
      %v4061 = vld [vmem:[%s10 + $0xc] sm:$0xf]
      %v4062 = vld [vmem:[%s11] sm:$0x1]
      %v4064 = vperm.slane %v4062, 0
      %v4070 = vunpack.c.l.b16 %v4058
      %v4071 = vunpack.c.l.b16 %v4059
      %v4072 = vunpack.c.l.b16 %v4060
      %v4073 = vunpack.c.l.b16 %v4061
      %v4074 = vpack.c.b16 %v4071, %v4070
      %v4075 = vpack.c.b16 %v4073, %v4072
      %v4079 = vsel %vm495, %v4050, 0
      %v4082 = vsel %vm495, %v4051, 0
      %v4085 = vsel %vm495, %v4052, 0
      %v4088 = vsel %vm495, %v4053, 0
      %v4091 = vsel %vm495, %v4054, 0
      %v4094 = vsel %vm495, %v4055, 0
      %v4097 = vsel %vm495, %v4056, 0
      %v4100 = vsel %vm495, %v4057, 0
      %4102 = vmatpush.bf16.msra.mxu0 0
      %4103 = vmatpush.bf16.msra.mxu0 0
      %4104 = vmatpush.bf16.msra.mxu0 0
      %4105 = vmatpush.bf16.msra.mxu0 0
      %4106 = vmatpush.bf16.msra.mxu0 0
      %4107 = vmatpush.bf16.msra.mxu0 0
      %4108 = vmatpush.bf16.msra.mxu0 %v4075
      %4109 = vmatpush.bf16.msra.mxu0 %v4074
      %4110 = vmatmul.bf16.gmra.mxu0 %v4079
      %v4111 = vpop.f32.mrf.mxu0
      %v4112 = vadd.f32 %v4064, %v4111
      %v4113 = vpop.f32.mrf.mxu0
      %v4114 = vadd.f32 %v4064, %v4113
      %4115 = vmatmul.bf16.gmra.mxu0 %v4082
      %v4116 = vpop.f32.mrf.mxu0
      %v4117 = vadd.f32 %v4064, %v4116
      %v4118 = vpop.f32.mrf.mxu0
      %v4119 = vadd.f32 %v4064, %v4118
      %4120 = vmatmul.bf16.gmra.mxu0 %v4085
      %v4121 = vpop.f32.mrf.mxu0
      %v4122 = vadd.f32 %v4064, %v4121
      %v4123 = vpop.f32.mrf.mxu0
      %v4124 = vadd.f32 %v4064, %v4123
      %4125 = vmatmul.bf16.gmra.mxu0 %v4088
      %v4126 = vpop.f32.mrf.mxu0
      %v4127 = vadd.f32 %v4064, %v4126
      %v4128 = vpop.f32.mrf.mxu0
      %v4129 = vadd.f32 %v4064, %v4128
      %4130 = vmatmul.bf16.gmra.mxu0 %v4091
      %v4131 = vpop.f32.mrf.mxu0
      %v4132 = vadd.f32 %v4064, %v4131
      %v4133 = vpop.f32.mrf.mxu0
      %v4134 = vadd.f32 %v4064, %v4133
      %4135 = vmatmul.bf16.gmra.mxu0 %v4094
      %v4136 = vpop.f32.mrf.mxu0
      %v4137 = vadd.f32 %v4064, %v4136
      %v4138 = vpop.f32.mrf.mxu0
      %v4139 = vadd.f32 %v4064, %v4138
      %4140 = vmatmul.bf16.gmra.mxu0 %v4097
      %v4141 = vpop.f32.mrf.mxu0
      %v4142 = vadd.f32 %v4064, %v4141
      %v4143 = vpop.f32.mrf.mxu0
      %v4144 = vadd.f32 %v4064, %v4143
      %4145 = vmatmul.bf16.gmra.mxu0 %v4100
      %v4146 = vpop.f32.mrf.mxu0
      %v4147 = vadd.f32 %v4064, %v4146
      %v4148 = vpop.f32.mrf.mxu0
      %v4149 = vadd.f32 %v4064, %v4148
      %4150 = vdwg.mxu0
      %v4151 = vmul.f32 %v4112, 0.5
      %v4152 = vmul.f32 %v4114, 0.5
      %v4153 = vmul.f32 %v4117, 0.5
      %v4154 = vmul.f32 %v4119, 0.5
      %v4155 = vmul.f32 %v4122, 0.5
      %v4156 = vmul.f32 %v4124, 0.5
      %v4157 = vmul.f32 %v4127, 0.5
      %v4158 = vmul.f32 %v4129, 0.5
      %v4159 = vmul.f32 %v4132, 0.5
      %v4160 = vmul.f32 %v4134, 0.5
      %v4161 = vmul.f32 %v4137, 0.5
      %v4162 = vmul.f32 %v4139, 0.5
      %v4163 = vmul.f32 %v4142, 0.5
      %v4164 = vmul.f32 %v4144, 0.5
      %v4165 = vmul.f32 %v4147, 0.5
      %v4166 = vmul.f32 %v4149, 0.5
      %v4167 = vmul.f32 %v4112, 0.70710677
      %v4168 = vmul.f32 %v4114, 0.70710677
      %v4169 = vmul.f32 %v4117, 0.70710677
      %v4170 = vmul.f32 %v4119, 0.70710677
      %v4171 = vmul.f32 %v4122, 0.70710677
      %v4172 = vmul.f32 %v4124, 0.70710677
      %v4173 = vmul.f32 %v4127, 0.70710677
      %v4174 = vmul.f32 %v4129, 0.70710677
      %v4175 = vmul.f32 %v4132, 0.70710677
      %v4176 = vmul.f32 %v4134, 0.70710677
      %v4177 = vmul.f32 %v4137, 0.70710677
      %v4178 = vmul.f32 %v4139, 0.70710677
      %v4179 = vmul.f32 %v4142, 0.70710677
      %v4180 = vmul.f32 %v4144, 0.70710677
      %v4181 = vmul.f32 %v4147, 0.70710677
      %v4182 = vmul.f32 %v4149, 0.70710677
      %v4183 = vand.u32 2147483647, %v4167
      %v4184 = vand.u32 2147483647, %v4168
      %v4185 = vand.u32 2147483647, %v4169
      %v4186 = vand.u32 2147483647, %v4170
      %v4187 = vand.u32 2147483647, %v4171
      %v4188 = vand.u32 2147483647, %v4172
      %v4189 = vand.u32 2147483647, %v4173
      %v4190 = vand.u32 2147483647, %v4174
      %v4191 = vand.u32 2147483647, %v4175
      %v4192 = vand.u32 2147483647, %v4176
      %v4193 = vand.u32 2147483647, %v4177
      %v4194 = vand.u32 2147483647, %v4178
      %v4195 = vand.u32 2147483647, %v4179
      %v4196 = vand.u32 2147483647, %v4180
      %v4197 = vand.u32 2147483647, %v4181
      %v4198 = vand.u32 2147483647, %v4182
      %v4199 = vmul.f32 %v4183, 0.3275911
      %v4200 = vmul.f32 %v4184, 0.3275911
      %v4201 = vmul.f32 %v4185, 0.3275911
      %v4202 = vmul.f32 %v4186, 0.3275911
      %v4203 = vmul.f32 %v4187, 0.3275911
      %v4204 = vmul.f32 %v4188, 0.3275911
      %v4205 = vmul.f32 %v4189, 0.3275911
      %v4206 = vmul.f32 %v4190, 0.3275911
      %v4207 = vmul.f32 %v4191, 0.3275911
      %v4208 = vmul.f32 %v4192, 0.3275911
      %v4209 = vmul.f32 %v4193, 0.3275911
      %v4210 = vmul.f32 %v4194, 0.3275911
      %v4211 = vmul.f32 %v4195, 0.3275911
      %v4212 = vmul.f32 %v4196, 0.3275911
      %v4213 = vmul.f32 %v4197, 0.3275911
      %v4214 = vmul.f32 %v4198, 0.3275911
      %v4215 = vadd.f32 %v4199, 1.0
      %v4216 = vadd.f32 %v4200, 1.0
      %v4217 = vadd.f32 %v4201, 1.0
      %v4218 = vadd.f32 %v4202, 1.0
      %v4219 = vadd.f32 %v4203, 1.0
      %v4220 = vadd.f32 %v4204, 1.0
      %v4221 = vadd.f32 %v4205, 1.0
      %v4222 = vadd.f32 %v4206, 1.0
      %v4223 = vadd.f32 %v4207, 1.0
      %v4224 = vadd.f32 %v4208, 1.0
      %v4225 = vadd.f32 %v4209, 1.0
      %v4226 = vadd.f32 %v4210, 1.0
      %v4227 = vadd.f32 %v4211, 1.0
      %v4228 = vadd.f32 %v4212, 1.0
      %v4229 = vadd.f32 %v4213, 1.0
      %v4230 = vadd.f32 %v4214, 1.0
      %v4231 = vrcp.pop %v4215
      %v4232 = vmul.f32 %v4215, %v4231
      %v4233 = vsub.f32 1.0, %v4232
      %v4234 = vmul.f32 %v4231, %v4233
      %v4235 = vadd.f32 %v4231, %v4234
      %vm4236 = vweird.f32 %v4215
      %vm4237 = vweird.f32 %v4231
      %vm4238 = vmor %vm4236, %vm4237
      %v4239 = vsel %vm4238, %v4231, %v4235
      %v4240 = vand.u32 2147483647, %v4215
      %vm4241 = vcmp.eq.f32.partialorder %v4240, 8.507059e+37
      %v4242 = vand.u32 %v4215, 2147483648
      %v4243 = vor.u32 1.1754944e-38, %v4242
      %v4244 = vsel %vm4241, %v4243, %v4239
      %v4245 = vmul.f32 1.0, %v4244
      %v4246 = vrcp.pop %v4216
      %v4247 = vmul.f32 %v4216, %v4246
      %v4248 = vsub.f32 1.0, %v4247
      %v4249 = vmul.f32 %v4246, %v4248
      %v4250 = vadd.f32 %v4246, %v4249
      %vm4251 = vweird.f32 %v4216
      %vm4252 = vweird.f32 %v4246
      %vm4253 = vmor %vm4251, %vm4252
      %v4254 = vsel %vm4253, %v4246, %v4250
      %v4255 = vand.u32 2147483647, %v4216
      %vm4256 = vcmp.eq.f32.partialorder %v4255, 8.507059e+37
      %v4257 = vand.u32 %v4216, 2147483648
      %v4258 = vor.u32 1.1754944e-38, %v4257
      %v4259 = vsel %vm4256, %v4258, %v4254
      %v4260 = vmul.f32 1.0, %v4259
      %v4261 = vrcp.pop %v4217
      %v4262 = vmul.f32 %v4217, %v4261
      %v4263 = vsub.f32 1.0, %v4262
      %v4264 = vmul.f32 %v4261, %v4263
      %v4265 = vadd.f32 %v4261, %v4264
      %vm4266 = vweird.f32 %v4217
      %vm4267 = vweird.f32 %v4261
      %vm4268 = vmor %vm4266, %vm4267
      %v4269 = vsel %vm4268, %v4261, %v4265
      %v4270 = vand.u32 2147483647, %v4217
      %vm4271 = vcmp.eq.f32.partialorder %v4270, 8.507059e+37
      %v4272 = vand.u32 %v4217, 2147483648
      %v4273 = vor.u32 1.1754944e-38, %v4272
      %v4274 = vsel %vm4271, %v4273, %v4269
      %v4275 = vmul.f32 1.0, %v4274
      %v4276 = vrcp.pop %v4218
      %v4277 = vmul.f32 %v4218, %v4276
      %v4278 = vsub.f32 1.0, %v4277
      %v4279 = vmul.f32 %v4276, %v4278
      %v4280 = vadd.f32 %v4276, %v4279
      %vm4281 = vweird.f32 %v4218
      %vm4282 = vweird.f32 %v4276
      %vm4283 = vmor %vm4281, %vm4282
      %v4284 = vsel %vm4283, %v4276, %v4280
      %v4285 = vand.u32 2147483647, %v4218
      %vm4286 = vcmp.eq.f32.partialorder %v4285, 8.507059e+37
      %v4287 = vand.u32 %v4218, 2147483648
      %v4288 = vor.u32 1.1754944e-38, %v4287
      %v4289 = vsel %vm4286, %v4288, %v4284
      %v4290 = vmul.f32 1.0, %v4289
      %v4291 = vrcp.pop %v4219
      %v4292 = vmul.f32 %v4219, %v4291
      %v4293 = vsub.f32 1.0, %v4292
      %v4294 = vmul.f32 %v4291, %v4293
      %v4295 = vadd.f32 %v4291, %v4294
      %vm4296 = vweird.f32 %v4219
      %vm4297 = vweird.f32 %v4291
      %vm4298 = vmor %vm4296, %vm4297
      %v4299 = vsel %vm4298, %v4291, %v4295
      %v4300 = vand.u32 2147483647, %v4219
      %vm4301 = vcmp.eq.f32.partialorder %v4300, 8.507059e+37
      %v4302 = vand.u32 %v4219, 2147483648
      %v4303 = vor.u32 1.1754944e-38, %v4302
      %v4304 = vsel %vm4301, %v4303, %v4299
      %v4305 = vmul.f32 1.0, %v4304
      %v4306 = vrcp.pop %v4220
      %v4307 = vmul.f32 %v4220, %v4306
      %v4308 = vsub.f32 1.0, %v4307
      %v4309 = vmul.f32 %v4306, %v4308
      %v4310 = vadd.f32 %v4306, %v4309
      %vm4311 = vweird.f32 %v4220
      %vm4312 = vweird.f32 %v4306
      %vm4313 = vmor %vm4311, %vm4312
      %v4314 = vsel %vm4313, %v4306, %v4310
      %v4315 = vand.u32 2147483647, %v4220
      %vm4316 = vcmp.eq.f32.partialorder %v4315, 8.507059e+37
      %v4317 = vand.u32 %v4220, 2147483648
      %v4318 = vor.u32 1.1754944e-38, %v4317
      %v4319 = vsel %vm4316, %v4318, %v4314
      %v4320 = vmul.f32 1.0, %v4319
      %v4321 = vrcp.pop %v4221
      %v4322 = vmul.f32 %v4221, %v4321
      %v4323 = vsub.f32 1.0, %v4322
      %v4324 = vmul.f32 %v4321, %v4323
      %v4325 = vadd.f32 %v4321, %v4324
      %vm4326 = vweird.f32 %v4221
      %vm4327 = vweird.f32 %v4321
      %vm4328 = vmor %vm4326, %vm4327
      %v4329 = vsel %vm4328, %v4321, %v4325
      %v4330 = vand.u32 2147483647, %v4221
      %vm4331 = vcmp.eq.f32.partialorder %v4330, 8.507059e+37
      %v4332 = vand.u32 %v4221, 2147483648
      %v4333 = vor.u32 1.1754944e-38, %v4332
      %v4334 = vsel %vm4331, %v4333, %v4329
      %v4335 = vmul.f32 1.0, %v4334
      %v4336 = vrcp.pop %v4222
      %v4337 = vmul.f32 %v4222, %v4336
      %v4338 = vsub.f32 1.0, %v4337
      %v4339 = vmul.f32 %v4336, %v4338
      %v4340 = vadd.f32 %v4336, %v4339
      %vm4341 = vweird.f32 %v4222
      %vm4342 = vweird.f32 %v4336
      %vm4343 = vmor %vm4341, %vm4342
      %v4344 = vsel %vm4343, %v4336, %v4340
      %v4345 = vand.u32 2147483647, %v4222
      %vm4346 = vcmp.eq.f32.partialorder %v4345, 8.507059e+37
      %v4347 = vand.u32 %v4222, 2147483648
      %v4348 = vor.u32 1.1754944e-38, %v4347
      %v4349 = vsel %vm4346, %v4348, %v4344
      %v4350 = vmul.f32 1.0, %v4349
      %v4351 = vrcp.pop %v4223
      %v4352 = vmul.f32 %v4223, %v4351
      %v4353 = vsub.f32 1.0, %v4352
      %v4354 = vmul.f32 %v4351, %v4353
      %v4355 = vadd.f32 %v4351, %v4354
      %vm4356 = vweird.f32 %v4223
      %vm4357 = vweird.f32 %v4351
      %vm4358 = vmor %vm4356, %vm4357
      %v4359 = vsel %vm4358, %v4351, %v4355
      %v4360 = vand.u32 2147483647, %v4223
      %vm4361 = vcmp.eq.f32.partialorder %v4360, 8.507059e+37
      %v4362 = vand.u32 %v4223, 2147483648
      %v4363 = vor.u32 1.1754944e-38, %v4362
      %v4364 = vsel %vm4361, %v4363, %v4359
      %v4365 = vmul.f32 1.0, %v4364
      %v4366 = vrcp.pop %v4224
      %v4367 = vmul.f32 %v4224, %v4366
      %v4368 = vsub.f32 1.0, %v4367
      %v4369 = vmul.f32 %v4366, %v4368
      %v4370 = vadd.f32 %v4366, %v4369
      %vm4371 = vweird.f32 %v4224
      %vm4372 = vweird.f32 %v4366
      %vm4373 = vmor %vm4371, %vm4372
      %v4374 = vsel %vm4373, %v4366, %v4370
      %v4375 = vand.u32 2147483647, %v4224
      %vm4376 = vcmp.eq.f32.partialorder %v4375, 8.507059e+37
      %v4377 = vand.u32 %v4224, 2147483648
      %v4378 = vor.u32 1.1754944e-38, %v4377
      %v4379 = vsel %vm4376, %v4378, %v4374
      %v4380 = vmul.f32 1.0, %v4379
      %v4381 = vrcp.pop %v4225
      %v4382 = vmul.f32 %v4225, %v4381
      %v4383 = vsub.f32 1.0, %v4382
      %v4384 = vmul.f32 %v4381, %v4383
      %v4385 = vadd.f32 %v4381, %v4384
      %vm4386 = vweird.f32 %v4225
      %vm4387 = vweird.f32 %v4381
      %vm4388 = vmor %vm4386, %vm4387
      %v4389 = vsel %vm4388, %v4381, %v4385
      %v4390 = vand.u32 2147483647, %v4225
      %vm4391 = vcmp.eq.f32.partialorder %v4390, 8.507059e+37
      %v4392 = vand.u32 %v4225, 2147483648
      %v4393 = vor.u32 1.1754944e-38, %v4392
      %v4394 = vsel %vm4391, %v4393, %v4389
      %v4395 = vmul.f32 1.0, %v4394
      %v4396 = vrcp.pop %v4226
      %v4397 = vmul.f32 %v4226, %v4396
      %v4398 = vsub.f32 1.0, %v4397
      %v4399 = vmul.f32 %v4396, %v4398
      %v4400 = vadd.f32 %v4396, %v4399
      %vm4401 = vweird.f32 %v4226
      %vm4402 = vweird.f32 %v4396
      %vm4403 = vmor %vm4401, %vm4402
      %v4404 = vsel %vm4403, %v4396, %v4400
      %v4405 = vand.u32 2147483647, %v4226
      %vm4406 = vcmp.eq.f32.partialorder %v4405, 8.507059e+37
      %v4407 = vand.u32 %v4226, 2147483648
      %v4408 = vor.u32 1.1754944e-38, %v4407
      %v4409 = vsel %vm4406, %v4408, %v4404
      %v4410 = vmul.f32 1.0, %v4409
      %v4411 = vrcp.pop %v4227
      %v4412 = vmul.f32 %v4227, %v4411
      %v4413 = vsub.f32 1.0, %v4412
      %v4414 = vmul.f32 %v4411, %v4413
      %v4415 = vadd.f32 %v4411, %v4414
      %vm4416 = vweird.f32 %v4227
      %vm4417 = vweird.f32 %v4411
      %vm4418 = vmor %vm4416, %vm4417
      %v4419 = vsel %vm4418, %v4411, %v4415
      %v4420 = vand.u32 2147483647, %v4227
      %vm4421 = vcmp.eq.f32.partialorder %v4420, 8.507059e+37
      %v4422 = vand.u32 %v4227, 2147483648
      %v4423 = vor.u32 1.1754944e-38, %v4422
      %v4424 = vsel %vm4421, %v4423, %v4419
      %v4425 = vmul.f32 1.0, %v4424
      %v4426 = vrcp.pop %v4228
      %v4427 = vmul.f32 %v4228, %v4426
      %v4428 = vsub.f32 1.0, %v4427
      %v4429 = vmul.f32 %v4426, %v4428
      %v4430 = vadd.f32 %v4426, %v4429
      %vm4431 = vweird.f32 %v4228
      %vm4432 = vweird.f32 %v4426
      %vm4433 = vmor %vm4431, %vm4432
      %v4434 = vsel %vm4433, %v4426, %v4430
      %v4435 = vand.u32 2147483647, %v4228
      %vm4436 = vcmp.eq.f32.partialorder %v4435, 8.507059e+37
      %v4437 = vand.u32 %v4228, 2147483648
      %v4438 = vor.u32 1.1754944e-38, %v4437
      %v4439 = vsel %vm4436, %v4438, %v4434
      %v4440 = vmul.f32 1.0, %v4439
      %v4441 = vrcp.pop %v4229
      %v4442 = vmul.f32 %v4229, %v4441
      %v4443 = vsub.f32 1.0, %v4442
      %v4444 = vmul.f32 %v4441, %v4443
      %v4445 = vadd.f32 %v4441, %v4444
      %vm4446 = vweird.f32 %v4229
      %vm4447 = vweird.f32 %v4441
      %vm4448 = vmor %vm4446, %vm4447
      %v4449 = vsel %vm4448, %v4441, %v4445
      %v4450 = vand.u32 2147483647, %v4229
      %vm4451 = vcmp.eq.f32.partialorder %v4450, 8.507059e+37
      %v4452 = vand.u32 %v4229, 2147483648
      %v4453 = vor.u32 1.1754944e-38, %v4452
      %v4454 = vsel %vm4451, %v4453, %v4449
      %v4455 = vmul.f32 1.0, %v4454
      %v4456 = vrcp.pop %v4230
      %v4457 = vmul.f32 %v4230, %v4456
      %v4458 = vsub.f32 1.0, %v4457
      %v4459 = vmul.f32 %v4456, %v4458
      %v4460 = vadd.f32 %v4456, %v4459
      %vm4461 = vweird.f32 %v4230
      %vm4462 = vweird.f32 %v4456
      %vm4463 = vmor %vm4461, %vm4462
      %v4464 = vsel %vm4463, %v4456, %v4460
      %v4465 = vand.u32 2147483647, %v4230
      %vm4466 = vcmp.eq.f32.partialorder %v4465, 8.507059e+37
      %v4467 = vand.u32 %v4230, 2147483648
      %v4468 = vor.u32 1.1754944e-38, %v4467
      %v4469 = vsel %vm4466, %v4468, %v4464
      %v4470 = vmul.f32 1.0, %v4469
      %v4471 = vmul.f32 %v4245, 1.0614054
      %v4472 = vmul.f32 %v4260, 1.0614054
      %v4473 = vmul.f32 %v4275, 1.0614054
      %v4474 = vmul.f32 %v4290, 1.0614054
      %v4475 = vmul.f32 %v4305, 1.0614054
      %v4476 = vmul.f32 %v4320, 1.0614054
      %v4477 = vmul.f32 %v4335, 1.0614054
      %v4478 = vmul.f32 %v4350, 1.0614054
      %v4479 = vmul.f32 %v4365, 1.0614054
      %v4480 = vmul.f32 %v4380, 1.0614054
      %v4481 = vmul.f32 %v4395, 1.0614054
      %v4482 = vmul.f32 %v4410, 1.0614054
      %v4483 = vmul.f32 %v4425, 1.0614054
      %v4484 = vmul.f32 %v4440, 1.0614054
      %v4485 = vmul.f32 %v4455, 1.0614054
      %v4486 = vmul.f32 %v4470, 1.0614054
      %v4487 = vadd.f32 %v4471, -1.4531521
      %v4488 = vadd.f32 %v4472, -1.4531521
      %v4489 = vadd.f32 %v4473, -1.4531521
      %v4490 = vadd.f32 %v4474, -1.4531521
      %v4491 = vadd.f32 %v4475, -1.4531521
      %v4492 = vadd.f32 %v4476, -1.4531521
      %v4493 = vadd.f32 %v4477, -1.4531521
      %v4494 = vadd.f32 %v4478, -1.4531521
      %v4495 = vadd.f32 %v4479, -1.4531521
      %v4496 = vadd.f32 %v4480, -1.4531521
      %v4497 = vadd.f32 %v4481, -1.4531521
      %v4498 = vadd.f32 %v4482, -1.4531521
      %v4499 = vadd.f32 %v4483, -1.4531521
      %v4500 = vadd.f32 %v4484, -1.4531521
      %v4501 = vadd.f32 %v4485, -1.4531521
      %v4502 = vadd.f32 %v4486, -1.4531521
      %v4503 = vmul.f32 %v4487, %v4245
      %v4504 = vmul.f32 %v4488, %v4260
      %v4505 = vmul.f32 %v4489, %v4275
      %v4506 = vmul.f32 %v4490, %v4290
      %v4507 = vmul.f32 %v4491, %v4305
      %v4508 = vmul.f32 %v4492, %v4320
      %v4509 = vmul.f32 %v4493, %v4335
      %v4510 = vmul.f32 %v4494, %v4350
      %v4511 = vmul.f32 %v4495, %v4365
      %v4512 = vmul.f32 %v4496, %v4380
      %v4513 = vmul.f32 %v4497, %v4395
      %v4514 = vmul.f32 %v4498, %v4410
      %v4515 = vmul.f32 %v4499, %v4425
      %v4516 = vmul.f32 %v4500, %v4440
      %v4517 = vmul.f32 %v4501, %v4455
      %v4518 = vmul.f32 %v4502, %v4470
      %v4519 = vadd.f32 %v4503, 1.4214138
      %v4520 = vadd.f32 %v4504, 1.4214138
      %v4521 = vadd.f32 %v4505, 1.4214138
      %v4522 = vadd.f32 %v4506, 1.4214138
      %v4523 = vadd.f32 %v4507, 1.4214138
      %v4524 = vadd.f32 %v4508, 1.4214138
      %v4525 = vadd.f32 %v4509, 1.4214138
      %v4526 = vadd.f32 %v4510, 1.4214138
      %v4527 = vadd.f32 %v4511, 1.4214138
      %v4528 = vadd.f32 %v4512, 1.4214138
      %v4529 = vadd.f32 %v4513, 1.4214138
      %v4530 = vadd.f32 %v4514, 1.4214138
      %v4531 = vadd.f32 %v4515, 1.4214138
      %v4532 = vadd.f32 %v4516, 1.4214138
      %v4533 = vadd.f32 %v4517, 1.4214138
      %v4534 = vadd.f32 %v4518, 1.4214138
      %v4535 = vmul.f32 %v4519, %v4245
      %v4536 = vmul.f32 %v4520, %v4260
      %v4537 = vmul.f32 %v4521, %v4275
      %v4538 = vmul.f32 %v4522, %v4290
      %v4539 = vmul.f32 %v4523, %v4305
      %v4540 = vmul.f32 %v4524, %v4320
      %v4541 = vmul.f32 %v4525, %v4335
      %v4542 = vmul.f32 %v4526, %v4350
      %v4543 = vmul.f32 %v4527, %v4365
      %v4544 = vmul.f32 %v4528, %v4380
      %v4545 = vmul.f32 %v4529, %v4395
      %v4546 = vmul.f32 %v4530, %v4410
      %v4547 = vmul.f32 %v4531, %v4425
      %v4548 = vmul.f32 %v4532, %v4440
      %v4549 = vmul.f32 %v4533, %v4455
      %v4550 = vmul.f32 %v4534, %v4470
      %v4551 = vadd.f32 %v4535, -0.28449672
      %v4552 = vadd.f32 %v4536, -0.28449672
      %v4553 = vadd.f32 %v4537, -0.28449672
      %v4554 = vadd.f32 %v4538, -0.28449672
      %v4555 = vadd.f32 %v4539, -0.28449672
      %v4556 = vadd.f32 %v4540, -0.28449672
      %v4557 = vadd.f32 %v4541, -0.28449672
      %v4558 = vadd.f32 %v4542, -0.28449672
      %v4559 = vadd.f32 %v4543, -0.28449672
      %v4560 = vadd.f32 %v4544, -0.28449672
      %v4561 = vadd.f32 %v4545, -0.28449672
      %v4562 = vadd.f32 %v4546, -0.28449672
      %v4563 = vadd.f32 %v4547, -0.28449672
      %v4564 = vadd.f32 %v4548, -0.28449672
      %v4565 = vadd.f32 %v4549, -0.28449672
      %v4566 = vadd.f32 %v4550, -0.28449672
      %v4567 = vmul.f32 %v4551, %v4245
      %v4568 = vmul.f32 %v4552, %v4260
      %v4569 = vmul.f32 %v4553, %v4275
      %v4570 = vmul.f32 %v4554, %v4290
      %v4571 = vmul.f32 %v4555, %v4305
      %v4572 = vmul.f32 %v4556, %v4320
      %v4573 = vmul.f32 %v4557, %v4335
      %v4574 = vmul.f32 %v4558, %v4350
      %v4575 = vmul.f32 %v4559, %v4365
      %v4576 = vmul.f32 %v4560, %v4380
      %v4577 = vmul.f32 %v4561, %v4395
      %v4578 = vmul.f32 %v4562, %v4410
      %v4579 = vmul.f32 %v4563, %v4425
      %v4580 = vmul.f32 %v4564, %v4440
      %v4581 = vmul.f32 %v4565, %v4455
      %v4582 = vmul.f32 %v4566, %v4470
      %v4583 = vadd.f32 %v4567, 0.2548296
      %v4584 = vadd.f32 %v4568, 0.2548296
      %v4585 = vadd.f32 %v4569, 0.2548296
      %v4586 = vadd.f32 %v4570, 0.2548296
      %v4587 = vadd.f32 %v4571, 0.2548296
      %v4588 = vadd.f32 %v4572, 0.2548296
      %v4589 = vadd.f32 %v4573, 0.2548296
      %v4590 = vadd.f32 %v4574, 0.2548296
      %v4591 = vadd.f32 %v4575, 0.2548296
      %v4592 = vadd.f32 %v4576, 0.2548296
      %v4593 = vadd.f32 %v4577, 0.2548296
      %v4594 = vadd.f32 %v4578, 0.2548296
      %v4595 = vadd.f32 %v4579, 0.2548296
      %v4596 = vadd.f32 %v4580, 0.2548296
      %v4597 = vadd.f32 %v4581, 0.2548296
      %v4598 = vadd.f32 %v4582, 0.2548296
      %v4599 = vmul.f32 %v4583, %v4245
      %v4600 = vmul.f32 %v4584, %v4260
      %v4601 = vmul.f32 %v4585, %v4275
      %v4602 = vmul.f32 %v4586, %v4290
      %v4603 = vmul.f32 %v4587, %v4305
      %v4604 = vmul.f32 %v4588, %v4320
      %v4605 = vmul.f32 %v4589, %v4335
      %v4606 = vmul.f32 %v4590, %v4350
      %v4607 = vmul.f32 %v4591, %v4365
      %v4608 = vmul.f32 %v4592, %v4380
      %v4609 = vmul.f32 %v4593, %v4395
      %v4610 = vmul.f32 %v4594, %v4410
      %v4611 = vmul.f32 %v4595, %v4425
      %v4612 = vmul.f32 %v4596, %v4440
      %v4613 = vmul.f32 %v4597, %v4455
      %v4614 = vmul.f32 %v4598, %v4470
      %v4615 = vsub.f32 0.0, %v4183
      %v4616 = vsub.f32 0.0, %v4184
      %v4617 = vsub.f32 0.0, %v4185
      %v4618 = vsub.f32 0.0, %v4186
      %v4619 = vsub.f32 0.0, %v4187
      %v4620 = vsub.f32 0.0, %v4188
      %v4621 = vsub.f32 0.0, %v4189
      %v4622 = vsub.f32 0.0, %v4190
      %v4623 = vsub.f32 0.0, %v4191
      %v4624 = vsub.f32 0.0, %v4192
      %v4625 = vsub.f32 0.0, %v4193
      %v4626 = vsub.f32 0.0, %v4194
      %v4627 = vsub.f32 0.0, %v4195
      %v4628 = vsub.f32 0.0, %v4196
      %v4629 = vsub.f32 0.0, %v4197
      %v4630 = vsub.f32 0.0, %v4198
      %v4631 = vmul.f32 %v4615, %v4183
      %v4632 = vmul.f32 %v4616, %v4184
      %v4633 = vmul.f32 %v4617, %v4185
      %v4634 = vmul.f32 %v4618, %v4186
      %v4635 = vmul.f32 %v4619, %v4187
      %v4636 = vmul.f32 %v4620, %v4188
      %v4637 = vmul.f32 %v4621, %v4189
      %v4638 = vmul.f32 %v4622, %v4190
      %v4639 = vmul.f32 %v4623, %v4191
      %v4640 = vmul.f32 %v4624, %v4192
      %v4641 = vmul.f32 %v4625, %v4193
      %v4642 = vmul.f32 %v4626, %v4194
      %v4643 = vmul.f32 %v4627, %v4195
      %v4644 = vmul.f32 %v4628, %v4196
      %v4645 = vmul.f32 %v4629, %v4197
      %v4646 = vmul.f32 %v4630, %v4198
      %v4647 = vmul.f32 %v4631, 1.442695
      %v4648 = vpow.pop %v4647
      %v4649 = vmul.f32 %v4632, 1.442695
      %v4650 = vpow.pop %v4649
      %v4651 = vmul.f32 %v4633, 1.442695
      %v4652 = vpow.pop %v4651
      %v4653 = vmul.f32 %v4634, 1.442695
      %v4654 = vpow.pop %v4653
      %v4655 = vmul.f32 %v4635, 1.442695
      %v4656 = vpow.pop %v4655
      %v4657 = vmul.f32 %v4636, 1.442695
      %v4658 = vpow.pop %v4657
      %v4659 = vmul.f32 %v4637, 1.442695
      %v4660 = vpow.pop %v4659
      %v4661 = vmul.f32 %v4638, 1.442695
      %v4662 = vpow.pop %v4661
      %v4663 = vmul.f32 %v4639, 1.442695
      %v4664 = vpow.pop %v4663
      %v4665 = vmul.f32 %v4640, 1.442695
      %v4666 = vpow.pop %v4665
      %v4667 = vmul.f32 %v4641, 1.442695
      %v4668 = vpow.pop %v4667
      %v4669 = vmul.f32 %v4642, 1.442695
      %v4670 = vpow.pop %v4669
      %v4671 = vmul.f32 %v4643, 1.442695
      %v4672 = vpow.pop %v4671
      %v4673 = vmul.f32 %v4644, 1.442695
      %v4674 = vpow.pop %v4673
      %v4675 = vmul.f32 %v4645, 1.442695
      %v4676 = vpow.pop %v4675
      %v4677 = vmul.f32 %v4646, 1.442695
      %v4678 = vpow.pop %v4677
      %v4679 = vmul.f32 %v4599, %v4648
      %v4680 = vmul.f32 %v4600, %v4650
      %v4681 = vmul.f32 %v4601, %v4652
      %v4682 = vmul.f32 %v4602, %v4654
      %v4683 = vmul.f32 %v4603, %v4656
      %v4684 = vmul.f32 %v4604, %v4658
      %v4685 = vmul.f32 %v4605, %v4660
      %v4686 = vmul.f32 %v4606, %v4662
      %v4687 = vmul.f32 %v4607, %v4664
      %v4688 = vmul.f32 %v4608, %v4666
      %v4689 = vmul.f32 %v4609, %v4668
      %v4690 = vmul.f32 %v4610, %v4670
      %v4691 = vmul.f32 %v4611, %v4672
      %v4692 = vmul.f32 %v4612, %v4674
      %v4693 = vmul.f32 %v4613, %v4676
      %v4694 = vmul.f32 %v4614, %v4678
      %v4695 = vsub.f32 1.0, %v4679
      %v4696 = vsub.f32 1.0, %v4680
      %v4697 = vsub.f32 1.0, %v4681
      %v4698 = vsub.f32 1.0, %v4682
      %v4699 = vsub.f32 1.0, %v4683
      %v4700 = vsub.f32 1.0, %v4684
      %v4701 = vsub.f32 1.0, %v4685
      %v4702 = vsub.f32 1.0, %v4686
      %v4703 = vsub.f32 1.0, %v4687
      %v4704 = vsub.f32 1.0, %v4688
      %v4705 = vsub.f32 1.0, %v4689
      %v4706 = vsub.f32 1.0, %v4690
      %v4707 = vsub.f32 1.0, %v4691
      %v4708 = vsub.f32 1.0, %v4692
      %v4709 = vsub.f32 1.0, %v4693
      %v4710 = vsub.f32 1.0, %v4694
      %vm4711 = vcmp.lt.f32.partialorder %v4167, 0.0
      %vm4712 = vcmp.lt.f32.partialorder %v4168, 0.0
      %vm4713 = vcmp.lt.f32.partialorder %v4169, 0.0
      %vm4714 = vcmp.lt.f32.partialorder %v4170, 0.0
      %vm4715 = vcmp.lt.f32.partialorder %v4171, 0.0
      %vm4716 = vcmp.lt.f32.partialorder %v4172, 0.0
      %vm4717 = vcmp.lt.f32.partialorder %v4173, 0.0
      %vm4718 = vcmp.lt.f32.partialorder %v4174, 0.0
      %vm4719 = vcmp.lt.f32.partialorder %v4175, 0.0
      %vm4720 = vcmp.lt.f32.partialorder %v4176, 0.0
      %vm4721 = vcmp.lt.f32.partialorder %v4177, 0.0
      %vm4722 = vcmp.lt.f32.partialorder %v4178, 0.0
      %vm4723 = vcmp.lt.f32.partialorder %v4179, 0.0
      %vm4724 = vcmp.lt.f32.partialorder %v4180, 0.0
      %vm4725 = vcmp.lt.f32.partialorder %v4181, 0.0
      %vm4726 = vcmp.lt.f32.partialorder %v4182, 0.0
      %v4727 = vsub.f32 0.0, %v4695
      %v4728 = vsub.f32 0.0, %v4696
      %v4729 = vsub.f32 0.0, %v4697
      %v4730 = vsub.f32 0.0, %v4698
      %v4731 = vsub.f32 0.0, %v4699
      %v4732 = vsub.f32 0.0, %v4700
      %v4733 = vsub.f32 0.0, %v4701
      %v4734 = vsub.f32 0.0, %v4702
      %v4735 = vsub.f32 0.0, %v4703
      %v4736 = vsub.f32 0.0, %v4704
      %v4737 = vsub.f32 0.0, %v4705
      %v4738 = vsub.f32 0.0, %v4706
      %v4739 = vsub.f32 0.0, %v4707
      %v4740 = vsub.f32 0.0, %v4708
      %v4741 = vsub.f32 0.0, %v4709
      %v4742 = vsub.f32 0.0, %v4710
      %v4743 = vsel %vm4711, %v4727, %v4695
      %v4744 = vsel %vm4712, %v4728, %v4696
      %v4745 = vsel %vm4713, %v4729, %v4697
      %v4746 = vsel %vm4714, %v4730, %v4698
      %v4747 = vsel %vm4715, %v4731, %v4699
      %v4748 = vsel %vm4716, %v4732, %v4700
      %v4749 = vsel %vm4717, %v4733, %v4701
      %v4750 = vsel %vm4718, %v4734, %v4702
      %v4751 = vsel %vm4719, %v4735, %v4703
      %v4752 = vsel %vm4720, %v4736, %v4704
      %v4753 = vsel %vm4721, %v4737, %v4705
      %v4754 = vsel %vm4722, %v4738, %v4706
      %v4755 = vsel %vm4723, %v4739, %v4707
      %v4756 = vsel %vm4724, %v4740, %v4708
      %v4757 = vsel %vm4725, %v4741, %v4709
      %v4758 = vsel %vm4726, %v4742, %v4710
      %v4759 = vadd.f32 %v4743, 1.0
      %v4760 = vadd.f32 %v4744, 1.0
      %v4761 = vadd.f32 %v4745, 1.0
      %v4762 = vadd.f32 %v4746, 1.0
      %v4763 = vadd.f32 %v4747, 1.0
      %v4764 = vadd.f32 %v4748, 1.0
      %v4765 = vadd.f32 %v4749, 1.0
      %v4766 = vadd.f32 %v4750, 1.0
      %v4767 = vadd.f32 %v4751, 1.0
      %v4768 = vadd.f32 %v4752, 1.0
      %v4769 = vadd.f32 %v4753, 1.0
      %v4770 = vadd.f32 %v4754, 1.0
      %v4771 = vadd.f32 %v4755, 1.0
      %v4772 = vadd.f32 %v4756, 1.0
      %v4773 = vadd.f32 %v4757, 1.0
      %v4774 = vadd.f32 %v4758, 1.0
      %v4775 = vmul.f32 %v4151, %v4759
      %v4776 = vmul.f32 %v4152, %v4760
      %v4777 = vmul.f32 %v4153, %v4761
      %v4778 = vmul.f32 %v4154, %v4762
      %v4779 = vmul.f32 %v4155, %v4763
      %v4780 = vmul.f32 %v4156, %v4764
      %v4781 = vmul.f32 %v4157, %v4765
      %v4782 = vmul.f32 %v4158, %v4766
      %v4783 = vmul.f32 %v4159, %v4767
      %v4784 = vmul.f32 %v4160, %v4768
      %v4785 = vmul.f32 %v4161, %v4769
      %v4786 = vmul.f32 %v4162, %v4770
      %v4787 = vmul.f32 %v4163, %v4771
      %v4788 = vmul.f32 %v4164, %v4772
      %v4789 = vmul.f32 %v4165, %v4773
      %v4790 = vmul.f32 %v4166, %v4774
      %v4791 = vpack.c.bf16 %v4776, %v4775
      %v4792 = vpack.c.bf16 %v4778, %v4777
      %v4793 = vpack.c.bf16 %v4780, %v4779
      %v4794 = vpack.c.bf16 %v4782, %v4781
      %v4795 = vpack.c.bf16 %v4784, %v4783
      %v4796 = vpack.c.bf16 %v4786, %v4785
      %v4797 = vpack.c.bf16 %v4788, %v4787
      %v4798 = vpack.c.bf16 %v4790, %v4789
      %v4799 = vld [vmem:[%s12] sm:$0xf]
      %v4800 = vld [vmem:[%s12 + $0x4] sm:$0xf]
      %v4801 = vld [vmem:[%s12 + $0x8] sm:$0xf]
      %v4802 = vld [vmem:[%s12 + $0xc] sm:$0xf]
      %v4803 = vld [vmem:[%s12 + $0x10] sm:$0xf]
      %v4804 = vld [vmem:[%s12 + $0x14] sm:$0xf]
      %v4805 = vld [vmem:[%s12 + $0x18] sm:$0xf]
      %v4806 = vld [vmem:[%s12 + $0x1c] sm:$0xf]
      %v4807 = vld [vmem:[%s13] sm:$0x1]
      %v4809 = vperm.slane %v4807, 0
      %v4819 = vunpack.c.l.b16 %v4799
      %v4820 = vunpack.c.l.b16 %v4800
      %v4821 = vunpack.c.l.b16 %v4801
      %v4822 = vunpack.c.l.b16 %v4802
      %v4823 = vunpack.c.l.b16 %v4803
      %v4824 = vunpack.c.l.b16 %v4804
      %v4825 = vunpack.c.l.b16 %v4805
      %v4826 = vunpack.c.l.b16 %v4806
      %v4827 = vpack.c.b16 %v4820, %v4819
      %v4828 = vpack.c.b16 %v4822, %v4821
      %v4829 = vpack.c.b16 %v4824, %v4823
      %v4830 = vpack.c.b16 %v4826, %v4825
      %vm4835 = vcmask 523264
      %v4837 = vsel %vm4835, %v4791, 0
      %v4840 = vsel %vm4835, %v4792, 0
      %v4843 = vsel %vm4835, %v4793, 0
      %v4846 = vsel %vm4835, %v4794, 0
      %v4849 = vsel %vm4835, %v4795, 0
      %v4852 = vsel %vm4835, %v4796, 0
      %v4855 = vsel %vm4835, %v4797, 0
      %v4858 = vsel %vm4835, %v4798, 0
      %4860 = vmatpush.bf16.msra.mxu0 0
      %4861 = vmatpush.bf16.msra.mxu0 0
      %4862 = vmatpush.bf16.msra.mxu0 0
      %4863 = vmatpush.bf16.msra.mxu0 0
      %4864 = vmatpush.bf16.msra.mxu0 %v4830
      %4865 = vmatpush.bf16.msra.mxu0 %v4829
      %4866 = vmatpush.bf16.msra.mxu0 %v4828
      %4867 = vmatpush.bf16.msra.mxu0 %v4827
      %4868 = vmatmul.bf16.gmra.mxu0 %v4837
      %v4869 = vpop.f32.mrf.mxu0
      %v4870 = vadd.f32 %v4809, %v4869
      %v4871 = vpop.f32.mrf.mxu0
      %v4872 = vadd.f32 %v4809, %v4871
      %4873 = vmatmul.bf16.gmra.mxu0 %v4840
      %v4874 = vpop.f32.mrf.mxu0
      %v4875 = vadd.f32 %v4809, %v4874
      %v4876 = vpop.f32.mrf.mxu0
      %v4877 = vadd.f32 %v4809, %v4876
      %4878 = vmatmul.bf16.gmra.mxu0 %v4843
      %v4879 = vpop.f32.mrf.mxu0
      %v4880 = vadd.f32 %v4809, %v4879
      %v4881 = vpop.f32.mrf.mxu0
      %v4882 = vadd.f32 %v4809, %v4881
      %4883 = vmatmul.bf16.gmra.mxu0 %v4846
      %v4884 = vpop.f32.mrf.mxu0
      %v4885 = vadd.f32 %v4809, %v4884
      %v4886 = vpop.f32.mrf.mxu0
      %v4887 = vadd.f32 %v4809, %v4886
      %4888 = vmatmul.bf16.gmra.mxu0 %v4849
      %v4889 = vpop.f32.mrf.mxu0
      %v4890 = vadd.f32 %v4809, %v4889
      %v4891 = vpop.f32.mrf.mxu0
      %v4892 = vadd.f32 %v4809, %v4891
      %4893 = vmatmul.bf16.gmra.mxu0 %v4852
      %v4894 = vpop.f32.mrf.mxu0
      %v4895 = vadd.f32 %v4809, %v4894
      %v4896 = vpop.f32.mrf.mxu0
      %v4897 = vadd.f32 %v4809, %v4896
      %4898 = vmatmul.bf16.gmra.mxu0 %v4855
      %v4899 = vpop.f32.mrf.mxu0
      %v4900 = vadd.f32 %v4809, %v4899
      %v4901 = vpop.f32.mrf.mxu0
      %v4902 = vadd.f32 %v4809, %v4901
      %4903 = vmatmul.bf16.gmra.mxu0 %v4858
      %v4904 = vpop.f32.mrf.mxu0
      %v4905 = vadd.f32 %v4809, %v4904
      %v4906 = vpop.f32.mrf.mxu0
      %v4907 = vadd.f32 %v4809, %v4906
      %4908 = vdwg.mxu0
      %v4909 = vadd.f32 %v477, %v4870
      %v4910 = vadd.f32 %v478, %v4872
      %v4911 = vadd.f32 %v479, %v4875
      %v4912 = vadd.f32 %v480, %v4877
      %v4913 = vadd.f32 %v481, %v4880
      %v4914 = vadd.f32 %v482, %v4882
      %v4915 = vadd.f32 %v483, %v4885
      %v4916 = vadd.f32 %v484, %v4887
      %v4917 = vadd.f32 %v485, %v4890
      %v4918 = vadd.f32 %v486, %v4892
      %v4919 = vadd.f32 %v487, %v4895
      %v4920 = vadd.f32 %v488, %v4897
      %v4921 = vadd.f32 %v489, %v4900
      %v4922 = vadd.f32 %v490, %v4902
      %v4923 = vadd.f32 %v491, %v4905
      %v4924 = vadd.f32 %v492, %v4907
      %4925 = vst.msk [vmem:[%s474] sm:$0xff] %vm495, %v4909
      %4926 = vst.msk [vmem:[%s474 + $0x8] sm:$0xff] %vm495, %v4910
      %4927 = vst.msk [vmem:[%s474 + $0x10] sm:$0xff] %vm495, %v4911
      %4928 = vst.msk [vmem:[%s474 + $0x18] sm:$0xff] %vm495, %v4912
      %4929 = vst.msk [vmem:[%s474 + $0x20] sm:$0xff] %vm495, %v4913
      %4930 = vst.msk [vmem:[%s474 + $0x28] sm:$0xff] %vm495, %v4914
      %4931 = vst.msk [vmem:[%s474 + $0x30] sm:$0xff] %vm495, %v4915
      %4932 = vst.msk [vmem:[%s474 + $0x38] sm:$0xff] %vm495, %v4916
      %4933 = vst.msk [vmem:[%s474 + $0x40] sm:$0xff] %vm495, %v4917
      %4934 = vst.msk [vmem:[%s474 + $0x48] sm:$0xff] %vm495, %v4918
      %4935 = vst.msk [vmem:[%s474 + $0x50] sm:$0xff] %vm495, %v4919
      %4936 = vst.msk [vmem:[%s474 + $0x58] sm:$0xff] %vm495, %v4920
      %4937 = vst.msk [vmem:[%s474 + $0x60] sm:$0xff] %vm495, %v4921
      %4938 = vst.msk [vmem:[%s474 + $0x68] sm:$0xff] %vm495, %v4922
      %4939 = vst.msk [vmem:[%s474 + $0x70] sm:$0xff] %vm495, %v4923
      %4940 = vst.msk [vmem:[%s474 + $0x78] sm:$0xff] %vm495, %v4924
      %s4941 = smul.u32 4, %s25
      %p4942 = scmp.lt.s32.totalorder %s4941, 15
      %s4943 = scalar_select %p4942, %s4941, 15
      %s4944 = smul.addr %s4943, 4
      %s4945 = smul.addr %s4944, 8
      %s4946 = scalar_lea.vmem %s14, %s4945
      // Predicated region
      $region77: #{rstb_forward.2} parent=75 // pred_check
        %p4947 = pneg %p342
      $region78: #{rstb_forward.2} parent=75 // pred_check_branch
        %4949 = sbr.rel (%p4947) target = $region80
      $region79: #{rstb_forward.2} parent=75 // pred_region
        %s4950 = smul.u32 4, %s25
      $region80: #{rstb_forward.2} parent=75 // pred_fallthru
        _
    $region76: #{rstb_forward.2} parent=5 // pred_fallthru
      _
    %p4951 = scmp.le.s32.totalorder 2, %s20
    // Predicated region
    $region81: #{rstb_forward.2} parent=5 // pred_check
      %p4952 = pneg %p4951
    $region82: #{rstb_forward.2} parent=5 // pred_check_branch
      %4954 = sbr.rel (%p4952) target = $region84
    $region83: #{rstb_forward.2} parent=5 // pred_region
      %s4955 = ssub.s32 %s20, 2
      // Predicated region
      $region85: #{rstb_forward.2} parent=83 // pred_check
        %p4956 = pneg %p348
      $region86: #{rstb_forward.2} parent=83 // pred_check_branch
        %4958 = sbr.rel (%p4956) target = $region88
      $region87: #{rstb_forward.2} parent=83 // pred_region
        %s4959 = smul.u32 4, %s26
        %p4960 = scmp.lt.s32.totalorder %s4959, 15
        %s4961 = scalar_select %p4960, %s4959, 15
        %s4962 = smul.addr %s4961, 4
        %s4963 = smul.addr %s4962, 8
        %s4964 = scalar_lea.vmem %s14, %s4963
      $region88: #{rstb_forward.2} parent=83 // pred_fallthru
        _
    $region84: #{rstb_forward.2} parent=5 // pred_fallthru
      _
  $region6: #{rstb_forward.2} parent=0 // loop_footer
    %s24 = sadd.s32 1, %s20
  $region7: #{rstb_forward.2} parent=0 // loop_footer_branch
    %19 = sbr.rel target = $region3
  $region8: #{rstb_forward.2} parent=0 // loop_exit
    _

// kernel: rstb_forward.3
$region0: #{rstb_forward.3}
  #allocation0 [shape = 'u32[]', space=smem, size = 0x4, offset = 0x4, fixed_abs, tag = 'smem constant byte address 0x4 - core index']
  #allocation1 [shape = 'u32[72,128]{1,0:T(1,128)}', space=vmem, size = 0x9000, scoped, tag = 'internal scratch']
  %s0 = inlined_call_operand.vmem [shape: f32[16,32,32], index: 0, kind: input, shape index: {}]
  %s1 = inlined_call_operand.vmem [shape: bf16[8,32,32], index: 1, kind: input, shape index: {}]
  %s2 = inlined_call_operand.vmem [shape: f32[1,32], index: 2, kind: input, shape index: {}]
  %s3 = inlined_call_operand.vmem [shape: f32[1,32], index: 3, kind: input, shape index: {}]
  %s4 = inlined_call_operand.vmem [shape: bf16[32,96], index: 4, kind: input, shape index: {}]
  %s5 = inlined_call_operand.vmem [shape: f32[1,96], index: 5, kind: input, shape index: {}]
  %s6 = inlined_call_operand.vmem [shape: bf16[4,32,32], index: 6, kind: input, shape index: {}]
  %s7 = inlined_call_operand.vmem [shape: bf16[32,32], index: 7, kind: input, shape index: {}]
  %s8 = inlined_call_operand.vmem [shape: f32[1,32], index: 8, kind: input, shape index: {}]
  %s9 = inlined_call_operand.vmem [shape: f32[1,32], index: 9, kind: input, shape index: {}]
  %s10 = inlined_call_operand.vmem [shape: f32[1,32], index: 10, kind: input, shape index: {}]
  %s11 = inlined_call_operand.vmem [shape: bf16[32,64], index: 11, kind: input, shape index: {}]
  %s12 = inlined_call_operand.vmem [shape: f32[1,64], index: 12, kind: input, shape index: {}]
  %s13 = inlined_call_operand.vmem [shape: bf16[64,32], index: 13, kind: input, shape index: {}]
  %s14 = inlined_call_operand.vmem [shape: f32[1,32], index: 14, kind: input, shape index: {}]
  %s15 = inlined_call_operand.vmem [shape: f32[16,32,32], index: 15, kind: output, shape index: {}]
  %s16 = sld [smem:[#allocation0]]
  $region93: #{rstb_forward.3} parent=0
    _
  %s18 = ssub.s32 1, %s16
  %s19 = scalar_select 0, %s18, %s16
  loop: start=0, step=1, limit=6
  $region2: #{rstb_forward.3} parent=0 // loop_pre_header
    _
  $region3: #{rstb_forward.3} parent=0 // loop_header
    %s21 = sphi 0, %s25
    %p22 = scmp.ge.s32.totalorder %s21, 6
    %s31 = sphi 0, %s33
    %s34 = sphi 0, %s31
    %s35 = sphi 0, %s34
    %s51 = sphi 0, %s35
    %s81 = sphi 0, %s83
    %s84 = sphi 0, %s81
    %s85 = sphi 0, %s84
    %s101 = sphi 0, %s85
    %s105 = sphi 0, %s105
    %s107 = sphi 0, %s105
    %s108 = sphi 0, %s107
    %s122 = sphi 0, %s108
    %s126 = sphi 0, %s126
    %s128 = sphi 0, %s126
    %s129 = sphi 0, %s128
    %s143 = sphi 0, %s129
    %s147 = sphi 0, %s147
    %s149 = sphi 0, %s147
    %s150 = sphi 0, %s149
    %s164 = sphi 0, %s150
    %s168 = sphi 0, %s168
    %s170 = sphi 0, %s168
    %s171 = sphi 0, %s170
    %s185 = sphi 0, %s171
    %s189 = sphi 0, %s189
    %s191 = sphi 0, %s189
    %s192 = sphi 0, %s191
    %s206 = sphi 0, %s192
    %s210 = sphi 0, %s210
    %s212 = sphi 0, %s210
    %s213 = sphi 0, %s212
    %s227 = sphi 0, %s213
    %s231 = sphi 0, %s231
    %s233 = sphi 0, %s231
    %s234 = sphi 0, %s233
    %s248 = sphi 0, %s234
    %s252 = sphi 0, %s252
    %s254 = sphi 0, %s252
    %s255 = sphi 0, %s254
    %s269 = sphi 0, %s255
    %s273 = sphi 0, %s273
    %s275 = sphi 0, %s273
    %s276 = sphi 0, %s275
    %s290 = sphi 0, %s276
    %s294 = sphi 0, %s294
    %s296 = sphi 0, %s294
    %s297 = sphi 0, %s296
    %s311 = sphi 0, %s297
    %s315 = sphi 0, %s315
    %s317 = sphi 0, %s315
    %s318 = sphi 0, %s317
    %s332 = sphi 0, %s318
    %s336 = sphi 0, %s336
    %s338 = sphi 0, %s336
    %s339 = sphi 0, %s338
    %s353 = sphi 0, %s339
    %s357 = sphi 0, %s357
    %s359 = sphi 0, %s357
    %s360 = sphi 0, %s359
    %s374 = sphi 0, %s360
    %s380 = sphi 0, %s382
    %s383 = sphi 0, %s380
    %s384 = sphi 0, %s383
    %s400 = sphi 0, %s384
  $region4: #{rstb_forward.3} parent=0 // loop_header_branch
    %24 = sbr.rel (%p22) target = $region8
  $region5: #{rstb_forward.3} parent=0 // loop_body
    %s26 = ssub.s32 %s21, 1
    %s27 = ssub.s32 %s21, 2
    %s28 = sadd.s32 %s21, 1
    %s29 = ssub.s32 %s21, %s28
    %p30 = scmp.eq.s32.totalorder %s29, 0
    %s32 = sadd.s32 %s31, 1
    %s33 = scalar_select %p30, %s31, %s32
    %p36 = pneg %p30
    %p37 = scmp.eq.s32.totalorder %s21, 3
    %p38 = por %p36, %p37
    %p39 = scmp.ne.s32.totalorder %s31, %s34
    %p40 = scmp.eq.s32.totalorder %s21, 0
    %p41 = por %p39, %p40
    %p42 = scmp.ne.s32.totalorder %s31, %s34
    %p43 = scmp.eq.s32.totalorder %s26, 3
    %p44 = por %p42, %p43
    %p45 = scmp.ne.s32.totalorder %s34, %s35
    %p46 = scmp.eq.s32.totalorder %s26, 0
    %p47 = por %p45, %p46
    %p48 = scmp.ne.s32.totalorder %s34, %s35
    %p49 = scmp.eq.s32.totalorder %s27, 3
    %p50 = por %p48, %p49
    %p52 = scmp.ne.s32.totalorder %s35, %s51
    %p53 = scmp.eq.s32.totalorder %s27, 0
    %p54 = por %p52, %p53
    %p55 = scmp.lt.s32.totalorder %s21, 0
    %s56 = ssub.s32 0, %s21
    %s57 = scalar_select %p55, %s56, %s21
    %s58 = sand.u32 %s57, 1
    %s59 = ssub.s32 0, %s58
    %s60 = scalar_select %p55, %s59, %s58
    %p61 = scmp.ne.s32.totalorder %s60, 0
    %p62 = scmp.lt.s32.totalorder %s60, 0
    %p63 = pnand %p62, %p61
    %p64 = pneg %p63
    %s65 = sadd.s32 %s60, 2
    %s66 = scalar_select %p64, %s65, %s60
    %p67 = scmp.lt.s32.totalorder %s28, 0
    %s68 = ssub.s32 0, %s28
    %s69 = scalar_select %p67, %s68, %s28
    %s70 = sand.u32 %s69, 1
    %s71 = ssub.s32 0, %s70
    %s72 = scalar_select %p67, %s71, %s70
    %p73 = scmp.ne.s32.totalorder %s72, 0
    %p74 = scmp.lt.s32.totalorder %s72, 0
    %p75 = pnand %p74, %p73
    %p76 = pneg %p75
    %s77 = sadd.s32 %s72, 2
    %s78 = scalar_select %p76, %s77, %s72
    %s79 = ssub.s32 %s66, %s78
    %p80 = scmp.eq.s32.totalorder %s79, 0
    %s82 = sadd.s32 %s81, 1
    %s83 = scalar_select %p80, %s81, %s82
    %p86 = pneg %p80
    %p87 = scmp.eq.s32.totalorder %s21, 3
    %p88 = por %p86, %p87
    %p89 = scmp.ne.s32.totalorder %s81, %s84
    %p90 = scmp.eq.s32.totalorder %s21, 0
    %p91 = por %p89, %p90
    %p92 = scmp.ne.s32.totalorder %s81, %s84
    %p93 = scmp.eq.s32.totalorder %s26, 3
    %p94 = por %p92, %p93
    %p95 = scmp.ne.s32.totalorder %s84, %s85
    %p96 = scmp.eq.s32.totalorder %s26, 0
    %p97 = por %p95, %p96
    %p98 = scmp.ne.s32.totalorder %s84, %s85
    %p99 = scmp.eq.s32.totalorder %s27, 3
    %p100 = por %p98, %p99
    %p102 = scmp.ne.s32.totalorder %s85, %s101
    %p103 = scmp.eq.s32.totalorder %s27, 0
    %p104 = por %p102, %p103
    %s106 = sadd.s32 %s105, 1
    %p109 = scmp.eq.s32.totalorder %s21, 3
    %p110 = scmp.ne.s32.totalorder %s105, %s107
    %p111 = scmp.eq.s32.totalorder %s21, 0
    %p112 = por %p110, %p111
    %p113 = scmp.ne.s32.totalorder %s105, %s107
    %p114 = scmp.eq.s32.totalorder %s26, 3
    %p115 = por %p113, %p114
    %p116 = scmp.ne.s32.totalorder %s107, %s108
    %p117 = scmp.eq.s32.totalorder %s26, 0
    %p118 = por %p116, %p117
    %p119 = scmp.ne.s32.totalorder %s107, %s108
    %p120 = scmp.eq.s32.totalorder %s27, 3
    %p121 = por %p119, %p120
    %p123 = scmp.ne.s32.totalorder %s108, %s122
    %p124 = scmp.eq.s32.totalorder %s27, 0
    %p125 = por %p123, %p124
    %s127 = sadd.s32 %s126, 1
    %p130 = scmp.eq.s32.totalorder %s21, 3
    %p131 = scmp.ne.s32.totalorder %s126, %s128
    %p132 = scmp.eq.s32.totalorder %s21, 0
    %p133 = por %p131, %p132
    %p134 = scmp.ne.s32.totalorder %s126, %s128
    %p135 = scmp.eq.s32.totalorder %s26, 3
    %p136 = por %p134, %p135
    %p137 = scmp.ne.s32.totalorder %s128, %s129
    %p138 = scmp.eq.s32.totalorder %s26, 0
    %p139 = por %p137, %p138
    %p140 = scmp.ne.s32.totalorder %s128, %s129
    %p141 = scmp.eq.s32.totalorder %s27, 3
    %p142 = por %p140, %p141
    %p144 = scmp.ne.s32.totalorder %s129, %s143
    %p145 = scmp.eq.s32.totalorder %s27, 0
    %p146 = por %p144, %p145
    %s148 = sadd.s32 %s147, 1
    %p151 = scmp.eq.s32.totalorder %s21, 3
    %p152 = scmp.ne.s32.totalorder %s147, %s149
    %p153 = scmp.eq.s32.totalorder %s21, 0
    %p154 = por %p152, %p153
    %p155 = scmp.ne.s32.totalorder %s147, %s149
    %p156 = scmp.eq.s32.totalorder %s26, 3
    %p157 = por %p155, %p156
    %p158 = scmp.ne.s32.totalorder %s149, %s150
    %p159 = scmp.eq.s32.totalorder %s26, 0
    %p160 = por %p158, %p159
    %p161 = scmp.ne.s32.totalorder %s149, %s150
    %p162 = scmp.eq.s32.totalorder %s27, 3
    %p163 = por %p161, %p162
    %p165 = scmp.ne.s32.totalorder %s150, %s164
    %p166 = scmp.eq.s32.totalorder %s27, 0
    %p167 = por %p165, %p166
    %s169 = sadd.s32 %s168, 1
    %p172 = scmp.eq.s32.totalorder %s21, 3
    %p173 = scmp.ne.s32.totalorder %s168, %s170
    %p174 = scmp.eq.s32.totalorder %s21, 0
    %p175 = por %p173, %p174
    %p176 = scmp.ne.s32.totalorder %s168, %s170
    %p177 = scmp.eq.s32.totalorder %s26, 3
    %p178 = por %p176, %p177
    %p179 = scmp.ne.s32.totalorder %s170, %s171
    %p180 = scmp.eq.s32.totalorder %s26, 0
    %p181 = por %p179, %p180
    %p182 = scmp.ne.s32.totalorder %s170, %s171
    %p183 = scmp.eq.s32.totalorder %s27, 3
    %p184 = por %p182, %p183
    %p186 = scmp.ne.s32.totalorder %s171, %s185
    %p187 = scmp.eq.s32.totalorder %s27, 0
    %p188 = por %p186, %p187
    %s190 = sadd.s32 %s189, 1
    %p193 = scmp.eq.s32.totalorder %s21, 3
    %p194 = scmp.ne.s32.totalorder %s189, %s191
    %p195 = scmp.eq.s32.totalorder %s21, 0
    %p196 = por %p194, %p195
    %p197 = scmp.ne.s32.totalorder %s189, %s191
    %p198 = scmp.eq.s32.totalorder %s26, 3
    %p199 = por %p197, %p198
    %p200 = scmp.ne.s32.totalorder %s191, %s192
    %p201 = scmp.eq.s32.totalorder %s26, 0
    %p202 = por %p200, %p201
    %p203 = scmp.ne.s32.totalorder %s191, %s192
    %p204 = scmp.eq.s32.totalorder %s27, 3
    %p205 = por %p203, %p204
    %p207 = scmp.ne.s32.totalorder %s192, %s206
    %p208 = scmp.eq.s32.totalorder %s27, 0
    %p209 = por %p207, %p208
    %s211 = sadd.s32 %s210, 1
    %p214 = scmp.eq.s32.totalorder %s21, 3
    %p215 = scmp.ne.s32.totalorder %s210, %s212
    %p216 = scmp.eq.s32.totalorder %s21, 0
    %p217 = por %p215, %p216
    %p218 = scmp.ne.s32.totalorder %s210, %s212
    %p219 = scmp.eq.s32.totalorder %s26, 3
    %p220 = por %p218, %p219
    %p221 = scmp.ne.s32.totalorder %s212, %s213
    %p222 = scmp.eq.s32.totalorder %s26, 0
    %p223 = por %p221, %p222
    %p224 = scmp.ne.s32.totalorder %s212, %s213
    %p225 = scmp.eq.s32.totalorder %s27, 3
    %p226 = por %p224, %p225
    %p228 = scmp.ne.s32.totalorder %s213, %s227
    %p229 = scmp.eq.s32.totalorder %s27, 0
    %p230 = por %p228, %p229
    %s232 = sadd.s32 %s231, 1
    %p235 = scmp.eq.s32.totalorder %s21, 3
    %p236 = scmp.ne.s32.totalorder %s231, %s233
    %p237 = scmp.eq.s32.totalorder %s21, 0
    %p238 = por %p236, %p237
    %p239 = scmp.ne.s32.totalorder %s231, %s233
    %p240 = scmp.eq.s32.totalorder %s26, 3
    %p241 = por %p239, %p240
    %p242 = scmp.ne.s32.totalorder %s233, %s234
    %p243 = scmp.eq.s32.totalorder %s26, 0
    %p244 = por %p242, %p243
    %p245 = scmp.ne.s32.totalorder %s233, %s234
    %p246 = scmp.eq.s32.totalorder %s27, 3
    %p247 = por %p245, %p246
    %p249 = scmp.ne.s32.totalorder %s234, %s248
    %p250 = scmp.eq.s32.totalorder %s27, 0
    %p251 = por %p249, %p250
    %s253 = sadd.s32 %s252, 1
    %p256 = scmp.eq.s32.totalorder %s21, 3
    %p257 = scmp.ne.s32.totalorder %s252, %s254
    %p258 = scmp.eq.s32.totalorder %s21, 0
    %p259 = por %p257, %p258
    %p260 = scmp.ne.s32.totalorder %s252, %s254
    %p261 = scmp.eq.s32.totalorder %s26, 3
    %p262 = por %p260, %p261
    %p263 = scmp.ne.s32.totalorder %s254, %s255
    %p264 = scmp.eq.s32.totalorder %s26, 0
    %p265 = por %p263, %p264
    %p266 = scmp.ne.s32.totalorder %s254, %s255
    %p267 = scmp.eq.s32.totalorder %s27, 3
    %p268 = por %p266, %p267
    %p270 = scmp.ne.s32.totalorder %s255, %s269
    %p271 = scmp.eq.s32.totalorder %s27, 0
    %p272 = por %p270, %p271
    %s274 = sadd.s32 %s273, 1
    %p277 = scmp.eq.s32.totalorder %s21, 3
    %p278 = scmp.ne.s32.totalorder %s273, %s275
    %p279 = scmp.eq.s32.totalorder %s21, 0
    %p280 = por %p278, %p279
    %p281 = scmp.ne.s32.totalorder %s273, %s275
    %p282 = scmp.eq.s32.totalorder %s26, 3
    %p283 = por %p281, %p282
    %p284 = scmp.ne.s32.totalorder %s275, %s276
    %p285 = scmp.eq.s32.totalorder %s26, 0
    %p286 = por %p284, %p285
    %p287 = scmp.ne.s32.totalorder %s275, %s276
    %p288 = scmp.eq.s32.totalorder %s27, 3
    %p289 = por %p287, %p288
    %p291 = scmp.ne.s32.totalorder %s276, %s290
    %p292 = scmp.eq.s32.totalorder %s27, 0
    %p293 = por %p291, %p292
    %s295 = sadd.s32 %s294, 1
    %p298 = scmp.eq.s32.totalorder %s21, 3
    %p299 = scmp.ne.s32.totalorder %s294, %s296
    %p300 = scmp.eq.s32.totalorder %s21, 0
    %p301 = por %p299, %p300
    %p302 = scmp.ne.s32.totalorder %s294, %s296
    %p303 = scmp.eq.s32.totalorder %s26, 3
    %p304 = por %p302, %p303
    %p305 = scmp.ne.s32.totalorder %s296, %s297
    %p306 = scmp.eq.s32.totalorder %s26, 0
    %p307 = por %p305, %p306
    %p308 = scmp.ne.s32.totalorder %s296, %s297
    %p309 = scmp.eq.s32.totalorder %s27, 3
    %p310 = por %p308, %p309
    %p312 = scmp.ne.s32.totalorder %s297, %s311
    %p313 = scmp.eq.s32.totalorder %s27, 0
    %p314 = por %p312, %p313
    %s316 = sadd.s32 %s315, 1
    %p319 = scmp.eq.s32.totalorder %s21, 3
    %p320 = scmp.ne.s32.totalorder %s315, %s317
    %p321 = scmp.eq.s32.totalorder %s21, 0
    %p322 = por %p320, %p321
    %p323 = scmp.ne.s32.totalorder %s315, %s317
    %p324 = scmp.eq.s32.totalorder %s26, 3
    %p325 = por %p323, %p324
    %p326 = scmp.ne.s32.totalorder %s317, %s318
    %p327 = scmp.eq.s32.totalorder %s26, 0
    %p328 = por %p326, %p327
    %p329 = scmp.ne.s32.totalorder %s317, %s318
    %p330 = scmp.eq.s32.totalorder %s27, 3
    %p331 = por %p329, %p330
    %p333 = scmp.ne.s32.totalorder %s318, %s332
    %p334 = scmp.eq.s32.totalorder %s27, 0
    %p335 = por %p333, %p334
    %s337 = sadd.s32 %s336, 1
    %p340 = scmp.eq.s32.totalorder %s21, 3
    %p341 = scmp.ne.s32.totalorder %s336, %s338
    %p342 = scmp.eq.s32.totalorder %s21, 0
    %p343 = por %p341, %p342
    %p344 = scmp.ne.s32.totalorder %s336, %s338
    %p345 = scmp.eq.s32.totalorder %s26, 3
    %p346 = por %p344, %p345
    %p347 = scmp.ne.s32.totalorder %s338, %s339
    %p348 = scmp.eq.s32.totalorder %s26, 0
    %p349 = por %p347, %p348
    %p350 = scmp.ne.s32.totalorder %s338, %s339
    %p351 = scmp.eq.s32.totalorder %s27, 3
    %p352 = por %p350, %p351
    %p354 = scmp.ne.s32.totalorder %s339, %s353
    %p355 = scmp.eq.s32.totalorder %s27, 0
    %p356 = por %p354, %p355
    %s358 = sadd.s32 %s357, 1
    %p361 = scmp.eq.s32.totalorder %s21, 3
    %p362 = scmp.ne.s32.totalorder %s357, %s359
    %p363 = scmp.eq.s32.totalorder %s21, 0
    %p364 = por %p362, %p363
    %p365 = scmp.ne.s32.totalorder %s357, %s359
    %p366 = scmp.eq.s32.totalorder %s26, 3
    %p367 = por %p365, %p366
    %p368 = scmp.ne.s32.totalorder %s359, %s360
    %p369 = scmp.eq.s32.totalorder %s26, 0
    %p370 = por %p368, %p369
    %p371 = scmp.ne.s32.totalorder %s359, %s360
    %p372 = scmp.eq.s32.totalorder %s27, 3
    %p373 = por %p371, %p372
    %p375 = scmp.ne.s32.totalorder %s360, %s374
    %p376 = scmp.eq.s32.totalorder %s27, 0
    %p377 = por %p375, %p376
    %s378 = ssub.s32 %s21, %s28
    %p379 = scmp.eq.s32.totalorder %s378, 0
    %s381 = sadd.s32 %s380, 1
    %s382 = scalar_select %p379, %s380, %s381
    %p385 = pneg %p379
    %p386 = scmp.eq.s32.totalorder %s21, 3
    %p387 = por %p385, %p386
    %p388 = scmp.ne.s32.totalorder %s380, %s383
    %p389 = scmp.eq.s32.totalorder %s21, 0
    %p390 = por %p388, %p389
    %p391 = scmp.ne.s32.totalorder %s380, %s383
    %p392 = scmp.eq.s32.totalorder %s26, 3
    %p393 = por %p391, %p392
    %p394 = scmp.ne.s32.totalorder %s383, %s384
    %p395 = scmp.eq.s32.totalorder %s26, 0
    %p396 = por %p394, %p395
    %p397 = scmp.ne.s32.totalorder %s383, %s384
    %p398 = scmp.eq.s32.totalorder %s27, 3
    %p399 = por %p397, %p398
    %p401 = scmp.ne.s32.totalorder %s384, %s400
    %p402 = scmp.eq.s32.totalorder %s27, 0
    %p403 = por %p401, %p402
    %p404 = scmp.le.s32.totalorder 1, %s21
    %p405 = scmp.lt.s32.totalorder %s21, 5
    %p406 = pnand %p404, %p405
    %p407 = pneg %p406
    // Predicated region
    $region9: #{rstb_forward.3} parent=5 // pred_check
      _
    $region10: #{rstb_forward.3} parent=5 // pred_check_branch
      %409 = sbr.rel (%p406) target = $region12
    $region11: #{rstb_forward.3} parent=5 // pred_region
      %s410 = ssub.s32 %s21, 1
      // Predicated region
      $region13: #{rstb_forward.3} parent=11 // pred_check
        %p411 = pneg %p118
      $region14: #{rstb_forward.3} parent=11 // pred_check_branch
        %413 = sbr.rel (%p411) target = $region16
      $region15: #{rstb_forward.3} parent=11 // pred_region
        _
      $region16: #{rstb_forward.3} parent=11 // pred_fallthru
        _
      // Predicated region
      $region17: #{rstb_forward.3} parent=11 // pred_check
        %p414 = pneg %p139
      $region18: #{rstb_forward.3} parent=11 // pred_check_branch
        %416 = sbr.rel (%p414) target = $region20
      $region19: #{rstb_forward.3} parent=11 // pred_region
        _
      $region20: #{rstb_forward.3} parent=11 // pred_fallthru
        _
      // Predicated region
      $region21: #{rstb_forward.3} parent=11 // pred_check
        %p417 = pneg %p160
      $region22: #{rstb_forward.3} parent=11 // pred_check_branch
        %419 = sbr.rel (%p417) target = $region24
      $region23: #{rstb_forward.3} parent=11 // pred_region
        _
      $region24: #{rstb_forward.3} parent=11 // pred_fallthru
        _
      // Predicated region
      $region25: #{rstb_forward.3} parent=11 // pred_check
        %p420 = pneg %p181
      $region26: #{rstb_forward.3} parent=11 // pred_check_branch
        %422 = sbr.rel (%p420) target = $region28
      $region27: #{rstb_forward.3} parent=11 // pred_region
        _
      $region28: #{rstb_forward.3} parent=11 // pred_fallthru
        _
      // Predicated region
      $region29: #{rstb_forward.3} parent=11 // pred_check
        %p423 = pneg %p202
      $region30: #{rstb_forward.3} parent=11 // pred_check_branch
        %425 = sbr.rel (%p423) target = $region32
      $region31: #{rstb_forward.3} parent=11 // pred_region
        _
      $region32: #{rstb_forward.3} parent=11 // pred_fallthru
        _
      // Predicated region
      $region33: #{rstb_forward.3} parent=11 // pred_check
        %p426 = pneg %p223
      $region34: #{rstb_forward.3} parent=11 // pred_check_branch
        %428 = sbr.rel (%p426) target = $region36
      $region35: #{rstb_forward.3} parent=11 // pred_region
        _
      $region36: #{rstb_forward.3} parent=11 // pred_fallthru
        _
      // Predicated region
      $region37: #{rstb_forward.3} parent=11 // pred_check
        %p429 = pneg %p244
      $region38: #{rstb_forward.3} parent=11 // pred_check_branch
        %431 = sbr.rel (%p429) target = $region40
      $region39: #{rstb_forward.3} parent=11 // pred_region
        _
      $region40: #{rstb_forward.3} parent=11 // pred_fallthru
        _
      // Predicated region
      $region41: #{rstb_forward.3} parent=11 // pred_check
        %p432 = pneg %p265
      $region42: #{rstb_forward.3} parent=11 // pred_check_branch
        %434 = sbr.rel (%p432) target = $region44
      $region43: #{rstb_forward.3} parent=11 // pred_region
        _
      $region44: #{rstb_forward.3} parent=11 // pred_fallthru
        _
      // Predicated region
      $region45: #{rstb_forward.3} parent=11 // pred_check
        %p435 = pneg %p286
      $region46: #{rstb_forward.3} parent=11 // pred_check_branch
        %437 = sbr.rel (%p435) target = $region48
      $region47: #{rstb_forward.3} parent=11 // pred_region
        _
      $region48: #{rstb_forward.3} parent=11 // pred_fallthru
        _
      // Predicated region
      $region49: #{rstb_forward.3} parent=11 // pred_check
        %p438 = pneg %p307
      $region50: #{rstb_forward.3} parent=11 // pred_check_branch
        %440 = sbr.rel (%p438) target = $region52
      $region51: #{rstb_forward.3} parent=11 // pred_region
        _
      $region52: #{rstb_forward.3} parent=11 // pred_fallthru
        _
      // Predicated region
      $region53: #{rstb_forward.3} parent=11 // pred_check
        %p441 = pneg %p328
      $region54: #{rstb_forward.3} parent=11 // pred_check_branch
        %443 = sbr.rel (%p441) target = $region56
      $region55: #{rstb_forward.3} parent=11 // pred_region
        _
      $region56: #{rstb_forward.3} parent=11 // pred_fallthru
        _
      // Predicated region
      $region57: #{rstb_forward.3} parent=11 // pred_check
        %p444 = pneg %p349
      $region58: #{rstb_forward.3} parent=11 // pred_check_branch
        %446 = sbr.rel (%p444) target = $region60
      $region59: #{rstb_forward.3} parent=11 // pred_region
        _
      $region60: #{rstb_forward.3} parent=11 // pred_fallthru
        _
      // Predicated region
      $region61: #{rstb_forward.3} parent=11 // pred_check
        %p447 = pneg %p370
      $region62: #{rstb_forward.3} parent=11 // pred_check_branch
        %449 = sbr.rel (%p447) target = $region64
      $region63: #{rstb_forward.3} parent=11 // pred_region
        _
      $region64: #{rstb_forward.3} parent=11 // pred_fallthru
        _
    $region12: #{rstb_forward.3} parent=5 // pred_fallthru
      _
    %p450 = scmp.lt.s32.totalorder %s21, 4
    // Predicated region
    $region65: #{rstb_forward.3} parent=5 // pred_check
      %p451 = pneg %p450
    $region66: #{rstb_forward.3} parent=5 // pred_check_branch
      %453 = sbr.rel (%p451) target = $region68
    $region67: #{rstb_forward.3} parent=5 // pred_region
      // Predicated region
      $region69: #{rstb_forward.3} parent=67 // pred_check
        %p454 = pneg %p41
      $region70: #{rstb_forward.3} parent=67 // pred_check_branch
        %456 = sbr.rel (%p454) target = $region72
      $region71: #{rstb_forward.3} parent=67 // pred_region
        %s457 = smul.u32 4, %s21
        %p458 = scmp.lt.s32.totalorder %s457, 15
        %s459 = scalar_select %p458, %s457, 15
        %s460 = smul.addr %s459, 4
        %s461 = smul.addr %s460, 8
        %s462 = scalar_lea.vmem %s0, %s461
        %s463 = smul.u32 4, %s21
      $region72: #{rstb_forward.3} parent=67 // pred_fallthru
        _
      // Predicated region
      $region73: #{rstb_forward.3} parent=67 // pred_check
        %p464 = pneg %p91
      $region74: #{rstb_forward.3} parent=67 // pred_check_branch
        %466 = sbr.rel (%p464) target = $region76
      $region75: #{rstb_forward.3} parent=67 // pred_region
        %p467 = scmp.lt.s32.totalorder %s21, 0
        %s468 = ssub.s32 0, %s21
        %s469 = scalar_select %p467, %s468, %s21
        %s470 = sand.u32 %s469, 1
        %s471 = ssub.s32 0, %s470
        %s472 = scalar_select %p467, %s471, %s470
        %p473 = scmp.ne.s32.totalorder %s472, 0
        %p474 = scmp.lt.s32.totalorder %s472, 0
        %p475 = pnand %p474, %p473
        %p476 = pneg %p475
        %s477 = sadd.s32 %s472, 2
        %s478 = scalar_select %p476, %s477, %s472
        %s479 = smul.u32 4, %s478
        %p480 = scmp.lt.s32.totalorder %s479, 7
        %s481 = scalar_select %p480, %s479, 7
        %s482 = smul.addr %s481, 4
        %s483 = smul.addr %s482, 4
        %s484 = scalar_lea.vmem %s1, %s483
        %p485 = scmp.lt.s32.totalorder %s21, 0
        %s486 = ssub.s32 0, %s21
        %s487 = scalar_select %p485, %s486, %s21
        %s488 = sand.u32 %s487, 1
        %s489 = ssub.s32 0, %s488
        %s490 = scalar_select %p485, %s489, %s488
        %p491 = scmp.ne.s32.totalorder %s490, 0
        %p492 = scmp.lt.s32.totalorder %s490, 0
        %p493 = pnand %p492, %p491
        %p494 = pneg %p493
        %s495 = sadd.s32 %s490, 2
        %s496 = scalar_select %p494, %s495, %s490
        %s497 = smul.u32 4, %s496
      $region76: #{rstb_forward.3} parent=67 // pred_fallthru
        _
    $region68: #{rstb_forward.3} parent=5 // pred_fallthru
      _
    %p498 = scmp.le.s32.totalorder 1, %s21
    %p499 = scmp.lt.s32.totalorder %s21, 5
    %p500 = pnand %p498, %p499
    %p501 = pneg %p500
    // Predicated region
    $region77: #{rstb_forward.3} parent=5 // pred_check
      _
    $region78: #{rstb_forward.3} parent=5 // pred_check_branch
      %503 = sbr.rel (%p500) target = $region80
    $region79: #{rstb_forward.3} parent=5 // pred_region
      %s504 = ssub.s32 %s21, 1
      %s505 = smul.u32 4, %s26
      %p506 = scmp.lt.s32.totalorder %s505, 15
      %s507 = scalar_select %p506, %s505, 15
      %s508 = smul.addr %s507, 4
      %s509 = smul.addr %s508, 8
      %s510 = scalar_lea.vmem %s0, %s509
      %p511 = pneg %p47
      %p512 = pneg %p44
      %p513 = scmp.lt.s32.totalorder %s26, 0
      %s514 = ssub.s32 0, %s26
      %s515 = scalar_select %p513, %s514, %s26
      %s516 = sand.u32 %s515, 1
      %s517 = ssub.s32 0, %s516
      %s518 = scalar_select %p513, %s517, %s516
      %p519 = scmp.ne.s32.totalorder %s518, 0
      %p520 = scmp.lt.s32.totalorder %s518, 0
      %p521 = pnand %p520, %p519
      %p522 = pneg %p521
      %s523 = sadd.s32 %s518, 2
      %s524 = scalar_select %p522, %s523, %s518
      %s525 = smul.u32 4, %s524
      %p526 = scmp.lt.s32.totalorder %s525, 7
      %s527 = scalar_select %p526, %s525, 7
      %s528 = smul.addr %s527, 4
      %s529 = smul.addr %s528, 4
      %s530 = scalar_lea.vmem %s1, %s529
      %p531 = pneg %p97
      %p532 = pneg %p94
      %p533 = pneg %p118
      %p534 = pneg %p115
      %p535 = pneg %p139
      %p536 = pneg %p136
      %p537 = pneg %p160
      %p538 = pneg %p157
      %p539 = pneg %p181
      %p540 = pneg %p178
      %p541 = pneg %p202
      %p542 = pneg %p199
      %p543 = pneg %p223
      %p544 = pneg %p220
      %p545 = pneg %p244
      %p546 = pneg %p241
      %p547 = pneg %p265
      %p548 = pneg %p262
      %p549 = pneg %p286
      %p550 = pneg %p283
      %p551 = pneg %p307
      %p552 = pneg %p304
      %p553 = pneg %p328
      %p554 = pneg %p325
      %p555 = pneg %p349
      %p556 = pneg %p346
      %p557 = pneg %p370
      %p558 = pneg %p367
      %p559 = pneg %p396
      %p560 = pneg %p393
      %s561 = smul.u32 4, %s26
      %p562 = scmp.lt.s32.totalorder %s561, 15
      %s563 = scalar_select %p562, %s561, 15
      %s564 = smul.addr %s563, 4
      %s565 = smul.addr %s564, 8
      %s566 = scalar_lea.vmem %s15, %s565
      %s567 = smul.u32 4, %s26
      %p568 = scmp.lt.s32.totalorder %s567, 15
      %s569 = scalar_select %p568, %s567, 15
      %s570 = smul.addr %s569, 4
      %s571 = smul.addr %s570, 8
      %s572 = scalar_lea.vmem %s0, %s571
      %s573 = smul.u32 4, %s26
      %p574 = scmp.lt.s32.totalorder %s26, 0
      %s575 = ssub.s32 0, %s26
      %s576 = scalar_select %p574, %s575, %s26
      %s577 = sand.u32 %s576, 1
      %s578 = ssub.s32 0, %s577
      %s579 = scalar_select %p574, %s578, %s577
      %p580 = scmp.ne.s32.totalorder %s579, 0
      %p581 = scmp.lt.s32.totalorder %s579, 0
      %p582 = pnand %p581, %p580
      %p583 = pneg %p582
      %s584 = sadd.s32 %s579, 2
      %s585 = scalar_select %p583, %s584, %s579
      %s586 = smul.u32 4, %s585
      %p587 = scmp.lt.s32.totalorder %s586, 7
      %s588 = scalar_select %p587, %s586, 7
      %s589 = smul.addr %s588, 4
      %s590 = smul.addr %s589, 4
      %s591 = scalar_lea.vmem %s1, %s590
      %p592 = scmp.lt.s32.totalorder %s26, 0
      %s593 = ssub.s32 0, %s26
      %s594 = scalar_select %p592, %s593, %s26
      %s595 = sand.u32 %s594, 1
      %s596 = ssub.s32 0, %s595
      %s597 = scalar_select %p592, %s596, %s595
      %p598 = scmp.ne.s32.totalorder %s597, 0
      %p599 = scmp.lt.s32.totalorder %s597, 0
      %p600 = pnand %p599, %p598
      %p601 = pneg %p600
      %s602 = sadd.s32 %s597, 2
      %s603 = scalar_select %p601, %s602, %s597
      %s604 = smul.u32 4, %s603
      %s605 = smul.u32 4, %s26
      %p606 = scmp.lt.s32.totalorder %s605, 15
      %s607 = scalar_select %p606, %s605, 15
      %s608 = smul.addr %s607, 4
      %s609 = smul.addr %s608, 8
      %s610 = scalar_lea.vmem %s15, %s609
      %s611 = smul.u32 4, %s26
      %v613 = vld [vmem:[%s572] sm:$0xff]
      %v614 = vld [vmem:[%s572 + $0x8] sm:$0xff]
      %v615 = vld [vmem:[%s572 + $0x10] sm:$0xff]
      %v616 = vld [vmem:[%s572 + $0x18] sm:$0xff]
      %v617 = vld [vmem:[%s572 + $0x20] sm:$0xff]
      %v618 = vld [vmem:[%s572 + $0x28] sm:$0xff]
      %v619 = vld [vmem:[%s572 + $0x30] sm:$0xff]
      %v620 = vld [vmem:[%s572 + $0x38] sm:$0xff]
      %v621 = vld [vmem:[%s572 + $0x40] sm:$0xff]
      %v622 = vld [vmem:[%s572 + $0x48] sm:$0xff]
      %v623 = vld [vmem:[%s572 + $0x50] sm:$0xff]
      %v624 = vld [vmem:[%s572 + $0x58] sm:$0xff]
      %v625 = vld [vmem:[%s572 + $0x60] sm:$0xff]
      %v626 = vld [vmem:[%s572 + $0x68] sm:$0xff]
      %v627 = vld [vmem:[%s572 + $0x70] sm:$0xff]
      %v628 = vld [vmem:[%s572 + $0x78] sm:$0xff]
      %v629 = vld [vmem:[%s2] sm:$0x1]
      %v630 = vld [vmem:[%s3] sm:$0x1]
      %vm631 = vcmask 261120
      %v632 = vsel %vm631, %v613, 0.0
      %633 = vadd.xlane.f32.xlu0 %v632
      %v634 = vpop.xlane.xlu0 %633
      %v635 = vsel %vm631, %v614, 0.0
      %636 = vadd.xlane.f32.xlu0 %v635
      %v637 = vpop.xlane.xlu0 %636
      %v638 = vsel %vm631, %v615, 0.0
      %639 = vadd.xlane.f32.xlu0 %v638
      %v640 = vpop.xlane.xlu0 %639
      %v641 = vsel %vm631, %v616, 0.0
      %642 = vadd.xlane.f32.xlu0 %v641
      %v643 = vpop.xlane.xlu0 %642
      %v644 = vsel %vm631, %v617, 0.0
      %645 = vadd.xlane.f32.xlu0 %v644
      %v646 = vpop.xlane.xlu0 %645
      %v647 = vsel %vm631, %v618, 0.0
      %648 = vadd.xlane.f32.xlu0 %v647
      %v649 = vpop.xlane.xlu0 %648
      %v650 = vsel %vm631, %v619, 0.0
      %651 = vadd.xlane.f32.xlu0 %v650
      %v652 = vpop.xlane.xlu0 %651
      %v653 = vsel %vm631, %v620, 0.0
      %654 = vadd.xlane.f32.xlu0 %v653
      %v655 = vpop.xlane.xlu0 %654
      %v656 = vsel %vm631, %v621, 0.0
      %657 = vadd.xlane.f32.xlu0 %v656
      %v658 = vpop.xlane.xlu0 %657
      %v659 = vsel %vm631, %v622, 0.0
      %660 = vadd.xlane.f32.xlu0 %v659
      %v661 = vpop.xlane.xlu0 %660
      %v662 = vsel %vm631, %v623, 0.0
      %663 = vadd.xlane.f32.xlu0 %v662
      %v664 = vpop.xlane.xlu0 %663
      %v665 = vsel %vm631, %v624, 0.0
      %666 = vadd.xlane.f32.xlu0 %v665
      %v667 = vpop.xlane.xlu0 %666
      %v668 = vsel %vm631, %v625, 0.0
      %669 = vadd.xlane.f32.xlu0 %v668
      %v670 = vpop.xlane.xlu0 %669
      %v671 = vsel %vm631, %v626, 0.0
      %672 = vadd.xlane.f32.xlu0 %v671
      %v673 = vpop.xlane.xlu0 %672
      %v674 = vsel %vm631, %v627, 0.0
      %675 = vadd.xlane.f32.xlu0 %v674
      %v676 = vpop.xlane.xlu0 %675
      %v677 = vsel %vm631, %v628, 0.0
      %678 = vadd.xlane.f32.xlu0 %v677
      %v679 = vpop.xlane.xlu0 %678
      %v680 = vrcp.pop 32.0
      %v681 = vmul.f32 32.0, %v680
      %v682 = vsub.f32 1.0, %v681
      %v683 = vmul.f32 %v680, %v682
      %v684 = vadd.f32 %v680, %v683
      %vm685 = vweird.f32 %v680
      %v686 = vsel %vm685, %v680, %v684
      %v687 = vmul.f32 %v634, %v686
      %v688 = vmul.f32 %v637, %v686
      %v689 = vmul.f32 %v640, %v686
      %v690 = vmul.f32 %v643, %v686
      %v691 = vmul.f32 %v646, %v686
      %v692 = vmul.f32 %v649, %v686
      %v693 = vmul.f32 %v652, %v686
      %v694 = vmul.f32 %v655, %v686
      %v695 = vmul.f32 %v658, %v686
      %v696 = vmul.f32 %v661, %v686
      %v697 = vmul.f32 %v664, %v686
      %v698 = vmul.f32 %v667, %v686
      %v699 = vmul.f32 %v670, %v686
      %v700 = vmul.f32 %v673, %v686
      %v701 = vmul.f32 %v676, %v686
      %v702 = vmul.f32 %v679, %v686
      %v703 = vsub.f32 %v613, %v687
      %v704 = vsub.f32 %v614, %v688
      %v705 = vsub.f32 %v615, %v689
      %v706 = vsub.f32 %v616, %v690
      %v707 = vsub.f32 %v617, %v691
      %v708 = vsub.f32 %v618, %v692
      %v709 = vsub.f32 %v619, %v693
      %v710 = vsub.f32 %v620, %v694
      %v711 = vsub.f32 %v621, %v695
      %v712 = vsub.f32 %v622, %v696
      %v713 = vsub.f32 %v623, %v697
      %v714 = vsub.f32 %v624, %v698
      %v715 = vsub.f32 %v625, %v699
      %v716 = vsub.f32 %v626, %v700
      %v717 = vsub.f32 %v627, %v701
      %v718 = vsub.f32 %v628, %v702
      %v719 = vmul.f32 %v703, %v703
      %v720 = vmul.f32 %v704, %v704
      %v721 = vmul.f32 %v705, %v705
      %v722 = vmul.f32 %v706, %v706
      %v723 = vmul.f32 %v707, %v707
      %v724 = vmul.f32 %v708, %v708
      %v725 = vmul.f32 %v709, %v709
      %v726 = vmul.f32 %v710, %v710
      %v727 = vmul.f32 %v711, %v711
      %v728 = vmul.f32 %v712, %v712
      %v729 = vmul.f32 %v713, %v713
      %v730 = vmul.f32 %v714, %v714
      %v731 = vmul.f32 %v715, %v715
      %v732 = vmul.f32 %v716, %v716
      %v733 = vmul.f32 %v717, %v717
      %v734 = vmul.f32 %v718, %v718
      %v735 = vsel %vm631, %v719, 0.0
      %736 = vadd.xlane.f32.xlu0 %v735
      %v737 = vpop.xlane.xlu0 %736
      %v738 = vsel %vm631, %v720, 0.0
      %739 = vadd.xlane.f32.xlu0 %v738
      %v740 = vpop.xlane.xlu0 %739
      %v741 = vsel %vm631, %v721, 0.0
      %742 = vadd.xlane.f32.xlu0 %v741
      %v743 = vpop.xlane.xlu0 %742
      %v744 = vsel %vm631, %v722, 0.0
      %745 = vadd.xlane.f32.xlu0 %v744
      %v746 = vpop.xlane.xlu0 %745
      %v747 = vsel %vm631, %v723, 0.0
      %748 = vadd.xlane.f32.xlu0 %v747
      %v749 = vpop.xlane.xlu0 %748
      %v750 = vsel %vm631, %v724, 0.0
      %751 = vadd.xlane.f32.xlu0 %v750
      %v752 = vpop.xlane.xlu0 %751
      %v753 = vsel %vm631, %v725, 0.0
      %754 = vadd.xlane.f32.xlu0 %v753
      %v755 = vpop.xlane.xlu0 %754
      %v756 = vsel %vm631, %v726, 0.0
      %757 = vadd.xlane.f32.xlu0 %v756
      %v758 = vpop.xlane.xlu0 %757
      %v759 = vsel %vm631, %v727, 0.0
      %760 = vadd.xlane.f32.xlu0 %v759
      %v761 = vpop.xlane.xlu0 %760
      %v762 = vsel %vm631, %v728, 0.0
      %763 = vadd.xlane.f32.xlu0 %v762
      %v764 = vpop.xlane.xlu0 %763
      %v765 = vsel %vm631, %v729, 0.0
      %766 = vadd.xlane.f32.xlu0 %v765
      %v767 = vpop.xlane.xlu0 %766
      %v768 = vsel %vm631, %v730, 0.0
      %769 = vadd.xlane.f32.xlu0 %v768
      %v770 = vpop.xlane.xlu0 %769
      %v771 = vsel %vm631, %v731, 0.0
      %772 = vadd.xlane.f32.xlu0 %v771
      %v773 = vpop.xlane.xlu0 %772
      %v774 = vsel %vm631, %v732, 0.0
      %775 = vadd.xlane.f32.xlu0 %v774
      %v776 = vpop.xlane.xlu0 %775
      %v777 = vsel %vm631, %v733, 0.0
      %778 = vadd.xlane.f32.xlu0 %v777
      %v779 = vpop.xlane.xlu0 %778
      %v780 = vsel %vm631, %v734, 0.0
      %781 = vadd.xlane.f32.xlu0 %v780
      %v782 = vpop.xlane.xlu0 %781
      %v783 = vmul.f32 %v737, %v686
      %v784 = vmul.f32 %v740, %v686
      %v785 = vmul.f32 %v743, %v686
      %v786 = vmul.f32 %v746, %v686
      %v787 = vmul.f32 %v749, %v686
      %v788 = vmul.f32 %v752, %v686
      %v789 = vmul.f32 %v755, %v686
      %v790 = vmul.f32 %v758, %v686
      %v791 = vmul.f32 %v761, %v686
      %v792 = vmul.f32 %v764, %v686
      %v793 = vmul.f32 %v767, %v686
      %v794 = vmul.f32 %v770, %v686
      %v795 = vmul.f32 %v773, %v686
      %v796 = vmul.f32 %v776, %v686
      %v797 = vmul.f32 %v779, %v686
      %v798 = vmul.f32 %v782, %v686
      %v799 = vadd.f32 %v783, 1e-05
      %v800 = vadd.f32 %v784, 1e-05
      %v801 = vadd.f32 %v785, 1e-05
      %v802 = vadd.f32 %v786, 1e-05
      %v803 = vadd.f32 %v787, 1e-05
      %v804 = vadd.f32 %v788, 1e-05
      %v805 = vadd.f32 %v789, 1e-05
      %v806 = vadd.f32 %v790, 1e-05
      %v807 = vadd.f32 %v791, 1e-05
      %v808 = vadd.f32 %v792, 1e-05
      %v809 = vadd.f32 %v793, 1e-05
      %v810 = vadd.f32 %v794, 1e-05
      %v811 = vadd.f32 %v795, 1e-05
      %v812 = vadd.f32 %v796, 1e-05
      %v813 = vadd.f32 %v797, 1e-05
      %v814 = vadd.f32 %v798, 1e-05
      %v815 = vrsqrt.pop %v799
      %v816 = vmul.f32 %v815, %v799
      %v817 = vmul.f32 %v816, %v815
      %v818 = vmul.f32 0.5, %v817
      %v819 = vsub.f32 1.5, %v818
      %v820 = vmul.f32 %v815, %v819
      %vm821 = vweird.f32 %v799
      %vm822 = vweird.f32 %v815
      %vm823 = vmor %vm821, %vm822
      %v824 = vsel %vm823, %v815, %v820
      %v825 = vrsqrt.pop %v800
      %v826 = vmul.f32 %v825, %v800
      %v827 = vmul.f32 %v826, %v825
      %v828 = vmul.f32 0.5, %v827
      %v829 = vsub.f32 1.5, %v828
      %v830 = vmul.f32 %v825, %v829
      %vm831 = vweird.f32 %v800
      %vm832 = vweird.f32 %v825
      %vm833 = vmor %vm831, %vm832
      %v834 = vsel %vm833, %v825, %v830
      %v835 = vrsqrt.pop %v801
      %v836 = vmul.f32 %v835, %v801
      %v837 = vmul.f32 %v836, %v835
      %v838 = vmul.f32 0.5, %v837
      %v839 = vsub.f32 1.5, %v838
      %v840 = vmul.f32 %v835, %v839
      %vm841 = vweird.f32 %v801
      %vm842 = vweird.f32 %v835
      %vm843 = vmor %vm841, %vm842
      %v844 = vsel %vm843, %v835, %v840
      %v845 = vrsqrt.pop %v802
      %v846 = vmul.f32 %v845, %v802
      %v847 = vmul.f32 %v846, %v845
      %v848 = vmul.f32 0.5, %v847
      %v849 = vsub.f32 1.5, %v848
      %v850 = vmul.f32 %v845, %v849
      %vm851 = vweird.f32 %v802
      %vm852 = vweird.f32 %v845
      %vm853 = vmor %vm851, %vm852
      %v854 = vsel %vm853, %v845, %v850
      %v855 = vrsqrt.pop %v803
      %v856 = vmul.f32 %v855, %v803
      %v857 = vmul.f32 %v856, %v855
      %v858 = vmul.f32 0.5, %v857
      %v859 = vsub.f32 1.5, %v858
      %v860 = vmul.f32 %v855, %v859
      %vm861 = vweird.f32 %v803
      %vm862 = vweird.f32 %v855
      %vm863 = vmor %vm861, %vm862
      %v864 = vsel %vm863, %v855, %v860
      %v865 = vrsqrt.pop %v804
      %v866 = vmul.f32 %v865, %v804
      %v867 = vmul.f32 %v866, %v865
      %v868 = vmul.f32 0.5, %v867
      %v869 = vsub.f32 1.5, %v868
      %v870 = vmul.f32 %v865, %v869
      %vm871 = vweird.f32 %v804
      %vm872 = vweird.f32 %v865
      %vm873 = vmor %vm871, %vm872
      %v874 = vsel %vm873, %v865, %v870
      %v875 = vrsqrt.pop %v805
      %v876 = vmul.f32 %v875, %v805
      %v877 = vmul.f32 %v876, %v875
      %v878 = vmul.f32 0.5, %v877
      %v879 = vsub.f32 1.5, %v878
      %v880 = vmul.f32 %v875, %v879
      %vm881 = vweird.f32 %v805
      %vm882 = vweird.f32 %v875
      %vm883 = vmor %vm881, %vm882
      %v884 = vsel %vm883, %v875, %v880
      %v885 = vrsqrt.pop %v806
      %v886 = vmul.f32 %v885, %v806
      %v887 = vmul.f32 %v886, %v885
      %v888 = vmul.f32 0.5, %v887
      %v889 = vsub.f32 1.5, %v888
      %v890 = vmul.f32 %v885, %v889
      %vm891 = vweird.f32 %v806
      %vm892 = vweird.f32 %v885
      %vm893 = vmor %vm891, %vm892
      %v894 = vsel %vm893, %v885, %v890
      %v895 = vrsqrt.pop %v807
      %v896 = vmul.f32 %v895, %v807
      %v897 = vmul.f32 %v896, %v895
      %v898 = vmul.f32 0.5, %v897
      %v899 = vsub.f32 1.5, %v898
      %v900 = vmul.f32 %v895, %v899
      %vm901 = vweird.f32 %v807
      %vm902 = vweird.f32 %v895
      %vm903 = vmor %vm901, %vm902
      %v904 = vsel %vm903, %v895, %v900
      %v905 = vrsqrt.pop %v808
      %v906 = vmul.f32 %v905, %v808
      %v907 = vmul.f32 %v906, %v905
      %v908 = vmul.f32 0.5, %v907
      %v909 = vsub.f32 1.5, %v908
      %v910 = vmul.f32 %v905, %v909
      %vm911 = vweird.f32 %v808
      %vm912 = vweird.f32 %v905
      %vm913 = vmor %vm911, %vm912
      %v914 = vsel %vm913, %v905, %v910
      %v915 = vrsqrt.pop %v809
      %v916 = vmul.f32 %v915, %v809
      %v917 = vmul.f32 %v916, %v915
      %v918 = vmul.f32 0.5, %v917
      %v919 = vsub.f32 1.5, %v918
      %v920 = vmul.f32 %v915, %v919
      %vm921 = vweird.f32 %v809
      %vm922 = vweird.f32 %v915
      %vm923 = vmor %vm921, %vm922
      %v924 = vsel %vm923, %v915, %v920
      %v925 = vrsqrt.pop %v810
      %v926 = vmul.f32 %v925, %v810
      %v927 = vmul.f32 %v926, %v925
      %v928 = vmul.f32 0.5, %v927
      %v929 = vsub.f32 1.5, %v928
      %v930 = vmul.f32 %v925, %v929
      %vm931 = vweird.f32 %v810
      %vm932 = vweird.f32 %v925
      %vm933 = vmor %vm931, %vm932
      %v934 = vsel %vm933, %v925, %v930
      %v935 = vrsqrt.pop %v811
      %v936 = vmul.f32 %v935, %v811
      %v937 = vmul.f32 %v936, %v935
      %v938 = vmul.f32 0.5, %v937
      %v939 = vsub.f32 1.5, %v938
      %v940 = vmul.f32 %v935, %v939
      %vm941 = vweird.f32 %v811
      %vm942 = vweird.f32 %v935
      %vm943 = vmor %vm941, %vm942
      %v944 = vsel %vm943, %v935, %v940
      %v945 = vrsqrt.pop %v812
      %v946 = vmul.f32 %v945, %v812
      %v947 = vmul.f32 %v946, %v945
      %v948 = vmul.f32 0.5, %v947
      %v949 = vsub.f32 1.5, %v948
      %v950 = vmul.f32 %v945, %v949
      %vm951 = vweird.f32 %v812
      %vm952 = vweird.f32 %v945
      %vm953 = vmor %vm951, %vm952
      %v954 = vsel %vm953, %v945, %v950
      %v955 = vrsqrt.pop %v813
      %v956 = vmul.f32 %v955, %v813
      %v957 = vmul.f32 %v956, %v955
      %v958 = vmul.f32 0.5, %v957
      %v959 = vsub.f32 1.5, %v958
      %v960 = vmul.f32 %v955, %v959
      %vm961 = vweird.f32 %v813
      %vm962 = vweird.f32 %v955
      %vm963 = vmor %vm961, %vm962
      %v964 = vsel %vm963, %v955, %v960
      %v965 = vrsqrt.pop %v814
      %v966 = vmul.f32 %v965, %v814
      %v967 = vmul.f32 %v966, %v965
      %v968 = vmul.f32 0.5, %v967
      %v969 = vsub.f32 1.5, %v968
      %v970 = vmul.f32 %v965, %v969
      %vm971 = vweird.f32 %v814
      %vm972 = vweird.f32 %v965
      %vm973 = vmor %vm971, %vm972
      %v974 = vsel %vm973, %v965, %v970
      %v975 = vmul.f32 %v703, %v824
      %v976 = vmul.f32 %v704, %v834
      %v977 = vmul.f32 %v705, %v844
      %v978 = vmul.f32 %v706, %v854
      %v979 = vmul.f32 %v707, %v864
      %v980 = vmul.f32 %v708, %v874
      %v981 = vmul.f32 %v709, %v884
      %v982 = vmul.f32 %v710, %v894
      %v983 = vmul.f32 %v711, %v904
      %v984 = vmul.f32 %v712, %v914
      %v985 = vmul.f32 %v713, %v924
      %v986 = vmul.f32 %v714, %v934
      %v987 = vmul.f32 %v715, %v944
      %v988 = vmul.f32 %v716, %v954
      %v989 = vmul.f32 %v717, %v964
      %v990 = vmul.f32 %v718, %v974
      %v992 = vperm.slane %v629, 0
      %v994 = vmul.f32 %v975, %v992
      %v995 = vmul.f32 %v976, %v992
      %v996 = vmul.f32 %v977, %v992
      %v997 = vmul.f32 %v978, %v992
      %v998 = vmul.f32 %v979, %v992
      %v999 = vmul.f32 %v980, %v992
      %v1000 = vmul.f32 %v981, %v992
      %v1001 = vmul.f32 %v982, %v992
      %v1002 = vmul.f32 %v983, %v992
      %v1003 = vmul.f32 %v984, %v992
      %v1004 = vmul.f32 %v985, %v992
      %v1005 = vmul.f32 %v986, %v992
      %v1006 = vmul.f32 %v987, %v992
      %v1007 = vmul.f32 %v988, %v992
      %v1008 = vmul.f32 %v989, %v992
      %v1009 = vmul.f32 %v990, %v992
      %v1011 = vperm.slane %v630, 0
      %v1013 = vadd.f32 %v994, %v1011
      %v1014 = vadd.f32 %v995, %v1011
      %v1015 = vadd.f32 %v996, %v1011
      %v1016 = vadd.f32 %v997, %v1011
      %v1017 = vadd.f32 %v998, %v1011
      %v1018 = vadd.f32 %v999, %v1011
      %v1019 = vadd.f32 %v1000, %v1011
      %v1020 = vadd.f32 %v1001, %v1011
      %v1021 = vadd.f32 %v1002, %v1011
      %v1022 = vadd.f32 %v1003, %v1011
      %v1023 = vadd.f32 %v1004, %v1011
      %v1024 = vadd.f32 %v1005, %v1011
      %v1025 = vadd.f32 %v1006, %v1011
      %v1026 = vadd.f32 %v1007, %v1011
      %v1027 = vadd.f32 %v1008, %v1011
      %v1028 = vadd.f32 %v1009, %v1011
      %v1029 = vpack.c.bf16 %v1014, %v1013
      %v1030 = vpack.c.bf16 %v1016, %v1015
      %v1031 = vpack.c.bf16 %v1018, %v1017
      %v1032 = vpack.c.bf16 %v1020, %v1019
      %v1033 = vpack.c.bf16 %v1022, %v1021
      %v1034 = vpack.c.bf16 %v1024, %v1023
      %v1035 = vpack.c.bf16 %v1026, %v1025
      %v1036 = vpack.c.bf16 %v1028, %v1027
      %v1037 = vld [vmem:[%s4] sm:$0xf]
      %v1038 = vld [vmem:[%s4 + $0x4] sm:$0xf]
      %v1039 = vld [vmem:[%s4 + $0x8] sm:$0xf]
      %v1040 = vld [vmem:[%s4 + $0xc] sm:$0xf]
      %v1041 = vld [vmem:[%s5] sm:$0x1]
      %v1043 = vperm.slane %v1041, 0
      %v1049 = vunpack.c.l.b16 %v1037
      %v1050 = vunpack.c.l.b16 %v1038
      %v1051 = vunpack.c.l.b16 %v1039
      %v1052 = vunpack.c.l.b16 %v1040
      %v1053 = vpack.c.b16 %v1050, %v1049
      %v1054 = vpack.c.b16 %v1052, %v1051
      %v1058 = vsel %vm631, %v1029, 0
      %v1061 = vsel %vm631, %v1030, 0
      %v1064 = vsel %vm631, %v1031, 0
      %v1067 = vsel %vm631, %v1032, 0
      %v1070 = vsel %vm631, %v1033, 0
      %v1073 = vsel %vm631, %v1034, 0
      %v1076 = vsel %vm631, %v1035, 0
      %v1079 = vsel %vm631, %v1036, 0
      %1081 = vmatpush.bf16.msra.mxu0 0
      %1082 = vmatpush.bf16.msra.mxu0 0
      %1083 = vmatpush.bf16.msra.mxu0 0
      %1084 = vmatpush.bf16.msra.mxu0 0
      %1085 = vmatpush.bf16.msra.mxu0 0
      %1086 = vmatpush.bf16.msra.mxu0 0
      %1087 = vmatpush.bf16.msra.mxu0 %v1054
      %1088 = vmatpush.bf16.msra.mxu0 %v1053
      %1089 = vmatmul.bf16.gmra.mxu0 %v1058
      %v1090 = vpop.f32.mrf.mxu0
      %v1091 = vadd.f32 %v1043, %v1090
      %v1092 = vpop.f32.mrf.mxu0
      %v1093 = vadd.f32 %v1043, %v1092
      %1094 = vmatmul.bf16.gmra.mxu0 %v1061
      %v1095 = vpop.f32.mrf.mxu0
      %v1096 = vadd.f32 %v1043, %v1095
      %v1097 = vpop.f32.mrf.mxu0
      %v1098 = vadd.f32 %v1043, %v1097
      %1099 = vmatmul.bf16.gmra.mxu0 %v1064
      %v1100 = vpop.f32.mrf.mxu0
      %v1101 = vadd.f32 %v1043, %v1100
      %v1102 = vpop.f32.mrf.mxu0
      %v1103 = vadd.f32 %v1043, %v1102
      %1104 = vmatmul.bf16.gmra.mxu0 %v1067
      %v1105 = vpop.f32.mrf.mxu0
      %v1106 = vadd.f32 %v1043, %v1105
      %v1107 = vpop.f32.mrf.mxu0
      %v1108 = vadd.f32 %v1043, %v1107
      %1109 = vmatmul.bf16.gmra.mxu0 %v1070
      %v1110 = vpop.f32.mrf.mxu0
      %v1111 = vadd.f32 %v1043, %v1110
      %v1112 = vpop.f32.mrf.mxu0
      %v1113 = vadd.f32 %v1043, %v1112
      %1114 = vmatmul.bf16.gmra.mxu0 %v1073
      %v1115 = vpop.f32.mrf.mxu0
      %v1116 = vadd.f32 %v1043, %v1115
      %v1117 = vpop.f32.mrf.mxu0
      %v1118 = vadd.f32 %v1043, %v1117
      %1119 = vmatmul.bf16.gmra.mxu0 %v1076
      %v1120 = vpop.f32.mrf.mxu0
      %v1121 = vadd.f32 %v1043, %v1120
      %v1122 = vpop.f32.mrf.mxu0
      %v1123 = vadd.f32 %v1043, %v1122
      %1124 = vmatmul.bf16.gmra.mxu0 %v1079
      %v1125 = vpop.f32.mrf.mxu0
      %v1126 = vadd.f32 %v1043, %v1125
      %v1127 = vpop.f32.mrf.mxu0
      %v1128 = vadd.f32 %v1043, %v1127
      %1129 = vdwg.mxu0
      %v1130 = vpack.c.bf16 %v1091, %v1091
      %v1131 = vpack.c.bf16 %v1093, %v1093
      %v1132 = vpack.c.bf16 %v1096, %v1096
      %v1133 = vpack.c.bf16 %v1098, %v1098
      %v1134 = vpack.c.bf16 %v1101, %v1101
      %v1135 = vpack.c.bf16 %v1103, %v1103
      %v1136 = vpack.c.bf16 %v1106, %v1106
      %v1137 = vpack.c.bf16 %v1108, %v1108
      %v1138 = vpack.c.bf16 %v1111, %v1111
      %v1139 = vpack.c.bf16 %v1113, %v1113
      %v1140 = vpack.c.bf16 %v1116, %v1116
      %v1141 = vpack.c.bf16 %v1118, %v1118
      %v1142 = vpack.c.bf16 %v1121, %v1121
      %v1143 = vpack.c.bf16 %v1123, %v1123
      %v1144 = vpack.c.bf16 %v1126, %v1126
      %v1145 = vpack.c.bf16 %v1128, %v1128
      %1162 = vrot.lane.b32.xlu0 %v1130, 120
      %v1163 = vpop.permute.xlu0 %1162
      %1164 = vrot.lane.b32.xlu0 %v1131, 120
      %v1165 = vpop.permute.xlu0 %1164
      %1166 = vrot.lane.b32.xlu0 %v1132, 120
      %v1167 = vpop.permute.xlu0 %1166
      %1168 = vrot.lane.b32.xlu0 %v1133, 120
      %v1169 = vpop.permute.xlu0 %1168
      %1170 = vrot.lane.b32.xlu0 %v1134, 120
      %v1171 = vpop.permute.xlu0 %1170
      %1172 = vrot.lane.b32.xlu0 %v1135, 120
      %v1173 = vpop.permute.xlu0 %1172
      %1174 = vrot.lane.b32.xlu0 %v1136, 120
      %v1175 = vpop.permute.xlu0 %1174
      %1176 = vrot.lane.b32.xlu0 %v1137, 120
      %v1177 = vpop.permute.xlu0 %1176
      %1178 = vrot.lane.b32.xlu0 %v1138, 120
      %v1179 = vpop.permute.xlu0 %1178
      %1180 = vrot.lane.b32.xlu0 %v1139, 120
      %v1181 = vpop.permute.xlu0 %1180
      %1182 = vrot.lane.b32.xlu0 %v1140, 120
      %v1183 = vpop.permute.xlu0 %1182
      %1184 = vrot.lane.b32.xlu0 %v1141, 120
      %v1185 = vpop.permute.xlu0 %1184
      %1186 = vrot.lane.b32.xlu0 %v1142, 120
      %v1187 = vpop.permute.xlu0 %1186
      %1188 = vrot.lane.b32.xlu0 %v1143, 120
      %v1189 = vpop.permute.xlu0 %1188
      %1190 = vrot.lane.b32.xlu0 %v1144, 120
      %v1191 = vpop.permute.xlu0 %1190
      %1192 = vrot.lane.b32.xlu0 %v1145, 120
      %v1193 = vpop.permute.xlu0 %1192
      %1194 = vrot.lane.b32.xlu0 %v1130, 112
      %v1195 = vpop.permute.xlu0 %1194
      %1196 = vrot.lane.b32.xlu0 %v1131, 112
      %v1197 = vpop.permute.xlu0 %1196
      %1198 = vrot.lane.b32.xlu0 %v1132, 112
      %v1199 = vpop.permute.xlu0 %1198
      %1200 = vrot.lane.b32.xlu0 %v1133, 112
      %v1201 = vpop.permute.xlu0 %1200
      %1202 = vrot.lane.b32.xlu0 %v1134, 112
      %v1203 = vpop.permute.xlu0 %1202
      %1204 = vrot.lane.b32.xlu0 %v1135, 112
      %v1205 = vpop.permute.xlu0 %1204
      %1206 = vrot.lane.b32.xlu0 %v1136, 112
      %v1207 = vpop.permute.xlu0 %1206
      %1208 = vrot.lane.b32.xlu0 %v1137, 112
      %v1209 = vpop.permute.xlu0 %1208
      %1210 = vrot.lane.b32.xlu0 %v1138, 112
      %v1211 = vpop.permute.xlu0 %1210
      %1212 = vrot.lane.b32.xlu0 %v1139, 112
      %v1213 = vpop.permute.xlu0 %1212
      %1214 = vrot.lane.b32.xlu0 %v1140, 112
      %v1215 = vpop.permute.xlu0 %1214
      %1216 = vrot.lane.b32.xlu0 %v1141, 112
      %v1217 = vpop.permute.xlu0 %1216
      %1218 = vrot.lane.b32.xlu0 %v1142, 112
      %v1219 = vpop.permute.xlu0 %1218
      %1220 = vrot.lane.b32.xlu0 %v1143, 112
      %v1221 = vpop.permute.xlu0 %1220
      %1222 = vrot.lane.b32.xlu0 %v1144, 112
      %v1223 = vpop.permute.xlu0 %1222
      %1224 = vrot.lane.b32.xlu0 %v1145, 112
      %v1225 = vpop.permute.xlu0 %1224
      %1226 = vrot.lane.b32.xlu0 %v1130, 104
      %v1227 = vpop.permute.xlu0 %1226
      %1228 = vrot.lane.b32.xlu0 %v1131, 104
      %v1229 = vpop.permute.xlu0 %1228
      %1230 = vrot.lane.b32.xlu0 %v1132, 104
      %v1231 = vpop.permute.xlu0 %1230
      %1232 = vrot.lane.b32.xlu0 %v1133, 104
      %v1233 = vpop.permute.xlu0 %1232
      %1234 = vrot.lane.b32.xlu0 %v1134, 104
      %v1235 = vpop.permute.xlu0 %1234
      %1236 = vrot.lane.b32.xlu0 %v1135, 104
      %v1237 = vpop.permute.xlu0 %1236
      %1238 = vrot.lane.b32.xlu0 %v1136, 104
      %v1239 = vpop.permute.xlu0 %1238
      %1240 = vrot.lane.b32.xlu0 %v1137, 104
      %v1241 = vpop.permute.xlu0 %1240
      %1242 = vrot.lane.b32.xlu0 %v1138, 104
      %v1243 = vpop.permute.xlu0 %1242
      %1244 = vrot.lane.b32.xlu0 %v1139, 104
      %v1245 = vpop.permute.xlu0 %1244
      %1246 = vrot.lane.b32.xlu0 %v1140, 104
      %v1247 = vpop.permute.xlu0 %1246
      %1248 = vrot.lane.b32.xlu0 %v1141, 104
      %v1249 = vpop.permute.xlu0 %1248
      %1250 = vrot.lane.b32.xlu0 %v1142, 104
      %v1251 = vpop.permute.xlu0 %1250
      %1252 = vrot.lane.b32.xlu0 %v1143, 104
      %v1253 = vpop.permute.xlu0 %1252
      %1254 = vrot.lane.b32.xlu0 %v1144, 104
      %v1255 = vpop.permute.xlu0 %1254
      %1256 = vrot.lane.b32.xlu0 %v1145, 104
      %v1257 = vpop.permute.xlu0 %1256
      %v1258 = vunpack.c.l.b16 %v1130
      %v1259 = vunpack.c.l.b16 %v1131
      %v1260 = vunpack.c.l.b16 %v1132
      %v1261 = vunpack.c.l.b16 %v1133
      %v1262 = vpack.c.b16 %v1259, %v1258
      %v1263 = vpack.c.b16 %v1261, %v1260
      %1264 = vrot.lane.b32.xlu0 %v1262, 96
      %v1265 = vpop.permute.xlu0 %1264
      %1266 = vrot.lane.b32.xlu0 %v1263, 96
      %v1267 = vpop.permute.xlu0 %1266
      %vm1268 = vcmask 64512
      %v1270 = vsel %vm1268, %v1262, 0
      %v1273 = vsel %vm1268, %v1263, 0
      %v1276 = vsel %vm1268, %v1265, 0
      %v1279 = vsel %vm1268, %v1267, 0
      %1281 = vmatpush.bf16.xpose.msra.mxu0 0
      %1282 = vmatpush.bf16.xpose.msra.mxu0 0
      %1283 = vmatpush.bf16.xpose.msra.mxu0 0
      %1284 = vmatpush.bf16.xpose.msra.mxu0 0
      %1285 = vmatpush.bf16.xpose.msra.mxu0 0
      %1286 = vmatpush.bf16.xpose.msra.mxu0 0
      %1287 = vmatpush.bf16.xpose.msra.mxu0 %v1279
      %1288 = vmatpush.bf16.xpose.msra.mxu0 %v1276
      %1289 = vmatmul.bf16.gmra.mxu0 %v1270
      %v1290 = vpop.f32.mrf.mxu0
      %v1291 = vadd.f32 0.0, %v1290
      %v1292 = vpop.f32.mrf.mxu0
      %v1293 = vadd.f32 0.0, %v1292
      %1294 = vmatmul.bf16.gmra.mxu0 %v1273
      %v1295 = vpop.f32.mrf.mxu0
      %v1296 = vadd.f32 0.0, %v1295
      %v1297 = vpop.f32.mrf.mxu0
      %v1298 = vadd.f32 0.0, %v1297
      %1299 = vdwg.mxu0
      %v1300 = vunpack.c.l.b16 %v1163
      %v1301 = vunpack.c.l.b16 %v1165
      %v1302 = vunpack.c.l.b16 %v1167
      %v1303 = vunpack.c.l.b16 %v1169
      %v1304 = vpack.c.b16 %v1301, %v1300
      %v1305 = vpack.c.b16 %v1303, %v1302
      %1306 = vrot.lane.b32.xlu0 %v1304, 96
      %v1307 = vpop.permute.xlu0 %1306
      %1308 = vrot.lane.b32.xlu0 %v1305, 96
      %v1309 = vpop.permute.xlu0 %1308
      %v1311 = vsel %vm1268, %v1304, 0
      %v1314 = vsel %vm1268, %v1305, 0
      %v1317 = vsel %vm1268, %v1307, 0
      %v1320 = vsel %vm1268, %v1309, 0
      %1322 = vmatpush.bf16.xpose.msra.mxu0 0
      %1323 = vmatpush.bf16.xpose.msra.mxu0 0
      %1324 = vmatpush.bf16.xpose.msra.mxu0 0
      %1325 = vmatpush.bf16.xpose.msra.mxu0 0
      %1326 = vmatpush.bf16.xpose.msra.mxu0 0
      %1327 = vmatpush.bf16.xpose.msra.mxu0 0
      %1328 = vmatpush.bf16.xpose.msra.mxu0 %v1320
      %1329 = vmatpush.bf16.xpose.msra.mxu0 %v1317
      %1330 = vmatmul.bf16.gmra.mxu0 %v1311
      %v1331 = vpop.f32.mrf.mxu0
      %v1332 = vadd.f32 0.0, %v1331
      %v1333 = vpop.f32.mrf.mxu0
      %v1334 = vadd.f32 0.0, %v1333
      %1335 = vmatmul.bf16.gmra.mxu0 %v1314
      %v1336 = vpop.f32.mrf.mxu0
      %v1337 = vadd.f32 0.0, %v1336
      %v1338 = vpop.f32.mrf.mxu0
      %v1339 = vadd.f32 0.0, %v1338
      %1340 = vdwg.mxu0
      %v1341 = vunpack.c.l.b16 %v1195
      %v1342 = vunpack.c.l.b16 %v1197
      %v1343 = vunpack.c.l.b16 %v1199
      %v1344 = vunpack.c.l.b16 %v1201
      %v1345 = vpack.c.b16 %v1342, %v1341
      %v1346 = vpack.c.b16 %v1344, %v1343
      %1347 = vrot.lane.b32.xlu0 %v1345, 96
      %v1348 = vpop.permute.xlu0 %1347
      %1349 = vrot.lane.b32.xlu0 %v1346, 96
      %v1350 = vpop.permute.xlu0 %1349
      %v1352 = vsel %vm1268, %v1345, 0
      %v1355 = vsel %vm1268, %v1346, 0
      %v1358 = vsel %vm1268, %v1348, 0
      %v1361 = vsel %vm1268, %v1350, 0
      %1363 = vmatpush.bf16.xpose.msra.mxu0 0
      %1364 = vmatpush.bf16.xpose.msra.mxu0 0
      %1365 = vmatpush.bf16.xpose.msra.mxu0 0
      %1366 = vmatpush.bf16.xpose.msra.mxu0 0
      %1367 = vmatpush.bf16.xpose.msra.mxu0 0
      %1368 = vmatpush.bf16.xpose.msra.mxu0 0
      %1369 = vmatpush.bf16.xpose.msra.mxu0 %v1361
      %1370 = vmatpush.bf16.xpose.msra.mxu0 %v1358
      %1371 = vmatmul.bf16.gmra.mxu0 %v1352
      %v1372 = vpop.f32.mrf.mxu0
      %v1373 = vadd.f32 0.0, %v1372
      %v1374 = vpop.f32.mrf.mxu0
      %v1375 = vadd.f32 0.0, %v1374
      %1376 = vmatmul.bf16.gmra.mxu0 %v1355
      %v1377 = vpop.f32.mrf.mxu0
      %v1378 = vadd.f32 0.0, %v1377
      %v1379 = vpop.f32.mrf.mxu0
      %v1380 = vadd.f32 0.0, %v1379
      %1381 = vdwg.mxu0
      %v1382 = vunpack.c.l.b16 %v1227
      %v1383 = vunpack.c.l.b16 %v1229
      %v1384 = vunpack.c.l.b16 %v1231
      %v1385 = vunpack.c.l.b16 %v1233
      %v1386 = vpack.c.b16 %v1383, %v1382
      %v1387 = vpack.c.b16 %v1385, %v1384
      %1388 = vrot.lane.b32.xlu0 %v1386, 96
      %v1389 = vpop.permute.xlu0 %1388
      %1390 = vrot.lane.b32.xlu0 %v1387, 96
      %v1391 = vpop.permute.xlu0 %1390
      %v1393 = vsel %vm1268, %v1386, 0
      %v1396 = vsel %vm1268, %v1387, 0
      %v1399 = vsel %vm1268, %v1389, 0
      %v1402 = vsel %vm1268, %v1391, 0
      %1404 = vmatpush.bf16.xpose.msra.mxu0 0
      %1405 = vmatpush.bf16.xpose.msra.mxu0 0
      %1406 = vmatpush.bf16.xpose.msra.mxu0 0
      %1407 = vmatpush.bf16.xpose.msra.mxu0 0
      %1408 = vmatpush.bf16.xpose.msra.mxu0 0
      %1409 = vmatpush.bf16.xpose.msra.mxu0 0
      %1410 = vmatpush.bf16.xpose.msra.mxu0 %v1402
      %1411 = vmatpush.bf16.xpose.msra.mxu0 %v1399
      %1412 = vmatmul.bf16.gmra.mxu0 %v1393
      %v1413 = vpop.f32.mrf.mxu0
      %v1414 = vadd.f32 0.0, %v1413
      %v1415 = vpop.f32.mrf.mxu0
      %v1416 = vadd.f32 0.0, %v1415
      %1417 = vmatmul.bf16.gmra.mxu0 %v1396
      %v1418 = vpop.f32.mrf.mxu0
      %v1419 = vadd.f32 0.0, %v1418
      %v1420 = vpop.f32.mrf.mxu0
      %v1421 = vadd.f32 0.0, %v1420
      %1422 = vdwg.mxu0
      %v1423 = vunpack.c.l.b16 %v1134
      %v1424 = vunpack.c.l.b16 %v1135
      %v1425 = vunpack.c.l.b16 %v1136
      %v1426 = vunpack.c.l.b16 %v1137
      %v1427 = vpack.c.b16 %v1424, %v1423
      %v1428 = vpack.c.b16 %v1426, %v1425
      %1429 = vrot.lane.b32.xlu0 %v1427, 96
      %v1430 = vpop.permute.xlu0 %1429
      %1431 = vrot.lane.b32.xlu0 %v1428, 96
      %v1432 = vpop.permute.xlu0 %1431
      %v1434 = vsel %vm1268, %v1427, 0
      %v1437 = vsel %vm1268, %v1428, 0
      %v1440 = vsel %vm1268, %v1430, 0
      %v1443 = vsel %vm1268, %v1432, 0
      %1445 = vmatpush.bf16.xpose.msra.mxu0 0
      %1446 = vmatpush.bf16.xpose.msra.mxu0 0
      %1447 = vmatpush.bf16.xpose.msra.mxu0 0
      %1448 = vmatpush.bf16.xpose.msra.mxu0 0
      %1449 = vmatpush.bf16.xpose.msra.mxu0 0
      %1450 = vmatpush.bf16.xpose.msra.mxu0 0
      %1451 = vmatpush.bf16.xpose.msra.mxu0 %v1443
      %1452 = vmatpush.bf16.xpose.msra.mxu0 %v1440
      %1453 = vmatmul.bf16.gmra.mxu0 %v1434
      %v1454 = vpop.f32.mrf.mxu0
      %v1455 = vadd.f32 0.0, %v1454
      %v1456 = vpop.f32.mrf.mxu0
      %v1457 = vadd.f32 0.0, %v1456
      %1458 = vmatmul.bf16.gmra.mxu0 %v1437
      %v1459 = vpop.f32.mrf.mxu0
      %v1460 = vadd.f32 0.0, %v1459
      %v1461 = vpop.f32.mrf.mxu0
      %v1462 = vadd.f32 0.0, %v1461
      %1463 = vdwg.mxu0
      %v1464 = vunpack.c.l.b16 %v1171
      %v1465 = vunpack.c.l.b16 %v1173
      %v1466 = vunpack.c.l.b16 %v1175
      %v1467 = vunpack.c.l.b16 %v1177
      %v1468 = vpack.c.b16 %v1465, %v1464
      %v1469 = vpack.c.b16 %v1467, %v1466
      %1470 = vrot.lane.b32.xlu0 %v1468, 96
      %v1471 = vpop.permute.xlu0 %1470
      %1472 = vrot.lane.b32.xlu0 %v1469, 96
      %v1473 = vpop.permute.xlu0 %1472
      %v1475 = vsel %vm1268, %v1468, 0
      %v1478 = vsel %vm1268, %v1469, 0
      %v1481 = vsel %vm1268, %v1471, 0
      %v1484 = vsel %vm1268, %v1473, 0
      %1486 = vmatpush.bf16.xpose.msra.mxu0 0
      %1487 = vmatpush.bf16.xpose.msra.mxu0 0
      %1488 = vmatpush.bf16.xpose.msra.mxu0 0
      %1489 = vmatpush.bf16.xpose.msra.mxu0 0
      %1490 = vmatpush.bf16.xpose.msra.mxu0 0
      %1491 = vmatpush.bf16.xpose.msra.mxu0 0
      %1492 = vmatpush.bf16.xpose.msra.mxu0 %v1484
      %1493 = vmatpush.bf16.xpose.msra.mxu0 %v1481
      %1494 = vmatmul.bf16.gmra.mxu0 %v1475
      %v1495 = vpop.f32.mrf.mxu0
      %v1496 = vadd.f32 0.0, %v1495
      %v1497 = vpop.f32.mrf.mxu0
      %v1498 = vadd.f32 0.0, %v1497
      %1499 = vmatmul.bf16.gmra.mxu0 %v1478
      %v1500 = vpop.f32.mrf.mxu0
      %v1501 = vadd.f32 0.0, %v1500
      %v1502 = vpop.f32.mrf.mxu0
      %v1503 = vadd.f32 0.0, %v1502
      %1504 = vdwg.mxu0
      %v1505 = vunpack.c.l.b16 %v1203
      %v1506 = vunpack.c.l.b16 %v1205
      %v1507 = vunpack.c.l.b16 %v1207
      %v1508 = vunpack.c.l.b16 %v1209
      %v1509 = vpack.c.b16 %v1506, %v1505
      %v1510 = vpack.c.b16 %v1508, %v1507
      %1511 = vrot.lane.b32.xlu0 %v1509, 96
      %v1512 = vpop.permute.xlu0 %1511
      %1513 = vrot.lane.b32.xlu0 %v1510, 96
      %v1514 = vpop.permute.xlu0 %1513
      %v1516 = vsel %vm1268, %v1509, 0
      %v1519 = vsel %vm1268, %v1510, 0
      %v1522 = vsel %vm1268, %v1512, 0
      %v1525 = vsel %vm1268, %v1514, 0
      %1527 = vmatpush.bf16.xpose.msra.mxu0 0
      %1528 = vmatpush.bf16.xpose.msra.mxu0 0
      %1529 = vmatpush.bf16.xpose.msra.mxu0 0
      %1530 = vmatpush.bf16.xpose.msra.mxu0 0
      %1531 = vmatpush.bf16.xpose.msra.mxu0 0
      %1532 = vmatpush.bf16.xpose.msra.mxu0 0
      %1533 = vmatpush.bf16.xpose.msra.mxu0 %v1525
      %1534 = vmatpush.bf16.xpose.msra.mxu0 %v1522
      %1535 = vmatmul.bf16.gmra.mxu0 %v1516
      %v1536 = vpop.f32.mrf.mxu0
      %v1537 = vadd.f32 0.0, %v1536
      %v1538 = vpop.f32.mrf.mxu0
      %v1539 = vadd.f32 0.0, %v1538
      %1540 = vmatmul.bf16.gmra.mxu0 %v1519
      %v1541 = vpop.f32.mrf.mxu0
      %v1542 = vadd.f32 0.0, %v1541
      %v1543 = vpop.f32.mrf.mxu0
      %v1544 = vadd.f32 0.0, %v1543
      %1545 = vdwg.mxu0
      %v1546 = vunpack.c.l.b16 %v1235
      %v1547 = vunpack.c.l.b16 %v1237
      %v1548 = vunpack.c.l.b16 %v1239
      %v1549 = vunpack.c.l.b16 %v1241
      %v1550 = vpack.c.b16 %v1547, %v1546
      %v1551 = vpack.c.b16 %v1549, %v1548
      %1552 = vrot.lane.b32.xlu0 %v1550, 96
      %v1553 = vpop.permute.xlu0 %1552
      %1554 = vrot.lane.b32.xlu0 %v1551, 96
      %v1555 = vpop.permute.xlu0 %1554
      %v1557 = vsel %vm1268, %v1550, 0
      %v1560 = vsel %vm1268, %v1551, 0
      %v1563 = vsel %vm1268, %v1553, 0
      %v1566 = vsel %vm1268, %v1555, 0
      %1568 = vmatpush.bf16.xpose.msra.mxu0 0
      %1569 = vmatpush.bf16.xpose.msra.mxu0 0
      %1570 = vmatpush.bf16.xpose.msra.mxu0 0
      %1571 = vmatpush.bf16.xpose.msra.mxu0 0
      %1572 = vmatpush.bf16.xpose.msra.mxu0 0
      %1573 = vmatpush.bf16.xpose.msra.mxu0 0
      %1574 = vmatpush.bf16.xpose.msra.mxu0 %v1566
      %1575 = vmatpush.bf16.xpose.msra.mxu0 %v1563
      %1576 = vmatmul.bf16.gmra.mxu0 %v1557
      %v1577 = vpop.f32.mrf.mxu0
      %v1578 = vadd.f32 0.0, %v1577
      %v1579 = vpop.f32.mrf.mxu0
      %v1580 = vadd.f32 0.0, %v1579
      %1581 = vmatmul.bf16.gmra.mxu0 %v1560
      %v1582 = vpop.f32.mrf.mxu0
      %v1583 = vadd.f32 0.0, %v1582
      %v1584 = vpop.f32.mrf.mxu0
      %v1585 = vadd.f32 0.0, %v1584
      %1586 = vdwg.mxu0
      %v1587 = vunpack.c.l.b16 %v1138
      %v1588 = vunpack.c.l.b16 %v1139
      %v1589 = vunpack.c.l.b16 %v1140
      %v1590 = vunpack.c.l.b16 %v1141
      %v1591 = vpack.c.b16 %v1588, %v1587
      %v1592 = vpack.c.b16 %v1590, %v1589
      %1593 = vrot.lane.b32.xlu0 %v1591, 96
      %v1594 = vpop.permute.xlu0 %1593
      %1595 = vrot.lane.b32.xlu0 %v1592, 96
      %v1596 = vpop.permute.xlu0 %1595
      %v1598 = vsel %vm1268, %v1591, 0
      %v1601 = vsel %vm1268, %v1592, 0
      %v1604 = vsel %vm1268, %v1594, 0
      %v1607 = vsel %vm1268, %v1596, 0
      %1609 = vmatpush.bf16.xpose.msra.mxu0 0
      %1610 = vmatpush.bf16.xpose.msra.mxu0 0
      %1611 = vmatpush.bf16.xpose.msra.mxu0 0
      %1612 = vmatpush.bf16.xpose.msra.mxu0 0
      %1613 = vmatpush.bf16.xpose.msra.mxu0 0
      %1614 = vmatpush.bf16.xpose.msra.mxu0 0
      %1615 = vmatpush.bf16.xpose.msra.mxu0 %v1607
      %1616 = vmatpush.bf16.xpose.msra.mxu0 %v1604
      %1617 = vmatmul.bf16.gmra.mxu0 %v1598
      %v1618 = vpop.f32.mrf.mxu0
      %v1619 = vadd.f32 0.0, %v1618
      %v1620 = vpop.f32.mrf.mxu0
      %v1621 = vadd.f32 0.0, %v1620
      %1622 = vmatmul.bf16.gmra.mxu0 %v1601
      %v1623 = vpop.f32.mrf.mxu0
      %v1624 = vadd.f32 0.0, %v1623
      %v1625 = vpop.f32.mrf.mxu0
      %v1626 = vadd.f32 0.0, %v1625
      %1627 = vdwg.mxu0
      %v1628 = vunpack.c.l.b16 %v1179
      %v1629 = vunpack.c.l.b16 %v1181
      %v1630 = vunpack.c.l.b16 %v1183
      %v1631 = vunpack.c.l.b16 %v1185
      %v1632 = vpack.c.b16 %v1629, %v1628
      %v1633 = vpack.c.b16 %v1631, %v1630
      %1634 = vrot.lane.b32.xlu0 %v1632, 96
      %v1635 = vpop.permute.xlu0 %1634
      %1636 = vrot.lane.b32.xlu0 %v1633, 96
      %v1637 = vpop.permute.xlu0 %1636
      %v1639 = vsel %vm1268, %v1632, 0
      %v1642 = vsel %vm1268, %v1633, 0
      %v1645 = vsel %vm1268, %v1635, 0
      %v1648 = vsel %vm1268, %v1637, 0
      %1650 = vmatpush.bf16.xpose.msra.mxu0 0
      %1651 = vmatpush.bf16.xpose.msra.mxu0 0
      %1652 = vmatpush.bf16.xpose.msra.mxu0 0
      %1653 = vmatpush.bf16.xpose.msra.mxu0 0
      %1654 = vmatpush.bf16.xpose.msra.mxu0 0
      %1655 = vmatpush.bf16.xpose.msra.mxu0 0
      %1656 = vmatpush.bf16.xpose.msra.mxu0 %v1648
      %1657 = vmatpush.bf16.xpose.msra.mxu0 %v1645
      %1658 = vmatmul.bf16.gmra.mxu0 %v1639
      %v1659 = vpop.f32.mrf.mxu0
      %v1660 = vadd.f32 0.0, %v1659
      %v1661 = vpop.f32.mrf.mxu0
      %v1662 = vadd.f32 0.0, %v1661
      %1663 = vmatmul.bf16.gmra.mxu0 %v1642
      %v1664 = vpop.f32.mrf.mxu0
      %v1665 = vadd.f32 0.0, %v1664
      %v1666 = vpop.f32.mrf.mxu0
      %v1667 = vadd.f32 0.0, %v1666
      %1668 = vdwg.mxu0
      %v1669 = vunpack.c.l.b16 %v1211
      %v1670 = vunpack.c.l.b16 %v1213
      %v1671 = vunpack.c.l.b16 %v1215
      %v1672 = vunpack.c.l.b16 %v1217
      %v1673 = vpack.c.b16 %v1670, %v1669
      %v1674 = vpack.c.b16 %v1672, %v1671
      %1675 = vrot.lane.b32.xlu0 %v1673, 96
      %v1676 = vpop.permute.xlu0 %1675
      %1677 = vrot.lane.b32.xlu0 %v1674, 96
      %v1678 = vpop.permute.xlu0 %1677
      %v1680 = vsel %vm1268, %v1673, 0
      %v1683 = vsel %vm1268, %v1674, 0
      %v1686 = vsel %vm1268, %v1676, 0
      %v1689 = vsel %vm1268, %v1678, 0
      %1691 = vmatpush.bf16.xpose.msra.mxu0 0
      %1692 = vmatpush.bf16.xpose.msra.mxu0 0
      %1693 = vmatpush.bf16.xpose.msra.mxu0 0
      %1694 = vmatpush.bf16.xpose.msra.mxu0 0
      %1695 = vmatpush.bf16.xpose.msra.mxu0 0
      %1696 = vmatpush.bf16.xpose.msra.mxu0 0
      %1697 = vmatpush.bf16.xpose.msra.mxu0 %v1689
      %1698 = vmatpush.bf16.xpose.msra.mxu0 %v1686
      %1699 = vmatmul.bf16.gmra.mxu0 %v1680
      %v1700 = vpop.f32.mrf.mxu0
      %v1701 = vadd.f32 0.0, %v1700
      %v1702 = vpop.f32.mrf.mxu0
      %v1703 = vadd.f32 0.0, %v1702
      %1704 = vmatmul.bf16.gmra.mxu0 %v1683
      %v1705 = vpop.f32.mrf.mxu0
      %v1706 = vadd.f32 0.0, %v1705
      %v1707 = vpop.f32.mrf.mxu0
      %v1708 = vadd.f32 0.0, %v1707
      %1709 = vdwg.mxu0
      %v1710 = vunpack.c.l.b16 %v1243
      %v1711 = vunpack.c.l.b16 %v1245
      %v1712 = vunpack.c.l.b16 %v1247
      %v1713 = vunpack.c.l.b16 %v1249
      %v1714 = vpack.c.b16 %v1711, %v1710
      %v1715 = vpack.c.b16 %v1713, %v1712
      %1716 = vrot.lane.b32.xlu0 %v1714, 96
      %v1717 = vpop.permute.xlu0 %1716
      %1718 = vrot.lane.b32.xlu0 %v1715, 96
      %v1719 = vpop.permute.xlu0 %1718
      %v1721 = vsel %vm1268, %v1714, 0
      %v1724 = vsel %vm1268, %v1715, 0
      %v1727 = vsel %vm1268, %v1717, 0
      %v1730 = vsel %vm1268, %v1719, 0
      %1732 = vmatpush.bf16.xpose.msra.mxu0 0
      %1733 = vmatpush.bf16.xpose.msra.mxu0 0
      %1734 = vmatpush.bf16.xpose.msra.mxu0 0
      %1735 = vmatpush.bf16.xpose.msra.mxu0 0
      %1736 = vmatpush.bf16.xpose.msra.mxu0 0
      %1737 = vmatpush.bf16.xpose.msra.mxu0 0
      %1738 = vmatpush.bf16.xpose.msra.mxu0 %v1730
      %1739 = vmatpush.bf16.xpose.msra.mxu0 %v1727
      %1740 = vmatmul.bf16.gmra.mxu0 %v1721
      %v1741 = vpop.f32.mrf.mxu0
      %v1742 = vadd.f32 0.0, %v1741
      %v1743 = vpop.f32.mrf.mxu0
      %v1744 = vadd.f32 0.0, %v1743
      %1745 = vmatmul.bf16.gmra.mxu0 %v1724
      %v1746 = vpop.f32.mrf.mxu0
      %v1747 = vadd.f32 0.0, %v1746
      %v1748 = vpop.f32.mrf.mxu0
      %v1749 = vadd.f32 0.0, %v1748
      %1750 = vdwg.mxu0
      %v1751 = vunpack.c.l.b16 %v1142
      %v1752 = vunpack.c.l.b16 %v1143
      %v1753 = vunpack.c.l.b16 %v1144
      %v1754 = vunpack.c.l.b16 %v1145
      %v1755 = vpack.c.b16 %v1752, %v1751
      %v1756 = vpack.c.b16 %v1754, %v1753
      %1757 = vrot.lane.b32.xlu0 %v1755, 96
      %v1758 = vpop.permute.xlu0 %1757
      %1759 = vrot.lane.b32.xlu0 %v1756, 96
      %v1760 = vpop.permute.xlu0 %1759
      %v1762 = vsel %vm1268, %v1755, 0
      %v1765 = vsel %vm1268, %v1756, 0
      %v1768 = vsel %vm1268, %v1758, 0
      %v1771 = vsel %vm1268, %v1760, 0
      %1773 = vmatpush.bf16.xpose.msra.mxu0 0
      %1774 = vmatpush.bf16.xpose.msra.mxu0 0
      %1775 = vmatpush.bf16.xpose.msra.mxu0 0
      %1776 = vmatpush.bf16.xpose.msra.mxu0 0
      %1777 = vmatpush.bf16.xpose.msra.mxu0 0
      %1778 = vmatpush.bf16.xpose.msra.mxu0 0
      %1779 = vmatpush.bf16.xpose.msra.mxu0 %v1771
      %1780 = vmatpush.bf16.xpose.msra.mxu0 %v1768
      %1781 = vmatmul.bf16.gmra.mxu0 %v1762
      %v1782 = vpop.f32.mrf.mxu0
      %v1783 = vadd.f32 0.0, %v1782
      %v1784 = vpop.f32.mrf.mxu0
      %v1785 = vadd.f32 0.0, %v1784
      %1786 = vmatmul.bf16.gmra.mxu0 %v1765
      %v1787 = vpop.f32.mrf.mxu0
      %v1788 = vadd.f32 0.0, %v1787
      %v1789 = vpop.f32.mrf.mxu0
      %v1790 = vadd.f32 0.0, %v1789
      %1791 = vdwg.mxu0
      %v1792 = vunpack.c.l.b16 %v1187
      %v1793 = vunpack.c.l.b16 %v1189
      %v1794 = vunpack.c.l.b16 %v1191
      %v1795 = vunpack.c.l.b16 %v1193
      %v1796 = vpack.c.b16 %v1793, %v1792
      %v1797 = vpack.c.b16 %v1795, %v1794
      %1798 = vrot.lane.b32.xlu0 %v1796, 96
      %v1799 = vpop.permute.xlu0 %1798
      %1800 = vrot.lane.b32.xlu0 %v1797, 96
      %v1801 = vpop.permute.xlu0 %1800
      %v1803 = vsel %vm1268, %v1796, 0
      %v1806 = vsel %vm1268, %v1797, 0
      %v1809 = vsel %vm1268, %v1799, 0
      %v1812 = vsel %vm1268, %v1801, 0
      %1814 = vmatpush.bf16.xpose.msra.mxu0 0
      %1815 = vmatpush.bf16.xpose.msra.mxu0 0
      %1816 = vmatpush.bf16.xpose.msra.mxu0 0
      %1817 = vmatpush.bf16.xpose.msra.mxu0 0
      %1818 = vmatpush.bf16.xpose.msra.mxu0 0
      %1819 = vmatpush.bf16.xpose.msra.mxu0 0
      %1820 = vmatpush.bf16.xpose.msra.mxu0 %v1812
      %1821 = vmatpush.bf16.xpose.msra.mxu0 %v1809
      %1822 = vmatmul.bf16.gmra.mxu0 %v1803
      %v1823 = vpop.f32.mrf.mxu0
      %v1824 = vadd.f32 0.0, %v1823
      %v1825 = vpop.f32.mrf.mxu0
      %v1826 = vadd.f32 0.0, %v1825
      %1827 = vmatmul.bf16.gmra.mxu0 %v1806
      %v1828 = vpop.f32.mrf.mxu0
      %v1829 = vadd.f32 0.0, %v1828
      %v1830 = vpop.f32.mrf.mxu0
      %v1831 = vadd.f32 0.0, %v1830
      %1832 = vdwg.mxu0
      %v1833 = vunpack.c.l.b16 %v1219
      %v1834 = vunpack.c.l.b16 %v1221
      %v1835 = vunpack.c.l.b16 %v1223
      %v1836 = vunpack.c.l.b16 %v1225
      %v1837 = vpack.c.b16 %v1834, %v1833
      %v1838 = vpack.c.b16 %v1836, %v1835
      %1839 = vrot.lane.b32.xlu0 %v1837, 96
      %v1840 = vpop.permute.xlu0 %1839
      %1841 = vrot.lane.b32.xlu0 %v1838, 96
      %v1842 = vpop.permute.xlu0 %1841
      %v1844 = vsel %vm1268, %v1837, 0
      %v1847 = vsel %vm1268, %v1838, 0
      %v1850 = vsel %vm1268, %v1840, 0
      %v1853 = vsel %vm1268, %v1842, 0
      %1855 = vmatpush.bf16.xpose.msra.mxu0 0
      %1856 = vmatpush.bf16.xpose.msra.mxu0 0
      %1857 = vmatpush.bf16.xpose.msra.mxu0 0
      %1858 = vmatpush.bf16.xpose.msra.mxu0 0
      %1859 = vmatpush.bf16.xpose.msra.mxu0 0
      %1860 = vmatpush.bf16.xpose.msra.mxu0 0
      %1861 = vmatpush.bf16.xpose.msra.mxu0 %v1853
      %1862 = vmatpush.bf16.xpose.msra.mxu0 %v1850
      %1863 = vmatmul.bf16.gmra.mxu0 %v1844
      %v1864 = vpop.f32.mrf.mxu0
      %v1865 = vadd.f32 0.0, %v1864
      %v1866 = vpop.f32.mrf.mxu0
      %v1867 = vadd.f32 0.0, %v1866
      %1868 = vmatmul.bf16.gmra.mxu0 %v1847
      %v1869 = vpop.f32.mrf.mxu0
      %v1870 = vadd.f32 0.0, %v1869
      %v1871 = vpop.f32.mrf.mxu0
      %v1872 = vadd.f32 0.0, %v1871
      %1873 = vdwg.mxu0
      %v1874 = vunpack.c.l.b16 %v1251
      %v1875 = vunpack.c.l.b16 %v1253
      %v1876 = vunpack.c.l.b16 %v1255
      %v1877 = vunpack.c.l.b16 %v1257
      %v1878 = vpack.c.b16 %v1875, %v1874
      %v1879 = vpack.c.b16 %v1877, %v1876
      %1880 = vrot.lane.b32.xlu0 %v1878, 96
      %v1881 = vpop.permute.xlu0 %1880
      %1882 = vrot.lane.b32.xlu0 %v1879, 96
      %v1883 = vpop.permute.xlu0 %1882
      %v1885 = vsel %vm1268, %v1878, 0
      %v1888 = vsel %vm1268, %v1879, 0
      %v1891 = vsel %vm1268, %v1881, 0
      %v1894 = vsel %vm1268, %v1883, 0
      %1896 = vmatpush.bf16.xpose.msra.mxu0 0
      %1897 = vmatpush.bf16.xpose.msra.mxu0 0
      %1898 = vmatpush.bf16.xpose.msra.mxu0 0
      %1899 = vmatpush.bf16.xpose.msra.mxu0 0
      %1900 = vmatpush.bf16.xpose.msra.mxu0 0
      %1901 = vmatpush.bf16.xpose.msra.mxu0 0
      %1902 = vmatpush.bf16.xpose.msra.mxu0 %v1894
      %1903 = vmatpush.bf16.xpose.msra.mxu0 %v1891
      %1904 = vmatmul.bf16.gmra.mxu0 %v1885
      %v1905 = vpop.f32.mrf.mxu0
      %v1906 = vadd.f32 0.0, %v1905
      %v1907 = vpop.f32.mrf.mxu0
      %v1908 = vadd.f32 0.0, %v1907
      %1909 = vmatmul.bf16.gmra.mxu0 %v1888
      %v1910 = vpop.f32.mrf.mxu0
      %v1911 = vadd.f32 0.0, %v1910
      %v1912 = vpop.f32.mrf.mxu0
      %v1913 = vadd.f32 0.0, %v1912
      %1914 = vdwg.mxu0
      %v1915 = vld [vmem:[%s6] sm:$0xf]
      %v1916 = vld [vmem:[%s6 + $0x4] sm:$0xf]
      %v1917 = vld [vmem:[%s6 + $0x8] sm:$0xf]
      %v1918 = vld [vmem:[%s6 + $0xc] sm:$0xf]
      %v1919 = vld [vmem:[%s6 + $0x10] sm:$0xf]
      %v1920 = vld [vmem:[%s6 + $0x14] sm:$0xf]
      %v1921 = vld [vmem:[%s6 + $0x18] sm:$0xf]
      %v1922 = vld [vmem:[%s6 + $0x1c] sm:$0xf]
      %v1923 = vld [vmem:[%s6 + $0x20] sm:$0xf]
      %v1924 = vld [vmem:[%s6 + $0x24] sm:$0xf]
      %v1925 = vld [vmem:[%s6 + $0x28] sm:$0xf]
      %v1926 = vld [vmem:[%s6 + $0x2c] sm:$0xf]
      %v1927 = vld [vmem:[%s6 + $0x30] sm:$0xf]
      %v1928 = vld [vmem:[%s6 + $0x34] sm:$0xf]
      %v1929 = vld [vmem:[%s6 + $0x38] sm:$0xf]
      %v1930 = vld [vmem:[%s6 + $0x3c] sm:$0xf]
      %v1931 = vunpack.c.l.bf16 %v1915
      %v1932 = vunpack.c.l.bf16 %v1916
      %v1933 = vunpack.c.l.bf16 %v1917
      %v1934 = vunpack.c.l.bf16 %v1918
      %v1935 = vunpack.c.l.bf16 %v1919
      %v1936 = vunpack.c.l.bf16 %v1920
      %v1937 = vunpack.c.l.bf16 %v1921
      %v1938 = vunpack.c.l.bf16 %v1922
      %v1939 = vunpack.c.l.bf16 %v1923
      %v1940 = vunpack.c.l.bf16 %v1924
      %v1941 = vunpack.c.l.bf16 %v1925
      %v1942 = vunpack.c.l.bf16 %v1926
      %v1943 = vunpack.c.l.bf16 %v1927
      %v1944 = vunpack.c.l.bf16 %v1928
      %v1945 = vunpack.c.l.bf16 %v1929
      %v1946 = vunpack.c.l.bf16 %v1930
      %v1947 = vld [vmem:[%s591] sm:$0xf]
      %v1948 = vld [vmem:[%s591 + $0x4] sm:$0xf]
      %v1949 = vld [vmem:[%s591 + $0x8] sm:$0xf]
      %v1950 = vld [vmem:[%s591 + $0xc] sm:$0xf]
      %v1951 = vld [vmem:[%s591 + $0x10] sm:$0xf]
      %v1952 = vld [vmem:[%s591 + $0x14] sm:$0xf]
      %v1953 = vld [vmem:[%s591 + $0x18] sm:$0xf]
      %v1954 = vld [vmem:[%s591 + $0x1c] sm:$0xf]
      %v1955 = vld [vmem:[%s591 + $0x20] sm:$0xf]
      %v1956 = vld [vmem:[%s591 + $0x24] sm:$0xf]
      %v1957 = vld [vmem:[%s591 + $0x28] sm:$0xf]
      %v1958 = vld [vmem:[%s591 + $0x2c] sm:$0xf]
      %v1959 = vld [vmem:[%s591 + $0x30] sm:$0xf]
      %v1960 = vld [vmem:[%s591 + $0x34] sm:$0xf]
      %v1961 = vld [vmem:[%s591 + $0x38] sm:$0xf]
      %v1962 = vld [vmem:[%s591 + $0x3c] sm:$0xf]
      %v1963 = vunpack.c.l.bf16 %v1947
      %v1964 = vunpack.c.l.bf16 %v1948
      %v1965 = vunpack.c.l.bf16 %v1949
      %v1966 = vunpack.c.l.bf16 %v1950
      %v1967 = vunpack.c.l.bf16 %v1951
      %v1968 = vunpack.c.l.bf16 %v1952
      %v1969 = vunpack.c.l.bf16 %v1953
      %v1970 = vunpack.c.l.bf16 %v1954
      %v1971 = vunpack.c.l.bf16 %v1955
      %v1972 = vunpack.c.l.bf16 %v1956
      %v1973 = vunpack.c.l.bf16 %v1957
      %v1974 = vunpack.c.l.bf16 %v1958
      %v1975 = vunpack.c.l.bf16 %v1959
      %v1976 = vunpack.c.l.bf16 %v1960
      %v1977 = vunpack.c.l.bf16 %v1961
      %v1978 = vunpack.c.l.bf16 %v1962
      %v1979 = vadd.f32 %v1931, %v1963
      %v1980 = vadd.f32 %v1932, %v1964
      %v1981 = vadd.f32 %v1933, %v1965
      %v1982 = vadd.f32 %v1934, %v1966
      %v1983 = vadd.f32 %v1935, %v1963
      %v1984 = vadd.f32 %v1936, %v1964
      %v1985 = vadd.f32 %v1937, %v1965
      %v1986 = vadd.f32 %v1938, %v1966
      %v1987 = vadd.f32 %v1939, %v1963
      %v1988 = vadd.f32 %v1940, %v1964
      %v1989 = vadd.f32 %v1941, %v1965
      %v1990 = vadd.f32 %v1942, %v1966
      %v1991 = vadd.f32 %v1943, %v1963
      %v1992 = vadd.f32 %v1944, %v1964
      %v1993 = vadd.f32 %v1945, %v1965
      %v1994 = vadd.f32 %v1946, %v1966
      %v1995 = vadd.f32 %v1931, %v1967
      %v1996 = vadd.f32 %v1932, %v1968
      %v1997 = vadd.f32 %v1933, %v1969
      %v1998 = vadd.f32 %v1934, %v1970
      %v1999 = vadd.f32 %v1935, %v1967
      %v2000 = vadd.f32 %v1936, %v1968
      %v2001 = vadd.f32 %v1937, %v1969
      %v2002 = vadd.f32 %v1938, %v1970
      %v2003 = vadd.f32 %v1939, %v1967
      %v2004 = vadd.f32 %v1940, %v1968
      %v2005 = vadd.f32 %v1941, %v1969
      %v2006 = vadd.f32 %v1942, %v1970
      %v2007 = vadd.f32 %v1943, %v1967
      %v2008 = vadd.f32 %v1944, %v1968
      %v2009 = vadd.f32 %v1945, %v1969
      %v2010 = vadd.f32 %v1946, %v1970
      %v2011 = vadd.f32 %v1931, %v1971
      %v2012 = vadd.f32 %v1932, %v1972
      %v2013 = vadd.f32 %v1933, %v1973
      %v2014 = vadd.f32 %v1934, %v1974
      %v2015 = vadd.f32 %v1935, %v1971
      %v2016 = vadd.f32 %v1936, %v1972
      %v2017 = vadd.f32 %v1937, %v1973
      %v2018 = vadd.f32 %v1938, %v1974
      %v2019 = vadd.f32 %v1939, %v1971
      %v2020 = vadd.f32 %v1940, %v1972
      %v2021 = vadd.f32 %v1941, %v1973
      %v2022 = vadd.f32 %v1942, %v1974
      %v2023 = vadd.f32 %v1943, %v1971
      %v2024 = vadd.f32 %v1944, %v1972
      %v2025 = vadd.f32 %v1945, %v1973
      %v2026 = vadd.f32 %v1946, %v1974
      %v2027 = vadd.f32 %v1931, %v1975
      %v2028 = vadd.f32 %v1932, %v1976
      %v2029 = vadd.f32 %v1933, %v1977
      %v2030 = vadd.f32 %v1934, %v1978
      %v2031 = vadd.f32 %v1935, %v1975
      %v2032 = vadd.f32 %v1936, %v1976
      %v2033 = vadd.f32 %v1937, %v1977
      %v2034 = vadd.f32 %v1938, %v1978
      %v2035 = vadd.f32 %v1939, %v1975
      %v2036 = vadd.f32 %v1940, %v1976
      %v2037 = vadd.f32 %v1941, %v1977
      %v2038 = vadd.f32 %v1942, %v1978
      %v2039 = vadd.f32 %v1943, %v1975
      %v2040 = vadd.f32 %v1944, %v1976
      %v2041 = vadd.f32 %v1945, %v1977
      %v2042 = vadd.f32 %v1946, %v1978
      %v2043 = vadd.f32 %v1291, %v1979
      %v2044 = vadd.f32 %v1293, %v1980
      %v2045 = vadd.f32 %v1296, %v1981
      %v2046 = vadd.f32 %v1298, %v1982
      %v2047 = vadd.f32 %v1332, %v1983
      %v2048 = vadd.f32 %v1334, %v1984
      %v2049 = vadd.f32 %v1337, %v1985
      %v2050 = vadd.f32 %v1339, %v1986
      %v2051 = vadd.f32 %v1373, %v1987
      %v2052 = vadd.f32 %v1375, %v1988
      %v2053 = vadd.f32 %v1378, %v1989
      %v2054 = vadd.f32 %v1380, %v1990
      %v2055 = vadd.f32 %v1414, %v1991
      %v2056 = vadd.f32 %v1416, %v1992
      %v2057 = vadd.f32 %v1419, %v1993
      %v2058 = vadd.f32 %v1421, %v1994
      %v2059 = vadd.f32 %v1455, %v1995
      %v2060 = vadd.f32 %v1457, %v1996
      %v2061 = vadd.f32 %v1460, %v1997
      %v2062 = vadd.f32 %v1462, %v1998
      %v2063 = vadd.f32 %v1496, %v1999
      %v2064 = vadd.f32 %v1498, %v2000
      %v2065 = vadd.f32 %v1501, %v2001
      %v2066 = vadd.f32 %v1503, %v2002
      %v2067 = vadd.f32 %v1537, %v2003
      %v2068 = vadd.f32 %v1539, %v2004
      %v2069 = vadd.f32 %v1542, %v2005
      %v2070 = vadd.f32 %v1544, %v2006
      %v2071 = vadd.f32 %v1578, %v2007
      %v2072 = vadd.f32 %v1580, %v2008
      %v2073 = vadd.f32 %v1583, %v2009
      %v2074 = vadd.f32 %v1585, %v2010
      %v2075 = vadd.f32 %v1619, %v2011
      %v2076 = vadd.f32 %v1621, %v2012
      %v2077 = vadd.f32 %v1624, %v2013
      %v2078 = vadd.f32 %v1626, %v2014
      %v2079 = vadd.f32 %v1660, %v2015
      %v2080 = vadd.f32 %v1662, %v2016
      %v2081 = vadd.f32 %v1665, %v2017
      %v2082 = vadd.f32 %v1667, %v2018
      %v2083 = vadd.f32 %v1701, %v2019
      %v2084 = vadd.f32 %v1703, %v2020
      %v2085 = vadd.f32 %v1706, %v2021
      %v2086 = vadd.f32 %v1708, %v2022
      %v2087 = vadd.f32 %v1742, %v2023
      %v2088 = vadd.f32 %v1744, %v2024
      %v2089 = vadd.f32 %v1747, %v2025
      %v2090 = vadd.f32 %v1749, %v2026
      %v2091 = vadd.f32 %v1783, %v2027
      %v2092 = vadd.f32 %v1785, %v2028
      %v2093 = vadd.f32 %v1788, %v2029
      %v2094 = vadd.f32 %v1790, %v2030
      %v2095 = vadd.f32 %v1824, %v2031
      %v2096 = vadd.f32 %v1826, %v2032
      %v2097 = vadd.f32 %v1829, %v2033
      %v2098 = vadd.f32 %v1831, %v2034
      %v2099 = vadd.f32 %v1865, %v2035
      %v2100 = vadd.f32 %v1867, %v2036
      %v2101 = vadd.f32 %v1870, %v2037
      %v2102 = vadd.f32 %v1872, %v2038
      %v2103 = vadd.f32 %v1906, %v2039
      %v2104 = vadd.f32 %v1908, %v2040
      %v2105 = vadd.f32 %v1911, %v2041
      %v2106 = vadd.f32 %v1913, %v2042
      %v2107 = vsel %vm631, %v2043, -inf
      %2108 = vmax.xlane.f32.xlu0 %v2107
      %v2109 = vpop.xlane.xlu0 %2108
      %v2110 = vsel %vm631, %v2044, -inf
      %2111 = vmax.xlane.f32.xlu0 %v2110
      %v2112 = vpop.xlane.xlu0 %2111
      %v2113 = vsel %vm631, %v2045, -inf
      %2114 = vmax.xlane.f32.xlu0 %v2113
      %v2115 = vpop.xlane.xlu0 %2114
      %v2116 = vsel %vm631, %v2046, -inf
      %2117 = vmax.xlane.f32.xlu0 %v2116
      %v2118 = vpop.xlane.xlu0 %2117
      %v2119 = vsel %vm631, %v2047, -inf
      %2120 = vmax.xlane.f32.xlu0 %v2119
      %v2121 = vpop.xlane.xlu0 %2120
      %v2122 = vsel %vm631, %v2048, -inf
      %2123 = vmax.xlane.f32.xlu0 %v2122
      %v2124 = vpop.xlane.xlu0 %2123
      %v2125 = vsel %vm631, %v2049, -inf
      %2126 = vmax.xlane.f32.xlu0 %v2125
      %v2127 = vpop.xlane.xlu0 %2126
      %v2128 = vsel %vm631, %v2050, -inf
      %2129 = vmax.xlane.f32.xlu0 %v2128
      %v2130 = vpop.xlane.xlu0 %2129
      %v2131 = vsel %vm631, %v2051, -inf
      %2132 = vmax.xlane.f32.xlu0 %v2131
      %v2133 = vpop.xlane.xlu0 %2132
      %v2134 = vsel %vm631, %v2052, -inf
      %2135 = vmax.xlane.f32.xlu0 %v2134
      %v2136 = vpop.xlane.xlu0 %2135
      %v2137 = vsel %vm631, %v2053, -inf
      %2138 = vmax.xlane.f32.xlu0 %v2137
      %v2139 = vpop.xlane.xlu0 %2138
      %v2140 = vsel %vm631, %v2054, -inf
      %2141 = vmax.xlane.f32.xlu0 %v2140
      %v2142 = vpop.xlane.xlu0 %2141
      %v2143 = vsel %vm631, %v2055, -inf
      %2144 = vmax.xlane.f32.xlu0 %v2143
      %v2145 = vpop.xlane.xlu0 %2144
      %v2146 = vsel %vm631, %v2056, -inf
      %2147 = vmax.xlane.f32.xlu0 %v2146
      %v2148 = vpop.xlane.xlu0 %2147
      %v2149 = vsel %vm631, %v2057, -inf
      %2150 = vmax.xlane.f32.xlu0 %v2149
      %v2151 = vpop.xlane.xlu0 %2150
      %v2152 = vsel %vm631, %v2058, -inf
      %2153 = vmax.xlane.f32.xlu0 %v2152
      %v2154 = vpop.xlane.xlu0 %2153
      %v2155 = vsel %vm631, %v2059, -inf
      %2156 = vmax.xlane.f32.xlu0 %v2155
      %v2157 = vpop.xlane.xlu0 %2156
      %v2158 = vsel %vm631, %v2060, -inf
      %2159 = vmax.xlane.f32.xlu0 %v2158
      %v2160 = vpop.xlane.xlu0 %2159
      %v2161 = vsel %vm631, %v2061, -inf
      %2162 = vmax.xlane.f32.xlu0 %v2161
      %v2163 = vpop.xlane.xlu0 %2162
      %v2164 = vsel %vm631, %v2062, -inf
      %2165 = vmax.xlane.f32.xlu0 %v2164
      %v2166 = vpop.xlane.xlu0 %2165
      %v2167 = vsel %vm631, %v2063, -inf
      %2168 = vmax.xlane.f32.xlu0 %v2167
      %v2169 = vpop.xlane.xlu0 %2168
      %v2170 = vsel %vm631, %v2064, -inf
      %2171 = vmax.xlane.f32.xlu0 %v2170
      %v2172 = vpop.xlane.xlu0 %2171
      %v2173 = vsel %vm631, %v2065, -inf
      %2174 = vmax.xlane.f32.xlu0 %v2173
      %v2175 = vpop.xlane.xlu0 %2174
      %v2176 = vsel %vm631, %v2066, -inf
      %2177 = vmax.xlane.f32.xlu0 %v2176
      %v2178 = vpop.xlane.xlu0 %2177
      %v2179 = vsel %vm631, %v2067, -inf
      %2180 = vmax.xlane.f32.xlu0 %v2179
      %v2181 = vpop.xlane.xlu0 %2180
      %v2182 = vsel %vm631, %v2068, -inf
      %2183 = vmax.xlane.f32.xlu0 %v2182
      %v2184 = vpop.xlane.xlu0 %2183
      %v2185 = vsel %vm631, %v2069, -inf
      %2186 = vmax.xlane.f32.xlu0 %v2185
      %v2187 = vpop.xlane.xlu0 %2186
      %v2188 = vsel %vm631, %v2070, -inf
      %2189 = vmax.xlane.f32.xlu0 %v2188
      %v2190 = vpop.xlane.xlu0 %2189
      %v2191 = vsel %vm631, %v2071, -inf
      %2192 = vmax.xlane.f32.xlu0 %v2191
      %v2193 = vpop.xlane.xlu0 %2192
      %v2194 = vsel %vm631, %v2072, -inf
      %2195 = vmax.xlane.f32.xlu0 %v2194
      %v2196 = vpop.xlane.xlu0 %2195
      %v2197 = vsel %vm631, %v2073, -inf
      %2198 = vmax.xlane.f32.xlu0 %v2197
      %v2199 = vpop.xlane.xlu0 %2198
      %v2200 = vsel %vm631, %v2074, -inf
      %2201 = vmax.xlane.f32.xlu0 %v2200
      %v2202 = vpop.xlane.xlu0 %2201
      %v2203 = vsel %vm631, %v2075, -inf
      %2204 = vmax.xlane.f32.xlu0 %v2203
      %v2205 = vpop.xlane.xlu0 %2204
      %v2206 = vsel %vm631, %v2076, -inf
      %2207 = vmax.xlane.f32.xlu0 %v2206
      %v2208 = vpop.xlane.xlu0 %2207
      %v2209 = vsel %vm631, %v2077, -inf
      %2210 = vmax.xlane.f32.xlu0 %v2209
      %v2211 = vpop.xlane.xlu0 %2210
      %v2212 = vsel %vm631, %v2078, -inf
      %2213 = vmax.xlane.f32.xlu0 %v2212
      %v2214 = vpop.xlane.xlu0 %2213
      %v2215 = vsel %vm631, %v2079, -inf
      %2216 = vmax.xlane.f32.xlu0 %v2215
      %v2217 = vpop.xlane.xlu0 %2216
      %v2218 = vsel %vm631, %v2080, -inf
      %2219 = vmax.xlane.f32.xlu0 %v2218
      %v2220 = vpop.xlane.xlu0 %2219
      %v2221 = vsel %vm631, %v2081, -inf
      %2222 = vmax.xlane.f32.xlu0 %v2221
      %v2223 = vpop.xlane.xlu0 %2222
      %v2224 = vsel %vm631, %v2082, -inf
      %2225 = vmax.xlane.f32.xlu0 %v2224
      %v2226 = vpop.xlane.xlu0 %2225
      %v2227 = vsel %vm631, %v2083, -inf
      %2228 = vmax.xlane.f32.xlu0 %v2227
      %v2229 = vpop.xlane.xlu0 %2228
      %v2230 = vsel %vm631, %v2084, -inf
      %2231 = vmax.xlane.f32.xlu0 %v2230
      %v2232 = vpop.xlane.xlu0 %2231
      %v2233 = vsel %vm631, %v2085, -inf
      %2234 = vmax.xlane.f32.xlu0 %v2233
      %v2235 = vpop.xlane.xlu0 %2234
      %v2236 = vsel %vm631, %v2086, -inf
      %2237 = vmax.xlane.f32.xlu0 %v2236
      %v2238 = vpop.xlane.xlu0 %2237
      %v2239 = vsel %vm631, %v2087, -inf
      %2240 = vmax.xlane.f32.xlu0 %v2239
      %v2241 = vpop.xlane.xlu0 %2240
      %v2242 = vsel %vm631, %v2088, -inf
      %2243 = vmax.xlane.f32.xlu0 %v2242
      %v2244 = vpop.xlane.xlu0 %2243
      %v2245 = vsel %vm631, %v2089, -inf
      %2246 = vmax.xlane.f32.xlu0 %v2245
      %v2247 = vpop.xlane.xlu0 %2246
      %v2248 = vsel %vm631, %v2090, -inf
      %2249 = vmax.xlane.f32.xlu0 %v2248
      %v2250 = vpop.xlane.xlu0 %2249
      %v2251 = vsel %vm631, %v2091, -inf
      %2252 = vmax.xlane.f32.xlu0 %v2251
      %v2253 = vpop.xlane.xlu0 %2252
      %v2254 = vsel %vm631, %v2092, -inf
      %2255 = vmax.xlane.f32.xlu0 %v2254
      %v2256 = vpop.xlane.xlu0 %2255
      %v2257 = vsel %vm631, %v2093, -inf
      %2258 = vmax.xlane.f32.xlu0 %v2257
      %v2259 = vpop.xlane.xlu0 %2258
      %v2260 = vsel %vm631, %v2094, -inf
      %2261 = vmax.xlane.f32.xlu0 %v2260
      %v2262 = vpop.xlane.xlu0 %2261
      %v2263 = vsel %vm631, %v2095, -inf
      %2264 = vmax.xlane.f32.xlu0 %v2263
      %v2265 = vpop.xlane.xlu0 %2264
      %v2266 = vsel %vm631, %v2096, -inf
      %2267 = vmax.xlane.f32.xlu0 %v2266
      %v2268 = vpop.xlane.xlu0 %2267
      %v2269 = vsel %vm631, %v2097, -inf
      %2270 = vmax.xlane.f32.xlu0 %v2269
      %v2271 = vpop.xlane.xlu0 %2270
      %v2272 = vsel %vm631, %v2098, -inf
      %2273 = vmax.xlane.f32.xlu0 %v2272
      %v2274 = vpop.xlane.xlu0 %2273
      %v2275 = vsel %vm631, %v2099, -inf
      %2276 = vmax.xlane.f32.xlu0 %v2275
      %v2277 = vpop.xlane.xlu0 %2276
      %v2278 = vsel %vm631, %v2100, -inf
      %2279 = vmax.xlane.f32.xlu0 %v2278
      %v2280 = vpop.xlane.xlu0 %2279
      %v2281 = vsel %vm631, %v2101, -inf
      %2282 = vmax.xlane.f32.xlu0 %v2281
      %v2283 = vpop.xlane.xlu0 %2282
      %v2284 = vsel %vm631, %v2102, -inf
      %2285 = vmax.xlane.f32.xlu0 %v2284
      %v2286 = vpop.xlane.xlu0 %2285
      %v2287 = vsel %vm631, %v2103, -inf
      %2288 = vmax.xlane.f32.xlu0 %v2287
      %v2289 = vpop.xlane.xlu0 %2288
      %v2290 = vsel %vm631, %v2104, -inf
      %2291 = vmax.xlane.f32.xlu0 %v2290
      %v2292 = vpop.xlane.xlu0 %2291
      %v2293 = vsel %vm631, %v2105, -inf
      %2294 = vmax.xlane.f32.xlu0 %v2293
      %v2295 = vpop.xlane.xlu0 %2294
      %v2296 = vsel %vm631, %v2106, -inf
      %2297 = vmax.xlane.f32.xlu0 %v2296
      %v2298 = vpop.xlane.xlu0 %2297
      %v2299 = vsub.f32 %v2043, %v2109
      %v2300 = vsub.f32 %v2044, %v2112
      %v2301 = vsub.f32 %v2045, %v2115
      %v2302 = vsub.f32 %v2046, %v2118
      %v2303 = vsub.f32 %v2047, %v2121
      %v2304 = vsub.f32 %v2048, %v2124
      %v2305 = vsub.f32 %v2049, %v2127
      %v2306 = vsub.f32 %v2050, %v2130
      %v2307 = vsub.f32 %v2051, %v2133
      %v2308 = vsub.f32 %v2052, %v2136
      %v2309 = vsub.f32 %v2053, %v2139
      %v2310 = vsub.f32 %v2054, %v2142
      %v2311 = vsub.f32 %v2055, %v2145
      %v2312 = vsub.f32 %v2056, %v2148
      %v2313 = vsub.f32 %v2057, %v2151
      %v2314 = vsub.f32 %v2058, %v2154
      %v2315 = vsub.f32 %v2059, %v2157
      %v2316 = vsub.f32 %v2060, %v2160
      %v2317 = vsub.f32 %v2061, %v2163
      %v2318 = vsub.f32 %v2062, %v2166
      %v2319 = vsub.f32 %v2063, %v2169
      %v2320 = vsub.f32 %v2064, %v2172
      %v2321 = vsub.f32 %v2065, %v2175
      %v2322 = vsub.f32 %v2066, %v2178
      %v2323 = vsub.f32 %v2067, %v2181
      %v2324 = vsub.f32 %v2068, %v2184
      %v2325 = vsub.f32 %v2069, %v2187
      %v2326 = vsub.f32 %v2070, %v2190
      %v2327 = vsub.f32 %v2071, %v2193
      %v2328 = vsub.f32 %v2072, %v2196
      %v2329 = vsub.f32 %v2073, %v2199
      %v2330 = vsub.f32 %v2074, %v2202
      %v2331 = vsub.f32 %v2075, %v2205
      %v2332 = vsub.f32 %v2076, %v2208
      %v2333 = vsub.f32 %v2077, %v2211
      %v2334 = vsub.f32 %v2078, %v2214
      %v2335 = vsub.f32 %v2079, %v2217
      %v2336 = vsub.f32 %v2080, %v2220
      %v2337 = vsub.f32 %v2081, %v2223
      %v2338 = vsub.f32 %v2082, %v2226
      %v2339 = vsub.f32 %v2083, %v2229
      %v2340 = vsub.f32 %v2084, %v2232
      %v2341 = vsub.f32 %v2085, %v2235
      %v2342 = vsub.f32 %v2086, %v2238
      %v2343 = vsub.f32 %v2087, %v2241
      %v2344 = vsub.f32 %v2088, %v2244
      %v2345 = vsub.f32 %v2089, %v2247
      %v2346 = vsub.f32 %v2090, %v2250
      %v2347 = vsub.f32 %v2091, %v2253
      %v2348 = vsub.f32 %v2092, %v2256
      %v2349 = vsub.f32 %v2093, %v2259
      %v2350 = vsub.f32 %v2094, %v2262
      %v2351 = vsub.f32 %v2095, %v2265
      %v2352 = vsub.f32 %v2096, %v2268
      %v2353 = vsub.f32 %v2097, %v2271
      %v2354 = vsub.f32 %v2098, %v2274
      %v2355 = vsub.f32 %v2099, %v2277
      %v2356 = vsub.f32 %v2100, %v2280
      %v2357 = vsub.f32 %v2101, %v2283
      %v2358 = vsub.f32 %v2102, %v2286
      %v2359 = vsub.f32 %v2103, %v2289
      %v2360 = vsub.f32 %v2104, %v2292
      %v2361 = vsub.f32 %v2105, %v2295
      %v2362 = vsub.f32 %v2106, %v2298
      %v2363 = vmul.f32 %v2299, 1.442695
      %v2364 = vpow.pop %v2363
      %v2365 = vmul.f32 %v2300, 1.442695
      %v2366 = vpow.pop %v2365
      %v2367 = vmul.f32 %v2301, 1.442695
      %v2368 = vpow.pop %v2367
      %v2369 = vmul.f32 %v2302, 1.442695
      %v2370 = vpow.pop %v2369
      %v2371 = vmul.f32 %v2303, 1.442695
      %v2372 = vpow.pop %v2371
      %v2373 = vmul.f32 %v2304, 1.442695
      %v2374 = vpow.pop %v2373
      %v2375 = vmul.f32 %v2305, 1.442695
      %v2376 = vpow.pop %v2375
      %v2377 = vmul.f32 %v2306, 1.442695
      %v2378 = vpow.pop %v2377
      %v2379 = vmul.f32 %v2307, 1.442695
      %v2380 = vpow.pop %v2379
      %v2381 = vmul.f32 %v2308, 1.442695
      %v2382 = vpow.pop %v2381
      %v2383 = vmul.f32 %v2309, 1.442695
      %v2384 = vpow.pop %v2383
      %v2385 = vmul.f32 %v2310, 1.442695
      %v2386 = vpow.pop %v2385
      %v2387 = vmul.f32 %v2311, 1.442695
      %v2388 = vpow.pop %v2387
      %v2389 = vmul.f32 %v2312, 1.442695
      %v2390 = vpow.pop %v2389
      %v2391 = vmul.f32 %v2313, 1.442695
      %v2392 = vpow.pop %v2391
      %v2393 = vmul.f32 %v2314, 1.442695
      %v2394 = vpow.pop %v2393
      %v2395 = vmul.f32 %v2315, 1.442695
      %v2396 = vpow.pop %v2395
      %v2397 = vmul.f32 %v2316, 1.442695
      %v2398 = vpow.pop %v2397
      %v2399 = vmul.f32 %v2317, 1.442695
      %v2400 = vpow.pop %v2399
      %v2401 = vmul.f32 %v2318, 1.442695
      %v2402 = vpow.pop %v2401
      %v2403 = vmul.f32 %v2319, 1.442695
      %v2404 = vpow.pop %v2403
      %v2405 = vmul.f32 %v2320, 1.442695
      %v2406 = vpow.pop %v2405
      %v2407 = vmul.f32 %v2321, 1.442695
      %v2408 = vpow.pop %v2407
      %v2409 = vmul.f32 %v2322, 1.442695
      %v2410 = vpow.pop %v2409
      %v2411 = vmul.f32 %v2323, 1.442695
      %v2412 = vpow.pop %v2411
      %v2413 = vmul.f32 %v2324, 1.442695
      %v2414 = vpow.pop %v2413
      %v2415 = vmul.f32 %v2325, 1.442695
      %v2416 = vpow.pop %v2415
      %v2417 = vmul.f32 %v2326, 1.442695
      %v2418 = vpow.pop %v2417
      %v2419 = vmul.f32 %v2327, 1.442695
      %v2420 = vpow.pop %v2419
      %v2421 = vmul.f32 %v2328, 1.442695
      %v2422 = vpow.pop %v2421
      %v2423 = vmul.f32 %v2329, 1.442695
      %v2424 = vpow.pop %v2423
      %v2425 = vmul.f32 %v2330, 1.442695
      %v2426 = vpow.pop %v2425
      %v2427 = vmul.f32 %v2331, 1.442695
      %v2428 = vpow.pop %v2427
      %v2429 = vmul.f32 %v2332, 1.442695
      %v2430 = vpow.pop %v2429
      %v2431 = vmul.f32 %v2333, 1.442695
      %v2432 = vpow.pop %v2431
      %v2433 = vmul.f32 %v2334, 1.442695
      %v2434 = vpow.pop %v2433
      %v2435 = vmul.f32 %v2335, 1.442695
      %v2436 = vpow.pop %v2435
      %v2437 = vmul.f32 %v2336, 1.442695
      %v2438 = vpow.pop %v2437
      %v2439 = vmul.f32 %v2337, 1.442695
      %v2440 = vpow.pop %v2439
      %v2441 = vmul.f32 %v2338, 1.442695
      %v2442 = vpow.pop %v2441
      %v2443 = vmul.f32 %v2339, 1.442695
      %v2444 = vpow.pop %v2443
      %v2445 = vmul.f32 %v2340, 1.442695
      %v2446 = vpow.pop %v2445
      %v2447 = vmul.f32 %v2341, 1.442695
      %v2448 = vpow.pop %v2447
      %v2449 = vmul.f32 %v2342, 1.442695
      %v2450 = vpow.pop %v2449
      %v2451 = vmul.f32 %v2343, 1.442695
      %v2452 = vpow.pop %v2451
      %v2453 = vmul.f32 %v2344, 1.442695
      %v2454 = vpow.pop %v2453
      %v2455 = vmul.f32 %v2345, 1.442695
      %v2456 = vpow.pop %v2455
      %v2457 = vmul.f32 %v2346, 1.442695
      %v2458 = vpow.pop %v2457
      %v2459 = vmul.f32 %v2347, 1.442695
      %v2460 = vpow.pop %v2459
      %v2461 = vmul.f32 %v2348, 1.442695
      %v2462 = vpow.pop %v2461
      %v2463 = vmul.f32 %v2349, 1.442695
      %v2464 = vpow.pop %v2463
      %v2465 = vmul.f32 %v2350, 1.442695
      %v2466 = vpow.pop %v2465
      %v2467 = vmul.f32 %v2351, 1.442695
      %v2468 = vpow.pop %v2467
      %v2469 = vmul.f32 %v2352, 1.442695
      %v2470 = vpow.pop %v2469
      %v2471 = vmul.f32 %v2353, 1.442695
      %v2472 = vpow.pop %v2471
      %v2473 = vmul.f32 %v2354, 1.442695
      %v2474 = vpow.pop %v2473
      %v2475 = vmul.f32 %v2355, 1.442695
      %v2476 = vpow.pop %v2475
      %v2477 = vmul.f32 %v2356, 1.442695
      %v2478 = vpow.pop %v2477
      %v2479 = vmul.f32 %v2357, 1.442695
      %v2480 = vpow.pop %v2479
      %v2481 = vmul.f32 %v2358, 1.442695
      %v2482 = vpow.pop %v2481
      %v2483 = vmul.f32 %v2359, 1.442695
      %v2484 = vpow.pop %v2483
      %v2485 = vmul.f32 %v2360, 1.442695
      %v2486 = vpow.pop %v2485
      %v2487 = vmul.f32 %v2361, 1.442695
      %v2488 = vpow.pop %v2487
      %v2489 = vmul.f32 %v2362, 1.442695
      %v2490 = vpow.pop %v2489
      %v2491 = vsel %vm631, %v2364, 0.0
      %2492 = vadd.xlane.f32.xlu0 %v2491
      %v2493 = vpop.xlane.xlu0 %2492
      %v2494 = vsel %vm631, %v2366, 0.0
      %2495 = vadd.xlane.f32.xlu0 %v2494
      %v2496 = vpop.xlane.xlu0 %2495
      %v2497 = vsel %vm631, %v2368, 0.0
      %2498 = vadd.xlane.f32.xlu0 %v2497
      %v2499 = vpop.xlane.xlu0 %2498
      %v2500 = vsel %vm631, %v2370, 0.0
      %2501 = vadd.xlane.f32.xlu0 %v2500
      %v2502 = vpop.xlane.xlu0 %2501
      %v2503 = vsel %vm631, %v2372, 0.0
      %2504 = vadd.xlane.f32.xlu0 %v2503
      %v2505 = vpop.xlane.xlu0 %2504
      %v2506 = vsel %vm631, %v2374, 0.0
      %2507 = vadd.xlane.f32.xlu0 %v2506
      %v2508 = vpop.xlane.xlu0 %2507
      %v2509 = vsel %vm631, %v2376, 0.0
      %2510 = vadd.xlane.f32.xlu0 %v2509
      %v2511 = vpop.xlane.xlu0 %2510
      %v2512 = vsel %vm631, %v2378, 0.0
      %2513 = vadd.xlane.f32.xlu0 %v2512
      %v2514 = vpop.xlane.xlu0 %2513
      %v2515 = vsel %vm631, %v2380, 0.0
      %2516 = vadd.xlane.f32.xlu0 %v2515
      %v2517 = vpop.xlane.xlu0 %2516
      %v2518 = vsel %vm631, %v2382, 0.0
      %2519 = vadd.xlane.f32.xlu0 %v2518
      %v2520 = vpop.xlane.xlu0 %2519
      %v2521 = vsel %vm631, %v2384, 0.0
      %2522 = vadd.xlane.f32.xlu0 %v2521
      %v2523 = vpop.xlane.xlu0 %2522
      %v2524 = vsel %vm631, %v2386, 0.0
      %2525 = vadd.xlane.f32.xlu0 %v2524
      %v2526 = vpop.xlane.xlu0 %2525
      %v2527 = vsel %vm631, %v2388, 0.0
      %2528 = vadd.xlane.f32.xlu0 %v2527
      %v2529 = vpop.xlane.xlu0 %2528
      %v2530 = vsel %vm631, %v2390, 0.0
      %2531 = vadd.xlane.f32.xlu0 %v2530
      %v2532 = vpop.xlane.xlu0 %2531
      %v2533 = vsel %vm631, %v2392, 0.0
      %2534 = vadd.xlane.f32.xlu0 %v2533
      %v2535 = vpop.xlane.xlu0 %2534
      %v2536 = vsel %vm631, %v2394, 0.0
      %2537 = vadd.xlane.f32.xlu0 %v2536
      %v2538 = vpop.xlane.xlu0 %2537
      %v2539 = vsel %vm631, %v2396, 0.0
      %2540 = vadd.xlane.f32.xlu0 %v2539
      %v2541 = vpop.xlane.xlu0 %2540
      %v2542 = vsel %vm631, %v2398, 0.0
      %2543 = vadd.xlane.f32.xlu0 %v2542
      %v2544 = vpop.xlane.xlu0 %2543
      %v2545 = vsel %vm631, %v2400, 0.0
      %2546 = vadd.xlane.f32.xlu0 %v2545
      %v2547 = vpop.xlane.xlu0 %2546
      %v2548 = vsel %vm631, %v2402, 0.0
      %2549 = vadd.xlane.f32.xlu0 %v2548
      %v2550 = vpop.xlane.xlu0 %2549
      %v2551 = vsel %vm631, %v2404, 0.0
      %2552 = vadd.xlane.f32.xlu0 %v2551
      %v2553 = vpop.xlane.xlu0 %2552
      %v2554 = vsel %vm631, %v2406, 0.0
      %2555 = vadd.xlane.f32.xlu0 %v2554
      %v2556 = vpop.xlane.xlu0 %2555
      %v2557 = vsel %vm631, %v2408, 0.0
      %2558 = vadd.xlane.f32.xlu0 %v2557
      %v2559 = vpop.xlane.xlu0 %2558
      %v2560 = vsel %vm631, %v2410, 0.0
      %2561 = vadd.xlane.f32.xlu0 %v2560
      %v2562 = vpop.xlane.xlu0 %2561
      %v2563 = vsel %vm631, %v2412, 0.0
      %2564 = vadd.xlane.f32.xlu0 %v2563
      %v2565 = vpop.xlane.xlu0 %2564
      %v2566 = vsel %vm631, %v2414, 0.0
      %2567 = vadd.xlane.f32.xlu0 %v2566
      %v2568 = vpop.xlane.xlu0 %2567
      %v2569 = vsel %vm631, %v2416, 0.0
      %2570 = vadd.xlane.f32.xlu0 %v2569
      %v2571 = vpop.xlane.xlu0 %2570
      %v2572 = vsel %vm631, %v2418, 0.0
      %2573 = vadd.xlane.f32.xlu0 %v2572
      %v2574 = vpop.xlane.xlu0 %2573
      %v2575 = vsel %vm631, %v2420, 0.0
      %2576 = vadd.xlane.f32.xlu0 %v2575
      %v2577 = vpop.xlane.xlu0 %2576
      %v2578 = vsel %vm631, %v2422, 0.0
      %2579 = vadd.xlane.f32.xlu0 %v2578
      %v2580 = vpop.xlane.xlu0 %2579
      %v2581 = vsel %vm631, %v2424, 0.0
      %2582 = vadd.xlane.f32.xlu0 %v2581
      %v2583 = vpop.xlane.xlu0 %2582
      %v2584 = vsel %vm631, %v2426, 0.0
      %2585 = vadd.xlane.f32.xlu0 %v2584
      %v2586 = vpop.xlane.xlu0 %2585
      %v2587 = vsel %vm631, %v2428, 0.0
      %2588 = vadd.xlane.f32.xlu0 %v2587
      %v2589 = vpop.xlane.xlu0 %2588
      %v2590 = vsel %vm631, %v2430, 0.0
      %2591 = vadd.xlane.f32.xlu0 %v2590
      %v2592 = vpop.xlane.xlu0 %2591
      %v2593 = vsel %vm631, %v2432, 0.0
      %2594 = vadd.xlane.f32.xlu0 %v2593
      %v2595 = vpop.xlane.xlu0 %2594
      %v2596 = vsel %vm631, %v2434, 0.0
      %2597 = vadd.xlane.f32.xlu0 %v2596
      %v2598 = vpop.xlane.xlu0 %2597
      %v2599 = vsel %vm631, %v2436, 0.0
      %2600 = vadd.xlane.f32.xlu0 %v2599
      %v2601 = vpop.xlane.xlu0 %2600
      %v2602 = vsel %vm631, %v2438, 0.0
      %2603 = vadd.xlane.f32.xlu0 %v2602
      %v2604 = vpop.xlane.xlu0 %2603
      %v2605 = vsel %vm631, %v2440, 0.0
      %2606 = vadd.xlane.f32.xlu0 %v2605
      %v2607 = vpop.xlane.xlu0 %2606
      %v2608 = vsel %vm631, %v2442, 0.0
      %2609 = vadd.xlane.f32.xlu0 %v2608
      %v2610 = vpop.xlane.xlu0 %2609
      %v2611 = vsel %vm631, %v2444, 0.0
      %2612 = vadd.xlane.f32.xlu0 %v2611
      %v2613 = vpop.xlane.xlu0 %2612
      %v2614 = vsel %vm631, %v2446, 0.0
      %2615 = vadd.xlane.f32.xlu0 %v2614
      %v2616 = vpop.xlane.xlu0 %2615
      %v2617 = vsel %vm631, %v2448, 0.0
      %2618 = vadd.xlane.f32.xlu0 %v2617
      %v2619 = vpop.xlane.xlu0 %2618
      %v2620 = vsel %vm631, %v2450, 0.0
      %2621 = vadd.xlane.f32.xlu0 %v2620
      %v2622 = vpop.xlane.xlu0 %2621
      %v2623 = vsel %vm631, %v2452, 0.0
      %2624 = vadd.xlane.f32.xlu0 %v2623
      %v2625 = vpop.xlane.xlu0 %2624
      %v2626 = vsel %vm631, %v2454, 0.0
      %2627 = vadd.xlane.f32.xlu0 %v2626
      %v2628 = vpop.xlane.xlu0 %2627
      %v2629 = vsel %vm631, %v2456, 0.0
      %2630 = vadd.xlane.f32.xlu0 %v2629
      %v2631 = vpop.xlane.xlu0 %2630
      %v2632 = vsel %vm631, %v2458, 0.0
      %2633 = vadd.xlane.f32.xlu0 %v2632
      %v2634 = vpop.xlane.xlu0 %2633
      %v2635 = vsel %vm631, %v2460, 0.0
      %2636 = vadd.xlane.f32.xlu0 %v2635
      %v2637 = vpop.xlane.xlu0 %2636
      %v2638 = vsel %vm631, %v2462, 0.0
      %2639 = vadd.xlane.f32.xlu0 %v2638
      %v2640 = vpop.xlane.xlu0 %2639
      %v2641 = vsel %vm631, %v2464, 0.0
      %2642 = vadd.xlane.f32.xlu0 %v2641
      %v2643 = vpop.xlane.xlu0 %2642
      %v2644 = vsel %vm631, %v2466, 0.0
      %2645 = vadd.xlane.f32.xlu0 %v2644
      %v2646 = vpop.xlane.xlu0 %2645
      %v2647 = vsel %vm631, %v2468, 0.0
      %2648 = vadd.xlane.f32.xlu0 %v2647
      %v2649 = vpop.xlane.xlu0 %2648
      %v2650 = vsel %vm631, %v2470, 0.0
      %2651 = vadd.xlane.f32.xlu0 %v2650
      %v2652 = vpop.xlane.xlu0 %2651
      %v2653 = vsel %vm631, %v2472, 0.0
      %2654 = vadd.xlane.f32.xlu0 %v2653
      %v2655 = vpop.xlane.xlu0 %2654
      %v2656 = vsel %vm631, %v2474, 0.0
      %2657 = vadd.xlane.f32.xlu0 %v2656
      %v2658 = vpop.xlane.xlu0 %2657
      %v2659 = vsel %vm631, %v2476, 0.0
      %2660 = vadd.xlane.f32.xlu0 %v2659
      %v2661 = vpop.xlane.xlu0 %2660
      %v2662 = vsel %vm631, %v2478, 0.0
      %2663 = vadd.xlane.f32.xlu0 %v2662
      %v2664 = vpop.xlane.xlu0 %2663
      %v2665 = vsel %vm631, %v2480, 0.0
      %2666 = vadd.xlane.f32.xlu0 %v2665
      %v2667 = vpop.xlane.xlu0 %2666
      %v2668 = vsel %vm631, %v2482, 0.0
      %2669 = vadd.xlane.f32.xlu0 %v2668
      %v2670 = vpop.xlane.xlu0 %2669
      %v2671 = vsel %vm631, %v2484, 0.0
      %2672 = vadd.xlane.f32.xlu0 %v2671
      %v2673 = vpop.xlane.xlu0 %2672
      %v2674 = vsel %vm631, %v2486, 0.0
      %2675 = vadd.xlane.f32.xlu0 %v2674
      %v2676 = vpop.xlane.xlu0 %2675
      %v2677 = vsel %vm631, %v2488, 0.0
      %2678 = vadd.xlane.f32.xlu0 %v2677
      %v2679 = vpop.xlane.xlu0 %2678
      %v2680 = vsel %vm631, %v2490, 0.0
      %2681 = vadd.xlane.f32.xlu0 %v2680
      %v2682 = vpop.xlane.xlu0 %2681
      %v2683 = vrcp.pop %v2493
      %v2684 = vrcp.pop %v2496
      %v2685 = vrcp.pop %v2499
      %v2686 = vrcp.pop %v2502
      %v2687 = vrcp.pop %v2505
      %v2688 = vrcp.pop %v2508
      %v2689 = vrcp.pop %v2511
      %v2690 = vrcp.pop %v2514
      %v2691 = vrcp.pop %v2517
      %v2692 = vrcp.pop %v2520
      %v2693 = vrcp.pop %v2523
      %v2694 = vrcp.pop %v2526
      %v2695 = vrcp.pop %v2529
      %v2696 = vrcp.pop %v2532
      %v2697 = vrcp.pop %v2535
      %v2698 = vrcp.pop %v2538
      %v2699 = vrcp.pop %v2541
      %v2700 = vrcp.pop %v2544
      %v2701 = vrcp.pop %v2547
      %v2702 = vrcp.pop %v2550
      %v2703 = vrcp.pop %v2553
      %v2704 = vrcp.pop %v2556
      %v2705 = vrcp.pop %v2559
      %v2706 = vrcp.pop %v2562
      %v2707 = vrcp.pop %v2565
      %v2708 = vrcp.pop %v2568
      %v2709 = vrcp.pop %v2571
      %v2710 = vrcp.pop %v2574
      %v2711 = vrcp.pop %v2577
      %v2712 = vrcp.pop %v2580
      %v2713 = vrcp.pop %v2583
      %v2714 = vrcp.pop %v2586
      %v2715 = vrcp.pop %v2589
      %v2716 = vrcp.pop %v2592
      %v2717 = vrcp.pop %v2595
      %v2718 = vrcp.pop %v2598
      %v2719 = vrcp.pop %v2601
      %v2720 = vrcp.pop %v2604
      %v2721 = vrcp.pop %v2607
      %v2722 = vrcp.pop %v2610
      %v2723 = vrcp.pop %v2613
      %v2724 = vrcp.pop %v2616
      %v2725 = vrcp.pop %v2619
      %v2726 = vrcp.pop %v2622
      %v2727 = vrcp.pop %v2625
      %v2728 = vrcp.pop %v2628
      %v2729 = vrcp.pop %v2631
      %v2730 = vrcp.pop %v2634
      %v2731 = vrcp.pop %v2637
      %v2732 = vrcp.pop %v2640
      %v2733 = vrcp.pop %v2643
      %v2734 = vrcp.pop %v2646
      %v2735 = vrcp.pop %v2649
      %v2736 = vrcp.pop %v2652
      %v2737 = vrcp.pop %v2655
      %v2738 = vrcp.pop %v2658
      %v2739 = vrcp.pop %v2661
      %v2740 = vrcp.pop %v2664
      %v2741 = vrcp.pop %v2667
      %v2742 = vrcp.pop %v2670
      %v2743 = vrcp.pop %v2673
      %v2744 = vrcp.pop %v2676
      %v2745 = vrcp.pop %v2679
      %v2746 = vrcp.pop %v2682
      %v2747 = vmul.f32 %v2364, %v2683
      %v2748 = vmul.f32 %v2366, %v2684
      %v2749 = vmul.f32 %v2368, %v2685
      %v2750 = vmul.f32 %v2370, %v2686
      %v2751 = vmul.f32 %v2372, %v2687
      %v2752 = vmul.f32 %v2374, %v2688
      %v2753 = vmul.f32 %v2376, %v2689
      %v2754 = vmul.f32 %v2378, %v2690
      %v2755 = vmul.f32 %v2380, %v2691
      %v2756 = vmul.f32 %v2382, %v2692
      %v2757 = vmul.f32 %v2384, %v2693
      %v2758 = vmul.f32 %v2386, %v2694
      %v2759 = vmul.f32 %v2388, %v2695
      %v2760 = vmul.f32 %v2390, %v2696
      %v2761 = vmul.f32 %v2392, %v2697
      %v2762 = vmul.f32 %v2394, %v2698
      %v2763 = vmul.f32 %v2396, %v2699
      %v2764 = vmul.f32 %v2398, %v2700
      %v2765 = vmul.f32 %v2400, %v2701
      %v2766 = vmul.f32 %v2402, %v2702
      %v2767 = vmul.f32 %v2404, %v2703
      %v2768 = vmul.f32 %v2406, %v2704
      %v2769 = vmul.f32 %v2408, %v2705
      %v2770 = vmul.f32 %v2410, %v2706
      %v2771 = vmul.f32 %v2412, %v2707
      %v2772 = vmul.f32 %v2414, %v2708
      %v2773 = vmul.f32 %v2416, %v2709
      %v2774 = vmul.f32 %v2418, %v2710
      %v2775 = vmul.f32 %v2420, %v2711
      %v2776 = vmul.f32 %v2422, %v2712
      %v2777 = vmul.f32 %v2424, %v2713
      %v2778 = vmul.f32 %v2426, %v2714
      %v2779 = vmul.f32 %v2428, %v2715
      %v2780 = vmul.f32 %v2430, %v2716
      %v2781 = vmul.f32 %v2432, %v2717
      %v2782 = vmul.f32 %v2434, %v2718
      %v2783 = vmul.f32 %v2436, %v2719
      %v2784 = vmul.f32 %v2438, %v2720
      %v2785 = vmul.f32 %v2440, %v2721
      %v2786 = vmul.f32 %v2442, %v2722
      %v2787 = vmul.f32 %v2444, %v2723
      %v2788 = vmul.f32 %v2446, %v2724
      %v2789 = vmul.f32 %v2448, %v2725
      %v2790 = vmul.f32 %v2450, %v2726
      %v2791 = vmul.f32 %v2452, %v2727
      %v2792 = vmul.f32 %v2454, %v2728
      %v2793 = vmul.f32 %v2456, %v2729
      %v2794 = vmul.f32 %v2458, %v2730
      %v2795 = vmul.f32 %v2460, %v2731
      %v2796 = vmul.f32 %v2462, %v2732
      %v2797 = vmul.f32 %v2464, %v2733
      %v2798 = vmul.f32 %v2466, %v2734
      %v2799 = vmul.f32 %v2468, %v2735
      %v2800 = vmul.f32 %v2470, %v2736
      %v2801 = vmul.f32 %v2472, %v2737
      %v2802 = vmul.f32 %v2474, %v2738
      %v2803 = vmul.f32 %v2476, %v2739
      %v2804 = vmul.f32 %v2478, %v2740
      %v2805 = vmul.f32 %v2480, %v2741
      %v2806 = vmul.f32 %v2482, %v2742
      %v2807 = vmul.f32 %v2484, %v2743
      %v2808 = vmul.f32 %v2486, %v2744
      %v2809 = vmul.f32 %v2488, %v2745
      %v2810 = vmul.f32 %v2490, %v2746
      %v2811 = vpack.c.bf16 %v2747, %v2747
      %v2812 = vpack.c.bf16 %v2748, %v2748
      %v2813 = vpack.c.bf16 %v2749, %v2749
      %v2814 = vpack.c.bf16 %v2750, %v2750
      %v2815 = vpack.c.bf16 %v2751, %v2751
      %v2816 = vpack.c.bf16 %v2752, %v2752
      %v2817 = vpack.c.bf16 %v2753, %v2753
      %v2818 = vpack.c.bf16 %v2754, %v2754
      %v2819 = vpack.c.bf16 %v2755, %v2755
      %v2820 = vpack.c.bf16 %v2756, %v2756
      %v2821 = vpack.c.bf16 %v2757, %v2757
      %v2822 = vpack.c.bf16 %v2758, %v2758
      %v2823 = vpack.c.bf16 %v2759, %v2759
      %v2824 = vpack.c.bf16 %v2760, %v2760
      %v2825 = vpack.c.bf16 %v2761, %v2761
      %v2826 = vpack.c.bf16 %v2762, %v2762
      %v2827 = vpack.c.bf16 %v2763, %v2763
      %v2828 = vpack.c.bf16 %v2764, %v2764
      %v2829 = vpack.c.bf16 %v2765, %v2765
      %v2830 = vpack.c.bf16 %v2766, %v2766
      %v2831 = vpack.c.bf16 %v2767, %v2767
      %v2832 = vpack.c.bf16 %v2768, %v2768
      %v2833 = vpack.c.bf16 %v2769, %v2769
      %v2834 = vpack.c.bf16 %v2770, %v2770
      %v2835 = vpack.c.bf16 %v2771, %v2771
      %v2836 = vpack.c.bf16 %v2772, %v2772
      %v2837 = vpack.c.bf16 %v2773, %v2773
      %v2838 = vpack.c.bf16 %v2774, %v2774
      %v2839 = vpack.c.bf16 %v2775, %v2775
      %v2840 = vpack.c.bf16 %v2776, %v2776
      %v2841 = vpack.c.bf16 %v2777, %v2777
      %v2842 = vpack.c.bf16 %v2778, %v2778
      %v2843 = vpack.c.bf16 %v2779, %v2779
      %v2844 = vpack.c.bf16 %v2780, %v2780
      %v2845 = vpack.c.bf16 %v2781, %v2781
      %v2846 = vpack.c.bf16 %v2782, %v2782
      %v2847 = vpack.c.bf16 %v2783, %v2783
      %v2848 = vpack.c.bf16 %v2784, %v2784
      %v2849 = vpack.c.bf16 %v2785, %v2785
      %v2850 = vpack.c.bf16 %v2786, %v2786
      %v2851 = vpack.c.bf16 %v2787, %v2787
      %v2852 = vpack.c.bf16 %v2788, %v2788
      %v2853 = vpack.c.bf16 %v2789, %v2789
      %v2854 = vpack.c.bf16 %v2790, %v2790
      %v2855 = vpack.c.bf16 %v2791, %v2791
      %v2856 = vpack.c.bf16 %v2792, %v2792
      %v2857 = vpack.c.bf16 %v2793, %v2793
      %v2858 = vpack.c.bf16 %v2794, %v2794
      %v2859 = vpack.c.bf16 %v2795, %v2795
      %v2860 = vpack.c.bf16 %v2796, %v2796
      %v2861 = vpack.c.bf16 %v2797, %v2797
      %v2862 = vpack.c.bf16 %v2798, %v2798
      %v2863 = vpack.c.bf16 %v2799, %v2799
      %v2864 = vpack.c.bf16 %v2800, %v2800
      %v2865 = vpack.c.bf16 %v2801, %v2801
      %v2866 = vpack.c.bf16 %v2802, %v2802
      %v2867 = vpack.c.bf16 %v2803, %v2803
      %v2868 = vpack.c.bf16 %v2804, %v2804
      %v2869 = vpack.c.bf16 %v2805, %v2805
      %v2870 = vpack.c.bf16 %v2806, %v2806
      %v2871 = vpack.c.bf16 %v2807, %v2807
      %v2872 = vpack.c.bf16 %v2808, %v2808
      %v2873 = vpack.c.bf16 %v2809, %v2809
      %v2874 = vpack.c.bf16 %v2810, %v2810
      %v2879 = vunpack.c.l.b16 %v2811
      %v2880 = vunpack.c.l.b16 %v2812
      %v2881 = vunpack.c.l.b16 %v2813
      %v2882 = vunpack.c.l.b16 %v2814
      %v2883 = vpack.c.b16 %v2880, %v2879
      %v2884 = vpack.c.b16 %v2882, %v2881
      %2885 = vrot.lane.b32.xlu0 %v1262, 64
      %v2886 = vpop.permute.xlu0 %2885
      %2887 = vrot.lane.b32.xlu0 %v1263, 64
      %v2888 = vpop.permute.xlu0 %2887
      %v2892 = vsel %vm631, %v2883, 0
      %v2895 = vsel %vm631, %v2884, 0
      %2897 = vmatpush.bf16.msra.mxu0 0
      %2898 = vmatpush.bf16.msra.mxu0 0
      %2899 = vmatpush.bf16.msra.mxu0 0
      %2900 = vmatpush.bf16.msra.mxu0 0
      %2901 = vmatpush.bf16.msra.mxu0 0
      %2902 = vmatpush.bf16.msra.mxu0 0
      %2903 = vmatpush.bf16.msra.mxu0 %v2888
      %2904 = vmatpush.bf16.msra.mxu0 %v2886
      %2905 = vmatmul.bf16.gmra.mxu0 %v2892
      %v2906 = vpop.f32.mrf.mxu0
      %v2907 = vadd.f32 0.0, %v2906
      %v2908 = vpop.f32.mrf.mxu0
      %v2909 = vadd.f32 0.0, %v2908
      %2910 = vmatmul.bf16.gmra.mxu0 %v2895
      %v2911 = vpop.f32.mrf.mxu0
      %v2912 = vadd.f32 0.0, %v2911
      %v2913 = vpop.f32.mrf.mxu0
      %v2914 = vadd.f32 0.0, %v2913
      %2915 = vdwg.mxu0
      %v2920 = vunpack.c.l.b16 %v2815
      %v2921 = vunpack.c.l.b16 %v2816
      %v2922 = vunpack.c.l.b16 %v2817
      %v2923 = vunpack.c.l.b16 %v2818
      %v2924 = vpack.c.b16 %v2921, %v2920
      %v2925 = vpack.c.b16 %v2923, %v2922
      %2926 = vrot.lane.b32.xlu0 %v1304, 64
      %v2927 = vpop.permute.xlu0 %2926
      %2928 = vrot.lane.b32.xlu0 %v1305, 64
      %v2929 = vpop.permute.xlu0 %2928
      %v2933 = vsel %vm631, %v2924, 0
      %v2936 = vsel %vm631, %v2925, 0
      %2938 = vmatpush.bf16.msra.mxu0 0
      %2939 = vmatpush.bf16.msra.mxu0 0
      %2940 = vmatpush.bf16.msra.mxu0 0
      %2941 = vmatpush.bf16.msra.mxu0 0
      %2942 = vmatpush.bf16.msra.mxu0 0
      %2943 = vmatpush.bf16.msra.mxu0 0
      %2944 = vmatpush.bf16.msra.mxu0 %v2929
      %2945 = vmatpush.bf16.msra.mxu0 %v2927
      %2946 = vmatmul.bf16.gmra.mxu0 %v2933
      %v2947 = vpop.f32.mrf.mxu0
      %v2948 = vadd.f32 0.0, %v2947
      %v2949 = vpop.f32.mrf.mxu0
      %v2950 = vadd.f32 0.0, %v2949
      %2951 = vmatmul.bf16.gmra.mxu0 %v2936
      %v2952 = vpop.f32.mrf.mxu0
      %v2953 = vadd.f32 0.0, %v2952
      %v2954 = vpop.f32.mrf.mxu0
      %v2955 = vadd.f32 0.0, %v2954
      %2956 = vdwg.mxu0
      %v2961 = vunpack.c.l.b16 %v2819
      %v2962 = vunpack.c.l.b16 %v2820
      %v2963 = vunpack.c.l.b16 %v2821
      %v2964 = vunpack.c.l.b16 %v2822
      %v2965 = vpack.c.b16 %v2962, %v2961
      %v2966 = vpack.c.b16 %v2964, %v2963
      %2967 = vrot.lane.b32.xlu0 %v1345, 64
      %v2968 = vpop.permute.xlu0 %2967
      %2969 = vrot.lane.b32.xlu0 %v1346, 64
      %v2970 = vpop.permute.xlu0 %2969
      %v2974 = vsel %vm631, %v2965, 0
      %v2977 = vsel %vm631, %v2966, 0
      %2979 = vmatpush.bf16.msra.mxu0 0
      %2980 = vmatpush.bf16.msra.mxu0 0
      %2981 = vmatpush.bf16.msra.mxu0 0
      %2982 = vmatpush.bf16.msra.mxu0 0
      %2983 = vmatpush.bf16.msra.mxu0 0
      %2984 = vmatpush.bf16.msra.mxu0 0
      %2985 = vmatpush.bf16.msra.mxu0 %v2970
      %2986 = vmatpush.bf16.msra.mxu0 %v2968
      %2987 = vmatmul.bf16.gmra.mxu0 %v2974
      %v2988 = vpop.f32.mrf.mxu0
      %v2989 = vadd.f32 0.0, %v2988
      %v2990 = vpop.f32.mrf.mxu0
      %v2991 = vadd.f32 0.0, %v2990
      %2992 = vmatmul.bf16.gmra.mxu0 %v2977
      %v2993 = vpop.f32.mrf.mxu0
      %v2994 = vadd.f32 0.0, %v2993
      %v2995 = vpop.f32.mrf.mxu0
      %v2996 = vadd.f32 0.0, %v2995
      %2997 = vdwg.mxu0
      %v3002 = vunpack.c.l.b16 %v2823
      %v3003 = vunpack.c.l.b16 %v2824
      %v3004 = vunpack.c.l.b16 %v2825
      %v3005 = vunpack.c.l.b16 %v2826
      %v3006 = vpack.c.b16 %v3003, %v3002
      %v3007 = vpack.c.b16 %v3005, %v3004
      %3008 = vrot.lane.b32.xlu0 %v1386, 64
      %v3009 = vpop.permute.xlu0 %3008
      %3010 = vrot.lane.b32.xlu0 %v1387, 64
      %v3011 = vpop.permute.xlu0 %3010
      %v3015 = vsel %vm631, %v3006, 0
      %v3018 = vsel %vm631, %v3007, 0
      %3020 = vmatpush.bf16.msra.mxu0 0
      %3021 = vmatpush.bf16.msra.mxu0 0
      %3022 = vmatpush.bf16.msra.mxu0 0
      %3023 = vmatpush.bf16.msra.mxu0 0
      %3024 = vmatpush.bf16.msra.mxu0 0
      %3025 = vmatpush.bf16.msra.mxu0 0
      %3026 = vmatpush.bf16.msra.mxu0 %v3011
      %3027 = vmatpush.bf16.msra.mxu0 %v3009
      %3028 = vmatmul.bf16.gmra.mxu0 %v3015
      %v3029 = vpop.f32.mrf.mxu0
      %v3030 = vadd.f32 0.0, %v3029
      %v3031 = vpop.f32.mrf.mxu0
      %v3032 = vadd.f32 0.0, %v3031
      %3033 = vmatmul.bf16.gmra.mxu0 %v3018
      %v3034 = vpop.f32.mrf.mxu0
      %v3035 = vadd.f32 0.0, %v3034
      %v3036 = vpop.f32.mrf.mxu0
      %v3037 = vadd.f32 0.0, %v3036
      %3038 = vdwg.mxu0
      %v3043 = vunpack.c.l.b16 %v2827
      %v3044 = vunpack.c.l.b16 %v2828
      %v3045 = vunpack.c.l.b16 %v2829
      %v3046 = vunpack.c.l.b16 %v2830
      %v3047 = vpack.c.b16 %v3044, %v3043
      %v3048 = vpack.c.b16 %v3046, %v3045
      %3049 = vrot.lane.b32.xlu0 %v1427, 64
      %v3050 = vpop.permute.xlu0 %3049
      %3051 = vrot.lane.b32.xlu0 %v1428, 64
      %v3052 = vpop.permute.xlu0 %3051
      %v3056 = vsel %vm631, %v3047, 0
      %v3059 = vsel %vm631, %v3048, 0
      %3061 = vmatpush.bf16.msra.mxu0 0
      %3062 = vmatpush.bf16.msra.mxu0 0
      %3063 = vmatpush.bf16.msra.mxu0 0
      %3064 = vmatpush.bf16.msra.mxu0 0
      %3065 = vmatpush.bf16.msra.mxu0 0
      %3066 = vmatpush.bf16.msra.mxu0 0
      %3067 = vmatpush.bf16.msra.mxu0 %v3052
      %3068 = vmatpush.bf16.msra.mxu0 %v3050
      %3069 = vmatmul.bf16.gmra.mxu0 %v3056
      %v3070 = vpop.f32.mrf.mxu0
      %v3071 = vadd.f32 0.0, %v3070
      %v3072 = vpop.f32.mrf.mxu0
      %v3073 = vadd.f32 0.0, %v3072
      %3074 = vmatmul.bf16.gmra.mxu0 %v3059
      %v3075 = vpop.f32.mrf.mxu0
      %v3076 = vadd.f32 0.0, %v3075
      %v3077 = vpop.f32.mrf.mxu0
      %v3078 = vadd.f32 0.0, %v3077
      %3079 = vdwg.mxu0
      %v3084 = vunpack.c.l.b16 %v2831
      %v3085 = vunpack.c.l.b16 %v2832
      %v3086 = vunpack.c.l.b16 %v2833
      %v3087 = vunpack.c.l.b16 %v2834
      %v3088 = vpack.c.b16 %v3085, %v3084
      %v3089 = vpack.c.b16 %v3087, %v3086
      %3090 = vrot.lane.b32.xlu0 %v1468, 64
      %v3091 = vpop.permute.xlu0 %3090
      %3092 = vrot.lane.b32.xlu0 %v1469, 64
      %v3093 = vpop.permute.xlu0 %3092
      %v3097 = vsel %vm631, %v3088, 0
      %v3100 = vsel %vm631, %v3089, 0
      %3102 = vmatpush.bf16.msra.mxu0 0
      %3103 = vmatpush.bf16.msra.mxu0 0
      %3104 = vmatpush.bf16.msra.mxu0 0
      %3105 = vmatpush.bf16.msra.mxu0 0
      %3106 = vmatpush.bf16.msra.mxu0 0
      %3107 = vmatpush.bf16.msra.mxu0 0
      %3108 = vmatpush.bf16.msra.mxu0 %v3093
      %3109 = vmatpush.bf16.msra.mxu0 %v3091
      %3110 = vmatmul.bf16.gmra.mxu0 %v3097
      %v3111 = vpop.f32.mrf.mxu0
      %v3112 = vadd.f32 0.0, %v3111
      %v3113 = vpop.f32.mrf.mxu0
      %v3114 = vadd.f32 0.0, %v3113
      %3115 = vmatmul.bf16.gmra.mxu0 %v3100
      %v3116 = vpop.f32.mrf.mxu0
      %v3117 = vadd.f32 0.0, %v3116
      %v3118 = vpop.f32.mrf.mxu0
      %v3119 = vadd.f32 0.0, %v3118
      %3120 = vdwg.mxu0
      %v3125 = vunpack.c.l.b16 %v2835
      %v3126 = vunpack.c.l.b16 %v2836
      %v3127 = vunpack.c.l.b16 %v2837
      %v3128 = vunpack.c.l.b16 %v2838
      %v3129 = vpack.c.b16 %v3126, %v3125
      %v3130 = vpack.c.b16 %v3128, %v3127
      %3131 = vrot.lane.b32.xlu0 %v1509, 64
      %v3132 = vpop.permute.xlu0 %3131
      %3133 = vrot.lane.b32.xlu0 %v1510, 64
      %v3134 = vpop.permute.xlu0 %3133
      %v3138 = vsel %vm631, %v3129, 0
      %v3141 = vsel %vm631, %v3130, 0
      %3143 = vmatpush.bf16.msra.mxu0 0
      %3144 = vmatpush.bf16.msra.mxu0 0
      %3145 = vmatpush.bf16.msra.mxu0 0
      %3146 = vmatpush.bf16.msra.mxu0 0
      %3147 = vmatpush.bf16.msra.mxu0 0
      %3148 = vmatpush.bf16.msra.mxu0 0
      %3149 = vmatpush.bf16.msra.mxu0 %v3134
      %3150 = vmatpush.bf16.msra.mxu0 %v3132
      %3151 = vmatmul.bf16.gmra.mxu0 %v3138
      %v3152 = vpop.f32.mrf.mxu0
      %v3153 = vadd.f32 0.0, %v3152
      %v3154 = vpop.f32.mrf.mxu0
      %v3155 = vadd.f32 0.0, %v3154
      %3156 = vmatmul.bf16.gmra.mxu0 %v3141
      %v3157 = vpop.f32.mrf.mxu0
      %v3158 = vadd.f32 0.0, %v3157
      %v3159 = vpop.f32.mrf.mxu0
      %v3160 = vadd.f32 0.0, %v3159
      %3161 = vdwg.mxu0
      %v3166 = vunpack.c.l.b16 %v2839
      %v3167 = vunpack.c.l.b16 %v2840
      %v3168 = vunpack.c.l.b16 %v2841
      %v3169 = vunpack.c.l.b16 %v2842
      %v3170 = vpack.c.b16 %v3167, %v3166
      %v3171 = vpack.c.b16 %v3169, %v3168
      %3172 = vrot.lane.b32.xlu0 %v1550, 64
      %v3173 = vpop.permute.xlu0 %3172
      %3174 = vrot.lane.b32.xlu0 %v1551, 64
      %v3175 = vpop.permute.xlu0 %3174
      %v3179 = vsel %vm631, %v3170, 0
      %v3182 = vsel %vm631, %v3171, 0
      %3184 = vmatpush.bf16.msra.mxu0 0
      %3185 = vmatpush.bf16.msra.mxu0 0
      %3186 = vmatpush.bf16.msra.mxu0 0
      %3187 = vmatpush.bf16.msra.mxu0 0
      %3188 = vmatpush.bf16.msra.mxu0 0
      %3189 = vmatpush.bf16.msra.mxu0 0
      %3190 = vmatpush.bf16.msra.mxu0 %v3175
      %3191 = vmatpush.bf16.msra.mxu0 %v3173
      %3192 = vmatmul.bf16.gmra.mxu0 %v3179
      %v3193 = vpop.f32.mrf.mxu0
      %v3194 = vadd.f32 0.0, %v3193
      %v3195 = vpop.f32.mrf.mxu0
      %v3196 = vadd.f32 0.0, %v3195
      %3197 = vmatmul.bf16.gmra.mxu0 %v3182
      %v3198 = vpop.f32.mrf.mxu0
      %v3199 = vadd.f32 0.0, %v3198
      %v3200 = vpop.f32.mrf.mxu0
      %v3201 = vadd.f32 0.0, %v3200
      %3202 = vdwg.mxu0
      %v3207 = vunpack.c.l.b16 %v2843
      %v3208 = vunpack.c.l.b16 %v2844
      %v3209 = vunpack.c.l.b16 %v2845
      %v3210 = vunpack.c.l.b16 %v2846
      %v3211 = vpack.c.b16 %v3208, %v3207
      %v3212 = vpack.c.b16 %v3210, %v3209
      %3213 = vrot.lane.b32.xlu0 %v1591, 64
      %v3214 = vpop.permute.xlu0 %3213
      %3215 = vrot.lane.b32.xlu0 %v1592, 64
      %v3216 = vpop.permute.xlu0 %3215
      %v3220 = vsel %vm631, %v3211, 0
      %v3223 = vsel %vm631, %v3212, 0
      %3225 = vmatpush.bf16.msra.mxu0 0
      %3226 = vmatpush.bf16.msra.mxu0 0
      %3227 = vmatpush.bf16.msra.mxu0 0
      %3228 = vmatpush.bf16.msra.mxu0 0
      %3229 = vmatpush.bf16.msra.mxu0 0
      %3230 = vmatpush.bf16.msra.mxu0 0
      %3231 = vmatpush.bf16.msra.mxu0 %v3216
      %3232 = vmatpush.bf16.msra.mxu0 %v3214
      %3233 = vmatmul.bf16.gmra.mxu0 %v3220
      %v3234 = vpop.f32.mrf.mxu0
      %v3235 = vadd.f32 0.0, %v3234
      %v3236 = vpop.f32.mrf.mxu0
      %v3237 = vadd.f32 0.0, %v3236
      %3238 = vmatmul.bf16.gmra.mxu0 %v3223
      %v3239 = vpop.f32.mrf.mxu0
      %v3240 = vadd.f32 0.0, %v3239
      %v3241 = vpop.f32.mrf.mxu0
      %v3242 = vadd.f32 0.0, %v3241
      %3243 = vdwg.mxu0
      %v3248 = vunpack.c.l.b16 %v2847
      %v3249 = vunpack.c.l.b16 %v2848
      %v3250 = vunpack.c.l.b16 %v2849
      %v3251 = vunpack.c.l.b16 %v2850
      %v3252 = vpack.c.b16 %v3249, %v3248
      %v3253 = vpack.c.b16 %v3251, %v3250
      %3254 = vrot.lane.b32.xlu0 %v1632, 64
      %v3255 = vpop.permute.xlu0 %3254
      %3256 = vrot.lane.b32.xlu0 %v1633, 64
      %v3257 = vpop.permute.xlu0 %3256
      %v3261 = vsel %vm631, %v3252, 0
      %v3264 = vsel %vm631, %v3253, 0
      %3266 = vmatpush.bf16.msra.mxu0 0
      %3267 = vmatpush.bf16.msra.mxu0 0
      %3268 = vmatpush.bf16.msra.mxu0 0
      %3269 = vmatpush.bf16.msra.mxu0 0
      %3270 = vmatpush.bf16.msra.mxu0 0
      %3271 = vmatpush.bf16.msra.mxu0 0
      %3272 = vmatpush.bf16.msra.mxu0 %v3257
      %3273 = vmatpush.bf16.msra.mxu0 %v3255
      %3274 = vmatmul.bf16.gmra.mxu0 %v3261
      %v3275 = vpop.f32.mrf.mxu0
      %v3276 = vadd.f32 0.0, %v3275
      %v3277 = vpop.f32.mrf.mxu0
      %v3278 = vadd.f32 0.0, %v3277
      %3279 = vmatmul.bf16.gmra.mxu0 %v3264
      %v3280 = vpop.f32.mrf.mxu0
      %v3281 = vadd.f32 0.0, %v3280
      %v3282 = vpop.f32.mrf.mxu0
      %v3283 = vadd.f32 0.0, %v3282
      %3284 = vdwg.mxu0
      %v3289 = vunpack.c.l.b16 %v2851
      %v3290 = vunpack.c.l.b16 %v2852
      %v3291 = vunpack.c.l.b16 %v2853
      %v3292 = vunpack.c.l.b16 %v2854
      %v3293 = vpack.c.b16 %v3290, %v3289
      %v3294 = vpack.c.b16 %v3292, %v3291
      %3295 = vrot.lane.b32.xlu0 %v1673, 64
      %v3296 = vpop.permute.xlu0 %3295
      %3297 = vrot.lane.b32.xlu0 %v1674, 64
      %v3298 = vpop.permute.xlu0 %3297
      %v3302 = vsel %vm631, %v3293, 0
      %v3305 = vsel %vm631, %v3294, 0
      %3307 = vmatpush.bf16.msra.mxu0 0
      %3308 = vmatpush.bf16.msra.mxu0 0
      %3309 = vmatpush.bf16.msra.mxu0 0
      %3310 = vmatpush.bf16.msra.mxu0 0
      %3311 = vmatpush.bf16.msra.mxu0 0
      %3312 = vmatpush.bf16.msra.mxu0 0
      %3313 = vmatpush.bf16.msra.mxu0 %v3298
      %3314 = vmatpush.bf16.msra.mxu0 %v3296
      %3315 = vmatmul.bf16.gmra.mxu0 %v3302
      %v3316 = vpop.f32.mrf.mxu0
      %v3317 = vadd.f32 0.0, %v3316
      %v3318 = vpop.f32.mrf.mxu0
      %v3319 = vadd.f32 0.0, %v3318
      %3320 = vmatmul.bf16.gmra.mxu0 %v3305
      %v3321 = vpop.f32.mrf.mxu0
      %v3322 = vadd.f32 0.0, %v3321
      %v3323 = vpop.f32.mrf.mxu0
      %v3324 = vadd.f32 0.0, %v3323
      %3325 = vdwg.mxu0
      %v3330 = vunpack.c.l.b16 %v2855
      %v3331 = vunpack.c.l.b16 %v2856
      %v3332 = vunpack.c.l.b16 %v2857
      %v3333 = vunpack.c.l.b16 %v2858
      %v3334 = vpack.c.b16 %v3331, %v3330
      %v3335 = vpack.c.b16 %v3333, %v3332
      %3336 = vrot.lane.b32.xlu0 %v1714, 64
      %v3337 = vpop.permute.xlu0 %3336
      %3338 = vrot.lane.b32.xlu0 %v1715, 64
      %v3339 = vpop.permute.xlu0 %3338
      %v3343 = vsel %vm631, %v3334, 0
      %v3346 = vsel %vm631, %v3335, 0
      %3348 = vmatpush.bf16.msra.mxu0 0
      %3349 = vmatpush.bf16.msra.mxu0 0
      %3350 = vmatpush.bf16.msra.mxu0 0
      %3351 = vmatpush.bf16.msra.mxu0 0
      %3352 = vmatpush.bf16.msra.mxu0 0
      %3353 = vmatpush.bf16.msra.mxu0 0
      %3354 = vmatpush.bf16.msra.mxu0 %v3339
      %3355 = vmatpush.bf16.msra.mxu0 %v3337
      %3356 = vmatmul.bf16.gmra.mxu0 %v3343
      %v3357 = vpop.f32.mrf.mxu0
      %v3358 = vadd.f32 0.0, %v3357
      %v3359 = vpop.f32.mrf.mxu0
      %v3360 = vadd.f32 0.0, %v3359
      %3361 = vmatmul.bf16.gmra.mxu0 %v3346
      %v3362 = vpop.f32.mrf.mxu0
      %v3363 = vadd.f32 0.0, %v3362
      %v3364 = vpop.f32.mrf.mxu0
      %v3365 = vadd.f32 0.0, %v3364
      %3366 = vdwg.mxu0
      %v3371 = vunpack.c.l.b16 %v2859
      %v3372 = vunpack.c.l.b16 %v2860
      %v3373 = vunpack.c.l.b16 %v2861
      %v3374 = vunpack.c.l.b16 %v2862
      %v3375 = vpack.c.b16 %v3372, %v3371
      %v3376 = vpack.c.b16 %v3374, %v3373
      %3377 = vrot.lane.b32.xlu0 %v1755, 64
      %v3378 = vpop.permute.xlu0 %3377
      %3379 = vrot.lane.b32.xlu0 %v1756, 64
      %v3380 = vpop.permute.xlu0 %3379
      %v3384 = vsel %vm631, %v3375, 0
      %v3387 = vsel %vm631, %v3376, 0
      %3389 = vmatpush.bf16.msra.mxu0 0
      %3390 = vmatpush.bf16.msra.mxu0 0
      %3391 = vmatpush.bf16.msra.mxu0 0
      %3392 = vmatpush.bf16.msra.mxu0 0
      %3393 = vmatpush.bf16.msra.mxu0 0
      %3394 = vmatpush.bf16.msra.mxu0 0
      %3395 = vmatpush.bf16.msra.mxu0 %v3380
      %3396 = vmatpush.bf16.msra.mxu0 %v3378
      %3397 = vmatmul.bf16.gmra.mxu0 %v3384
      %v3398 = vpop.f32.mrf.mxu0
      %v3399 = vadd.f32 0.0, %v3398
      %v3400 = vpop.f32.mrf.mxu0
      %v3401 = vadd.f32 0.0, %v3400
      %3402 = vmatmul.bf16.gmra.mxu0 %v3387
      %v3403 = vpop.f32.mrf.mxu0
      %v3404 = vadd.f32 0.0, %v3403
      %v3405 = vpop.f32.mrf.mxu0
      %v3406 = vadd.f32 0.0, %v3405
      %3407 = vdwg.mxu0
      %v3412 = vunpack.c.l.b16 %v2863
      %v3413 = vunpack.c.l.b16 %v2864
      %v3414 = vunpack.c.l.b16 %v2865
      %v3415 = vunpack.c.l.b16 %v2866
      %v3416 = vpack.c.b16 %v3413, %v3412
      %v3417 = vpack.c.b16 %v3415, %v3414
      %3418 = vrot.lane.b32.xlu0 %v1796, 64
      %v3419 = vpop.permute.xlu0 %3418
      %3420 = vrot.lane.b32.xlu0 %v1797, 64
      %v3421 = vpop.permute.xlu0 %3420
      %v3425 = vsel %vm631, %v3416, 0
      %v3428 = vsel %vm631, %v3417, 0
      %3430 = vmatpush.bf16.msra.mxu0 0
      %3431 = vmatpush.bf16.msra.mxu0 0
      %3432 = vmatpush.bf16.msra.mxu0 0
      %3433 = vmatpush.bf16.msra.mxu0 0
      %3434 = vmatpush.bf16.msra.mxu0 0
      %3435 = vmatpush.bf16.msra.mxu0 0
      %3436 = vmatpush.bf16.msra.mxu0 %v3421
      %3437 = vmatpush.bf16.msra.mxu0 %v3419
      %3438 = vmatmul.bf16.gmra.mxu0 %v3425
      %v3439 = vpop.f32.mrf.mxu0
      %v3440 = vadd.f32 0.0, %v3439
      %v3441 = vpop.f32.mrf.mxu0
      %v3442 = vadd.f32 0.0, %v3441
      %3443 = vmatmul.bf16.gmra.mxu0 %v3428
      %v3444 = vpop.f32.mrf.mxu0
      %v3445 = vadd.f32 0.0, %v3444
      %v3446 = vpop.f32.mrf.mxu0
      %v3447 = vadd.f32 0.0, %v3446
      %3448 = vdwg.mxu0
      %v3453 = vunpack.c.l.b16 %v2867
      %v3454 = vunpack.c.l.b16 %v2868
      %v3455 = vunpack.c.l.b16 %v2869
      %v3456 = vunpack.c.l.b16 %v2870
      %v3457 = vpack.c.b16 %v3454, %v3453
      %v3458 = vpack.c.b16 %v3456, %v3455
      %3459 = vrot.lane.b32.xlu0 %v1837, 64
      %v3460 = vpop.permute.xlu0 %3459
      %3461 = vrot.lane.b32.xlu0 %v1838, 64
      %v3462 = vpop.permute.xlu0 %3461
      %v3466 = vsel %vm631, %v3457, 0
      %v3469 = vsel %vm631, %v3458, 0
      %3471 = vmatpush.bf16.msra.mxu0 0
      %3472 = vmatpush.bf16.msra.mxu0 0
      %3473 = vmatpush.bf16.msra.mxu0 0
      %3474 = vmatpush.bf16.msra.mxu0 0
      %3475 = vmatpush.bf16.msra.mxu0 0
      %3476 = vmatpush.bf16.msra.mxu0 0
      %3477 = vmatpush.bf16.msra.mxu0 %v3462
      %3478 = vmatpush.bf16.msra.mxu0 %v3460
      %3479 = vmatmul.bf16.gmra.mxu0 %v3466
      %v3480 = vpop.f32.mrf.mxu0
      %v3481 = vadd.f32 0.0, %v3480
      %v3482 = vpop.f32.mrf.mxu0
      %v3483 = vadd.f32 0.0, %v3482
      %3484 = vmatmul.bf16.gmra.mxu0 %v3469
      %v3485 = vpop.f32.mrf.mxu0
      %v3486 = vadd.f32 0.0, %v3485
      %v3487 = vpop.f32.mrf.mxu0
      %v3488 = vadd.f32 0.0, %v3487
      %3489 = vdwg.mxu0
      %v3494 = vunpack.c.l.b16 %v2871
      %v3495 = vunpack.c.l.b16 %v2872
      %v3496 = vunpack.c.l.b16 %v2873
      %v3497 = vunpack.c.l.b16 %v2874
      %v3498 = vpack.c.b16 %v3495, %v3494
      %v3499 = vpack.c.b16 %v3497, %v3496
      %3500 = vrot.lane.b32.xlu0 %v1878, 64
      %v3501 = vpop.permute.xlu0 %3500
      %3502 = vrot.lane.b32.xlu0 %v1879, 64
      %v3503 = vpop.permute.xlu0 %3502
      %v3507 = vsel %vm631, %v3498, 0
      %v3510 = vsel %vm631, %v3499, 0
      %3512 = vmatpush.bf16.msra.mxu0 0
      %3513 = vmatpush.bf16.msra.mxu0 0
      %3514 = vmatpush.bf16.msra.mxu0 0
      %3515 = vmatpush.bf16.msra.mxu0 0
      %3516 = vmatpush.bf16.msra.mxu0 0
      %3517 = vmatpush.bf16.msra.mxu0 0
      %3518 = vmatpush.bf16.msra.mxu0 %v3503
      %3519 = vmatpush.bf16.msra.mxu0 %v3501
      %3520 = vmatmul.bf16.gmra.mxu0 %v3507
      %v3521 = vpop.f32.mrf.mxu0
      %v3522 = vadd.f32 0.0, %v3521
      %v3523 = vpop.f32.mrf.mxu0
      %v3524 = vadd.f32 0.0, %v3523
      %3525 = vmatmul.bf16.gmra.mxu0 %v3510
      %v3526 = vpop.f32.mrf.mxu0
      %v3527 = vadd.f32 0.0, %v3526
      %v3528 = vpop.f32.mrf.mxu0
      %v3529 = vadd.f32 0.0, %v3528
      %3530 = vdwg.mxu0
      %3547 = vrot.lane.b32.xlu0 %v2948, 8
      %v3548 = vpop.permute.xlu0 %3547
      %3549 = vrot.lane.b32.xlu0 %v2950, 8
      %v3550 = vpop.permute.xlu0 %3549
      %3551 = vrot.lane.b32.xlu0 %v2953, 8
      %v3552 = vpop.permute.xlu0 %3551
      %3553 = vrot.lane.b32.xlu0 %v2955, 8
      %v3554 = vpop.permute.xlu0 %3553
      %3555 = vrot.lane.b32.xlu0 %v3112, 8
      %v3556 = vpop.permute.xlu0 %3555
      %3557 = vrot.lane.b32.xlu0 %v3114, 8
      %v3558 = vpop.permute.xlu0 %3557
      %3559 = vrot.lane.b32.xlu0 %v3117, 8
      %v3560 = vpop.permute.xlu0 %3559
      %3561 = vrot.lane.b32.xlu0 %v3119, 8
      %v3562 = vpop.permute.xlu0 %3561
      %3563 = vrot.lane.b32.xlu0 %v3276, 8
      %v3564 = vpop.permute.xlu0 %3563
      %3565 = vrot.lane.b32.xlu0 %v3278, 8
      %v3566 = vpop.permute.xlu0 %3565
      %3567 = vrot.lane.b32.xlu0 %v3281, 8
      %v3568 = vpop.permute.xlu0 %3567
      %3569 = vrot.lane.b32.xlu0 %v3283, 8
      %v3570 = vpop.permute.xlu0 %3569
      %3571 = vrot.lane.b32.xlu0 %v3440, 8
      %v3572 = vpop.permute.xlu0 %3571
      %3573 = vrot.lane.b32.xlu0 %v3442, 8
      %v3574 = vpop.permute.xlu0 %3573
      %3575 = vrot.lane.b32.xlu0 %v3445, 8
      %v3576 = vpop.permute.xlu0 %3575
      %3577 = vrot.lane.b32.xlu0 %v3447, 8
      %v3578 = vpop.permute.xlu0 %3577
      %3611 = vrot.lane.b32.xlu0 %v2989, 16
      %v3612 = vpop.permute.xlu0 %3611
      %3613 = vrot.lane.b32.xlu0 %v2991, 16
      %v3614 = vpop.permute.xlu0 %3613
      %3615 = vrot.lane.b32.xlu0 %v2994, 16
      %v3616 = vpop.permute.xlu0 %3615
      %3617 = vrot.lane.b32.xlu0 %v2996, 16
      %v3618 = vpop.permute.xlu0 %3617
      %3619 = vrot.lane.b32.xlu0 %v3153, 16
      %v3620 = vpop.permute.xlu0 %3619
      %3621 = vrot.lane.b32.xlu0 %v3155, 16
      %v3622 = vpop.permute.xlu0 %3621
      %3623 = vrot.lane.b32.xlu0 %v3158, 16
      %v3624 = vpop.permute.xlu0 %3623
      %3625 = vrot.lane.b32.xlu0 %v3160, 16
      %v3626 = vpop.permute.xlu0 %3625
      %3627 = vrot.lane.b32.xlu0 %v3317, 16
      %v3628 = vpop.permute.xlu0 %3627
      %3629 = vrot.lane.b32.xlu0 %v3319, 16
      %v3630 = vpop.permute.xlu0 %3629
      %3631 = vrot.lane.b32.xlu0 %v3322, 16
      %v3632 = vpop.permute.xlu0 %3631
      %3633 = vrot.lane.b32.xlu0 %v3324, 16
      %v3634 = vpop.permute.xlu0 %3633
      %3635 = vrot.lane.b32.xlu0 %v3481, 16
      %v3636 = vpop.permute.xlu0 %3635
      %3637 = vrot.lane.b32.xlu0 %v3483, 16
      %v3638 = vpop.permute.xlu0 %3637
      %3639 = vrot.lane.b32.xlu0 %v3486, 16
      %v3640 = vpop.permute.xlu0 %3639
      %3641 = vrot.lane.b32.xlu0 %v3488, 16
      %v3642 = vpop.permute.xlu0 %3641
      %3675 = vrot.lane.b32.xlu0 %v3030, 24
      %v3676 = vpop.permute.xlu0 %3675
      %3677 = vrot.lane.b32.xlu0 %v3032, 24
      %v3678 = vpop.permute.xlu0 %3677
      %3679 = vrot.lane.b32.xlu0 %v3035, 24
      %v3680 = vpop.permute.xlu0 %3679
      %3681 = vrot.lane.b32.xlu0 %v3037, 24
      %v3682 = vpop.permute.xlu0 %3681
      %3683 = vrot.lane.b32.xlu0 %v3194, 24
      %v3684 = vpop.permute.xlu0 %3683
      %3685 = vrot.lane.b32.xlu0 %v3196, 24
      %v3686 = vpop.permute.xlu0 %3685
      %3687 = vrot.lane.b32.xlu0 %v3199, 24
      %v3688 = vpop.permute.xlu0 %3687
      %3689 = vrot.lane.b32.xlu0 %v3201, 24
      %v3690 = vpop.permute.xlu0 %3689
      %3691 = vrot.lane.b32.xlu0 %v3358, 24
      %v3692 = vpop.permute.xlu0 %3691
      %3693 = vrot.lane.b32.xlu0 %v3360, 24
      %v3694 = vpop.permute.xlu0 %3693
      %3695 = vrot.lane.b32.xlu0 %v3363, 24
      %v3696 = vpop.permute.xlu0 %3695
      %3697 = vrot.lane.b32.xlu0 %v3365, 24
      %v3698 = vpop.permute.xlu0 %3697
      %3699 = vrot.lane.b32.xlu0 %v3522, 24
      %v3700 = vpop.permute.xlu0 %3699
      %3701 = vrot.lane.b32.xlu0 %v3524, 24
      %v3702 = vpop.permute.xlu0 %3701
      %3703 = vrot.lane.b32.xlu0 %v3527, 24
      %v3704 = vpop.permute.xlu0 %3703
      %3705 = vrot.lane.b32.xlu0 %v3529, 24
      %v3706 = vpop.permute.xlu0 %3705
      %v3723 = vsel %vm1268, %v2907, %v3548
      %v3724 = vsel %vm1268, %v2909, %v3550
      %v3725 = vsel %vm1268, %v2912, %v3552
      %v3726 = vsel %vm1268, %v2914, %v3554
      %v3727 = vsel %vm1268, %v3071, %v3556
      %v3728 = vsel %vm1268, %v3073, %v3558
      %v3729 = vsel %vm1268, %v3076, %v3560
      %v3730 = vsel %vm1268, %v3078, %v3562
      %v3731 = vsel %vm1268, %v3235, %v3564
      %v3732 = vsel %vm1268, %v3237, %v3566
      %v3733 = vsel %vm1268, %v3240, %v3568
      %v3734 = vsel %vm1268, %v3242, %v3570
      %v3735 = vsel %vm1268, %v3399, %v3572
      %v3736 = vsel %vm1268, %v3401, %v3574
      %v3737 = vsel %vm1268, %v3404, %v3576
      %v3738 = vsel %vm1268, %v3406, %v3578
      %vm3739 = vcmask 130048
      %v3740 = vsel %vm3739, %v3723, %v3612
      %v3741 = vsel %vm3739, %v3724, %v3614
      %v3742 = vsel %vm3739, %v3725, %v3616
      %v3743 = vsel %vm3739, %v3726, %v3618
      %v3744 = vsel %vm3739, %v3727, %v3620
      %v3745 = vsel %vm3739, %v3728, %v3622
      %v3746 = vsel %vm3739, %v3729, %v3624
      %v3747 = vsel %vm3739, %v3730, %v3626
      %v3748 = vsel %vm3739, %v3731, %v3628
      %v3749 = vsel %vm3739, %v3732, %v3630
      %v3750 = vsel %vm3739, %v3733, %v3632
      %v3751 = vsel %vm3739, %v3734, %v3634
      %v3752 = vsel %vm3739, %v3735, %v3636
      %v3753 = vsel %vm3739, %v3736, %v3638
      %v3754 = vsel %vm3739, %v3737, %v3640
      %v3755 = vsel %vm3739, %v3738, %v3642
      %vm3756 = vcmask 195584
      %v3757 = vsel %vm3756, %v3740, %v3676
      %v3758 = vsel %vm3756, %v3741, %v3678
      %v3759 = vsel %vm3756, %v3742, %v3680
      %v3760 = vsel %vm3756, %v3743, %v3682
      %v3761 = vsel %vm3756, %v3744, %v3684
      %v3762 = vsel %vm3756, %v3745, %v3686
      %v3763 = vsel %vm3756, %v3746, %v3688
      %v3764 = vsel %vm3756, %v3747, %v3690
      %v3765 = vsel %vm3756, %v3748, %v3692
      %v3766 = vsel %vm3756, %v3749, %v3694
      %v3767 = vsel %vm3756, %v3750, %v3696
      %v3768 = vsel %vm3756, %v3751, %v3698
      %v3769 = vsel %vm3756, %v3752, %v3700
      %v3770 = vsel %vm3756, %v3753, %v3702
      %v3771 = vsel %vm3756, %v3754, %v3704
      %v3772 = vsel %vm3756, %v3755, %v3706
      %v3773 = vpack.c.bf16 %v3758, %v3757
      %v3774 = vpack.c.bf16 %v3760, %v3759
      %v3775 = vpack.c.bf16 %v3762, %v3761
      %v3776 = vpack.c.bf16 %v3764, %v3763
      %v3777 = vpack.c.bf16 %v3766, %v3765
      %v3778 = vpack.c.bf16 %v3768, %v3767
      %v3779 = vpack.c.bf16 %v3770, %v3769
      %v3780 = vpack.c.bf16 %v3772, %v3771
      %v3781 = vld [vmem:[%s7] sm:$0xf]
      %v3782 = vld [vmem:[%s7 + $0x4] sm:$0xf]
      %v3783 = vld [vmem:[%s7 + $0x8] sm:$0xf]
      %v3784 = vld [vmem:[%s7 + $0xc] sm:$0xf]
      %v3785 = vld [vmem:[%s8] sm:$0x1]
      %v3787 = vperm.slane %v3785, 0
      %v3793 = vunpack.c.l.b16 %v3781
      %v3794 = vunpack.c.l.b16 %v3782
      %v3795 = vunpack.c.l.b16 %v3783
      %v3796 = vunpack.c.l.b16 %v3784
      %v3797 = vpack.c.b16 %v3794, %v3793
      %v3798 = vpack.c.b16 %v3796, %v3795
      %v3802 = vsel %vm631, %v3773, 0
      %v3805 = vsel %vm631, %v3774, 0
      %v3808 = vsel %vm631, %v3775, 0
      %v3811 = vsel %vm631, %v3776, 0
      %v3814 = vsel %vm631, %v3777, 0
      %v3817 = vsel %vm631, %v3778, 0
      %v3820 = vsel %vm631, %v3779, 0
      %v3823 = vsel %vm631, %v3780, 0
      %3825 = vmatpush.bf16.msra.mxu0 0
      %3826 = vmatpush.bf16.msra.mxu0 0
      %3827 = vmatpush.bf16.msra.mxu0 0
      %3828 = vmatpush.bf16.msra.mxu0 0
      %3829 = vmatpush.bf16.msra.mxu0 0
      %3830 = vmatpush.bf16.msra.mxu0 0
      %3831 = vmatpush.bf16.msra.mxu0 %v3798
      %3832 = vmatpush.bf16.msra.mxu0 %v3797
      %3833 = vmatmul.bf16.gmra.mxu0 %v3802
      %v3834 = vpop.f32.mrf.mxu0
      %v3835 = vadd.f32 %v3787, %v3834
      %v3836 = vpop.f32.mrf.mxu0
      %v3837 = vadd.f32 %v3787, %v3836
      %3838 = vmatmul.bf16.gmra.mxu0 %v3805
      %v3839 = vpop.f32.mrf.mxu0
      %v3840 = vadd.f32 %v3787, %v3839
      %v3841 = vpop.f32.mrf.mxu0
      %v3842 = vadd.f32 %v3787, %v3841
      %3843 = vmatmul.bf16.gmra.mxu0 %v3808
      %v3844 = vpop.f32.mrf.mxu0
      %v3845 = vadd.f32 %v3787, %v3844
      %v3846 = vpop.f32.mrf.mxu0
      %v3847 = vadd.f32 %v3787, %v3846
      %3848 = vmatmul.bf16.gmra.mxu0 %v3811
      %v3849 = vpop.f32.mrf.mxu0
      %v3850 = vadd.f32 %v3787, %v3849
      %v3851 = vpop.f32.mrf.mxu0
      %v3852 = vadd.f32 %v3787, %v3851
      %3853 = vmatmul.bf16.gmra.mxu0 %v3814
      %v3854 = vpop.f32.mrf.mxu0
      %v3855 = vadd.f32 %v3787, %v3854
      %v3856 = vpop.f32.mrf.mxu0
      %v3857 = vadd.f32 %v3787, %v3856
      %3858 = vmatmul.bf16.gmra.mxu0 %v3817
      %v3859 = vpop.f32.mrf.mxu0
      %v3860 = vadd.f32 %v3787, %v3859
      %v3861 = vpop.f32.mrf.mxu0
      %v3862 = vadd.f32 %v3787, %v3861
      %3863 = vmatmul.bf16.gmra.mxu0 %v3820
      %v3864 = vpop.f32.mrf.mxu0
      %v3865 = vadd.f32 %v3787, %v3864
      %v3866 = vpop.f32.mrf.mxu0
      %v3867 = vadd.f32 %v3787, %v3866
      %3868 = vmatmul.bf16.gmra.mxu0 %v3823
      %v3869 = vpop.f32.mrf.mxu0
      %v3870 = vadd.f32 %v3787, %v3869
      %v3871 = vpop.f32.mrf.mxu0
      %v3872 = vadd.f32 %v3787, %v3871
      %3873 = vdwg.mxu0
      %v3874 = vadd.f32 %v3835, %v613
      %v3875 = vadd.f32 %v3837, %v614
      %v3876 = vadd.f32 %v3840, %v615
      %v3877 = vadd.f32 %v3842, %v616
      %v3878 = vadd.f32 %v3845, %v617
      %v3879 = vadd.f32 %v3847, %v618
      %v3880 = vadd.f32 %v3850, %v619
      %v3881 = vadd.f32 %v3852, %v620
      %v3882 = vadd.f32 %v3855, %v621
      %v3883 = vadd.f32 %v3857, %v622
      %v3884 = vadd.f32 %v3860, %v623
      %v3885 = vadd.f32 %v3862, %v624
      %v3886 = vadd.f32 %v3865, %v625
      %v3887 = vadd.f32 %v3867, %v626
      %v3888 = vadd.f32 %v3870, %v627
      %v3889 = vadd.f32 %v3872, %v628
      %v3890 = vld [vmem:[%s9] sm:$0x1]
      %v3891 = vld [vmem:[%s10] sm:$0x1]
      %v3892 = vsel %vm631, %v3874, 0.0
      %3893 = vadd.xlane.f32.xlu0 %v3892
      %v3894 = vpop.xlane.xlu0 %3893
      %v3895 = vsel %vm631, %v3875, 0.0
      %3896 = vadd.xlane.f32.xlu0 %v3895
      %v3897 = vpop.xlane.xlu0 %3896
      %v3898 = vsel %vm631, %v3876, 0.0
      %3899 = vadd.xlane.f32.xlu0 %v3898
      %v3900 = vpop.xlane.xlu0 %3899
      %v3901 = vsel %vm631, %v3877, 0.0
      %3902 = vadd.xlane.f32.xlu0 %v3901
      %v3903 = vpop.xlane.xlu0 %3902
      %v3904 = vsel %vm631, %v3878, 0.0
      %3905 = vadd.xlane.f32.xlu0 %v3904
      %v3906 = vpop.xlane.xlu0 %3905
      %v3907 = vsel %vm631, %v3879, 0.0
      %3908 = vadd.xlane.f32.xlu0 %v3907
      %v3909 = vpop.xlane.xlu0 %3908
      %v3910 = vsel %vm631, %v3880, 0.0
      %3911 = vadd.xlane.f32.xlu0 %v3910
      %v3912 = vpop.xlane.xlu0 %3911
      %v3913 = vsel %vm631, %v3881, 0.0
      %3914 = vadd.xlane.f32.xlu0 %v3913
      %v3915 = vpop.xlane.xlu0 %3914
      %v3916 = vsel %vm631, %v3882, 0.0
      %3917 = vadd.xlane.f32.xlu0 %v3916
      %v3918 = vpop.xlane.xlu0 %3917
      %v3919 = vsel %vm631, %v3883, 0.0
      %3920 = vadd.xlane.f32.xlu0 %v3919
      %v3921 = vpop.xlane.xlu0 %3920
      %v3922 = vsel %vm631, %v3884, 0.0
      %3923 = vadd.xlane.f32.xlu0 %v3922
      %v3924 = vpop.xlane.xlu0 %3923
      %v3925 = vsel %vm631, %v3885, 0.0
      %3926 = vadd.xlane.f32.xlu0 %v3925
      %v3927 = vpop.xlane.xlu0 %3926
      %v3928 = vsel %vm631, %v3886, 0.0
      %3929 = vadd.xlane.f32.xlu0 %v3928
      %v3930 = vpop.xlane.xlu0 %3929
      %v3931 = vsel %vm631, %v3887, 0.0
      %3932 = vadd.xlane.f32.xlu0 %v3931
      %v3933 = vpop.xlane.xlu0 %3932
      %v3934 = vsel %vm631, %v3888, 0.0
      %3935 = vadd.xlane.f32.xlu0 %v3934
      %v3936 = vpop.xlane.xlu0 %3935
      %v3937 = vsel %vm631, %v3889, 0.0
      %3938 = vadd.xlane.f32.xlu0 %v3937
      %v3939 = vpop.xlane.xlu0 %3938
      %v3940 = vmul.f32 %v3894, %v686
      %v3941 = vmul.f32 %v3897, %v686
      %v3942 = vmul.f32 %v3900, %v686
      %v3943 = vmul.f32 %v3903, %v686
      %v3944 = vmul.f32 %v3906, %v686
      %v3945 = vmul.f32 %v3909, %v686
      %v3946 = vmul.f32 %v3912, %v686
      %v3947 = vmul.f32 %v3915, %v686
      %v3948 = vmul.f32 %v3918, %v686
      %v3949 = vmul.f32 %v3921, %v686
      %v3950 = vmul.f32 %v3924, %v686
      %v3951 = vmul.f32 %v3927, %v686
      %v3952 = vmul.f32 %v3930, %v686
      %v3953 = vmul.f32 %v3933, %v686
      %v3954 = vmul.f32 %v3936, %v686
      %v3955 = vmul.f32 %v3939, %v686
      %v3956 = vsub.f32 %v3874, %v3940
      %v3957 = vsub.f32 %v3875, %v3941
      %v3958 = vsub.f32 %v3876, %v3942
      %v3959 = vsub.f32 %v3877, %v3943
      %v3960 = vsub.f32 %v3878, %v3944
      %v3961 = vsub.f32 %v3879, %v3945
      %v3962 = vsub.f32 %v3880, %v3946
      %v3963 = vsub.f32 %v3881, %v3947
      %v3964 = vsub.f32 %v3882, %v3948
      %v3965 = vsub.f32 %v3883, %v3949
      %v3966 = vsub.f32 %v3884, %v3950
      %v3967 = vsub.f32 %v3885, %v3951
      %v3968 = vsub.f32 %v3886, %v3952
      %v3969 = vsub.f32 %v3887, %v3953
      %v3970 = vsub.f32 %v3888, %v3954
      %v3971 = vsub.f32 %v3889, %v3955
      %v3972 = vmul.f32 %v3956, %v3956
      %v3973 = vmul.f32 %v3957, %v3957
      %v3974 = vmul.f32 %v3958, %v3958
      %v3975 = vmul.f32 %v3959, %v3959
      %v3976 = vmul.f32 %v3960, %v3960
      %v3977 = vmul.f32 %v3961, %v3961
      %v3978 = vmul.f32 %v3962, %v3962
      %v3979 = vmul.f32 %v3963, %v3963
      %v3980 = vmul.f32 %v3964, %v3964
      %v3981 = vmul.f32 %v3965, %v3965
      %v3982 = vmul.f32 %v3966, %v3966
      %v3983 = vmul.f32 %v3967, %v3967
      %v3984 = vmul.f32 %v3968, %v3968
      %v3985 = vmul.f32 %v3969, %v3969
      %v3986 = vmul.f32 %v3970, %v3970
      %v3987 = vmul.f32 %v3971, %v3971
      %v3988 = vsel %vm631, %v3972, 0.0
      %3989 = vadd.xlane.f32.xlu0 %v3988
      %v3990 = vpop.xlane.xlu0 %3989
      %v3991 = vsel %vm631, %v3973, 0.0
      %3992 = vadd.xlane.f32.xlu0 %v3991
      %v3993 = vpop.xlane.xlu0 %3992
      %v3994 = vsel %vm631, %v3974, 0.0
      %3995 = vadd.xlane.f32.xlu0 %v3994
      %v3996 = vpop.xlane.xlu0 %3995
      %v3997 = vsel %vm631, %v3975, 0.0
      %3998 = vadd.xlane.f32.xlu0 %v3997
      %v3999 = vpop.xlane.xlu0 %3998
      %v4000 = vsel %vm631, %v3976, 0.0
      %4001 = vadd.xlane.f32.xlu0 %v4000
      %v4002 = vpop.xlane.xlu0 %4001
      %v4003 = vsel %vm631, %v3977, 0.0
      %4004 = vadd.xlane.f32.xlu0 %v4003
      %v4005 = vpop.xlane.xlu0 %4004
      %v4006 = vsel %vm631, %v3978, 0.0
      %4007 = vadd.xlane.f32.xlu0 %v4006
      %v4008 = vpop.xlane.xlu0 %4007
      %v4009 = vsel %vm631, %v3979, 0.0
      %4010 = vadd.xlane.f32.xlu0 %v4009
      %v4011 = vpop.xlane.xlu0 %4010
      %v4012 = vsel %vm631, %v3980, 0.0
      %4013 = vadd.xlane.f32.xlu0 %v4012
      %v4014 = vpop.xlane.xlu0 %4013
      %v4015 = vsel %vm631, %v3981, 0.0
      %4016 = vadd.xlane.f32.xlu0 %v4015
      %v4017 = vpop.xlane.xlu0 %4016
      %v4018 = vsel %vm631, %v3982, 0.0
      %4019 = vadd.xlane.f32.xlu0 %v4018
      %v4020 = vpop.xlane.xlu0 %4019
      %v4021 = vsel %vm631, %v3983, 0.0
      %4022 = vadd.xlane.f32.xlu0 %v4021
      %v4023 = vpop.xlane.xlu0 %4022
      %v4024 = vsel %vm631, %v3984, 0.0
      %4025 = vadd.xlane.f32.xlu0 %v4024
      %v4026 = vpop.xlane.xlu0 %4025
      %v4027 = vsel %vm631, %v3985, 0.0
      %4028 = vadd.xlane.f32.xlu0 %v4027
      %v4029 = vpop.xlane.xlu0 %4028
      %v4030 = vsel %vm631, %v3986, 0.0
      %4031 = vadd.xlane.f32.xlu0 %v4030
      %v4032 = vpop.xlane.xlu0 %4031
      %v4033 = vsel %vm631, %v3987, 0.0
      %4034 = vadd.xlane.f32.xlu0 %v4033
      %v4035 = vpop.xlane.xlu0 %4034
      %v4036 = vmul.f32 %v3990, %v686
      %v4037 = vmul.f32 %v3993, %v686
      %v4038 = vmul.f32 %v3996, %v686
      %v4039 = vmul.f32 %v3999, %v686
      %v4040 = vmul.f32 %v4002, %v686
      %v4041 = vmul.f32 %v4005, %v686
      %v4042 = vmul.f32 %v4008, %v686
      %v4043 = vmul.f32 %v4011, %v686
      %v4044 = vmul.f32 %v4014, %v686
      %v4045 = vmul.f32 %v4017, %v686
      %v4046 = vmul.f32 %v4020, %v686
      %v4047 = vmul.f32 %v4023, %v686
      %v4048 = vmul.f32 %v4026, %v686
      %v4049 = vmul.f32 %v4029, %v686
      %v4050 = vmul.f32 %v4032, %v686
      %v4051 = vmul.f32 %v4035, %v686
      %v4052 = vadd.f32 %v4036, 1e-05
      %v4053 = vadd.f32 %v4037, 1e-05
      %v4054 = vadd.f32 %v4038, 1e-05
      %v4055 = vadd.f32 %v4039, 1e-05
      %v4056 = vadd.f32 %v4040, 1e-05
      %v4057 = vadd.f32 %v4041, 1e-05
      %v4058 = vadd.f32 %v4042, 1e-05
      %v4059 = vadd.f32 %v4043, 1e-05
      %v4060 = vadd.f32 %v4044, 1e-05
      %v4061 = vadd.f32 %v4045, 1e-05
      %v4062 = vadd.f32 %v4046, 1e-05
      %v4063 = vadd.f32 %v4047, 1e-05
      %v4064 = vadd.f32 %v4048, 1e-05
      %v4065 = vadd.f32 %v4049, 1e-05
      %v4066 = vadd.f32 %v4050, 1e-05
      %v4067 = vadd.f32 %v4051, 1e-05
      %v4068 = vrsqrt.pop %v4052
      %v4069 = vmul.f32 %v4068, %v4052
      %v4070 = vmul.f32 %v4069, %v4068
      %v4071 = vmul.f32 0.5, %v4070
      %v4072 = vsub.f32 1.5, %v4071
      %v4073 = vmul.f32 %v4068, %v4072
      %vm4074 = vweird.f32 %v4052
      %vm4075 = vweird.f32 %v4068
      %vm4076 = vmor %vm4074, %vm4075
      %v4077 = vsel %vm4076, %v4068, %v4073
      %v4078 = vrsqrt.pop %v4053
      %v4079 = vmul.f32 %v4078, %v4053
      %v4080 = vmul.f32 %v4079, %v4078
      %v4081 = vmul.f32 0.5, %v4080
      %v4082 = vsub.f32 1.5, %v4081
      %v4083 = vmul.f32 %v4078, %v4082
      %vm4084 = vweird.f32 %v4053
      %vm4085 = vweird.f32 %v4078
      %vm4086 = vmor %vm4084, %vm4085
      %v4087 = vsel %vm4086, %v4078, %v4083
      %v4088 = vrsqrt.pop %v4054
      %v4089 = vmul.f32 %v4088, %v4054
      %v4090 = vmul.f32 %v4089, %v4088
      %v4091 = vmul.f32 0.5, %v4090
      %v4092 = vsub.f32 1.5, %v4091
      %v4093 = vmul.f32 %v4088, %v4092
      %vm4094 = vweird.f32 %v4054
      %vm4095 = vweird.f32 %v4088
      %vm4096 = vmor %vm4094, %vm4095
      %v4097 = vsel %vm4096, %v4088, %v4093
      %v4098 = vrsqrt.pop %v4055
      %v4099 = vmul.f32 %v4098, %v4055
      %v4100 = vmul.f32 %v4099, %v4098
      %v4101 = vmul.f32 0.5, %v4100
      %v4102 = vsub.f32 1.5, %v4101
      %v4103 = vmul.f32 %v4098, %v4102
      %vm4104 = vweird.f32 %v4055
      %vm4105 = vweird.f32 %v4098
      %vm4106 = vmor %vm4104, %vm4105
      %v4107 = vsel %vm4106, %v4098, %v4103
      %v4108 = vrsqrt.pop %v4056
      %v4109 = vmul.f32 %v4108, %v4056
      %v4110 = vmul.f32 %v4109, %v4108
      %v4111 = vmul.f32 0.5, %v4110
      %v4112 = vsub.f32 1.5, %v4111
      %v4113 = vmul.f32 %v4108, %v4112
      %vm4114 = vweird.f32 %v4056
      %vm4115 = vweird.f32 %v4108
      %vm4116 = vmor %vm4114, %vm4115
      %v4117 = vsel %vm4116, %v4108, %v4113
      %v4118 = vrsqrt.pop %v4057
      %v4119 = vmul.f32 %v4118, %v4057
      %v4120 = vmul.f32 %v4119, %v4118
      %v4121 = vmul.f32 0.5, %v4120
      %v4122 = vsub.f32 1.5, %v4121
      %v4123 = vmul.f32 %v4118, %v4122
      %vm4124 = vweird.f32 %v4057
      %vm4125 = vweird.f32 %v4118
      %vm4126 = vmor %vm4124, %vm4125
      %v4127 = vsel %vm4126, %v4118, %v4123
      %v4128 = vrsqrt.pop %v4058
      %v4129 = vmul.f32 %v4128, %v4058
      %v4130 = vmul.f32 %v4129, %v4128
      %v4131 = vmul.f32 0.5, %v4130
      %v4132 = vsub.f32 1.5, %v4131
      %v4133 = vmul.f32 %v4128, %v4132
      %vm4134 = vweird.f32 %v4058
      %vm4135 = vweird.f32 %v4128
      %vm4136 = vmor %vm4134, %vm4135
      %v4137 = vsel %vm4136, %v4128, %v4133
      %v4138 = vrsqrt.pop %v4059
      %v4139 = vmul.f32 %v4138, %v4059
      %v4140 = vmul.f32 %v4139, %v4138
      %v4141 = vmul.f32 0.5, %v4140
      %v4142 = vsub.f32 1.5, %v4141
      %v4143 = vmul.f32 %v4138, %v4142
      %vm4144 = vweird.f32 %v4059
      %vm4145 = vweird.f32 %v4138
      %vm4146 = vmor %vm4144, %vm4145
      %v4147 = vsel %vm4146, %v4138, %v4143
      %v4148 = vrsqrt.pop %v4060
      %v4149 = vmul.f32 %v4148, %v4060
      %v4150 = vmul.f32 %v4149, %v4148
      %v4151 = vmul.f32 0.5, %v4150
      %v4152 = vsub.f32 1.5, %v4151
      %v4153 = vmul.f32 %v4148, %v4152
      %vm4154 = vweird.f32 %v4060
      %vm4155 = vweird.f32 %v4148
      %vm4156 = vmor %vm4154, %vm4155
      %v4157 = vsel %vm4156, %v4148, %v4153
      %v4158 = vrsqrt.pop %v4061
      %v4159 = vmul.f32 %v4158, %v4061
      %v4160 = vmul.f32 %v4159, %v4158
      %v4161 = vmul.f32 0.5, %v4160
      %v4162 = vsub.f32 1.5, %v4161
      %v4163 = vmul.f32 %v4158, %v4162
      %vm4164 = vweird.f32 %v4061
      %vm4165 = vweird.f32 %v4158
      %vm4166 = vmor %vm4164, %vm4165
      %v4167 = vsel %vm4166, %v4158, %v4163
      %v4168 = vrsqrt.pop %v4062
      %v4169 = vmul.f32 %v4168, %v4062
      %v4170 = vmul.f32 %v4169, %v4168
      %v4171 = vmul.f32 0.5, %v4170
      %v4172 = vsub.f32 1.5, %v4171
      %v4173 = vmul.f32 %v4168, %v4172
      %vm4174 = vweird.f32 %v4062
      %vm4175 = vweird.f32 %v4168
      %vm4176 = vmor %vm4174, %vm4175
      %v4177 = vsel %vm4176, %v4168, %v4173
      %v4178 = vrsqrt.pop %v4063
      %v4179 = vmul.f32 %v4178, %v4063
      %v4180 = vmul.f32 %v4179, %v4178
      %v4181 = vmul.f32 0.5, %v4180
      %v4182 = vsub.f32 1.5, %v4181
      %v4183 = vmul.f32 %v4178, %v4182
      %vm4184 = vweird.f32 %v4063
      %vm4185 = vweird.f32 %v4178
      %vm4186 = vmor %vm4184, %vm4185
      %v4187 = vsel %vm4186, %v4178, %v4183
      %v4188 = vrsqrt.pop %v4064
      %v4189 = vmul.f32 %v4188, %v4064
      %v4190 = vmul.f32 %v4189, %v4188
      %v4191 = vmul.f32 0.5, %v4190
      %v4192 = vsub.f32 1.5, %v4191
      %v4193 = vmul.f32 %v4188, %v4192
      %vm4194 = vweird.f32 %v4064
      %vm4195 = vweird.f32 %v4188
      %vm4196 = vmor %vm4194, %vm4195
      %v4197 = vsel %vm4196, %v4188, %v4193
      %v4198 = vrsqrt.pop %v4065
      %v4199 = vmul.f32 %v4198, %v4065
      %v4200 = vmul.f32 %v4199, %v4198
      %v4201 = vmul.f32 0.5, %v4200
      %v4202 = vsub.f32 1.5, %v4201
      %v4203 = vmul.f32 %v4198, %v4202
      %vm4204 = vweird.f32 %v4065
      %vm4205 = vweird.f32 %v4198
      %vm4206 = vmor %vm4204, %vm4205
      %v4207 = vsel %vm4206, %v4198, %v4203
      %v4208 = vrsqrt.pop %v4066
      %v4209 = vmul.f32 %v4208, %v4066
      %v4210 = vmul.f32 %v4209, %v4208
      %v4211 = vmul.f32 0.5, %v4210
      %v4212 = vsub.f32 1.5, %v4211
      %v4213 = vmul.f32 %v4208, %v4212
      %vm4214 = vweird.f32 %v4066
      %vm4215 = vweird.f32 %v4208
      %vm4216 = vmor %vm4214, %vm4215
      %v4217 = vsel %vm4216, %v4208, %v4213
      %v4218 = vrsqrt.pop %v4067
      %v4219 = vmul.f32 %v4218, %v4067
      %v4220 = vmul.f32 %v4219, %v4218
      %v4221 = vmul.f32 0.5, %v4220
      %v4222 = vsub.f32 1.5, %v4221
      %v4223 = vmul.f32 %v4218, %v4222
      %vm4224 = vweird.f32 %v4067
      %vm4225 = vweird.f32 %v4218
      %vm4226 = vmor %vm4224, %vm4225
      %v4227 = vsel %vm4226, %v4218, %v4223
      %v4228 = vmul.f32 %v3956, %v4077
      %v4229 = vmul.f32 %v3957, %v4087
      %v4230 = vmul.f32 %v3958, %v4097
      %v4231 = vmul.f32 %v3959, %v4107
      %v4232 = vmul.f32 %v3960, %v4117
      %v4233 = vmul.f32 %v3961, %v4127
      %v4234 = vmul.f32 %v3962, %v4137
      %v4235 = vmul.f32 %v3963, %v4147
      %v4236 = vmul.f32 %v3964, %v4157
      %v4237 = vmul.f32 %v3965, %v4167
      %v4238 = vmul.f32 %v3966, %v4177
      %v4239 = vmul.f32 %v3967, %v4187
      %v4240 = vmul.f32 %v3968, %v4197
      %v4241 = vmul.f32 %v3969, %v4207
      %v4242 = vmul.f32 %v3970, %v4217
      %v4243 = vmul.f32 %v3971, %v4227
      %v4245 = vperm.slane %v3890, 0
      %v4247 = vmul.f32 %v4228, %v4245
      %v4248 = vmul.f32 %v4229, %v4245
      %v4249 = vmul.f32 %v4230, %v4245
      %v4250 = vmul.f32 %v4231, %v4245
      %v4251 = vmul.f32 %v4232, %v4245
      %v4252 = vmul.f32 %v4233, %v4245
      %v4253 = vmul.f32 %v4234, %v4245
      %v4254 = vmul.f32 %v4235, %v4245
      %v4255 = vmul.f32 %v4236, %v4245
      %v4256 = vmul.f32 %v4237, %v4245
      %v4257 = vmul.f32 %v4238, %v4245
      %v4258 = vmul.f32 %v4239, %v4245
      %v4259 = vmul.f32 %v4240, %v4245
      %v4260 = vmul.f32 %v4241, %v4245
      %v4261 = vmul.f32 %v4242, %v4245
      %v4262 = vmul.f32 %v4243, %v4245
      %v4264 = vperm.slane %v3891, 0
      %v4266 = vadd.f32 %v4247, %v4264
      %v4267 = vadd.f32 %v4248, %v4264
      %v4268 = vadd.f32 %v4249, %v4264
      %v4269 = vadd.f32 %v4250, %v4264
      %v4270 = vadd.f32 %v4251, %v4264
      %v4271 = vadd.f32 %v4252, %v4264
      %v4272 = vadd.f32 %v4253, %v4264
      %v4273 = vadd.f32 %v4254, %v4264
      %v4274 = vadd.f32 %v4255, %v4264
      %v4275 = vadd.f32 %v4256, %v4264
      %v4276 = vadd.f32 %v4257, %v4264
      %v4277 = vadd.f32 %v4258, %v4264
      %v4278 = vadd.f32 %v4259, %v4264
      %v4279 = vadd.f32 %v4260, %v4264
      %v4280 = vadd.f32 %v4261, %v4264
      %v4281 = vadd.f32 %v4262, %v4264
      %v4282 = vpack.c.bf16 %v4267, %v4266
      %v4283 = vpack.c.bf16 %v4269, %v4268
      %v4284 = vpack.c.bf16 %v4271, %v4270
      %v4285 = vpack.c.bf16 %v4273, %v4272
      %v4286 = vpack.c.bf16 %v4275, %v4274
      %v4287 = vpack.c.bf16 %v4277, %v4276
      %v4288 = vpack.c.bf16 %v4279, %v4278
      %v4289 = vpack.c.bf16 %v4281, %v4280
      %v4290 = vld [vmem:[%s11] sm:$0xf]
      %v4291 = vld [vmem:[%s11 + $0x4] sm:$0xf]
      %v4292 = vld [vmem:[%s11 + $0x8] sm:$0xf]
      %v4293 = vld [vmem:[%s11 + $0xc] sm:$0xf]
      %v4294 = vld [vmem:[%s12] sm:$0x1]
      %v4296 = vperm.slane %v4294, 0
      %v4302 = vunpack.c.l.b16 %v4290
      %v4303 = vunpack.c.l.b16 %v4291
      %v4304 = vunpack.c.l.b16 %v4292
      %v4305 = vunpack.c.l.b16 %v4293
      %v4306 = vpack.c.b16 %v4303, %v4302
      %v4307 = vpack.c.b16 %v4305, %v4304
      %v4311 = vsel %vm631, %v4282, 0
      %v4314 = vsel %vm631, %v4283, 0
      %v4317 = vsel %vm631, %v4284, 0
      %v4320 = vsel %vm631, %v4285, 0
      %v4323 = vsel %vm631, %v4286, 0
      %v4326 = vsel %vm631, %v4287, 0
      %v4329 = vsel %vm631, %v4288, 0
      %v4332 = vsel %vm631, %v4289, 0
      %4334 = vmatpush.bf16.msra.mxu0 0
      %4335 = vmatpush.bf16.msra.mxu0 0
      %4336 = vmatpush.bf16.msra.mxu0 0
      %4337 = vmatpush.bf16.msra.mxu0 0
      %4338 = vmatpush.bf16.msra.mxu0 0
      %4339 = vmatpush.bf16.msra.mxu0 0
      %4340 = vmatpush.bf16.msra.mxu0 %v4307
      %4341 = vmatpush.bf16.msra.mxu0 %v4306
      %4342 = vmatmul.bf16.gmra.mxu0 %v4311
      %v4343 = vpop.f32.mrf.mxu0
      %v4344 = vadd.f32 %v4296, %v4343
      %v4345 = vpop.f32.mrf.mxu0
      %v4346 = vadd.f32 %v4296, %v4345
      %4347 = vmatmul.bf16.gmra.mxu0 %v4314
      %v4348 = vpop.f32.mrf.mxu0
      %v4349 = vadd.f32 %v4296, %v4348
      %v4350 = vpop.f32.mrf.mxu0
      %v4351 = vadd.f32 %v4296, %v4350
      %4352 = vmatmul.bf16.gmra.mxu0 %v4317
      %v4353 = vpop.f32.mrf.mxu0
      %v4354 = vadd.f32 %v4296, %v4353
      %v4355 = vpop.f32.mrf.mxu0
      %v4356 = vadd.f32 %v4296, %v4355
      %4357 = vmatmul.bf16.gmra.mxu0 %v4320
      %v4358 = vpop.f32.mrf.mxu0
      %v4359 = vadd.f32 %v4296, %v4358
      %v4360 = vpop.f32.mrf.mxu0
      %v4361 = vadd.f32 %v4296, %v4360
      %4362 = vmatmul.bf16.gmra.mxu0 %v4323
      %v4363 = vpop.f32.mrf.mxu0
      %v4364 = vadd.f32 %v4296, %v4363
      %v4365 = vpop.f32.mrf.mxu0
      %v4366 = vadd.f32 %v4296, %v4365
      %4367 = vmatmul.bf16.gmra.mxu0 %v4326
      %v4368 = vpop.f32.mrf.mxu0
      %v4369 = vadd.f32 %v4296, %v4368
      %v4370 = vpop.f32.mrf.mxu0
      %v4371 = vadd.f32 %v4296, %v4370
      %4372 = vmatmul.bf16.gmra.mxu0 %v4329
      %v4373 = vpop.f32.mrf.mxu0
      %v4374 = vadd.f32 %v4296, %v4373
      %v4375 = vpop.f32.mrf.mxu0
      %v4376 = vadd.f32 %v4296, %v4375
      %4377 = vmatmul.bf16.gmra.mxu0 %v4332
      %v4378 = vpop.f32.mrf.mxu0
      %v4379 = vadd.f32 %v4296, %v4378
      %v4380 = vpop.f32.mrf.mxu0
      %v4381 = vadd.f32 %v4296, %v4380
      %4382 = vdwg.mxu0
      %v4383 = vmul.f32 %v4344, 0.5
      %v4384 = vmul.f32 %v4346, 0.5
      %v4385 = vmul.f32 %v4349, 0.5
      %v4386 = vmul.f32 %v4351, 0.5
      %v4387 = vmul.f32 %v4354, 0.5
      %v4388 = vmul.f32 %v4356, 0.5
      %v4389 = vmul.f32 %v4359, 0.5
      %v4390 = vmul.f32 %v4361, 0.5
      %v4391 = vmul.f32 %v4364, 0.5
      %v4392 = vmul.f32 %v4366, 0.5
      %v4393 = vmul.f32 %v4369, 0.5
      %v4394 = vmul.f32 %v4371, 0.5
      %v4395 = vmul.f32 %v4374, 0.5
      %v4396 = vmul.f32 %v4376, 0.5
      %v4397 = vmul.f32 %v4379, 0.5
      %v4398 = vmul.f32 %v4381, 0.5
      %v4399 = vmul.f32 %v4344, 0.70710677
      %v4400 = vmul.f32 %v4346, 0.70710677
      %v4401 = vmul.f32 %v4349, 0.70710677
      %v4402 = vmul.f32 %v4351, 0.70710677
      %v4403 = vmul.f32 %v4354, 0.70710677
      %v4404 = vmul.f32 %v4356, 0.70710677
      %v4405 = vmul.f32 %v4359, 0.70710677
      %v4406 = vmul.f32 %v4361, 0.70710677
      %v4407 = vmul.f32 %v4364, 0.70710677
      %v4408 = vmul.f32 %v4366, 0.70710677
      %v4409 = vmul.f32 %v4369, 0.70710677
      %v4410 = vmul.f32 %v4371, 0.70710677
      %v4411 = vmul.f32 %v4374, 0.70710677
      %v4412 = vmul.f32 %v4376, 0.70710677
      %v4413 = vmul.f32 %v4379, 0.70710677
      %v4414 = vmul.f32 %v4381, 0.70710677
      %v4415 = vand.u32 2147483647, %v4399
      %v4416 = vand.u32 2147483647, %v4400
      %v4417 = vand.u32 2147483647, %v4401
      %v4418 = vand.u32 2147483647, %v4402
      %v4419 = vand.u32 2147483647, %v4403
      %v4420 = vand.u32 2147483647, %v4404
      %v4421 = vand.u32 2147483647, %v4405
      %v4422 = vand.u32 2147483647, %v4406
      %v4423 = vand.u32 2147483647, %v4407
      %v4424 = vand.u32 2147483647, %v4408
      %v4425 = vand.u32 2147483647, %v4409
      %v4426 = vand.u32 2147483647, %v4410
      %v4427 = vand.u32 2147483647, %v4411
      %v4428 = vand.u32 2147483647, %v4412
      %v4429 = vand.u32 2147483647, %v4413
      %v4430 = vand.u32 2147483647, %v4414
      %v4431 = vmul.f32 %v4415, 0.3275911
      %v4432 = vmul.f32 %v4416, 0.3275911
      %v4433 = vmul.f32 %v4417, 0.3275911
      %v4434 = vmul.f32 %v4418, 0.3275911
      %v4435 = vmul.f32 %v4419, 0.3275911
      %v4436 = vmul.f32 %v4420, 0.3275911
      %v4437 = vmul.f32 %v4421, 0.3275911
      %v4438 = vmul.f32 %v4422, 0.3275911
      %v4439 = vmul.f32 %v4423, 0.3275911
      %v4440 = vmul.f32 %v4424, 0.3275911
      %v4441 = vmul.f32 %v4425, 0.3275911
      %v4442 = vmul.f32 %v4426, 0.3275911
      %v4443 = vmul.f32 %v4427, 0.3275911
      %v4444 = vmul.f32 %v4428, 0.3275911
      %v4445 = vmul.f32 %v4429, 0.3275911
      %v4446 = vmul.f32 %v4430, 0.3275911
      %v4447 = vadd.f32 %v4431, 1.0
      %v4448 = vadd.f32 %v4432, 1.0
      %v4449 = vadd.f32 %v4433, 1.0
      %v4450 = vadd.f32 %v4434, 1.0
      %v4451 = vadd.f32 %v4435, 1.0
      %v4452 = vadd.f32 %v4436, 1.0
      %v4453 = vadd.f32 %v4437, 1.0
      %v4454 = vadd.f32 %v4438, 1.0
      %v4455 = vadd.f32 %v4439, 1.0
      %v4456 = vadd.f32 %v4440, 1.0
      %v4457 = vadd.f32 %v4441, 1.0
      %v4458 = vadd.f32 %v4442, 1.0
      %v4459 = vadd.f32 %v4443, 1.0
      %v4460 = vadd.f32 %v4444, 1.0
      %v4461 = vadd.f32 %v4445, 1.0
      %v4462 = vadd.f32 %v4446, 1.0
      %v4463 = vrcp.pop %v4447
      %v4464 = vmul.f32 %v4447, %v4463
      %v4465 = vsub.f32 1.0, %v4464
      %v4466 = vmul.f32 %v4463, %v4465
      %v4467 = vadd.f32 %v4463, %v4466
      %vm4468 = vweird.f32 %v4447
      %vm4469 = vweird.f32 %v4463
      %vm4470 = vmor %vm4468, %vm4469
      %v4471 = vsel %vm4470, %v4463, %v4467
      %v4472 = vand.u32 2147483647, %v4447
      %vm4473 = vcmp.eq.f32.partialorder %v4472, 8.507059e+37
      %v4474 = vand.u32 %v4447, 2147483648
      %v4475 = vor.u32 1.1754944e-38, %v4474
      %v4476 = vsel %vm4473, %v4475, %v4471
      %v4477 = vmul.f32 1.0, %v4476
      %v4478 = vrcp.pop %v4448
      %v4479 = vmul.f32 %v4448, %v4478
      %v4480 = vsub.f32 1.0, %v4479
      %v4481 = vmul.f32 %v4478, %v4480
      %v4482 = vadd.f32 %v4478, %v4481
      %vm4483 = vweird.f32 %v4448
      %vm4484 = vweird.f32 %v4478
      %vm4485 = vmor %vm4483, %vm4484
      %v4486 = vsel %vm4485, %v4478, %v4482
      %v4487 = vand.u32 2147483647, %v4448
      %vm4488 = vcmp.eq.f32.partialorder %v4487, 8.507059e+37
      %v4489 = vand.u32 %v4448, 2147483648
      %v4490 = vor.u32 1.1754944e-38, %v4489
      %v4491 = vsel %vm4488, %v4490, %v4486
      %v4492 = vmul.f32 1.0, %v4491
      %v4493 = vrcp.pop %v4449
      %v4494 = vmul.f32 %v4449, %v4493
      %v4495 = vsub.f32 1.0, %v4494
      %v4496 = vmul.f32 %v4493, %v4495
      %v4497 = vadd.f32 %v4493, %v4496
      %vm4498 = vweird.f32 %v4449
      %vm4499 = vweird.f32 %v4493
      %vm4500 = vmor %vm4498, %vm4499
      %v4501 = vsel %vm4500, %v4493, %v4497
      %v4502 = vand.u32 2147483647, %v4449
      %vm4503 = vcmp.eq.f32.partialorder %v4502, 8.507059e+37
      %v4504 = vand.u32 %v4449, 2147483648
      %v4505 = vor.u32 1.1754944e-38, %v4504
      %v4506 = vsel %vm4503, %v4505, %v4501
      %v4507 = vmul.f32 1.0, %v4506
      %v4508 = vrcp.pop %v4450
      %v4509 = vmul.f32 %v4450, %v4508
      %v4510 = vsub.f32 1.0, %v4509
      %v4511 = vmul.f32 %v4508, %v4510
      %v4512 = vadd.f32 %v4508, %v4511
      %vm4513 = vweird.f32 %v4450
      %vm4514 = vweird.f32 %v4508
      %vm4515 = vmor %vm4513, %vm4514
      %v4516 = vsel %vm4515, %v4508, %v4512
      %v4517 = vand.u32 2147483647, %v4450
      %vm4518 = vcmp.eq.f32.partialorder %v4517, 8.507059e+37
      %v4519 = vand.u32 %v4450, 2147483648
      %v4520 = vor.u32 1.1754944e-38, %v4519
      %v4521 = vsel %vm4518, %v4520, %v4516
      %v4522 = vmul.f32 1.0, %v4521
      %v4523 = vrcp.pop %v4451
      %v4524 = vmul.f32 %v4451, %v4523
      %v4525 = vsub.f32 1.0, %v4524
      %v4526 = vmul.f32 %v4523, %v4525
      %v4527 = vadd.f32 %v4523, %v4526
      %vm4528 = vweird.f32 %v4451
      %vm4529 = vweird.f32 %v4523
      %vm4530 = vmor %vm4528, %vm4529
      %v4531 = vsel %vm4530, %v4523, %v4527
      %v4532 = vand.u32 2147483647, %v4451
      %vm4533 = vcmp.eq.f32.partialorder %v4532, 8.507059e+37
      %v4534 = vand.u32 %v4451, 2147483648
      %v4535 = vor.u32 1.1754944e-38, %v4534
      %v4536 = vsel %vm4533, %v4535, %v4531
      %v4537 = vmul.f32 1.0, %v4536
      %v4538 = vrcp.pop %v4452
      %v4539 = vmul.f32 %v4452, %v4538
      %v4540 = vsub.f32 1.0, %v4539
      %v4541 = vmul.f32 %v4538, %v4540
      %v4542 = vadd.f32 %v4538, %v4541
      %vm4543 = vweird.f32 %v4452
      %vm4544 = vweird.f32 %v4538
      %vm4545 = vmor %vm4543, %vm4544
      %v4546 = vsel %vm4545, %v4538, %v4542
      %v4547 = vand.u32 2147483647, %v4452
      %vm4548 = vcmp.eq.f32.partialorder %v4547, 8.507059e+37
      %v4549 = vand.u32 %v4452, 2147483648
      %v4550 = vor.u32 1.1754944e-38, %v4549
      %v4551 = vsel %vm4548, %v4550, %v4546
      %v4552 = vmul.f32 1.0, %v4551
      %v4553 = vrcp.pop %v4453
      %v4554 = vmul.f32 %v4453, %v4553
      %v4555 = vsub.f32 1.0, %v4554
      %v4556 = vmul.f32 %v4553, %v4555
      %v4557 = vadd.f32 %v4553, %v4556
      %vm4558 = vweird.f32 %v4453
      %vm4559 = vweird.f32 %v4553
      %vm4560 = vmor %vm4558, %vm4559
      %v4561 = vsel %vm4560, %v4553, %v4557
      %v4562 = vand.u32 2147483647, %v4453
      %vm4563 = vcmp.eq.f32.partialorder %v4562, 8.507059e+37
      %v4564 = vand.u32 %v4453, 2147483648
      %v4565 = vor.u32 1.1754944e-38, %v4564
      %v4566 = vsel %vm4563, %v4565, %v4561
      %v4567 = vmul.f32 1.0, %v4566
      %v4568 = vrcp.pop %v4454
      %v4569 = vmul.f32 %v4454, %v4568
      %v4570 = vsub.f32 1.0, %v4569
      %v4571 = vmul.f32 %v4568, %v4570
      %v4572 = vadd.f32 %v4568, %v4571
      %vm4573 = vweird.f32 %v4454
      %vm4574 = vweird.f32 %v4568
      %vm4575 = vmor %vm4573, %vm4574
      %v4576 = vsel %vm4575, %v4568, %v4572
      %v4577 = vand.u32 2147483647, %v4454
      %vm4578 = vcmp.eq.f32.partialorder %v4577, 8.507059e+37
      %v4579 = vand.u32 %v4454, 2147483648
      %v4580 = vor.u32 1.1754944e-38, %v4579
      %v4581 = vsel %vm4578, %v4580, %v4576
      %v4582 = vmul.f32 1.0, %v4581
      %v4583 = vrcp.pop %v4455
      %v4584 = vmul.f32 %v4455, %v4583
      %v4585 = vsub.f32 1.0, %v4584
      %v4586 = vmul.f32 %v4583, %v4585
      %v4587 = vadd.f32 %v4583, %v4586
      %vm4588 = vweird.f32 %v4455
      %vm4589 = vweird.f32 %v4583
      %vm4590 = vmor %vm4588, %vm4589
      %v4591 = vsel %vm4590, %v4583, %v4587
      %v4592 = vand.u32 2147483647, %v4455
      %vm4593 = vcmp.eq.f32.partialorder %v4592, 8.507059e+37
      %v4594 = vand.u32 %v4455, 2147483648
      %v4595 = vor.u32 1.1754944e-38, %v4594
      %v4596 = vsel %vm4593, %v4595, %v4591
      %v4597 = vmul.f32 1.0, %v4596
      %v4598 = vrcp.pop %v4456
      %v4599 = vmul.f32 %v4456, %v4598
      %v4600 = vsub.f32 1.0, %v4599
      %v4601 = vmul.f32 %v4598, %v4600
      %v4602 = vadd.f32 %v4598, %v4601
      %vm4603 = vweird.f32 %v4456
      %vm4604 = vweird.f32 %v4598
      %vm4605 = vmor %vm4603, %vm4604
      %v4606 = vsel %vm4605, %v4598, %v4602
      %v4607 = vand.u32 2147483647, %v4456
      %vm4608 = vcmp.eq.f32.partialorder %v4607, 8.507059e+37
      %v4609 = vand.u32 %v4456, 2147483648
      %v4610 = vor.u32 1.1754944e-38, %v4609
      %v4611 = vsel %vm4608, %v4610, %v4606
      %v4612 = vmul.f32 1.0, %v4611
      %v4613 = vrcp.pop %v4457
      %v4614 = vmul.f32 %v4457, %v4613
      %v4615 = vsub.f32 1.0, %v4614
      %v4616 = vmul.f32 %v4613, %v4615
      %v4617 = vadd.f32 %v4613, %v4616
      %vm4618 = vweird.f32 %v4457
      %vm4619 = vweird.f32 %v4613
      %vm4620 = vmor %vm4618, %vm4619
      %v4621 = vsel %vm4620, %v4613, %v4617
      %v4622 = vand.u32 2147483647, %v4457
      %vm4623 = vcmp.eq.f32.partialorder %v4622, 8.507059e+37
      %v4624 = vand.u32 %v4457, 2147483648
      %v4625 = vor.u32 1.1754944e-38, %v4624
      %v4626 = vsel %vm4623, %v4625, %v4621
      %v4627 = vmul.f32 1.0, %v4626
      %v4628 = vrcp.pop %v4458
      %v4629 = vmul.f32 %v4458, %v4628
      %v4630 = vsub.f32 1.0, %v4629
      %v4631 = vmul.f32 %v4628, %v4630
      %v4632 = vadd.f32 %v4628, %v4631
      %vm4633 = vweird.f32 %v4458
      %vm4634 = vweird.f32 %v4628
      %vm4635 = vmor %vm4633, %vm4634
      %v4636 = vsel %vm4635, %v4628, %v4632
      %v4637 = vand.u32 2147483647, %v4458
      %vm4638 = vcmp.eq.f32.partialorder %v4637, 8.507059e+37
      %v4639 = vand.u32 %v4458, 2147483648
      %v4640 = vor.u32 1.1754944e-38, %v4639
      %v4641 = vsel %vm4638, %v4640, %v4636
      %v4642 = vmul.f32 1.0, %v4641
      %v4643 = vrcp.pop %v4459
      %v4644 = vmul.f32 %v4459, %v4643
      %v4645 = vsub.f32 1.0, %v4644
      %v4646 = vmul.f32 %v4643, %v4645
      %v4647 = vadd.f32 %v4643, %v4646
      %vm4648 = vweird.f32 %v4459
      %vm4649 = vweird.f32 %v4643
      %vm4650 = vmor %vm4648, %vm4649
      %v4651 = vsel %vm4650, %v4643, %v4647
      %v4652 = vand.u32 2147483647, %v4459
      %vm4653 = vcmp.eq.f32.partialorder %v4652, 8.507059e+37
      %v4654 = vand.u32 %v4459, 2147483648
      %v4655 = vor.u32 1.1754944e-38, %v4654
      %v4656 = vsel %vm4653, %v4655, %v4651
      %v4657 = vmul.f32 1.0, %v4656
      %v4658 = vrcp.pop %v4460
      %v4659 = vmul.f32 %v4460, %v4658
      %v4660 = vsub.f32 1.0, %v4659
      %v4661 = vmul.f32 %v4658, %v4660
      %v4662 = vadd.f32 %v4658, %v4661
      %vm4663 = vweird.f32 %v4460
      %vm4664 = vweird.f32 %v4658
      %vm4665 = vmor %vm4663, %vm4664
      %v4666 = vsel %vm4665, %v4658, %v4662
      %v4667 = vand.u32 2147483647, %v4460
      %vm4668 = vcmp.eq.f32.partialorder %v4667, 8.507059e+37
      %v4669 = vand.u32 %v4460, 2147483648
      %v4670 = vor.u32 1.1754944e-38, %v4669
      %v4671 = vsel %vm4668, %v4670, %v4666
      %v4672 = vmul.f32 1.0, %v4671
      %v4673 = vrcp.pop %v4461
      %v4674 = vmul.f32 %v4461, %v4673
      %v4675 = vsub.f32 1.0, %v4674
      %v4676 = vmul.f32 %v4673, %v4675
      %v4677 = vadd.f32 %v4673, %v4676
      %vm4678 = vweird.f32 %v4461
      %vm4679 = vweird.f32 %v4673
      %vm4680 = vmor %vm4678, %vm4679
      %v4681 = vsel %vm4680, %v4673, %v4677
      %v4682 = vand.u32 2147483647, %v4461
      %vm4683 = vcmp.eq.f32.partialorder %v4682, 8.507059e+37
      %v4684 = vand.u32 %v4461, 2147483648
      %v4685 = vor.u32 1.1754944e-38, %v4684
      %v4686 = vsel %vm4683, %v4685, %v4681
      %v4687 = vmul.f32 1.0, %v4686
      %v4688 = vrcp.pop %v4462
      %v4689 = vmul.f32 %v4462, %v4688
      %v4690 = vsub.f32 1.0, %v4689
      %v4691 = vmul.f32 %v4688, %v4690
      %v4692 = vadd.f32 %v4688, %v4691
      %vm4693 = vweird.f32 %v4462
      %vm4694 = vweird.f32 %v4688
      %vm4695 = vmor %vm4693, %vm4694
      %v4696 = vsel %vm4695, %v4688, %v4692
      %v4697 = vand.u32 2147483647, %v4462
      %vm4698 = vcmp.eq.f32.partialorder %v4697, 8.507059e+37
      %v4699 = vand.u32 %v4462, 2147483648
      %v4700 = vor.u32 1.1754944e-38, %v4699
      %v4701 = vsel %vm4698, %v4700, %v4696
      %v4702 = vmul.f32 1.0, %v4701
      %v4703 = vmul.f32 %v4477, 1.0614054
      %v4704 = vmul.f32 %v4492, 1.0614054
      %v4705 = vmul.f32 %v4507, 1.0614054
      %v4706 = vmul.f32 %v4522, 1.0614054
      %v4707 = vmul.f32 %v4537, 1.0614054
      %v4708 = vmul.f32 %v4552, 1.0614054
      %v4709 = vmul.f32 %v4567, 1.0614054
      %v4710 = vmul.f32 %v4582, 1.0614054
      %v4711 = vmul.f32 %v4597, 1.0614054
      %v4712 = vmul.f32 %v4612, 1.0614054
      %v4713 = vmul.f32 %v4627, 1.0614054
      %v4714 = vmul.f32 %v4642, 1.0614054
      %v4715 = vmul.f32 %v4657, 1.0614054
      %v4716 = vmul.f32 %v4672, 1.0614054
      %v4717 = vmul.f32 %v4687, 1.0614054
      %v4718 = vmul.f32 %v4702, 1.0614054
      %v4719 = vadd.f32 %v4703, -1.4531521
      %v4720 = vadd.f32 %v4704, -1.4531521
      %v4721 = vadd.f32 %v4705, -1.4531521
      %v4722 = vadd.f32 %v4706, -1.4531521
      %v4723 = vadd.f32 %v4707, -1.4531521
      %v4724 = vadd.f32 %v4708, -1.4531521
      %v4725 = vadd.f32 %v4709, -1.4531521
      %v4726 = vadd.f32 %v4710, -1.4531521
      %v4727 = vadd.f32 %v4711, -1.4531521
      %v4728 = vadd.f32 %v4712, -1.4531521
      %v4729 = vadd.f32 %v4713, -1.4531521
      %v4730 = vadd.f32 %v4714, -1.4531521
      %v4731 = vadd.f32 %v4715, -1.4531521
      %v4732 = vadd.f32 %v4716, -1.4531521
      %v4733 = vadd.f32 %v4717, -1.4531521
      %v4734 = vadd.f32 %v4718, -1.4531521
      %v4735 = vmul.f32 %v4719, %v4477
      %v4736 = vmul.f32 %v4720, %v4492
      %v4737 = vmul.f32 %v4721, %v4507
      %v4738 = vmul.f32 %v4722, %v4522
      %v4739 = vmul.f32 %v4723, %v4537
      %v4740 = vmul.f32 %v4724, %v4552
      %v4741 = vmul.f32 %v4725, %v4567
      %v4742 = vmul.f32 %v4726, %v4582
      %v4743 = vmul.f32 %v4727, %v4597
      %v4744 = vmul.f32 %v4728, %v4612
      %v4745 = vmul.f32 %v4729, %v4627
      %v4746 = vmul.f32 %v4730, %v4642
      %v4747 = vmul.f32 %v4731, %v4657
      %v4748 = vmul.f32 %v4732, %v4672
      %v4749 = vmul.f32 %v4733, %v4687
      %v4750 = vmul.f32 %v4734, %v4702
      %v4751 = vadd.f32 %v4735, 1.4214138
      %v4752 = vadd.f32 %v4736, 1.4214138
      %v4753 = vadd.f32 %v4737, 1.4214138
      %v4754 = vadd.f32 %v4738, 1.4214138
      %v4755 = vadd.f32 %v4739, 1.4214138
      %v4756 = vadd.f32 %v4740, 1.4214138
      %v4757 = vadd.f32 %v4741, 1.4214138
      %v4758 = vadd.f32 %v4742, 1.4214138
      %v4759 = vadd.f32 %v4743, 1.4214138
      %v4760 = vadd.f32 %v4744, 1.4214138
      %v4761 = vadd.f32 %v4745, 1.4214138
      %v4762 = vadd.f32 %v4746, 1.4214138
      %v4763 = vadd.f32 %v4747, 1.4214138
      %v4764 = vadd.f32 %v4748, 1.4214138
      %v4765 = vadd.f32 %v4749, 1.4214138
      %v4766 = vadd.f32 %v4750, 1.4214138
      %v4767 = vmul.f32 %v4751, %v4477
      %v4768 = vmul.f32 %v4752, %v4492
      %v4769 = vmul.f32 %v4753, %v4507
      %v4770 = vmul.f32 %v4754, %v4522
      %v4771 = vmul.f32 %v4755, %v4537
      %v4772 = vmul.f32 %v4756, %v4552
      %v4773 = vmul.f32 %v4757, %v4567
      %v4774 = vmul.f32 %v4758, %v4582
      %v4775 = vmul.f32 %v4759, %v4597
      %v4776 = vmul.f32 %v4760, %v4612
      %v4777 = vmul.f32 %v4761, %v4627
      %v4778 = vmul.f32 %v4762, %v4642
      %v4779 = vmul.f32 %v4763, %v4657
      %v4780 = vmul.f32 %v4764, %v4672
      %v4781 = vmul.f32 %v4765, %v4687
      %v4782 = vmul.f32 %v4766, %v4702
      %v4783 = vadd.f32 %v4767, -0.28449672
      %v4784 = vadd.f32 %v4768, -0.28449672
      %v4785 = vadd.f32 %v4769, -0.28449672
      %v4786 = vadd.f32 %v4770, -0.28449672
      %v4787 = vadd.f32 %v4771, -0.28449672
      %v4788 = vadd.f32 %v4772, -0.28449672
      %v4789 = vadd.f32 %v4773, -0.28449672
      %v4790 = vadd.f32 %v4774, -0.28449672
      %v4791 = vadd.f32 %v4775, -0.28449672
      %v4792 = vadd.f32 %v4776, -0.28449672
      %v4793 = vadd.f32 %v4777, -0.28449672
      %v4794 = vadd.f32 %v4778, -0.28449672
      %v4795 = vadd.f32 %v4779, -0.28449672
      %v4796 = vadd.f32 %v4780, -0.28449672
      %v4797 = vadd.f32 %v4781, -0.28449672
      %v4798 = vadd.f32 %v4782, -0.28449672
      %v4799 = vmul.f32 %v4783, %v4477
      %v4800 = vmul.f32 %v4784, %v4492
      %v4801 = vmul.f32 %v4785, %v4507
      %v4802 = vmul.f32 %v4786, %v4522
      %v4803 = vmul.f32 %v4787, %v4537
      %v4804 = vmul.f32 %v4788, %v4552
      %v4805 = vmul.f32 %v4789, %v4567
      %v4806 = vmul.f32 %v4790, %v4582
      %v4807 = vmul.f32 %v4791, %v4597
      %v4808 = vmul.f32 %v4792, %v4612
      %v4809 = vmul.f32 %v4793, %v4627
      %v4810 = vmul.f32 %v4794, %v4642
      %v4811 = vmul.f32 %v4795, %v4657
      %v4812 = vmul.f32 %v4796, %v4672
      %v4813 = vmul.f32 %v4797, %v4687
      %v4814 = vmul.f32 %v4798, %v4702
      %v4815 = vadd.f32 %v4799, 0.2548296
      %v4816 = vadd.f32 %v4800, 0.2548296
      %v4817 = vadd.f32 %v4801, 0.2548296
      %v4818 = vadd.f32 %v4802, 0.2548296
      %v4819 = vadd.f32 %v4803, 0.2548296
      %v4820 = vadd.f32 %v4804, 0.2548296
      %v4821 = vadd.f32 %v4805, 0.2548296
      %v4822 = vadd.f32 %v4806, 0.2548296
      %v4823 = vadd.f32 %v4807, 0.2548296
      %v4824 = vadd.f32 %v4808, 0.2548296
      %v4825 = vadd.f32 %v4809, 0.2548296
      %v4826 = vadd.f32 %v4810, 0.2548296
      %v4827 = vadd.f32 %v4811, 0.2548296
      %v4828 = vadd.f32 %v4812, 0.2548296
      %v4829 = vadd.f32 %v4813, 0.2548296
      %v4830 = vadd.f32 %v4814, 0.2548296
      %v4831 = vmul.f32 %v4815, %v4477
      %v4832 = vmul.f32 %v4816, %v4492
      %v4833 = vmul.f32 %v4817, %v4507
      %v4834 = vmul.f32 %v4818, %v4522
      %v4835 = vmul.f32 %v4819, %v4537
      %v4836 = vmul.f32 %v4820, %v4552
      %v4837 = vmul.f32 %v4821, %v4567
      %v4838 = vmul.f32 %v4822, %v4582
      %v4839 = vmul.f32 %v4823, %v4597
      %v4840 = vmul.f32 %v4824, %v4612
      %v4841 = vmul.f32 %v4825, %v4627
      %v4842 = vmul.f32 %v4826, %v4642
      %v4843 = vmul.f32 %v4827, %v4657
      %v4844 = vmul.f32 %v4828, %v4672
      %v4845 = vmul.f32 %v4829, %v4687
      %v4846 = vmul.f32 %v4830, %v4702
      %v4847 = vsub.f32 0.0, %v4415
      %v4848 = vsub.f32 0.0, %v4416
      %v4849 = vsub.f32 0.0, %v4417
      %v4850 = vsub.f32 0.0, %v4418
      %v4851 = vsub.f32 0.0, %v4419
      %v4852 = vsub.f32 0.0, %v4420
      %v4853 = vsub.f32 0.0, %v4421
      %v4854 = vsub.f32 0.0, %v4422
      %v4855 = vsub.f32 0.0, %v4423
      %v4856 = vsub.f32 0.0, %v4424
      %v4857 = vsub.f32 0.0, %v4425
      %v4858 = vsub.f32 0.0, %v4426
      %v4859 = vsub.f32 0.0, %v4427
      %v4860 = vsub.f32 0.0, %v4428
      %v4861 = vsub.f32 0.0, %v4429
      %v4862 = vsub.f32 0.0, %v4430
      %v4863 = vmul.f32 %v4847, %v4415
      %v4864 = vmul.f32 %v4848, %v4416
      %v4865 = vmul.f32 %v4849, %v4417
      %v4866 = vmul.f32 %v4850, %v4418
      %v4867 = vmul.f32 %v4851, %v4419
      %v4868 = vmul.f32 %v4852, %v4420
      %v4869 = vmul.f32 %v4853, %v4421
      %v4870 = vmul.f32 %v4854, %v4422
      %v4871 = vmul.f32 %v4855, %v4423
      %v4872 = vmul.f32 %v4856, %v4424
      %v4873 = vmul.f32 %v4857, %v4425
      %v4874 = vmul.f32 %v4858, %v4426
      %v4875 = vmul.f32 %v4859, %v4427
      %v4876 = vmul.f32 %v4860, %v4428
      %v4877 = vmul.f32 %v4861, %v4429
      %v4878 = vmul.f32 %v4862, %v4430
      %v4879 = vmul.f32 %v4863, 1.442695
      %v4880 = vpow.pop %v4879
      %v4881 = vmul.f32 %v4864, 1.442695
      %v4882 = vpow.pop %v4881
      %v4883 = vmul.f32 %v4865, 1.442695
      %v4884 = vpow.pop %v4883
      %v4885 = vmul.f32 %v4866, 1.442695
      %v4886 = vpow.pop %v4885
      %v4887 = vmul.f32 %v4867, 1.442695
      %v4888 = vpow.pop %v4887
      %v4889 = vmul.f32 %v4868, 1.442695
      %v4890 = vpow.pop %v4889
      %v4891 = vmul.f32 %v4869, 1.442695
      %v4892 = vpow.pop %v4891
      %v4893 = vmul.f32 %v4870, 1.442695
      %v4894 = vpow.pop %v4893
      %v4895 = vmul.f32 %v4871, 1.442695
      %v4896 = vpow.pop %v4895
      %v4897 = vmul.f32 %v4872, 1.442695
      %v4898 = vpow.pop %v4897
      %v4899 = vmul.f32 %v4873, 1.442695
      %v4900 = vpow.pop %v4899
      %v4901 = vmul.f32 %v4874, 1.442695
      %v4902 = vpow.pop %v4901
      %v4903 = vmul.f32 %v4875, 1.442695
      %v4904 = vpow.pop %v4903
      %v4905 = vmul.f32 %v4876, 1.442695
      %v4906 = vpow.pop %v4905
      %v4907 = vmul.f32 %v4877, 1.442695
      %v4908 = vpow.pop %v4907
      %v4909 = vmul.f32 %v4878, 1.442695
      %v4910 = vpow.pop %v4909
      %v4911 = vmul.f32 %v4831, %v4880
      %v4912 = vmul.f32 %v4832, %v4882
      %v4913 = vmul.f32 %v4833, %v4884
      %v4914 = vmul.f32 %v4834, %v4886
      %v4915 = vmul.f32 %v4835, %v4888
      %v4916 = vmul.f32 %v4836, %v4890
      %v4917 = vmul.f32 %v4837, %v4892
      %v4918 = vmul.f32 %v4838, %v4894
      %v4919 = vmul.f32 %v4839, %v4896
      %v4920 = vmul.f32 %v4840, %v4898
      %v4921 = vmul.f32 %v4841, %v4900
      %v4922 = vmul.f32 %v4842, %v4902
      %v4923 = vmul.f32 %v4843, %v4904
      %v4924 = vmul.f32 %v4844, %v4906
      %v4925 = vmul.f32 %v4845, %v4908
      %v4926 = vmul.f32 %v4846, %v4910
      %v4927 = vsub.f32 1.0, %v4911
      %v4928 = vsub.f32 1.0, %v4912
      %v4929 = vsub.f32 1.0, %v4913
      %v4930 = vsub.f32 1.0, %v4914
      %v4931 = vsub.f32 1.0, %v4915
      %v4932 = vsub.f32 1.0, %v4916
      %v4933 = vsub.f32 1.0, %v4917
      %v4934 = vsub.f32 1.0, %v4918
      %v4935 = vsub.f32 1.0, %v4919
      %v4936 = vsub.f32 1.0, %v4920
      %v4937 = vsub.f32 1.0, %v4921
      %v4938 = vsub.f32 1.0, %v4922
      %v4939 = vsub.f32 1.0, %v4923
      %v4940 = vsub.f32 1.0, %v4924
      %v4941 = vsub.f32 1.0, %v4925
      %v4942 = vsub.f32 1.0, %v4926
      %vm4943 = vcmp.lt.f32.partialorder %v4399, 0.0
      %vm4944 = vcmp.lt.f32.partialorder %v4400, 0.0
      %vm4945 = vcmp.lt.f32.partialorder %v4401, 0.0
      %vm4946 = vcmp.lt.f32.partialorder %v4402, 0.0
      %vm4947 = vcmp.lt.f32.partialorder %v4403, 0.0
      %vm4948 = vcmp.lt.f32.partialorder %v4404, 0.0
      %vm4949 = vcmp.lt.f32.partialorder %v4405, 0.0
      %vm4950 = vcmp.lt.f32.partialorder %v4406, 0.0
      %vm4951 = vcmp.lt.f32.partialorder %v4407, 0.0
      %vm4952 = vcmp.lt.f32.partialorder %v4408, 0.0
      %vm4953 = vcmp.lt.f32.partialorder %v4409, 0.0
      %vm4954 = vcmp.lt.f32.partialorder %v4410, 0.0
      %vm4955 = vcmp.lt.f32.partialorder %v4411, 0.0
      %vm4956 = vcmp.lt.f32.partialorder %v4412, 0.0
      %vm4957 = vcmp.lt.f32.partialorder %v4413, 0.0
      %vm4958 = vcmp.lt.f32.partialorder %v4414, 0.0
      %v4959 = vsub.f32 0.0, %v4927
      %v4960 = vsub.f32 0.0, %v4928
      %v4961 = vsub.f32 0.0, %v4929
      %v4962 = vsub.f32 0.0, %v4930
      %v4963 = vsub.f32 0.0, %v4931
      %v4964 = vsub.f32 0.0, %v4932
      %v4965 = vsub.f32 0.0, %v4933
      %v4966 = vsub.f32 0.0, %v4934
      %v4967 = vsub.f32 0.0, %v4935
      %v4968 = vsub.f32 0.0, %v4936
      %v4969 = vsub.f32 0.0, %v4937
      %v4970 = vsub.f32 0.0, %v4938
      %v4971 = vsub.f32 0.0, %v4939
      %v4972 = vsub.f32 0.0, %v4940
      %v4973 = vsub.f32 0.0, %v4941
      %v4974 = vsub.f32 0.0, %v4942
      %v4975 = vsel %vm4943, %v4959, %v4927
      %v4976 = vsel %vm4944, %v4960, %v4928
      %v4977 = vsel %vm4945, %v4961, %v4929
      %v4978 = vsel %vm4946, %v4962, %v4930
      %v4979 = vsel %vm4947, %v4963, %v4931
      %v4980 = vsel %vm4948, %v4964, %v4932
      %v4981 = vsel %vm4949, %v4965, %v4933
      %v4982 = vsel %vm4950, %v4966, %v4934
      %v4983 = vsel %vm4951, %v4967, %v4935
      %v4984 = vsel %vm4952, %v4968, %v4936
      %v4985 = vsel %vm4953, %v4969, %v4937
      %v4986 = vsel %vm4954, %v4970, %v4938
      %v4987 = vsel %vm4955, %v4971, %v4939
      %v4988 = vsel %vm4956, %v4972, %v4940
      %v4989 = vsel %vm4957, %v4973, %v4941
      %v4990 = vsel %vm4958, %v4974, %v4942
      %v4991 = vadd.f32 %v4975, 1.0
      %v4992 = vadd.f32 %v4976, 1.0
      %v4993 = vadd.f32 %v4977, 1.0
      %v4994 = vadd.f32 %v4978, 1.0
      %v4995 = vadd.f32 %v4979, 1.0
      %v4996 = vadd.f32 %v4980, 1.0
      %v4997 = vadd.f32 %v4981, 1.0
      %v4998 = vadd.f32 %v4982, 1.0
      %v4999 = vadd.f32 %v4983, 1.0
      %v5000 = vadd.f32 %v4984, 1.0
      %v5001 = vadd.f32 %v4985, 1.0
      %v5002 = vadd.f32 %v4986, 1.0
      %v5003 = vadd.f32 %v4987, 1.0
      %v5004 = vadd.f32 %v4988, 1.0
      %v5005 = vadd.f32 %v4989, 1.0
      %v5006 = vadd.f32 %v4990, 1.0
      %v5007 = vmul.f32 %v4383, %v4991
      %v5008 = vmul.f32 %v4384, %v4992
      %v5009 = vmul.f32 %v4385, %v4993
      %v5010 = vmul.f32 %v4386, %v4994
      %v5011 = vmul.f32 %v4387, %v4995
      %v5012 = vmul.f32 %v4388, %v4996
      %v5013 = vmul.f32 %v4389, %v4997
      %v5014 = vmul.f32 %v4390, %v4998
      %v5015 = vmul.f32 %v4391, %v4999
      %v5016 = vmul.f32 %v4392, %v5000
      %v5017 = vmul.f32 %v4393, %v5001
      %v5018 = vmul.f32 %v4394, %v5002
      %v5019 = vmul.f32 %v4395, %v5003
      %v5020 = vmul.f32 %v4396, %v5004
      %v5021 = vmul.f32 %v4397, %v5005
      %v5022 = vmul.f32 %v4398, %v5006
      %v5023 = vpack.c.bf16 %v5008, %v5007
      %v5024 = vpack.c.bf16 %v5010, %v5009
      %v5025 = vpack.c.bf16 %v5012, %v5011
      %v5026 = vpack.c.bf16 %v5014, %v5013
      %v5027 = vpack.c.bf16 %v5016, %v5015
      %v5028 = vpack.c.bf16 %v5018, %v5017
      %v5029 = vpack.c.bf16 %v5020, %v5019
      %v5030 = vpack.c.bf16 %v5022, %v5021
      %v5031 = vld [vmem:[%s13] sm:$0xf]
      %v5032 = vld [vmem:[%s13 + $0x4] sm:$0xf]
      %v5033 = vld [vmem:[%s13 + $0x8] sm:$0xf]
      %v5034 = vld [vmem:[%s13 + $0xc] sm:$0xf]
      %v5035 = vld [vmem:[%s13 + $0x10] sm:$0xf]
      %v5036 = vld [vmem:[%s13 + $0x14] sm:$0xf]
      %v5037 = vld [vmem:[%s13 + $0x18] sm:$0xf]
      %v5038 = vld [vmem:[%s13 + $0x1c] sm:$0xf]
      %v5039 = vld [vmem:[%s14] sm:$0x1]
      %v5041 = vperm.slane %v5039, 0
      %v5051 = vunpack.c.l.b16 %v5031
      %v5052 = vunpack.c.l.b16 %v5032
      %v5053 = vunpack.c.l.b16 %v5033
      %v5054 = vunpack.c.l.b16 %v5034
      %v5055 = vunpack.c.l.b16 %v5035
      %v5056 = vunpack.c.l.b16 %v5036
      %v5057 = vunpack.c.l.b16 %v5037
      %v5058 = vunpack.c.l.b16 %v5038
      %v5059 = vpack.c.b16 %v5052, %v5051
      %v5060 = vpack.c.b16 %v5054, %v5053
      %v5061 = vpack.c.b16 %v5056, %v5055
      %v5062 = vpack.c.b16 %v5058, %v5057
      %vm5067 = vcmask 523264
      %v5069 = vsel %vm5067, %v5023, 0
      %v5072 = vsel %vm5067, %v5024, 0
      %v5075 = vsel %vm5067, %v5025, 0
      %v5078 = vsel %vm5067, %v5026, 0
      %v5081 = vsel %vm5067, %v5027, 0
      %v5084 = vsel %vm5067, %v5028, 0
      %v5087 = vsel %vm5067, %v5029, 0
      %v5090 = vsel %vm5067, %v5030, 0
      %5092 = vmatpush.bf16.msra.mxu0 0
      %5093 = vmatpush.bf16.msra.mxu0 0
      %5094 = vmatpush.bf16.msra.mxu0 0
      %5095 = vmatpush.bf16.msra.mxu0 0
      %5096 = vmatpush.bf16.msra.mxu0 %v5062
      %5097 = vmatpush.bf16.msra.mxu0 %v5061
      %5098 = vmatpush.bf16.msra.mxu0 %v5060
      %5099 = vmatpush.bf16.msra.mxu0 %v5059
      %5100 = vmatmul.bf16.gmra.mxu0 %v5069
      %v5101 = vpop.f32.mrf.mxu0
      %v5102 = vadd.f32 %v5041, %v5101
      %v5103 = vpop.f32.mrf.mxu0
      %v5104 = vadd.f32 %v5041, %v5103
      %5105 = vmatmul.bf16.gmra.mxu0 %v5072
      %v5106 = vpop.f32.mrf.mxu0
      %v5107 = vadd.f32 %v5041, %v5106
      %v5108 = vpop.f32.mrf.mxu0
      %v5109 = vadd.f32 %v5041, %v5108
      %5110 = vmatmul.bf16.gmra.mxu0 %v5075
      %v5111 = vpop.f32.mrf.mxu0
      %v5112 = vadd.f32 %v5041, %v5111
      %v5113 = vpop.f32.mrf.mxu0
      %v5114 = vadd.f32 %v5041, %v5113
      %5115 = vmatmul.bf16.gmra.mxu0 %v5078
      %v5116 = vpop.f32.mrf.mxu0
      %v5117 = vadd.f32 %v5041, %v5116
      %v5118 = vpop.f32.mrf.mxu0
      %v5119 = vadd.f32 %v5041, %v5118
      %5120 = vmatmul.bf16.gmra.mxu0 %v5081
      %v5121 = vpop.f32.mrf.mxu0
      %v5122 = vadd.f32 %v5041, %v5121
      %v5123 = vpop.f32.mrf.mxu0
      %v5124 = vadd.f32 %v5041, %v5123
      %5125 = vmatmul.bf16.gmra.mxu0 %v5084
      %v5126 = vpop.f32.mrf.mxu0
      %v5127 = vadd.f32 %v5041, %v5126
      %v5128 = vpop.f32.mrf.mxu0
      %v5129 = vadd.f32 %v5041, %v5128
      %5130 = vmatmul.bf16.gmra.mxu0 %v5087
      %v5131 = vpop.f32.mrf.mxu0
      %v5132 = vadd.f32 %v5041, %v5131
      %v5133 = vpop.f32.mrf.mxu0
      %v5134 = vadd.f32 %v5041, %v5133
      %5135 = vmatmul.bf16.gmra.mxu0 %v5090
      %v5136 = vpop.f32.mrf.mxu0
      %v5137 = vadd.f32 %v5041, %v5136
      %v5138 = vpop.f32.mrf.mxu0
      %v5139 = vadd.f32 %v5041, %v5138
      %5140 = vdwg.mxu0
      %v5141 = vadd.f32 %v613, %v5102
      %v5142 = vadd.f32 %v614, %v5104
      %v5143 = vadd.f32 %v615, %v5107
      %v5144 = vadd.f32 %v616, %v5109
      %v5145 = vadd.f32 %v617, %v5112
      %v5146 = vadd.f32 %v618, %v5114
      %v5147 = vadd.f32 %v619, %v5117
      %v5148 = vadd.f32 %v620, %v5119
      %v5149 = vadd.f32 %v621, %v5122
      %v5150 = vadd.f32 %v622, %v5124
      %v5151 = vadd.f32 %v623, %v5127
      %v5152 = vadd.f32 %v624, %v5129
      %v5153 = vadd.f32 %v625, %v5132
      %v5154 = vadd.f32 %v626, %v5134
      %v5155 = vadd.f32 %v627, %v5137
      %v5156 = vadd.f32 %v628, %v5139
      %5157 = vst.msk [vmem:[%s610] sm:$0xff] %vm631, %v5141
      %5158 = vst.msk [vmem:[%s610 + $0x8] sm:$0xff] %vm631, %v5142
      %5159 = vst.msk [vmem:[%s610 + $0x10] sm:$0xff] %vm631, %v5143
      %5160 = vst.msk [vmem:[%s610 + $0x18] sm:$0xff] %vm631, %v5144
      %5161 = vst.msk [vmem:[%s610 + $0x20] sm:$0xff] %vm631, %v5145
      %5162 = vst.msk [vmem:[%s610 + $0x28] sm:$0xff] %vm631, %v5146
      %5163 = vst.msk [vmem:[%s610 + $0x30] sm:$0xff] %vm631, %v5147
      %5164 = vst.msk [vmem:[%s610 + $0x38] sm:$0xff] %vm631, %v5148
      %5165 = vst.msk [vmem:[%s610 + $0x40] sm:$0xff] %vm631, %v5149
      %5166 = vst.msk [vmem:[%s610 + $0x48] sm:$0xff] %vm631, %v5150
      %5167 = vst.msk [vmem:[%s610 + $0x50] sm:$0xff] %vm631, %v5151
      %5168 = vst.msk [vmem:[%s610 + $0x58] sm:$0xff] %vm631, %v5152
      %5169 = vst.msk [vmem:[%s610 + $0x60] sm:$0xff] %vm631, %v5153
      %5170 = vst.msk [vmem:[%s610 + $0x68] sm:$0xff] %vm631, %v5154
      %5171 = vst.msk [vmem:[%s610 + $0x70] sm:$0xff] %vm631, %v5155
      %5172 = vst.msk [vmem:[%s610 + $0x78] sm:$0xff] %vm631, %v5156
      %s5173 = smul.u32 4, %s26
      %p5174 = scmp.lt.s32.totalorder %s5173, 15
      %s5175 = scalar_select %p5174, %s5173, 15
      %s5176 = smul.addr %s5175, 4
      %s5177 = smul.addr %s5176, 8
      %s5178 = scalar_lea.vmem %s15, %s5177
      // Predicated region
      $region81: #{rstb_forward.3} parent=79 // pred_check
        %p5179 = pneg %p393
      $region82: #{rstb_forward.3} parent=79 // pred_check_branch
        %5181 = sbr.rel (%p5179) target = $region84
      $region83: #{rstb_forward.3} parent=79 // pred_region
        %s5182 = smul.u32 4, %s26
      $region84: #{rstb_forward.3} parent=79 // pred_fallthru
        _
    $region80: #{rstb_forward.3} parent=5 // pred_fallthru
      _
    %p5183 = scmp.le.s32.totalorder 2, %s21
    // Predicated region
    $region85: #{rstb_forward.3} parent=5 // pred_check
      %p5184 = pneg %p5183
    $region86: #{rstb_forward.3} parent=5 // pred_check_branch
      %5186 = sbr.rel (%p5184) target = $region88
    $region87: #{rstb_forward.3} parent=5 // pred_region
      %s5187 = ssub.s32 %s21, 2
      // Predicated region
      $region89: #{rstb_forward.3} parent=87 // pred_check
        %p5188 = pneg %p399
      $region90: #{rstb_forward.3} parent=87 // pred_check_branch
        %5190 = sbr.rel (%p5188) target = $region92
      $region91: #{rstb_forward.3} parent=87 // pred_region
        %s5191 = smul.u32 4, %s27
        %p5192 = scmp.lt.s32.totalorder %s5191, 15
        %s5193 = scalar_select %p5192, %s5191, 15
        %s5194 = smul.addr %s5193, 4
        %s5195 = smul.addr %s5194, 8
        %s5196 = scalar_lea.vmem %s15, %s5195
      $region92: #{rstb_forward.3} parent=87 // pred_fallthru
        _
    $region88: #{rstb_forward.3} parent=5 // pred_fallthru
      _
  $region6: #{rstb_forward.3} parent=0 // loop_footer
    %s25 = sadd.s32 1, %s21
  $region7: #{rstb_forward.3} parent=0 // loop_footer_branch
    %20 = sbr.rel target = $region3
  $region8: #{rstb_forward.3} parent=0 // loop_exit
    _

</llo_original>
